<compile_context>
chip_gen: v5e
topology: v5e:2x2
jax: 0.10.0
libtpu: 0.0.40
codegen_flags: <defaults>
</compile_context>

<pallas_src>
import jax
import jax.numpy as jnp
from jax import lax
from jax.experimental import pallas as pl
from jax.experimental.pallas import tpu as pltpu

EPS = 1e-5

_COMPILER_PARAMS = pltpu.CompilerParams(
    dimension_semantics=("parallel",),
    vmem_limit_bytes=32 * 1024 * 1024,
)


# ----------------------------- Pallas kernels ------------------------------

def _matmul_stats_kernel(w_ref, x_ref, y_ref, psum_ref, psq_ref):
    """Conv-as-matmul tile: y = W @ patches, plus per-tile BN partial statistics."""
    y = jnp.dot(w_ref[...], x_ref[...], preferred_element_type=jnp.float32)
    y_ref[...] = y
    psum_ref[...] = jnp.sum(y, axis=1, keepdims=True)[None]      # (1, Cout, 1)
    psq_ref[...] = jnp.sum(y * y, axis=1, keepdims=True)[None]   # (1, Cout, 1)


def _matmul_bias_tanh_kernel(w_ref, x_ref, b_ref, o_ref):
    """Final conv tile: tanh(W @ patches + b)."""
    y = jnp.dot(w_ref[...], x_ref[...], preferred_element_type=jnp.float32)
    o_ref[...] = jnp.tanh(y + b_ref[...])


def _affine_relu_kernel(y_ref, s_ref, t_ref, o_ref):
    """BatchNorm apply (per-channel scale/shift) + ReLU."""
    o_ref[...] = jnp.maximum(y_ref[...] * s_ref[...] + t_ref[...], 0.0)


def _affine_add_kernel(y_ref, s_ref, t_ref, r_ref, o_ref):
    """BatchNorm apply + residual add (end of a ResnetBlock, no activation)."""
    o_ref[...] = y_ref[...] * s_ref[...] + t_ref[...] + r_ref[...]


# --------------------------- wrapper-side helpers ---------------------------

def _round_up(x, m):
    return ((x + m - 1) // m) * m


def _choose_tile(p):
    """Lane-dense pixel tile (multiple of 128) and padded pixel count."""
    ppad = _round_up(max(p, 1), 128)
    tp = min(512, ppad)
    ppad = _round_up(ppad, tp)
    return tp, ppad


def _pad_cols(a, ppad):
    p = a.shape[1]
    if ppad > p:
        a = jnp.pad(a, ((0, 0), (0, ppad - p)))
    return a


def _pad_hw(x, p, mode):
    """Pad the spatial (last two) axes of a (C, N, H, W) tensor."""
    return jnp.pad(x, ((0, 0), (0, 0), (p, p), (p, p)), mode=mode)


def _extract_patches(xp, k, stride):
    """(C, N, Hp, Wp) -> im2col patches (C*k*k, N*Ho*Wo), rows ordered (c, dy, dx)."""
    c, n, hp, wp = xp.shape
    ho = (hp - k) // stride + 1
    wo = (wp - k) // stride + 1
    taps = []
    for dy in range(k):
        for dx in range(k):
            taps.append(xp[:, :, dy:dy + stride * (ho - 1) + 1:stride,
                               dx:dx + stride * (wo - 1) + 1:stride])
    pat = jnp.stack(taps, axis=1)                 # (C, k*k, N, Ho, Wo)
    return pat.reshape(c * k * k, n * ho * wo), ho, wo


# ------------------------------- layer blocks -------------------------------

def _conv_bn_layer(xp, w_oihw, gamma, beta, *, k, stride, act, residual=None):
    """Conv (no bias) -> train-mode BatchNorm -> ReLU or residual add.

    xp:       (Cin, N, Hp, Wp) already padded (reflect or zero).
    w_oihw:   (Cout, Cin, k, k) PyTorch conv weight layout.
    residual: optional (Cout, N*Ho*Wo) tensor added after BN (no activation).
    Returns (Cout, N, Ho, Wo).
    """
    cin, n, hp, wp = xp.shape
    patches, ho, wo = _extract_patches(xp, k, stride)
    p_true = n * ho * wo
    cout = w_oihw.shape[0]
    kk = cin * k * k
    wmat = w_oihw.reshape(cout, kk)
    tp, ppad = _choose_tile(p_true)
    nt = ppad // tp
    xpad = _pad_cols(patches, ppad)   # zero cols contribute 0 to stats (no bias)

    tile_spec = pl.BlockSpec((cout, tp), lambda i: (0, i))
    w_spec = pl.BlockSpec((cout, kk), lambda i: (0, 0))        # resident weights
    x_spec = pl.BlockSpec((kk, tp), lambda i: (0, i))
    stat_spec = pl.BlockSpec((1, cout, 1), lambda i: (i, 0, 0))

    y_pad, psum, psq = pl.pallas_call(
        _matmul_stats_kernel,
        out_shape=(jax.ShapeDtypeStruct((cout, ppad), jnp.float32),
                   jax.ShapeDtypeStruct((nt, cout, 1), jnp.float32),
                   jax.ShapeDtypeStruct((nt, cout, 1), jnp.float32)),
        grid=(nt,),
        in_specs=[w_spec, x_spec],
        out_specs=(tile_spec, stat_spec, stat_spec),
        compiler_params=_COMPILER_PARAMS,
    )(wmat, xpad)

    # Exact training-mode BatchNorm statistics over all N*Ho*Wo pixels.
    mean = jnp.sum(psum, axis=0)[:, 0] / p_true
    msq = jnp.sum(psq, axis=0)[:, 0] / p_true
    var = msq - mean * mean                     # biased variance (PyTorch BN)
    scale = gamma * lax.rsqrt(var + EPS)
    shift = beta - mean * scale
    scale2 = scale[:, None]
    shift2 = shift[:, None]
    vec_spec = pl.BlockSpec((cout, 1), lambda i: (0, 0))

    if residual is None:
        assert act == "relu"
        out_pad = pl.pallas_call(
            _affine_relu_kernel,
            out_shape=jax.ShapeDtypeStruct((cout, ppad), jnp.float32),
            grid=(nt,),
            in_specs=[tile_spec, vec_spec, vec_spec],
            out_specs=tile_spec,
            compiler_params=_COMPILER_PARAMS,
        )(y_pad, scale2, shift2)
    else:
        assert act == "none"
        r_pad = _pad_cols(residual, ppad)
        out_pad = pl.pallas_call(
            _affine_add_kernel,
            out_shape=jax.ShapeDtypeStruct((cout, ppad), jnp.float32),
            grid=(nt,),
            in_specs=[tile_spec, vec_spec, vec_spec, tile_spec],
            out_specs=tile_spec,
            compiler_params=_COMPILER_PARAMS,
        )(y_pad, scale2, shift2, r_pad)

    return out_pad[:, :p_true].reshape(cout, n, ho, wo)


def _conv_transpose_bn_layer(x, w_iokk, gamma, beta, *, stride=2, padding=1,
                             output_padding=1, act="relu"):
    """ConvTranspose2d(k=3, s=2, p=1, op=1) -> BN -> ReLU, via dilate+pad+conv."""
    cin, n, h, w = x.shape
    k = w_iokk.shape[2]
    hd, wd = (h - 1) * stride + 1, (w - 1) * stride + 1
    xd = jnp.zeros((cin, n, hd, wd), x.dtype).at[:, :, ::stride, ::stride].set(x)
    lo = k - 1 - padding
    hi = k - 1 - padding + output_padding
    xdp = jnp.pad(xd, ((0, 0), (0, 0), (lo, hi), (lo, hi)))
    # equivalent direct-conv weight: flip spatially, swap in/out channel axes
    w_conv = jnp.transpose(w_iokk[:, :, ::-1, ::-1], (1, 0, 2, 3))
    return _conv_bn_layer(xdp, w_conv, gamma, beta, k=k, stride=1, act=act)


def _final_conv_tanh_layer(xp, w_oihw, bias, *, k):
    """Final 7x7 conv (with bias) + tanh fused in one kernel."""
    cin, n, hp, wp = xp.shape
    patches, ho, wo = _extract_patches(xp, k, 1)
    p_true = n * ho * wo
    cout = w_oihw.shape[0]
    kk = cin * k * k
    wmat = w_oihw.reshape(cout, kk)
    tp, ppad = _choose_tile(p_true)
    nt = ppad // tp
    xpad = _pad_cols(patches, ppad)

    out_pad = pl.pallas_call(
        _matmul_bias_tanh_kernel,
        out_shape=jax.ShapeDtypeStruct((cout, ppad), jnp.float32),
        grid=(nt,),
        in_specs=[pl.BlockSpec((cout, kk), lambda i: (0, 0)),
                  pl.BlockSpec((kk, tp), lambda i: (0, i)),
                  pl.BlockSpec((cout, 1), lambda i: (0, 0))],
        out_specs=pl.BlockSpec((cout, tp), lambda i: (0, i)),
        compiler_params=_COMPILER_PARAMS,
    )(wmat, xpad, bias[:, None])

    return out_pad[:, :p_true].reshape(cout, n, ho, wo)


# ------------------------------ full generator ------------------------------

def resnet_generator_forward(x_nchw, params, n_blocks):
    """ResnetGenerator forward (BatchNorm norm layer => use_bias=False, no dropout)."""
    h = jnp.transpose(x_nchw.astype(jnp.float32), (1, 0, 2, 3))   # (C, N, H, W)

    q = params["stem"]                                            # ReflectPad(3)+7x7
    h = _conv_bn_layer(_pad_hw(h, 3, "reflect"), q["w"], q["gamma"], q["beta"],
                       k=7, stride=1, act="relu")

    for i in range(2):                                            # downsampling
        q = params[f"down{i}"]
        h = _conv_bn_layer(_pad_hw(h, 1, "constant"), q["w"], q["gamma"], q["beta"],
                           k=3, stride=2, act="relu")

    for i in range(n_blocks):                                     # resnet blocks
        q = params[f"block{i}"]
        c, n, hh, ww = h.shape
        r = _conv_bn_layer(_pad_hw(h, 1, "reflect"), q["w1"], q["gamma1"], q["beta1"],
                           k=3, stride=1, act="relu")
        h = _conv_bn_layer(_pad_hw(r, 1, "reflect"), q["w2"], q["gamma2"], q["beta2"],
                           k=3, stride=1, act="none",
                           residual=h.reshape(c, n * hh * ww))

    for i in range(2):                                            # upsampling
        q = params[f"up{i}"]
        h = _conv_transpose_bn_layer(h, q["w"], q["gamma"], q["beta"])

    q = params["out"]                                             # ReflectPad(3)+7x7+tanh
    h = _final_conv_tanh_layer(_pad_hw(h, 3, "reflect"), q["w"], q["b"], k=7)
    return jnp.transpose(h, (1, 0, 2, 3))                         # back to NCHW


# ------------------------------ parameter init -------------------------------

def init_params(key, input_nc, output_nc, ngf, n_blocks):
    keys = list(jax.random.split(key, 64))
    it = iter(keys)

    def conv_w(cout, cin, k):
        s = 1.0 / float(cin * k * k) ** 0.5
        return jax.random.uniform(next(it), (cout, cin, k, k), jnp.float32, -s, s)

    def convt_w(cin, cout, k):  # PyTorch ConvTranspose2d weight: (Cin, Cout, k, k)
        s = 1.0 / float(cin * k * k) ** 0.5
        return jax.random.uniform(next(it), (cin, cout, k, k), jnp.float32, -s, s)

    def bn(c):
        g = 1.0 + 0.1 * jax.random.normal(next(it), (c,), jnp.float32)
        b = 0.1 * jax.random.normal(next(it), (c,), jnp.float32)
        return g, b

    params = {}
    g, b = bn(ngf)
    params["stem"] = dict(w=conv_w(ngf, input_nc, 7), gamma=g, beta=b)
    for i in range(2):
        mult = 2 ** i
        g, b = bn(ngf * mult * 2)
        params[f"down{i}"] = dict(w=conv_w(ngf * mult * 2, ngf * mult, 3),
                                  gamma=g, beta=b)
    dim = ngf * 4
    for i in range(n_blocks):
        g1, b1 = bn(dim)
        g2, b2 = bn(dim)
        params[f"block{i}"] = dict(w1=conv_w(dim, dim, 3), gamma1=g1, beta1=b1,
                                   w2=conv_w(dim, dim, 3), gamma2=g2, beta2=b2)
    for i in range(2):
        mult = 2 ** (2 - i)
        g, b = bn(ngf * mult // 2)
        params[f"up{i}"] = dict(w=convt_w(ngf * mult, ngf * mult // 2, 3),
                                gamma=g, beta=b)
    s = 1.0 / float(ngf * 49) ** 0.5
    params["out"] = dict(w=conv_w(output_nc, ngf, 7),
                         b=jax.random.uniform(next(it), (output_nc,), jnp.float32, -s, s))
    return params


# ------------------------------ JAX reference --------------------------------

def _reference_forward(x_nchw, params, n_blocks):
    dn = ("NCHW", "OIHW", "NCHW")

    def conv(x, w, stride=1, pad=0):
        return lax.conv_general_dilated(x, w, (stride, stride),
                                        [(pad, pad), (pad, pad)],
                                        dimension_numbers=dn)

    def bn(x, gamma, beta):
        m = jnp.mean(x, axis=(0, 2, 3), keepdims=True)
        v = jnp.mean((x - m) ** 2, axis=(0, 2, 3), keepdims=True)
        return ((x - m) * lax.rsqrt(v + EPS) * gamma[None, :, None, None]
                + beta[None, :, None, None])

    def relu(x):
        return jnp.maximum(x, 0.0)

    def reflect(x, p):
        return jnp.pad(x, ((0, 0), (0, 0), (p, p), (p, p)), mode="reflect")

    q = params["stem"]
    h = relu(bn(conv(reflect(x_nchw, 3), q["w"]), q["gamma"], q["beta"]))
    for i in range(2):
        q = params[f"down{i}"]
        h = relu(bn(conv(h, q["w"], stride=2, pad=1), q["gamma"], q["beta"]))
    for i in range(n_blocks):
        q = params[f"block{i}"]
        r = relu(bn(conv(reflect(h, 1), q["w1"]), q["gamma1"], q["beta1"]))
        r = bn(conv(reflect(r, 1), q["w2"]), q["gamma2"], q["beta2"])
        h = h + r
    for i in range(2):
        q = params[f"up{i}"]
        w_conv = jnp.transpose(q["w"][:, :, ::-1, ::-1], (1, 0, 2, 3))
        h = lax.conv_general_dilated(h, w_conv, (1, 1), [(1, 2), (1, 2)],
                                     lhs_dilation=(2, 2), dimension_numbers=dn)
        h = relu(bn(h, q["gamma"], q["beta"]))
    q = params["out"]
    h = conv(reflect(h, 3), q["w"]) + q["b"][None, :, None, None]
    return jnp.tanh(h)


# ----------------------------------- main ------------------------------------

if __name__ == "__main__":
    key = jax.random.PRNGKey(0)
    kx, kp = jax.random.split(key)

    N, INPUT_NC, OUTPUT_NC, NGF, N_BLOCKS, H, W = 2, 3, 3, 16, 2, 32, 32

    x = jax.random.normal(kx, (N, INPUT_NC, H, W), jnp.float32)
    params = init_params(kp, INPUT_NC, OUTPUT_NC, NGF, N_BLOCKS)

    fwd = jax.jit(lambda xx, pp: resnet_generator_forward(xx, pp, N_BLOCKS))
    out = jax.block_until_ready(fwd(x, params))
    assert out.shape == (N, OUTPUT_NC, H, W), out.shape

    ref = jax.block_until_ready(
        jax.jit(lambda xx, pp: _reference_forward(xx, pp, N_BLOCKS))(x, params))
    max_err = float(jnp.max(jnp.abs(out - ref)))
    assert max_err < 2e-2, f"mismatch vs JAX reference: max_err={max_err}"

    print("KERNEL_OK")
</pallas_src>

<mosaic_0001>
module attributes {stable_mosaic.version = 11 : i64} {
  func.func @_matmul_stats_kernel(%arg0: i32, %arg1: memref<16x147xf32, #tpu.memory_space<vmem>>, %arg2: memref<147x512xf32, #tpu.memory_space<vmem>>, %arg3: memref<16x512xf32, #tpu.memory_space<vmem>>, %arg4: memref<1x16x1xf32, #tpu.memory_space<vmem>>, %arg5: memref<1x16x1xf32, #tpu.memory_space<vmem>>) attributes {dimension_semantics = [#tpu.dimension_semantics<parallel>], iteration_bounds = array<i64: 4>, scalar_prefetch = 0 : i64, scratch_operands = 0 : i64, tpu.core_type = #tpu.core_type<tc>, window_params = [{pipeline_mode = #tpu.pipeline_mode<synchronous>, transform_indices = @transform_0, window_bounds = array<i64: 16, 147>}, {transform_indices = @transform_1, window_bounds = array<i64: 147, 512>}, {transform_indices = @transform_2, window_bounds = array<i64: 16, 512>}, {transform_indices = @transform_3, window_bounds = array<i64: 1, 16, 1>}, {transform_indices = @transform_4, window_bounds = array<i64: 1, 16, 1>}]} {
    %c0 = arith.constant 0 : index
    %c0_0 = arith.constant 0 : index
    %0 = vector.load %arg1[%c0, %c0_0] : memref<16x147xf32, #tpu.memory_space<vmem>>, vector<16x147xf32>
    %c0_1 = arith.constant 0 : index
    %c0_2 = arith.constant 0 : index
    %1 = vector.load %arg2[%c0_1, %c0_2] : memref<147x512xf32, #tpu.memory_space<vmem>>, vector<147x512xf32>
    %cst = arith.constant dense<0.000000e+00> : vector<16x512xf32>
    %2 = tpu.matmul %0, %1, %cst {dimension_numbers = #tpu.dot_dimension_numbers<[1], [0], [0], [1], [0, 0, 1, 1], [], []>} : vector<16x147xf32>, vector<147x512xf32>, vector<16x512xf32> -> vector<16x512xf32>
    %c0_3 = arith.constant 0 : index
    %c0_4 = arith.constant 0 : index
    %3 = vector.load %arg3[%c0_3, %c0_4] : memref<16x512xf32, #tpu.memory_space<vmem>>, vector<16x512xf32>
    tpu.vector_store %arg3[%c0_3, %c0_4], %2 {strides = array<i32>} : memref<16x512xf32, #tpu.memory_space<vmem>>, vector<16x512xf32>,
    %cst_5 = arith.constant dense<0.000000e+00> : vector<16xf32>
    %4 = vector.multi_reduction <add>, %2, %cst_5 [1] : vector<16x512xf32> to vector<16xf32>
    %5 = vector.shape_cast %4 : vector<16xf32> to vector<16x1xf32>
    %6 = vector.shape_cast %5 : vector<16x1xf32> to vector<1x16x1xf32>
    %c0_6 = arith.constant 0 : index
    %c0_7 = arith.constant 0 : index
    %c0_8 = arith.constant 0 : index
    %7 = vector.load %arg4[%c0_6, %c0_7, %c0_8] : memref<1x16x1xf32, #tpu.memory_space<vmem>>, vector<1x16x1xf32>
    tpu.vector_store %arg4[%c0_6, %c0_7, %c0_8], %6 {strides = array<i32>} : memref<1x16x1xf32, #tpu.memory_space<vmem>>, vector<1x16x1xf32>,
    %8 = arith.mulf %2, %2 : vector<16x512xf32>
    %cst_9 = arith.constant dense<0.000000e+00> : vector<16xf32>
    %9 = vector.multi_reduction <add>, %8, %cst_9 [1] : vector<16x512xf32> to vector<16xf32>
    %10 = vector.shape_cast %9 : vector<16xf32> to vector<16x1xf32>
    %11 = vector.shape_cast %10 : vector<16x1xf32> to vector<1x16x1xf32>
    %c0_10 = arith.constant 0 : index
    %c0_11 = arith.constant 0 : index
    %c0_12 = arith.constant 0 : index
    %12 = vector.load %arg5[%c0_10, %c0_11, %c0_12] : memref<1x16x1xf32, #tpu.memory_space<vmem>>, vector<1x16x1xf32>
    tpu.vector_store %arg5[%c0_10, %c0_11, %c0_12], %11 {strides = array<i32>} : memref<1x16x1xf32, #tpu.memory_space<vmem>>, vector<1x16x1xf32>,
    return
  }
  func.func @transform_0(%arg0: i32) -> (i32, i32) {
    %c0_i32 = arith.constant 0 : i32
    %c0_i32_0 = arith.constant 0 : i32
    %c0_i32_1 = arith.constant 0 : i32
    return %c0_i32, %c0_i32_0 : i32, i32
  }
  func.func @transform_1(%arg0: i32) -> (i32, i32) {
    %c0_i32 = arith.constant 0 : i32
    %c0_i32_0 = arith.constant 0 : i32
    return %c0_i32, %arg0 : i32, i32
  }
  func.func @transform_2(%arg0: i32) -> (i32, i32) {
    %c0_i32 = arith.constant 0 : i32
    %c0_i32_0 = arith.constant 0 : i32
    return %c0_i32, %arg0 : i32, i32
  }
  func.func @transform_3(%arg0: i32) -> (i32, i32, i32) {
    %c0_i32 = arith.constant 0 : i32
    %c0_i32_0 = arith.constant 0 : i32
    %c0_i32_1 = arith.constant 0 : i32
    return %arg0, %c0_i32, %c0_i32_0 : i32, i32, i32
  }
  func.func @transform_4(%arg0: i32) -> (i32, i32, i32) {
    %c0_i32 = arith.constant 0 : i32
    %c0_i32_0 = arith.constant 0 : i32
    %c0_i32_1 = arith.constant 0 : i32
    return %arg0, %c0_i32, %c0_i32_0 : i32, i32, i32
  }
}

module attributes {stable_mosaic.version = 11 : i64} {
  func.func @_affine_relu_kernel(%arg0: i32, %arg1: memref<16x512xf32, #tpu.memory_space<vmem>>, %arg2: memref<16x1xf32, #tpu.memory_space<vmem>>, %arg3: memref<16x1xf32, #tpu.memory_space<vmem>>, %arg4: memref<16x512xf32, #tpu.memory_space<vmem>>) attributes {dimension_semantics = [#tpu.dimension_semantics<parallel>], iteration_bounds = array<i64: 4>, scalar_prefetch = 0 : i64, scratch_operands = 0 : i64, tpu.core_type = #tpu.core_type<tc>, window_params = [{transform_indices = @transform_0, window_bounds = array<i64: 16, 512>}, {pipeline_mode = #tpu.pipeline_mode<synchronous>, transform_indices = @transform_1, window_bounds = array<i64: 16, 1>}, {pipeline_mode = #tpu.pipeline_mode<synchronous>, transform_indices = @transform_2, window_bounds = array<i64: 16, 1>}, {transform_indices = @transform_3, window_bounds = array<i64: 16, 512>}]} {
    %c0 = arith.constant 0 : index
    %c0_0 = arith.constant 0 : index
    %0 = vector.load %arg1[%c0, %c0_0] : memref<16x512xf32, #tpu.memory_space<vmem>>, vector<16x512xf32>
    %c0_1 = arith.constant 0 : index
    %c0_2 = arith.constant 0 : index
    %1 = vector.load %arg2[%c0_1, %c0_2] : memref<16x1xf32, #tpu.memory_space<vmem>>, vector<16x1xf32>
    %2 = vector.broadcast %1 : vector<16x1xf32> to vector<16x512xf32>
    %3 = arith.mulf %0, %2 : vector<16x512xf32>
    %c0_3 = arith.constant 0 : index
    %c0_4 = arith.constant 0 : index
    %4 = vector.load %arg3[%c0_3, %c0_4] : memref<16x1xf32, #tpu.memory_space<vmem>>, vector<16x1xf32>
    %5 = vector.broadcast %4 : vector<16x1xf32> to vector<16x512xf32>
    %6 = arith.addf %3, %5 : vector<16x512xf32>
    %cst = arith.constant 0.000000e+00 : f32
    %7 = vector.broadcast %cst : f32 to vector<16x512xf32>
    %8 = arith.maximumf %6, %7 : vector<16x512xf32>
    %c0_5 = arith.constant 0 : index
    %c0_6 = arith.constant 0 : index
    %9 = vector.load %arg4[%c0_5, %c0_6] : memref<16x512xf32, #tpu.memory_space<vmem>>, vector<16x512xf32>
    tpu.vector_store %arg4[%c0_5, %c0_6], %8 {strides = array<i32>} : memref<16x512xf32, #tpu.memory_space<vmem>>, vector<16x512xf32>,
    return
  }
  func.func @transform_0(%arg0: i32) -> (i32, i32) {
    %c0_i32 = arith.constant 0 : i32
    %c0_i32_0 = arith.constant 0 : i32
    return %c0_i32, %arg0 : i32, i32
  }
  func.func @transform_1(%arg0: i32) -> (i32, i32) {
    %c0_i32 = arith.constant 0 : i32
    %c0_i32_0 = arith.constant 0 : i32
    %c0_i32_1 = arith.constant 0 : i32
    return %c0_i32, %c0_i32_0 : i32, i32
  }
  func.func @transform_2(%arg0: i32) -> (i32, i32) {
    %c0_i32 = arith.constant 0 : i32
    %c0_i32_0 = arith.constant 0 : i32
    %c0_i32_1 = arith.constant 0 : i32
    return %c0_i32, %c0_i32_0 : i32, i32
  }
  func.func @transform_3(%arg0: i32) -> (i32, i32) {
    %c0_i32 = arith.constant 0 : i32
    %c0_i32_0 = arith.constant 0 : i32
    return %c0_i32, %arg0 : i32, i32
  }
}

module attributes {stable_mosaic.version = 11 : i64} {
  func.func @_matmul_stats_kernel(%arg0: i32, %arg1: memref<32x144xf32, #tpu.memory_space<vmem>>, %arg2: memref<144x512xf32, #tpu.memory_space<vmem>>, %arg3: memref<32x512xf32, #tpu.memory_space<vmem>>, %arg4: memref<1x32x1xf32, #tpu.memory_space<vmem>>, %arg5: memref<1x32x1xf32, #tpu.memory_space<vmem>>) attributes {dimension_semantics = [#tpu.dimension_semantics<parallel>], iteration_bounds = array<i64: 1>, scalar_prefetch = 0 : i64, scratch_operands = 0 : i64, tpu.core_type = #tpu.core_type<tc>, window_params = [{pipeline_mode = #tpu.pipeline_mode<synchronous>, transform_indices = @transform_0, window_bounds = array<i64: 32, 144>}, {transform_indices = @transform_1, window_bounds = array<i64: 144, 512>}, {transform_indices = @transform_2, window_bounds = array<i64: 32, 512>}, {transform_indices = @transform_3, window_bounds = array<i64: 1, 32, 1>}, {transform_indices = @transform_4, window_bounds = array<i64: 1, 32, 1>}]} {
    %c0 = arith.constant 0 : index
    %c0_0 = arith.constant 0 : index
    %0 = vector.load %arg1[%c0, %c0_0] : memref<32x144xf32, #tpu.memory_space<vmem>>, vector<32x144xf32>
    %c0_1 = arith.constant 0 : index
    %c0_2 = arith.constant 0 : index
    %1 = vector.load %arg2[%c0_1, %c0_2] : memref<144x512xf32, #tpu.memory_space<vmem>>, vector<144x512xf32>
    %cst = arith.constant dense<0.000000e+00> : vector<32x512xf32>
    %2 = tpu.matmul %0, %1, %cst {dimension_numbers = #tpu.dot_dimension_numbers<[1], [0], [0], [1], [0, 0, 1, 1], [], []>} : vector<32x144xf32>, vector<144x512xf32>, vector<32x512xf32> -> vector<32x512xf32>
    %c0_3 = arith.constant 0 : index
    %c0_4 = arith.constant 0 : index
    %3 = vector.load %arg3[%c0_3, %c0_4] : memref<32x512xf32, #tpu.memory_space<vmem>>, vector<32x512xf32>
    tpu.vector_store %arg3[%c0_3, %c0_4], %2 {strides = array<i32>} : memref<32x512xf32, #tpu.memory_space<vmem>>, vector<32x512xf32>,
    %cst_5 = arith.constant dense<0.000000e+00> : vector<32xf32>
    %4 = vector.multi_reduction <add>, %2, %cst_5 [1] : vector<32x512xf32> to vector<32xf32>
    %5 = vector.shape_cast %4 : vector<32xf32> to vector<32x1xf32>
    %6 = vector.shape_cast %5 : vector<32x1xf32> to vector<1x32x1xf32>
    %c0_6 = arith.constant 0 : index
    %c0_7 = arith.constant 0 : index
    %c0_8 = arith.constant 0 : index
    %7 = vector.load %arg4[%c0_6, %c0_7, %c0_8] : memref<1x32x1xf32, #tpu.memory_space<vmem>>, vector<1x32x1xf32>
    tpu.vector_store %arg4[%c0_6, %c0_7, %c0_8], %6 {strides = array<i32>} : memref<1x32x1xf32, #tpu.memory_space<vmem>>, vector<1x32x1xf32>,
    %8 = arith.mulf %2, %2 : vector<32x512xf32>
    %cst_9 = arith.constant dense<0.000000e+00> : vector<32xf32>
    %9 = vector.multi_reduction <add>, %8, %cst_9 [1] : vector<32x512xf32> to vector<32xf32>
    %10 = vector.shape_cast %9 : vector<32xf32> to vector<32x1xf32>
    %11 = vector.shape_cast %10 : vector<32x1xf32> to vector<1x32x1xf32>
    %c0_10 = arith.constant 0 : index
    %c0_11 = arith.constant 0 : index
    %c0_12 = arith.constant 0 : index
    %12 = vector.load %arg5[%c0_10, %c0_11, %c0_12] : memref<1x32x1xf32, #tpu.memory_space<vmem>>, vector<1x32x1xf32>
    tpu.vector_store %arg5[%c0_10, %c0_11, %c0_12], %11 {strides = array<i32>} : memref<1x32x1xf32, #tpu.memory_space<vmem>>, vector<1x32x1xf32>,
    return
  }
  func.func @transform_0(%arg0: i32) -> (i32, i32) {
    %c0_i32 = arith.constant 0 : i32
    %c0_i32_0 = arith.constant 0 : i32
    %c0_i32_1 = arith.constant 0 : i32
    return %c0_i32, %c0_i32_0 : i32, i32
  }
  func.func @transform_1(%arg0: i32) -> (i32, i32) {
    %c0_i32 = arith.constant 0 : i32
    %c0_i32_0 = arith.constant 0 : i32
    return %c0_i32, %arg0 : i32, i32
  }
  func.func @transform_2(%arg0: i32) -> (i32, i32) {
    %c0_i32 = arith.constant 0 : i32
    %c0_i32_0 = arith.constant 0 : i32
    return %c0_i32, %arg0 : i32, i32
  }
  func.func @transform_3(%arg0: i32) -> (i32, i32, i32) {
    %c0_i32 = arith.constant 0 : i32
    %c0_i32_0 = arith.constant 0 : i32
    %c0_i32_1 = arith.constant 0 : i32
    return %arg0, %c0_i32, %c0_i32_0 : i32, i32, i32
  }
  func.func @transform_4(%arg0: i32) -> (i32, i32, i32) {
    %c0_i32 = arith.constant 0 : i32
    %c0_i32_0 = arith.constant 0 : i32
    %c0_i32_1 = arith.constant 0 : i32
    return %arg0, %c0_i32, %c0_i32_0 : i32, i32, i32
  }
}

module attributes {stable_mosaic.version = 11 : i64} {
  func.func @_affine_relu_kernel(%arg0: i32, %arg1: memref<32x512xf32, #tpu.memory_space<vmem>>, %arg2: memref<32x1xf32, #tpu.memory_space<vmem>>, %arg3: memref<32x1xf32, #tpu.memory_space<vmem>>, %arg4: memref<32x512xf32, #tpu.memory_space<vmem>>) attributes {dimension_semantics = [#tpu.dimension_semantics<parallel>], iteration_bounds = array<i64: 1>, scalar_prefetch = 0 : i64, scratch_operands = 0 : i64, tpu.core_type = #tpu.core_type<tc>, window_params = [{transform_indices = @transform_0, window_bounds = array<i64: 32, 512>}, {pipeline_mode = #tpu.pipeline_mode<synchronous>, transform_indices = @transform_1, window_bounds = array<i64: 32, 1>}, {pipeline_mode = #tpu.pipeline_mode<synchronous>, transform_indices = @transform_2, window_bounds = array<i64: 32, 1>}, {transform_indices = @transform_3, window_bounds = array<i64: 32, 512>}]} {
    %c0 = arith.constant 0 : index
    %c0_0 = arith.constant 0 : index
    %0 = vector.load %arg1[%c0, %c0_0] : memref<32x512xf32, #tpu.memory_space<vmem>>, vector<32x512xf32>
    %c0_1 = arith.constant 0 : index
    %c0_2 = arith.constant 0 : index
    %1 = vector.load %arg2[%c0_1, %c0_2] : memref<32x1xf32, #tpu.memory_space<vmem>>, vector<32x1xf32>
    %2 = vector.broadcast %1 : vector<32x1xf32> to vector<32x512xf32>
    %3 = arith.mulf %0, %2 : vector<32x512xf32>
    %c0_3 = arith.constant 0 : index
    %c0_4 = arith.constant 0 : index
    %4 = vector.load %arg3[%c0_3, %c0_4] : memref<32x1xf32, #tpu.memory_space<vmem>>, vector<32x1xf32>
    %5 = vector.broadcast %4 : vector<32x1xf32> to vector<32x512xf32>
    %6 = arith.addf %3, %5 : vector<32x512xf32>
    %cst = arith.constant 0.000000e+00 : f32
    %7 = vector.broadcast %cst : f32 to vector<32x512xf32>
    %8 = arith.maximumf %6, %7 : vector<32x512xf32>
    %c0_5 = arith.constant 0 : index
    %c0_6 = arith.constant 0 : index
    %9 = vector.load %arg4[%c0_5, %c0_6] : memref<32x512xf32, #tpu.memory_space<vmem>>, vector<32x512xf32>
    tpu.vector_store %arg4[%c0_5, %c0_6], %8 {strides = array<i32>} : memref<32x512xf32, #tpu.memory_space<vmem>>, vector<32x512xf32>,
    return
  }
  func.func @transform_0(%arg0: i32) -> (i32, i32) {
    %c0_i32 = arith.constant 0 : i32
    %c0_i32_0 = arith.constant 0 : i32
    return %c0_i32, %arg0 : i32, i32
  }
  func.func @transform_1(%arg0: i32) -> (i32, i32) {
    %c0_i32 = arith.constant 0 : i32
    %c0_i32_0 = arith.constant 0 : i32
    %c0_i32_1 = arith.constant 0 : i32
    return %c0_i32, %c0_i32_0 : i32, i32
  }
  func.func @transform_2(%arg0: i32) -> (i32, i32) {
    %c0_i32 = arith.constant 0 : i32
    %c0_i32_0 = arith.constant 0 : i32
    %c0_i32_1 = arith.constant 0 : i32
    return %c0_i32, %c0_i32_0 : i32, i32
  }
  func.func @transform_3(%arg0: i32) -> (i32, i32) {
    %c0_i32 = arith.constant 0 : i32
    %c0_i32_0 = arith.constant 0 : i32
    return %c0_i32, %arg0 : i32, i32
  }
}

module attributes {stable_mosaic.version = 11 : i64} {
  func.func @_matmul_stats_kernel(%arg0: i32, %arg1: memref<64x288xf32, #tpu.memory_space<vmem>>, %arg2: memref<288x128xf32, #tpu.memory_space<vmem>>, %arg3: memref<64x128xf32, #tpu.memory_space<vmem>>, %arg4: memref<1x64x1xf32, #tpu.memory_space<vmem>>, %arg5: memref<1x64x1xf32, #tpu.memory_space<vmem>>) attributes {dimension_semantics = [#tpu.dimension_semantics<parallel>], iteration_bounds = array<i64: 1>, scalar_prefetch = 0 : i64, scratch_operands = 0 : i64, tpu.core_type = #tpu.core_type<tc>, window_params = [{pipeline_mode = #tpu.pipeline_mode<synchronous>, transform_indices = @transform_0, window_bounds = array<i64: 64, 288>}, {transform_indices = @transform_1, window_bounds = array<i64: 288, 128>}, {transform_indices = @transform_2, window_bounds = array<i64: 64, 128>}, {transform_indices = @transform_3, window_bounds = array<i64: 1, 64, 1>}, {transform_indices = @transform_4, window_bounds = array<i64: 1, 64, 1>}]} {
    %c0 = arith.constant 0 : index
    %c0_0 = arith.constant 0 : index
    %0 = vector.load %arg1[%c0, %c0_0] : memref<64x288xf32, #tpu.memory_space<vmem>>, vector<64x288xf32>
    %c0_1 = arith.constant 0 : index
    %c0_2 = arith.constant 0 : index
    %1 = vector.load %arg2[%c0_1, %c0_2] : memref<288x128xf32, #tpu.memory_space<vmem>>, vector<288x128xf32>
    %cst = arith.constant dense<0.000000e+00> : vector<64x128xf32>
    %2 = tpu.matmul %0, %1, %cst {dimension_numbers = #tpu.dot_dimension_numbers<[1], [0], [0], [1], [0, 0, 1, 1], [], []>} : vector<64x288xf32>, vector<288x128xf32>, vector<64x128xf32> -> vector<64x128xf32>
    %c0_3 = arith.constant 0 : index
    %c0_4 = arith.constant 0 : index
    %3 = vector.load %arg3[%c0_3, %c0_4] : memref<64x128xf32, #tpu.memory_space<vmem>>, vector<64x128xf32>
    tpu.vector_store %arg3[%c0_3, %c0_4], %2 {strides = array<i32>} : memref<64x128xf32, #tpu.memory_space<vmem>>, vector<64x128xf32>,
    %cst_5 = arith.constant dense<0.000000e+00> : vector<64xf32>
    %4 = vector.multi_reduction <add>, %2, %cst_5 [1] : vector<64x128xf32> to vector<64xf32>
    %5 = vector.shape_cast %4 : vector<64xf32> to vector<64x1xf32>
    %6 = vector.shape_cast %5 : vector<64x1xf32> to vector<1x64x1xf32>
    %c0_6 = arith.constant 0 : index
    %c0_7 = arith.constant 0 : index
    %c0_8 = arith.constant 0 : index
    %7 = vector.load %arg4[%c0_6, %c0_7, %c0_8] : memref<1x64x1xf32, #tpu.memory_space<vmem>>, vector<1x64x1xf32>
    tpu.vector_store %arg4[%c0_6, %c0_7, %c0_8], %6 {strides = array<i32>} : memref<1x64x1xf32, #tpu.memory_space<vmem>>, vector<1x64x1xf32>,
    %8 = arith.mulf %2, %2 : vector<64x128xf32>
    %cst_9 = arith.constant dense<0.000000e+00> : vector<64xf32>
    %9 = vector.multi_reduction <add>, %8, %cst_9 [1] : vector<64x128xf32> to vector<64xf32>
    %10 = vector.shape_cast %9 : vector<64xf32> to vector<64x1xf32>
    %11 = vector.shape_cast %10 : vector<64x1xf32> to vector<1x64x1xf32>
    %c0_10 = arith.constant 0 : index
    %c0_11 = arith.constant 0 : index
    %c0_12 = arith.constant 0 : index
    %12 = vector.load %arg5[%c0_10, %c0_11, %c0_12] : memref<1x64x1xf32, #tpu.memory_space<vmem>>, vector<1x64x1xf32>
    tpu.vector_store %arg5[%c0_10, %c0_11, %c0_12], %11 {strides = array<i32>} : memref<1x64x1xf32, #tpu.memory_space<vmem>>, vector<1x64x1xf32>,
    return
  }
  func.func @transform_0(%arg0: i32) -> (i32, i32) {
    %c0_i32 = arith.constant 0 : i32
    %c0_i32_0 = arith.constant 0 : i32
    %c0_i32_1 = arith.constant 0 : i32
    return %c0_i32, %c0_i32_0 : i32, i32
  }
  func.func @transform_1(%arg0: i32) -> (i32, i32) {
    %c0_i32 = arith.constant 0 : i32
    %c0_i32_0 = arith.constant 0 : i32
    return %c0_i32, %arg0 : i32, i32
  }
  func.func @transform_2(%arg0: i32) -> (i32, i32) {
    %c0_i32 = arith.constant 0 : i32
    %c0_i32_0 = arith.constant 0 : i32
    return %c0_i32, %arg0 : i32, i32
  }
  func.func @transform_3(%arg0: i32) -> (i32, i32, i32) {
    %c0_i32 = arith.constant 0 : i32
    %c0_i32_0 = arith.constant 0 : i32
    %c0_i32_1 = arith.constant 0 : i32
    return %arg0, %c0_i32, %c0_i32_0 : i32, i32, i32
  }
  func.func @transform_4(%arg0: i32) -> (i32, i32, i32) {
    %c0_i32 = arith.constant 0 : i32
    %c0_i32_0 = arith.constant 0 : i32
    %c0_i32_1 = arith.constant 0 : i32
    return %arg0, %c0_i32, %c0_i32_0 : i32, i32, i32
  }
}

module attributes {stable_mosaic.version = 11 : i64} {
  func.func @_affine_relu_kernel(%arg0: i32, %arg1: memref<64x128xf32, #tpu.memory_space<vmem>>, %arg2: memref<64x1xf32, #tpu.memory_space<vmem>>, %arg3: memref<64x1xf32, #tpu.memory_space<vmem>>, %arg4: memref<64x128xf32, #tpu.memory_space<vmem>>) attributes {dimension_semantics = [#tpu.dimension_semantics<parallel>], iteration_bounds = array<i64: 1>, scalar_prefetch = 0 : i64, scratch_operands = 0 : i64, tpu.core_type = #tpu.core_type<tc>, window_params = [{transform_indices = @transform_0, window_bounds = array<i64: 64, 128>}, {pipeline_mode = #tpu.pipeline_mode<synchronous>, transform_indices = @transform_1, window_bounds = array<i64: 64, 1>}, {pipeline_mode = #tpu.pipeline_mode<synchronous>, transform_indices = @transform_2, window_bounds = array<i64: 64, 1>}, {transform_indices = @transform_3, window_bounds = array<i64: 64, 128>}]} {
    %c0 = arith.constant 0 : index
    %c0_0 = arith.constant 0 : index
    %0 = vector.load %arg1[%c0, %c0_0] : memref<64x128xf32, #tpu.memory_space<vmem>>, vector<64x128xf32>
    %c0_1 = arith.constant 0 : index
    %c0_2 = arith.constant 0 : index
    %1 = vector.load %arg2[%c0_1, %c0_2] : memref<64x1xf32, #tpu.memory_space<vmem>>, vector<64x1xf32>
    %2 = vector.broadcast %1 : vector<64x1xf32> to vector<64x128xf32>
    %3 = arith.mulf %0, %2 : vector<64x128xf32>
    %c0_3 = arith.constant 0 : index
    %c0_4 = arith.constant 0 : index
    %4 = vector.load %arg3[%c0_3, %c0_4] : memref<64x1xf32, #tpu.memory_space<vmem>>, vector<64x1xf32>
    %5 = vector.broadcast %4 : vector<64x1xf32> to vector<64x128xf32>
    %6 = arith.addf %3, %5 : vector<64x128xf32>
    %cst = arith.constant 0.000000e+00 : f32
    %7 = vector.broadcast %cst : f32 to vector<64x128xf32>
    %8 = arith.maximumf %6, %7 : vector<64x128xf32>
    %c0_5 = arith.constant 0 : index
    %c0_6 = arith.constant 0 : index
    %9 = vector.load %arg4[%c0_5, %c0_6] : memref<64x128xf32, #tpu.memory_space<vmem>>, vector<64x128xf32>
    tpu.vector_store %arg4[%c0_5, %c0_6], %8 {strides = array<i32>} : memref<64x128xf32, #tpu.memory_space<vmem>>, vector<64x128xf32>,
    return
  }
  func.func @transform_0(%arg0: i32) -> (i32, i32) {
    %c0_i32 = arith.constant 0 : i32
    %c0_i32_0 = arith.constant 0 : i32
    return %c0_i32, %arg0 : i32, i32
  }
  func.func @transform_1(%arg0: i32) -> (i32, i32) {
    %c0_i32 = arith.constant 0 : i32
    %c0_i32_0 = arith.constant 0 : i32
    %c0_i32_1 = arith.constant 0 : i32
    return %c0_i32, %c0_i32_0 : i32, i32
  }
  func.func @transform_2(%arg0: i32) -> (i32, i32) {
    %c0_i32 = arith.constant 0 : i32
    %c0_i32_0 = arith.constant 0 : i32
    %c0_i32_1 = arith.constant 0 : i32
    return %c0_i32, %c0_i32_0 : i32, i32
  }
  func.func @transform_3(%arg0: i32) -> (i32, i32) {
    %c0_i32 = arith.constant 0 : i32
    %c0_i32_0 = arith.constant 0 : i32
    return %c0_i32, %arg0 : i32, i32
  }
}

module attributes {stable_mosaic.version = 11 : i64} {
  func.func @_matmul_stats_kernel(%arg0: i32, %arg1: memref<64x576xf32, #tpu.memory_space<vmem>>, %arg2: memref<576x128xf32, #tpu.memory_space<vmem>>, %arg3: memref<64x128xf32, #tpu.memory_space<vmem>>, %arg4: memref<1x64x1xf32, #tpu.memory_space<vmem>>, %arg5: memref<1x64x1xf32, #tpu.memory_space<vmem>>) attributes {dimension_semantics = [#tpu.dimension_semantics<parallel>], iteration_bounds = array<i64: 1>, scalar_prefetch = 0 : i64, scratch_operands = 0 : i64, tpu.core_type = #tpu.core_type<tc>, window_params = [{pipeline_mode = #tpu.pipeline_mode<synchronous>, transform_indices = @transform_0, window_bounds = array<i64: 64, 576>}, {transform_indices = @transform_1, window_bounds = array<i64: 576, 128>}, {transform_indices = @transform_2, window_bounds = array<i64: 64, 128>}, {transform_indices = @transform_3, window_bounds = array<i64: 1, 64, 1>}, {transform_indices = @transform_4, window_bounds = array<i64: 1, 64, 1>}]} {
    %c0 = arith.constant 0 : index
    %c0_0 = arith.constant 0 : index
    %0 = vector.load %arg1[%c0, %c0_0] : memref<64x576xf32, #tpu.memory_space<vmem>>, vector<64x576xf32>
    %c0_1 = arith.constant 0 : index
    %c0_2 = arith.constant 0 : index
    %1 = vector.load %arg2[%c0_1, %c0_2] : memref<576x128xf32, #tpu.memory_space<vmem>>, vector<576x128xf32>
    %cst = arith.constant dense<0.000000e+00> : vector<64x128xf32>
    %2 = tpu.matmul %0, %1, %cst {dimension_numbers = #tpu.dot_dimension_numbers<[1], [0], [0], [1], [0, 0, 1, 1], [], []>} : vector<64x576xf32>, vector<576x128xf32>, vector<64x128xf32> -> vector<64x128xf32>
    %c0_3 = arith.constant 0 : index
    %c0_4 = arith.constant 0 : index
    %3 = vector.load %arg3[%c0_3, %c0_4] : memref<64x128xf32, #tpu.memory_space<vmem>>, vector<64x128xf32>
    tpu.vector_store %arg3[%c0_3, %c0_4], %2 {strides = array<i32>} : memref<64x128xf32, #tpu.memory_space<vmem>>, vector<64x128xf32>,
    %cst_5 = arith.constant dense<0.000000e+00> : vector<64xf32>
    %4 = vector.multi_reduction <add>, %2, %cst_5 [1] : vector<64x128xf32> to vector<64xf32>
    %5 = vector.shape_cast %4 : vector<64xf32> to vector<64x1xf32>
    %6 = vector.shape_cast %5 : vector<64x1xf32> to vector<1x64x1xf32>
    %c0_6 = arith.constant 0 : index
    %c0_7 = arith.constant 0 : index
    %c0_8 = arith.constant 0 : index
    %7 = vector.load %arg4[%c0_6, %c0_7, %c0_8] : memref<1x64x1xf32, #tpu.memory_space<vmem>>, vector<1x64x1xf32>
    tpu.vector_store %arg4[%c0_6, %c0_7, %c0_8], %6 {strides = array<i32>} : memref<1x64x1xf32, #tpu.memory_space<vmem>>, vector<1x64x1xf32>,
    %8 = arith.mulf %2, %2 : vector<64x128xf32>
    %cst_9 = arith.constant dense<0.000000e+00> : vector<64xf32>
    %9 = vector.multi_reduction <add>, %8, %cst_9 [1] : vector<64x128xf32> to vector<64xf32>
    %10 = vector.shape_cast %9 : vector<64xf32> to vector<64x1xf32>
    %11 = vector.shape_cast %10 : vector<64x1xf32> to vector<1x64x1xf32>
    %c0_10 = arith.constant 0 : index
    %c0_11 = arith.constant 0 : index
    %c0_12 = arith.constant 0 : index
    %12 = vector.load %arg5[%c0_10, %c0_11, %c0_12] : memref<1x64x1xf32, #tpu.memory_space<vmem>>, vector<1x64x1xf32>
    tpu.vector_store %arg5[%c0_10, %c0_11, %c0_12], %11 {strides = array<i32>} : memref<1x64x1xf32, #tpu.memory_space<vmem>>, vector<1x64x1xf32>,
    return
  }
  func.func @transform_0(%arg0: i32) -> (i32, i32) {
    %c0_i32 = arith.constant 0 : i32
    %c0_i32_0 = arith.constant 0 : i32
    %c0_i32_1 = arith.constant 0 : i32
    return %c0_i32, %c0_i32_0 : i32, i32
  }
  func.func @transform_1(%arg0: i32) -> (i32, i32) {
    %c0_i32 = arith.constant 0 : i32
    %c0_i32_0 = arith.constant 0 : i32
    return %c0_i32, %arg0 : i32, i32
  }
  func.func @transform_2(%arg0: i32) -> (i32, i32) {
    %c0_i32 = arith.constant 0 : i32
    %c0_i32_0 = arith.constant 0 : i32
    return %c0_i32, %arg0 : i32, i32
  }
  func.func @transform_3(%arg0: i32) -> (i32, i32, i32) {
    %c0_i32 = arith.constant 0 : i32
    %c0_i32_0 = arith.constant 0 : i32
    %c0_i32_1 = arith.constant 0 : i32
    return %arg0, %c0_i32, %c0_i32_0 : i32, i32, i32
  }
  func.func @transform_4(%arg0: i32) -> (i32, i32, i32) {
    %c0_i32 = arith.constant 0 : i32
    %c0_i32_0 = arith.constant 0 : i32
    %c0_i32_1 = arith.constant 0 : i32
    return %arg0, %c0_i32, %c0_i32_0 : i32, i32, i32
  }
}

module attributes {stable_mosaic.version = 11 : i64} {
  func.func @_affine_add_kernel(%arg0: i32, %arg1: memref<64x128xf32, #tpu.memory_space<vmem>>, %arg2: memref<64x1xf32, #tpu.memory_space<vmem>>, %arg3: memref<64x1xf32, #tpu.memory_space<vmem>>, %arg4: memref<64x128xf32, #tpu.memory_space<vmem>>, %arg5: memref<64x128xf32, #tpu.memory_space<vmem>>) attributes {dimension_semantics = [#tpu.dimension_semantics<parallel>], iteration_bounds = array<i64: 1>, scalar_prefetch = 0 : i64, scratch_operands = 0 : i64, tpu.core_type = #tpu.core_type<tc>, window_params = [{transform_indices = @transform_0, window_bounds = array<i64: 64, 128>}, {pipeline_mode = #tpu.pipeline_mode<synchronous>, transform_indices = @transform_1, window_bounds = array<i64: 64, 1>}, {pipeline_mode = #tpu.pipeline_mode<synchronous>, transform_indices = @transform_2, window_bounds = array<i64: 64, 1>}, {transform_indices = @transform_3, window_bounds = array<i64: 64, 128>}, {transform_indices = @transform_4, window_bounds = array<i64: 64, 128>}]} {
    %c0 = arith.constant 0 : index
    %c0_0 = arith.constant 0 : index
    %0 = vector.load %arg1[%c0, %c0_0] : memref<64x128xf32, #tpu.memory_space<vmem>>, vector<64x128xf32>
    %c0_1 = arith.constant 0 : index
    %c0_2 = arith.constant 0 : index
    %1 = vector.load %arg2[%c0_1, %c0_2] : memref<64x1xf32, #tpu.memory_space<vmem>>, vector<64x1xf32>
    %2 = vector.broadcast %1 : vector<64x1xf32> to vector<64x128xf32>
    %3 = arith.mulf %0, %2 : vector<64x128xf32>
    %c0_3 = arith.constant 0 : index
    %c0_4 = arith.constant 0 : index
    %4 = vector.load %arg3[%c0_3, %c0_4] : memref<64x1xf32, #tpu.memory_space<vmem>>, vector<64x1xf32>
    %5 = vector.broadcast %4 : vector<64x1xf32> to vector<64x128xf32>
    %6 = arith.addf %3, %5 : vector<64x128xf32>
    %c0_5 = arith.constant 0 : index
    %c0_6 = arith.constant 0 : index
    %7 = vector.load %arg4[%c0_5, %c0_6] : memref<64x128xf32, #tpu.memory_space<vmem>>, vector<64x128xf32>
    %8 = arith.addf %6, %7 : vector<64x128xf32>
    %c0_7 = arith.constant 0 : index
    %c0_8 = arith.constant 0 : index
    %9 = vector.load %arg5[%c0_7, %c0_8] : memref<64x128xf32, #tpu.memory_space<vmem>>, vector<64x128xf32>
    tpu.vector_store %arg5[%c0_7, %c0_8], %8 {strides = array<i32>} : memref<64x128xf32, #tpu.memory_space<vmem>>, vector<64x128xf32>,
    return
  }
  func.func @transform_0(%arg0: i32) -> (i32, i32) {
    %c0_i32 = arith.constant 0 : i32
    %c0_i32_0 = arith.constant 0 : i32
    return %c0_i32, %arg0 : i32, i32
  }
  func.func @transform_1(%arg0: i32) -> (i32, i32) {
    %c0_i32 = arith.constant 0 : i32
    %c0_i32_0 = arith.constant 0 : i32
    %c0_i32_1 = arith.constant 0 : i32
    return %c0_i32, %c0_i32_0 : i32, i32
  }
  func.func @transform_2(%arg0: i32) -> (i32, i32) {
    %c0_i32 = arith.constant 0 : i32
    %c0_i32_0 = arith.constant 0 : i32
    %c0_i32_1 = arith.constant 0 : i32
    return %c0_i32, %c0_i32_0 : i32, i32
  }
  func.func @transform_3(%arg0: i32) -> (i32, i32) {
    %c0_i32 = arith.constant 0 : i32
    %c0_i32_0 = arith.constant 0 : i32
    return %c0_i32, %arg0 : i32, i32
  }
  func.func @transform_4(%arg0: i32) -> (i32, i32) {
    %c0_i32 = arith.constant 0 : i32
    %c0_i32_0 = arith.constant 0 : i32
    return %c0_i32, %arg0 : i32, i32
  }
}

module attributes {stable_mosaic.version = 11 : i64} {
  func.func @_matmul_stats_kernel(%arg0: i32, %arg1: memref<32x576xf32, #tpu.memory_space<vmem>>, %arg2: memref<576x512xf32, #tpu.memory_space<vmem>>, %arg3: memref<32x512xf32, #tpu.memory_space<vmem>>, %arg4: memref<1x32x1xf32, #tpu.memory_space<vmem>>, %arg5: memref<1x32x1xf32, #tpu.memory_space<vmem>>) attributes {dimension_semantics = [#tpu.dimension_semantics<parallel>], iteration_bounds = array<i64: 1>, scalar_prefetch = 0 : i64, scratch_operands = 0 : i64, tpu.core_type = #tpu.core_type<tc>, window_params = [{pipeline_mode = #tpu.pipeline_mode<synchronous>, transform_indices = @transform_0, window_bounds = array<i64: 32, 576>}, {transform_indices = @transform_1, window_bounds = array<i64: 576, 512>}, {transform_indices = @transform_2, window_bounds = array<i64: 32, 512>}, {transform_indices = @transform_3, window_bounds = array<i64: 1, 32, 1>}, {transform_indices = @transform_4, window_bounds = array<i64: 1, 32, 1>}]} {
    %c0 = arith.constant 0 : index
    %c0_0 = arith.constant 0 : index
    %0 = vector.load %arg1[%c0, %c0_0] : memref<32x576xf32, #tpu.memory_space<vmem>>, vector<32x576xf32>
    %c0_1 = arith.constant 0 : index
    %c0_2 = arith.constant 0 : index
    %1 = vector.load %arg2[%c0_1, %c0_2] : memref<576x512xf32, #tpu.memory_space<vmem>>, vector<576x512xf32>
    %cst = arith.constant dense<0.000000e+00> : vector<32x512xf32>
    %2 = tpu.matmul %0, %1, %cst {dimension_numbers = #tpu.dot_dimension_numbers<[1], [0], [0], [1], [0, 0, 1, 1], [], []>} : vector<32x576xf32>, vector<576x512xf32>, vector<32x512xf32> -> vector<32x512xf32>
    %c0_3 = arith.constant 0 : index
    %c0_4 = arith.constant 0 : index
    %3 = vector.load %arg3[%c0_3, %c0_4] : memref<32x512xf32, #tpu.memory_space<vmem>>, vector<32x512xf32>
    tpu.vector_store %arg3[%c0_3, %c0_4], %2 {strides = array<i32>} : memref<32x512xf32, #tpu.memory_space<vmem>>, vector<32x512xf32>,
    %cst_5 = arith.constant dense<0.000000e+00> : vector<32xf32>
    %4 = vector.multi_reduction <add>, %2, %cst_5 [1] : vector<32x512xf32> to vector<32xf32>
    %5 = vector.shape_cast %4 : vector<32xf32> to vector<32x1xf32>
    %6 = vector.shape_cast %5 : vector<32x1xf32> to vector<1x32x1xf32>
    %c0_6 = arith.constant 0 : index
    %c0_7 = arith.constant 0 : index
    %c0_8 = arith.constant 0 : index
    %7 = vector.load %arg4[%c0_6, %c0_7, %c0_8] : memref<1x32x1xf32, #tpu.memory_space<vmem>>, vector<1x32x1xf32>
    tpu.vector_store %arg4[%c0_6, %c0_7, %c0_8], %6 {strides = array<i32>} : memref<1x32x1xf32, #tpu.memory_space<vmem>>, vector<1x32x1xf32>,
    %8 = arith.mulf %2, %2 : vector<32x512xf32>
    %cst_9 = arith.constant dense<0.000000e+00> : vector<32xf32>
    %9 = vector.multi_reduction <add>, %8, %cst_9 [1] : vector<32x512xf32> to vector<32xf32>
    %10 = vector.shape_cast %9 : vector<32xf32> to vector<32x1xf32>
    %11 = vector.shape_cast %10 : vector<32x1xf32> to vector<1x32x1xf32>
    %c0_10 = arith.constant 0 : index
    %c0_11 = arith.constant 0 : index
    %c0_12 = arith.constant 0 : index
    %12 = vector.load %arg5[%c0_10, %c0_11, %c0_12] : memref<1x32x1xf32, #tpu.memory_space<vmem>>, vector<1x32x1xf32>
    tpu.vector_store %arg5[%c0_10, %c0_11, %c0_12], %11 {strides = array<i32>} : memref<1x32x1xf32, #tpu.memory_space<vmem>>, vector<1x32x1xf32>,
    return
  }
  func.func @transform_0(%arg0: i32) -> (i32, i32) {
    %c0_i32 = arith.constant 0 : i32
    %c0_i32_0 = arith.constant 0 : i32
    %c0_i32_1 = arith.constant 0 : i32
    return %c0_i32, %c0_i32_0 : i32, i32
  }
  func.func @transform_1(%arg0: i32) -> (i32, i32) {
    %c0_i32 = arith.constant 0 : i32
    %c0_i32_0 = arith.constant 0 : i32
    return %c0_i32, %arg0 : i32, i32
  }
  func.func @transform_2(%arg0: i32) -> (i32, i32) {
    %c0_i32 = arith.constant 0 : i32
    %c0_i32_0 = arith.constant 0 : i32
    return %c0_i32, %arg0 : i32, i32
  }
  func.func @transform_3(%arg0: i32) -> (i32, i32, i32) {
    %c0_i32 = arith.constant 0 : i32
    %c0_i32_0 = arith.constant 0 : i32
    %c0_i32_1 = arith.constant 0 : i32
    return %arg0, %c0_i32, %c0_i32_0 : i32, i32, i32
  }
  func.func @transform_4(%arg0: i32) -> (i32, i32, i32) {
    %c0_i32 = arith.constant 0 : i32
    %c0_i32_0 = arith.constant 0 : i32
    %c0_i32_1 = arith.constant 0 : i32
    return %arg0, %c0_i32, %c0_i32_0 : i32, i32, i32
  }
}

module attributes {stable_mosaic.version = 11 : i64} {
  func.func @_matmul_stats_kernel(%arg0: i32, %arg1: memref<16x288xf32, #tpu.memory_space<vmem>>, %arg2: memref<288x512xf32, #tpu.memory_space<vmem>>, %arg3: memref<16x512xf32, #tpu.memory_space<vmem>>, %arg4: memref<1x16x1xf32, #tpu.memory_space<vmem>>, %arg5: memref<1x16x1xf32, #tpu.memory_space<vmem>>) attributes {dimension_semantics = [#tpu.dimension_semantics<parallel>], iteration_bounds = array<i64: 4>, scalar_prefetch = 0 : i64, scratch_operands = 0 : i64, tpu.core_type = #tpu.core_type<tc>, window_params = [{pipeline_mode = #tpu.pipeline_mode<synchronous>, transform_indices = @transform_0, window_bounds = array<i64: 16, 288>}, {transform_indices = @transform_1, window_bounds = array<i64: 288, 512>}, {transform_indices = @transform_2, window_bounds = array<i64: 16, 512>}, {transform_indices = @transform_3, window_bounds = array<i64: 1, 16, 1>}, {transform_indices = @transform_4, window_bounds = array<i64: 1, 16, 1>}]} {
    %c0 = arith.constant 0 : index
    %c0_0 = arith.constant 0 : index
    %0 = vector.load %arg1[%c0, %c0_0] : memref<16x288xf32, #tpu.memory_space<vmem>>, vector<16x288xf32>
    %c0_1 = arith.constant 0 : index
    %c0_2 = arith.constant 0 : index
    %1 = vector.load %arg2[%c0_1, %c0_2] : memref<288x512xf32, #tpu.memory_space<vmem>>, vector<288x512xf32>
    %cst = arith.constant dense<0.000000e+00> : vector<16x512xf32>
    %2 = tpu.matmul %0, %1, %cst {dimension_numbers = #tpu.dot_dimension_numbers<[1], [0], [0], [1], [0, 0, 1, 1], [], []>} : vector<16x288xf32>, vector<288x512xf32>, vector<16x512xf32> -> vector<16x512xf32>
    %c0_3 = arith.constant 0 : index
    %c0_4 = arith.constant 0 : index
    %3 = vector.load %arg3[%c0_3, %c0_4] : memref<16x512xf32, #tpu.memory_space<vmem>>, vector<16x512xf32>
    tpu.vector_store %arg3[%c0_3, %c0_4], %2 {strides = array<i32>} : memref<16x512xf32, #tpu.memory_space<vmem>>, vector<16x512xf32>,
    %cst_5 = arith.constant dense<0.000000e+00> : vector<16xf32>
    %4 = vector.multi_reduction <add>, %2, %cst_5 [1] : vector<16x512xf32> to vector<16xf32>
    %5 = vector.shape_cast %4 : vector<16xf32> to vector<16x1xf32>
    %6 = vector.shape_cast %5 : vector<16x1xf32> to vector<1x16x1xf32>
    %c0_6 = arith.constant 0 : index
    %c0_7 = arith.constant 0 : index
    %c0_8 = arith.constant 0 : index
    %7 = vector.load %arg4[%c0_6, %c0_7, %c0_8] : memref<1x16x1xf32, #tpu.memory_space<vmem>>, vector<1x16x1xf32>
    tpu.vector_store %arg4[%c0_6, %c0_7, %c0_8], %6 {strides = array<i32>} : memref<1x16x1xf32, #tpu.memory_space<vmem>>, vector<1x16x1xf32>,
    %8 = arith.mulf %2, %2 : vector<16x512xf32>
    %cst_9 = arith.constant dense<0.000000e+00> : vector<16xf32>
    %9 = vector.multi_reduction <add>, %8, %cst_9 [1] : vector<16x512xf32> to vector<16xf32>
    %10 = vector.shape_cast %9 : vector<16xf32> to vector<16x1xf32>
    %11 = vector.shape_cast %10 : vector<16x1xf32> to vector<1x16x1xf32>
    %c0_10 = arith.constant 0 : index
    %c0_11 = arith.constant 0 : index
    %c0_12 = arith.constant 0 : index
    %12 = vector.load %arg5[%c0_10, %c0_11, %c0_12] : memref<1x16x1xf32, #tpu.memory_space<vmem>>, vector<1x16x1xf32>
    tpu.vector_store %arg5[%c0_10, %c0_11, %c0_12], %11 {strides = array<i32>} : memref<1x16x1xf32, #tpu.memory_space<vmem>>, vector<1x16x1xf32>,
    return
  }
  func.func @transform_0(%arg0: i32) -> (i32, i32) {
    %c0_i32 = arith.constant 0 : i32
    %c0_i32_0 = arith.constant 0 : i32
    %c0_i32_1 = arith.constant 0 : i32
    return %c0_i32, %c0_i32_0 : i32, i32
  }
  func.func @transform_1(%arg0: i32) -> (i32, i32) {
    %c0_i32 = arith.constant 0 : i32
    %c0_i32_0 = arith.constant 0 : i32
    return %c0_i32, %arg0 : i32, i32
  }
  func.func @transform_2(%arg0: i32) -> (i32, i32) {
    %c0_i32 = arith.constant 0 : i32
    %c0_i32_0 = arith.constant 0 : i32
    return %c0_i32, %arg0 : i32, i32
  }
  func.func @transform_3(%arg0: i32) -> (i32, i32, i32) {
    %c0_i32 = arith.constant 0 : i32
    %c0_i32_0 = arith.constant 0 : i32
    %c0_i32_1 = arith.constant 0 : i32
    return %arg0, %c0_i32, %c0_i32_0 : i32, i32, i32
  }
  func.func @transform_4(%arg0: i32) -> (i32, i32, i32) {
    %c0_i32 = arith.constant 0 : i32
    %c0_i32_0 = arith.constant 0 : i32
    %c0_i32_1 = arith.constant 0 : i32
    return %arg0, %c0_i32, %c0_i32_0 : i32, i32, i32
  }
}

module attributes {stable_mosaic.version = 11 : i64} {
  func.func @_matmul_bias_tanh_kernel(%arg0: i32, %arg1: memref<3x784xf32, #tpu.memory_space<vmem>>, %arg2: memref<784x512xf32, #tpu.memory_space<vmem>>, %arg3: memref<3x1xf32, #tpu.memory_space<vmem>>, %arg4: memref<3x512xf32, #tpu.memory_space<vmem>>) attributes {dimension_semantics = [#tpu.dimension_semantics<parallel>], iteration_bounds = array<i64: 4>, scalar_prefetch = 0 : i64, scratch_operands = 0 : i64, tpu.core_type = #tpu.core_type<tc>, window_params = [{pipeline_mode = #tpu.pipeline_mode<synchronous>, transform_indices = @transform_0, window_bounds = array<i64: 3, 784>}, {transform_indices = @transform_1, window_bounds = array<i64: 784, 512>}, {pipeline_mode = #tpu.pipeline_mode<synchronous>, transform_indices = @transform_2, window_bounds = array<i64: 3, 1>}, {transform_indices = @transform_3, window_bounds = array<i64: 3, 512>}]} {
    %c0 = arith.constant 0 : index
    %c0_0 = arith.constant 0 : index
    %0 = vector.load %arg1[%c0, %c0_0] : memref<3x784xf32, #tpu.memory_space<vmem>>, vector<3x784xf32>
    %c0_1 = arith.constant 0 : index
    %c0_2 = arith.constant 0 : index
    %1 = vector.load %arg2[%c0_1, %c0_2] : memref<784x512xf32, #tpu.memory_space<vmem>>, vector<784x512xf32>
    %cst = arith.constant dense<0.000000e+00> : vector<3x512xf32>
    %2 = tpu.matmul %0, %1, %cst {dimension_numbers = #tpu.dot_dimension_numbers<[1], [0], [0], [1], [0, 0, 1, 1], [], []>} : vector<3x784xf32>, vector<784x512xf32>, vector<3x512xf32> -> vector<3x512xf32>
    %c0_3 = arith.constant 0 : index
    %c0_4 = arith.constant 0 : index
    %3 = vector.load %arg3[%c0_3, %c0_4] : memref<3x1xf32, #tpu.memory_space<vmem>>, vector<3x1xf32>
    %4 = vector.broadcast %3 : vector<3x1xf32> to vector<3x512xf32>
    %5 = arith.addf %2, %4 : vector<3x512xf32>
    %6 = math.tanh %5 : vector<3x512xf32>
    %c0_5 = arith.constant 0 : index
    %c0_6 = arith.constant 0 : index
    %7 = vector.load %arg4[%c0_5, %c0_6] : memref<3x512xf32, #tpu.memory_space<vmem>>, vector<3x512xf32>
    tpu.vector_store %arg4[%c0_5, %c0_6], %6 {strides = array<i32>} : memref<3x512xf32, #tpu.memory_space<vmem>>, vector<3x512xf32>,
    return
  }
  func.func @transform_0(%arg0: i32) -> (i32, i32) {
    %c0_i32 = arith.constant 0 : i32
    %c0_i32_0 = arith.constant 0 : i32
    %c0_i32_1 = arith.constant 0 : i32
    return %c0_i32, %c0_i32_0 : i32, i32
  }
  func.func @transform_1(%arg0: i32) -> (i32, i32) {
    %c0_i32 = arith.constant 0 : i32
    %c0_i32_0 = arith.constant 0 : i32
    return %c0_i32, %arg0 : i32, i32
  }
  func.func @transform_2(%arg0: i32) -> (i32, i32) {
    %c0_i32 = arith.constant 0 : i32
    %c0_i32_0 = arith.constant 0 : i32
    %c0_i32_1 = arith.constant 0 : i32
    return %c0_i32, %c0_i32_0 : i32, i32
  }
  func.func @transform_3(%arg0: i32) -> (i32, i32) {
    %c0_i32 = arith.constant 0 : i32
    %c0_i32_0 = arith.constant 0 : i32
    return %c0_i32, %arg0 : i32, i32
  }
}

</mosaic_0001>

<llo_original>
// kernel: _lambda_.20
$region0: #{_lambda_.20}
  #allocation0 [shape = 'u32[]', space=smem, size = 0x4, offset = 0x4, fixed_abs, tag = 'smem constant byte address 0x4 - core index']
  #allocation1 [shape = 'u32[72,128]{1,0:T(1,128)}', space=vmem, size = 0x9000, scoped, tag = 'internal scratch']
  %s0 = inlined_call_operand.vmem [shape: f32[16,2048], index: 0, kind: input, shape index: {}]
  %s1 = inlined_call_operand.vmem [shape: f32[16,1], index: 1, kind: input, shape index: {}]
  %s2 = inlined_call_operand.vmem [shape: f32[16,1], index: 2, kind: input, shape index: {}]
  %s3 = inlined_call_operand.vmem [shape: f32[16,2048], index: 3, kind: output, shape index: {}]
  %s4 = sld [smem:[#allocation0]]
  $region87: #{_lambda_.20} parent=0
    _
  %s6 = ssub.s32 1, %s4
  %s7 = scalar_select 0, %s6, %s4
  $region1: #{_lambda_.20} parent=0
    #allocation2 [shape = 'u8[65536]{0}', space=vmem, size = 0x10000, scoped, tag = 'input window, operand 0']
    #allocation3 [shape = 'u8[65536]{0}', space=vmem, size = 0x10000, scoped, tag = 'output window, operand 0']
    loop: start=0, step=1, limit=6
    $region2: #{_lambda_.20} parent=1 // loop_pre_header
      _
    $region3: #{_lambda_.20} parent=1 // loop_header
      %s9 = sphi 0, %s13
      %p10 = scmp.ge.s32.totalorder %s9, 6
      %s19 = sphi 0, %s21
      %s22 = sphi 0, %s19
      %s23 = sphi 0, %s22
      %s39 = sphi 0, %s23
      %s43 = sphi 0, %s43
      %s45 = sphi 0, %s43
      %s46 = sphi 0, %s45
      %s60 = sphi 0, %s46
      %s64 = sphi 0, %s64
      %s66 = sphi 0, %s64
      %s67 = sphi 0, %s66
      %s81 = sphi 0, %s67
      %s87 = sphi 0, %s89
      %s90 = sphi 0, %s87
      %s91 = sphi 0, %s90
      %s107 = sphi 0, %s91
    $region4: #{_lambda_.20} parent=1 // loop_header_branch
      %12 = sbr.rel (%p10) target = $region8
    $region5: #{_lambda_.20} parent=1 // loop_body
      %s14 = ssub.s32 %s9, 1
      %s15 = ssub.s32 %s9, 2
      %s16 = sadd.s32 %s9, 1
      %s17 = ssub.s32 %s9, %s16
      %p18 = scmp.eq.s32.totalorder %s17, 0
      %s20 = sadd.s32 %s19, 1
      %s21 = scalar_select %p18, %s19, %s20
      %p24 = pneg %p18
      %p25 = scmp.eq.s32.totalorder %s9, 3
      %p26 = por %p24, %p25
      %p27 = scmp.ne.s32.totalorder %s19, %s22
      %p28 = scmp.eq.s32.totalorder %s9, 0
      %p29 = por %p27, %p28
      %p30 = scmp.ne.s32.totalorder %s19, %s22
      %p31 = scmp.eq.s32.totalorder %s14, 3
      %p32 = por %p30, %p31
      %p33 = scmp.ne.s32.totalorder %s22, %s23
      %p34 = scmp.eq.s32.totalorder %s14, 0
      %p35 = por %p33, %p34
      %p36 = scmp.ne.s32.totalorder %s22, %s23
      %p37 = scmp.eq.s32.totalorder %s15, 3
      %p38 = por %p36, %p37
      %p40 = scmp.ne.s32.totalorder %s23, %s39
      %p41 = scmp.eq.s32.totalorder %s15, 0
      %p42 = por %p40, %p41
      %s44 = sadd.s32 %s43, 1
      %p47 = scmp.eq.s32.totalorder %s9, 3
      %p48 = scmp.ne.s32.totalorder %s43, %s45
      %p49 = scmp.eq.s32.totalorder %s9, 0
      %p50 = por %p48, %p49
      %p51 = scmp.ne.s32.totalorder %s43, %s45
      %p52 = scmp.eq.s32.totalorder %s14, 3
      %p53 = por %p51, %p52
      %p54 = scmp.ne.s32.totalorder %s45, %s46
      %p55 = scmp.eq.s32.totalorder %s14, 0
      %p56 = por %p54, %p55
      %p57 = scmp.ne.s32.totalorder %s45, %s46
      %p58 = scmp.eq.s32.totalorder %s15, 3
      %p59 = por %p57, %p58
      %p61 = scmp.ne.s32.totalorder %s46, %s60
      %p62 = scmp.eq.s32.totalorder %s15, 0
      %p63 = por %p61, %p62
      %s65 = sadd.s32 %s64, 1
      %p68 = scmp.eq.s32.totalorder %s9, 3
      %p69 = scmp.ne.s32.totalorder %s64, %s66
      %p70 = scmp.eq.s32.totalorder %s9, 0
      %p71 = por %p69, %p70
      %p72 = scmp.ne.s32.totalorder %s64, %s66
      %p73 = scmp.eq.s32.totalorder %s14, 3
      %p74 = por %p72, %p73
      %p75 = scmp.ne.s32.totalorder %s66, %s67
      %p76 = scmp.eq.s32.totalorder %s14, 0
      %p77 = por %p75, %p76
      %p78 = scmp.ne.s32.totalorder %s66, %s67
      %p79 = scmp.eq.s32.totalorder %s15, 3
      %p80 = por %p78, %p79
      %p82 = scmp.ne.s32.totalorder %s67, %s81
      %p83 = scmp.eq.s32.totalorder %s15, 0
      %p84 = por %p82, %p83
      %s85 = ssub.s32 %s9, %s16
      %p86 = scmp.eq.s32.totalorder %s85, 0
      %s88 = sadd.s32 %s87, 1
      %s89 = scalar_select %p86, %s87, %s88
      %p92 = pneg %p86
      %p93 = scmp.eq.s32.totalorder %s9, 3
      %p94 = por %p92, %p93
      %p95 = scmp.ne.s32.totalorder %s87, %s90
      %p96 = scmp.eq.s32.totalorder %s9, 0
      %p97 = por %p95, %p96
      %p98 = scmp.ne.s32.totalorder %s87, %s90
      %p99 = scmp.eq.s32.totalorder %s14, 3
      %p100 = por %p98, %p99
      %p101 = scmp.ne.s32.totalorder %s90, %s91
      %p102 = scmp.eq.s32.totalorder %s14, 0
      %p103 = por %p101, %p102
      %p104 = scmp.ne.s32.totalorder %s90, %s91
      %p105 = scmp.eq.s32.totalorder %s15, 3
      %p106 = por %p104, %p105
      %p108 = scmp.ne.s32.totalorder %s91, %s107
      %p109 = scmp.eq.s32.totalorder %s15, 0
      %p110 = por %p108, %p109
      %p111 = scmp.le.s32.totalorder 1, %s9
      %p112 = scmp.lt.s32.totalorder %s9, 5
      %p113 = pnand %p111, %p112
      %p114 = pneg %p113
      // Predicated region
      $region9: #{_lambda_.20} parent=5 // pred_check
        _
      $region10: #{_lambda_.20} parent=5 // pred_check_branch
        %116 = sbr.rel (%p113) target = $region12
      $region11: #{_lambda_.20} parent=5 // pred_region
        %s117 = ssub.s32 %s9, 1
        // Predicated region
        $region13: #{_lambda_.20} parent=11 // pred_check
          %p118 = pneg %p56
        $region14: #{_lambda_.20} parent=11 // pred_check_branch
          %120 = sbr.rel (%p118) target = $region16
        $region15: #{_lambda_.20} parent=11 // pred_region
          _
        $region16: #{_lambda_.20} parent=11 // pred_fallthru
          _
        // Predicated region
        $region17: #{_lambda_.20} parent=11 // pred_check
          %p121 = pneg %p77
        $region18: #{_lambda_.20} parent=11 // pred_check_branch
          %123 = sbr.rel (%p121) target = $region20
        $region19: #{_lambda_.20} parent=11 // pred_region
          _
        $region20: #{_lambda_.20} parent=11 // pred_fallthru
          _
      $region12: #{_lambda_.20} parent=5 // pred_fallthru
        _
      %p124 = scmp.lt.s32.totalorder %s9, 4
      // Predicated region
      $region21: #{_lambda_.20} parent=5 // pred_check
        %p125 = pneg %p124
      $region22: #{_lambda_.20} parent=5 // pred_check_branch
        %127 = sbr.rel (%p125) target = $region24
      $region23: #{_lambda_.20} parent=5 // pred_region
        // Predicated region
        $region25: #{_lambda_.20} parent=23 // pred_check
          %p128 = pneg %p29
        $region26: #{_lambda_.20} parent=23 // pred_check_branch
          %130 = sbr.rel (%p128) target = $region28
        $region27: #{_lambda_.20} parent=23 // pred_region
          %s131 = sand.u32 %s19, 1
          %s132 = sand.u32 %s19, 1
          %s133 = smul.addr %s132, 64
          %s134 = scalar_lea.vmem [#allocation2], %s133
          %s135 = smul.u32 4, %s9
          %s136 = smul.addr %s135, 8
          %s137 = scalar_lea.vmem %s0, %s136
          // Predicated region
          $region29: #{_lambda_.20} parent=27 // pred_check
            _
          $region30: #{_lambda_.20} parent=27 // pred_check_branch
            %139 = sbr.rel (0) target = $region32
          $region31: #{_lambda_.20} parent=27 // pred_region
            // Predicated region
            $region33: #{_lambda_.20} parent=31 // pred_check
              _
            $region34: #{_lambda_.20} parent=31 // pred_check_branch
              %141 = sbr.rel (0) target = $region36
            $region35: #{_lambda_.20} parent=31 // pred_region
              loop: start=0, step=1, limit=1
              $region37: #{_lambda_.20} parent=35 // loop_pre_header
                _
              $region38: #{_lambda_.20} parent=35 // loop_header
                %s143 = sphi 0, %s147
                %p144 = scmp.ge.s32.totalorder %s143, 1
                %s148 = sphi %s137, %s137
                %s149 = sphi %s134, %s134
              $region39: #{_lambda_.20} parent=35 // loop_header_branch
                %146 = sbr.rel (%p144) target = $region43
              $region40: #{_lambda_.20} parent=35 // loop_body
                %v150 = vld [vmem:[%s148] sm:$0xff]
                %151 = vst [vmem:[%s149] sm:$0xff] %v150
                %v152 = vld [vmem:[%s148 + $0x8] sm:$0xff]
                %153 = vst [vmem:[%s149 + $0x8] sm:$0xff] %v152
                %v154 = vld [vmem:[%s148 + $0x10] sm:$0xff]
                %155 = vst [vmem:[%s149 + $0x10] sm:$0xff] %v154
                %v156 = vld [vmem:[%s148 + $0x18] sm:$0xff]
                %157 = vst [vmem:[%s149 + $0x18] sm:$0xff] %v156
                %v158 = vld [vmem:[%s148 + $0x80] sm:$0xff]
                %159 = vst [vmem:[%s149 + $0x20] sm:$0xff] %v158
                %v160 = vld [vmem:[%s148 + $0x88] sm:$0xff]
                %161 = vst [vmem:[%s149 + $0x28] sm:$0xff] %v160
                %v162 = vld [vmem:[%s148 + $0x90] sm:$0xff]
                %163 = vst [vmem:[%s149 + $0x30] sm:$0xff] %v162
                %v164 = vld [vmem:[%s148 + $0x98] sm:$0xff]
                %165 = vst [vmem:[%s149 + $0x38] sm:$0xff] %v164
              $region41: #{_lambda_.20} parent=35 // loop_footer
                %s147 = sadd.s32 1, %s143
              $region42: #{_lambda_.20} parent=35 // loop_footer_branch
                %142 = sbr.rel target = $region38
              $region43: #{_lambda_.20} parent=35 // loop_exit
                _
            $region36: #{_lambda_.20} parent=31 // pred_fallthru
              _
            // Predicated region
            $region44: #{_lambda_.20} parent=31 // pred_check
              _
            $region45: #{_lambda_.20} parent=31 // pred_check_branch
              %167 = sbr.rel target = $region47
            $region46: #{_lambda_.20} parent=31 // pred_region
              _
            $region47: #{_lambda_.20} parent=31 // pred_fallthru
              _
          $region32: #{_lambda_.20} parent=27 // pred_fallthru
            _
          %168 = vnop
        $region28: #{_lambda_.20} parent=23 // pred_fallthru
          _
      $region24: #{_lambda_.20} parent=5 // pred_fallthru
        _
      %p169 = scmp.le.s32.totalorder 1, %s9
      %p170 = scmp.lt.s32.totalorder %s9, 5
      %p171 = pnand %p169, %p170
      %p172 = pneg %p171
      // Predicated region
      $region48: #{_lambda_.20} parent=5 // pred_check
        _
      $region49: #{_lambda_.20} parent=5 // pred_check_branch
        %174 = sbr.rel (%p171) target = $region51
      $region50: #{_lambda_.20} parent=5 // pred_region
        %s175 = ssub.s32 %s9, 1
        %s176 = sand.u32 %s22, 1
        %s177 = sand.u32 %s22, 1
        %s178 = smul.addr %s177, 64
        %s179 = scalar_lea.vmem [#allocation2], %s178
        // Predicated region
        $region52: #{_lambda_.20} parent=50 // pred_check
          %p180 = pneg %p35
        $region53: #{_lambda_.20} parent=50 // pred_check_branch
          %182 = sbr.rel (%p180) target = $region55
        $region54: #{_lambda_.20} parent=50 // pred_region
          _
        $region55: #{_lambda_.20} parent=50 // pred_fallthru
          _
        %s183 = sand.u32 %s22, 1
        %s184 = sand.u32 %s22, 1
        %s185 = smul.addr %s184, 64
        %s186 = scalar_lea.vmem [#allocation2], %s185
        %p187 = pneg %p35
        %p188 = pneg %p32
        %p189 = pneg %p56
        %p190 = pneg %p53
        %p191 = pneg %p77
        %p192 = pneg %p74
        %p193 = pneg %p103
        %p194 = pneg %p100
        %s195 = sand.u32 %s90, 1
        %s196 = sand.u32 %s90, 1
        %s197 = smul.addr %s196, 64
        %s198 = scalar_lea.vmem [#allocation3], %s197
        %s199 = smul.u32 4, %s14
        %s200 = smul.u32 4, %s14
        %v201 = vld [vmem:[%s179] sm:$0xff]
        %v202 = vld [vmem:[%s179 + $0x8] sm:$0xff]
        %v203 = vld [vmem:[%s179 + $0x10] sm:$0xff]
        %v204 = vld [vmem:[%s179 + $0x18] sm:$0xff]
        %v205 = vld [vmem:[%s179 + $0x20] sm:$0xff]
        %v206 = vld [vmem:[%s179 + $0x28] sm:$0xff]
        %v207 = vld [vmem:[%s179 + $0x30] sm:$0xff]
        %v208 = vld [vmem:[%s179 + $0x38] sm:$0xff]
        %v209 = vld [vmem:[%s1] sm:$0xff]
        %v210 = vld [vmem:[%s1 + $0x8] sm:$0xff]
        %212 = vset.pattern.permute.xlu0 0
        %213 = vperm.xlu0 %212, %v209
        %v214 = vpop.permute.xlu0 %213
        %217 = vset.pattern.permute.xlu0 0
        %218 = vperm.xlu0 %217, %v210
        %v219 = vpop.permute.xlu0 %218
        %v221 = vmul.f32 %v201, %v214
        %v222 = vmul.f32 %v202, %v214
        %v223 = vmul.f32 %v203, %v214
        %v224 = vmul.f32 %v204, %v214
        %v225 = vmul.f32 %v205, %v219
        %v226 = vmul.f32 %v206, %v219
        %v227 = vmul.f32 %v207, %v219
        %v228 = vmul.f32 %v208, %v219
        %v229 = vld [vmem:[%s2] sm:$0xff]
        %v230 = vld [vmem:[%s2 + $0x8] sm:$0xff]
        %232 = vset.pattern.permute.xlu0 0
        %233 = vperm.xlu0 %232, %v229
        %v234 = vpop.permute.xlu0 %233
        %237 = vset.pattern.permute.xlu0 0
        %238 = vperm.xlu0 %237, %v230
        %v239 = vpop.permute.xlu0 %238
        %v241 = vadd.f32 %v221, %v234
        %v242 = vadd.f32 %v222, %v234
        %v243 = vadd.f32 %v223, %v234
        %v244 = vadd.f32 %v224, %v234
        %v245 = vadd.f32 %v225, %v239
        %v246 = vadd.f32 %v226, %v239
        %v247 = vadd.f32 %v227, %v239
        %v248 = vadd.f32 %v228, %v239
        %v249 = vmax.f32 %v241, 0.0
        %v250 = vmax.f32 %v242, 0.0
        %v251 = vmax.f32 %v243, 0.0
        %v252 = vmax.f32 %v244, 0.0
        %v253 = vmax.f32 %v245, 0.0
        %v254 = vmax.f32 %v246, 0.0
        %v255 = vmax.f32 %v247, 0.0
        %v256 = vmax.f32 %v248, 0.0
        %257 = vst [vmem:[%s198] sm:$0xff] %v249
        %258 = vst [vmem:[%s198 + $0x8] sm:$0xff] %v250
        %259 = vst [vmem:[%s198 + $0x10] sm:$0xff] %v251
        %260 = vst [vmem:[%s198 + $0x18] sm:$0xff] %v252
        %261 = vst [vmem:[%s198 + $0x20] sm:$0xff] %v253
        %262 = vst [vmem:[%s198 + $0x28] sm:$0xff] %v254
        %263 = vst [vmem:[%s198 + $0x30] sm:$0xff] %v255
        %264 = vst [vmem:[%s198 + $0x38] sm:$0xff] %v256
        %s265 = sand.u32 %s90, 1
        %s266 = sand.u32 %s90, 1
        %s267 = smul.addr %s266, 64
        %s268 = scalar_lea.vmem [#allocation3], %s267
        // Predicated region
        $region56: #{_lambda_.20} parent=50 // pred_check
          %p269 = pneg %p100
        $region57: #{_lambda_.20} parent=50 // pred_check_branch
          %271 = sbr.rel (%p269) target = $region59
        $region58: #{_lambda_.20} parent=50 // pred_region
          %s272 = smul.u32 4, %s14
          %s273 = smul.addr %s272, 8
          %s274 = scalar_lea.vmem %s3, %s273
          // Predicated region
          $region60: #{_lambda_.20} parent=58 // pred_check
            _
          $region61: #{_lambda_.20} parent=58 // pred_check_branch
            %276 = sbr.rel (0) target = $region63
          $region62: #{_lambda_.20} parent=58 // pred_region
            // Predicated region
            $region64: #{_lambda_.20} parent=62 // pred_check
              _
            $region65: #{_lambda_.20} parent=62 // pred_check_branch
              %278 = sbr.rel (0) target = $region67
            $region66: #{_lambda_.20} parent=62 // pred_region
              loop: start=0, step=1, limit=1
              $region68: #{_lambda_.20} parent=66 // loop_pre_header
                _
              $region69: #{_lambda_.20} parent=66 // loop_header
                %s280 = sphi 0, %s284
                %p281 = scmp.ge.s32.totalorder %s280, 1
                %s285 = sphi %s268, %s268
                %s286 = sphi %s274, %s274
              $region70: #{_lambda_.20} parent=66 // loop_header_branch
                %283 = sbr.rel (%p281) target = $region74
              $region71: #{_lambda_.20} parent=66 // loop_body
                %v287 = vld [vmem:[%s285] sm:$0xff]
                %288 = vst [vmem:[%s286] sm:$0xff] %v287
                %v289 = vld [vmem:[%s285 + $0x8] sm:$0xff]
                %290 = vst [vmem:[%s286 + $0x8] sm:$0xff] %v289
                %v291 = vld [vmem:[%s285 + $0x10] sm:$0xff]
                %292 = vst [vmem:[%s286 + $0x10] sm:$0xff] %v291
                %v293 = vld [vmem:[%s285 + $0x18] sm:$0xff]
                %294 = vst [vmem:[%s286 + $0x18] sm:$0xff] %v293
                %v295 = vld [vmem:[%s285 + $0x20] sm:$0xff]
                %296 = vst [vmem:[%s286 + $0x80] sm:$0xff] %v295
                %v297 = vld [vmem:[%s285 + $0x28] sm:$0xff]
                %298 = vst [vmem:[%s286 + $0x88] sm:$0xff] %v297
                %v299 = vld [vmem:[%s285 + $0x30] sm:$0xff]
                %300 = vst [vmem:[%s286 + $0x90] sm:$0xff] %v299
                %v301 = vld [vmem:[%s285 + $0x38] sm:$0xff]
                %302 = vst [vmem:[%s286 + $0x98] sm:$0xff] %v301
              $region72: #{_lambda_.20} parent=66 // loop_footer
                %s284 = sadd.s32 1, %s280
              $region73: #{_lambda_.20} parent=66 // loop_footer_branch
                %279 = sbr.rel target = $region69
              $region74: #{_lambda_.20} parent=66 // loop_exit
                _
            $region67: #{_lambda_.20} parent=62 // pred_fallthru
              _
            // Predicated region
            $region75: #{_lambda_.20} parent=62 // pred_check
              _
            $region76: #{_lambda_.20} parent=62 // pred_check_branch
              %304 = sbr.rel target = $region78
            $region77: #{_lambda_.20} parent=62 // pred_region
              _
            $region78: #{_lambda_.20} parent=62 // pred_fallthru
              _
          $region63: #{_lambda_.20} parent=58 // pred_fallthru
            _
          %305 = vnop
        $region59: #{_lambda_.20} parent=50 // pred_fallthru
          _
      $region51: #{_lambda_.20} parent=5 // pred_fallthru
        _
      %p306 = scmp.le.s32.totalorder 2, %s9
      // Predicated region
      $region79: #{_lambda_.20} parent=5 // pred_check
        %p307 = pneg %p306
      $region80: #{_lambda_.20} parent=5 // pred_check_branch
        %309 = sbr.rel (%p307) target = $region82
      $region81: #{_lambda_.20} parent=5 // pred_region
        %s310 = ssub.s32 %s9, 2
        // Predicated region
        $region83: #{_lambda_.20} parent=81 // pred_check
          %p311 = pneg %p106
        $region84: #{_lambda_.20} parent=81 // pred_check_branch
          %313 = sbr.rel (%p311) target = $region86
        $region85: #{_lambda_.20} parent=81 // pred_region
          %s314 = sand.u32 %s91, 1
          %s315 = sand.u32 %s91, 1
          %s316 = smul.addr %s315, 64
          %s317 = scalar_lea.vmem [#allocation3], %s316
        $region86: #{_lambda_.20} parent=81 // pred_fallthru
          _
      $region82: #{_lambda_.20} parent=5 // pred_fallthru
        _
    $region6: #{_lambda_.20} parent=1 // loop_footer
      %s13 = sadd.s32 1, %s9
    $region7: #{_lambda_.20} parent=1 // loop_footer_branch
      %8 = sbr.rel target = $region3
    $region8: #{_lambda_.20} parent=1 // loop_exit
      _

// kernel: _lambda_.19
$region0: #{_lambda_.19}
  #allocation0 [shape = 'u32[]', space=smem, size = 0x4, offset = 0x4, fixed_abs, tag = 'smem constant byte address 0x4 - core index']
  #allocation1 [shape = 'u32[72,128]{1,0:T(1,128)}', space=vmem, size = 0x9000, scoped, tag = 'internal scratch']
  %s0 = inlined_call_operand.vmem [shape: f32[16,147], index: 0, kind: input, shape index: {}]
  %s1 = inlined_call_operand.vmem [shape: f32[147,2048], index: 1, kind: input, shape index: {}]
  %s2 = inlined_call_operand.vmem [shape: f32[16,2048], index: 2, kind: output, shape index: {0}]
  %s3 = inlined_call_operand.vmem [shape: f32[4,16,1], index: 3, kind: output, shape index: {1}]
  %s4 = inlined_call_operand.vmem [shape: f32[4,16,1], index: 4, kind: output, shape index: {2}]
  %5 = xla_tuple %s2, %s3, %s4
  %s6 = sld [smem:[#allocation0]]
  $region99: #{_lambda_.19} parent=0
    _
  %s8 = ssub.s32 1, %s6
  %s9 = scalar_select 0, %s8, %s6
  $region1: #{_lambda_.19} parent=0
    #allocation2 [shape = 'u8[622592]{0}', space=vmem, size = 0x98000, scoped, tag = 'input window, operand 1']
    #allocation3 [shape = 'u8[65536]{0}', space=vmem, size = 0x10000, scoped, tag = 'output window, operand 0']
    loop: start=0, step=1, limit=6
    $region2: #{_lambda_.19} parent=1 // loop_pre_header
      _
    $region3: #{_lambda_.19} parent=1 // loop_header
      %s11 = sphi 0, %s15
      %p12 = scmp.ge.s32.totalorder %s11, 6
      %s19 = sphi 0, %s19
      %s21 = sphi 0, %s19
      %s22 = sphi 0, %s21
      %s36 = sphi 0, %s22
      %s42 = sphi 0, %s44
      %s45 = sphi 0, %s42
      %s46 = sphi 0, %s45
      %s62 = sphi 0, %s46
      %s68 = sphi 0, %s70
      %s71 = sphi 0, %s68
      %s72 = sphi 0, %s71
      %s88 = sphi 0, %s72
      %s94 = sphi 0, %s96
      %s97 = sphi 0, %s94
      %s98 = sphi 0, %s97
      %s114 = sphi 0, %s98
      %s120 = sphi 0, %s122
      %s123 = sphi 0, %s120
      %s124 = sphi 0, %s123
      %s140 = sphi 0, %s124
    $region4: #{_lambda_.19} parent=1 // loop_header_branch
      %14 = sbr.rel (%p12) target = $region8
    $region5: #{_lambda_.19} parent=1 // loop_body
      %s16 = ssub.s32 %s11, 1
      %s17 = ssub.s32 %s11, 2
      %s18 = sadd.s32 %s11, 1
      %s20 = sadd.s32 %s19, 1
      %p23 = scmp.eq.s32.totalorder %s11, 3
      %p24 = scmp.ne.s32.totalorder %s19, %s21
      %p25 = scmp.eq.s32.totalorder %s11, 0
      %p26 = por %p24, %p25
      %p27 = scmp.ne.s32.totalorder %s19, %s21
      %p28 = scmp.eq.s32.totalorder %s16, 3
      %p29 = por %p27, %p28
      %p30 = scmp.ne.s32.totalorder %s21, %s22
      %p31 = scmp.eq.s32.totalorder %s16, 0
      %p32 = por %p30, %p31
      %p33 = scmp.ne.s32.totalorder %s21, %s22
      %p34 = scmp.eq.s32.totalorder %s17, 3
      %p35 = por %p33, %p34
      %p37 = scmp.ne.s32.totalorder %s22, %s36
      %p38 = scmp.eq.s32.totalorder %s17, 0
      %p39 = por %p37, %p38
      %s40 = ssub.s32 %s11, %s18
      %p41 = scmp.eq.s32.totalorder %s40, 0
      %s43 = sadd.s32 %s42, 1
      %s44 = scalar_select %p41, %s42, %s43
      %p47 = pneg %p41
      %p48 = scmp.eq.s32.totalorder %s11, 3
      %p49 = por %p47, %p48
      %p50 = scmp.ne.s32.totalorder %s42, %s45
      %p51 = scmp.eq.s32.totalorder %s11, 0
      %p52 = por %p50, %p51
      %p53 = scmp.ne.s32.totalorder %s42, %s45
      %p54 = scmp.eq.s32.totalorder %s16, 3
      %p55 = por %p53, %p54
      %p56 = scmp.ne.s32.totalorder %s45, %s46
      %p57 = scmp.eq.s32.totalorder %s16, 0
      %p58 = por %p56, %p57
      %p59 = scmp.ne.s32.totalorder %s45, %s46
      %p60 = scmp.eq.s32.totalorder %s17, 3
      %p61 = por %p59, %p60
      %p63 = scmp.ne.s32.totalorder %s46, %s62
      %p64 = scmp.eq.s32.totalorder %s17, 0
      %p65 = por %p63, %p64
      %s66 = ssub.s32 %s11, %s18
      %p67 = scmp.eq.s32.totalorder %s66, 0
      %s69 = sadd.s32 %s68, 1
      %s70 = scalar_select %p67, %s68, %s69
      %p73 = pneg %p67
      %p74 = scmp.eq.s32.totalorder %s11, 3
      %p75 = por %p73, %p74
      %p76 = scmp.ne.s32.totalorder %s68, %s71
      %p77 = scmp.eq.s32.totalorder %s11, 0
      %p78 = por %p76, %p77
      %p79 = scmp.ne.s32.totalorder %s68, %s71
      %p80 = scmp.eq.s32.totalorder %s16, 3
      %p81 = por %p79, %p80
      %p82 = scmp.ne.s32.totalorder %s71, %s72
      %p83 = scmp.eq.s32.totalorder %s16, 0
      %p84 = por %p82, %p83
      %p85 = scmp.ne.s32.totalorder %s71, %s72
      %p86 = scmp.eq.s32.totalorder %s17, 3
      %p87 = por %p85, %p86
      %p89 = scmp.ne.s32.totalorder %s72, %s88
      %p90 = scmp.eq.s32.totalorder %s17, 0
      %p91 = por %p89, %p90
      %s92 = ssub.s32 %s11, %s18
      %p93 = scmp.eq.s32.totalorder %s92, 0
      %s95 = sadd.s32 %s94, 1
      %s96 = scalar_select %p93, %s94, %s95
      %p99 = pneg %p93
      %p100 = scmp.eq.s32.totalorder %s11, 3
      %p101 = por %p99, %p100
      %p102 = scmp.ne.s32.totalorder %s94, %s97
      %p103 = scmp.eq.s32.totalorder %s11, 0
      %p104 = por %p102, %p103
      %p105 = scmp.ne.s32.totalorder %s94, %s97
      %p106 = scmp.eq.s32.totalorder %s16, 3
      %p107 = por %p105, %p106
      %p108 = scmp.ne.s32.totalorder %s97, %s98
      %p109 = scmp.eq.s32.totalorder %s16, 0
      %p110 = por %p108, %p109
      %p111 = scmp.ne.s32.totalorder %s97, %s98
      %p112 = scmp.eq.s32.totalorder %s17, 3
      %p113 = por %p111, %p112
      %p115 = scmp.ne.s32.totalorder %s98, %s114
      %p116 = scmp.eq.s32.totalorder %s17, 0
      %p117 = por %p115, %p116
      %s118 = ssub.s32 %s11, %s18
      %p119 = scmp.eq.s32.totalorder %s118, 0
      %s121 = sadd.s32 %s120, 1
      %s122 = scalar_select %p119, %s120, %s121
      %p125 = pneg %p119
      %p126 = scmp.eq.s32.totalorder %s11, 3
      %p127 = por %p125, %p126
      %p128 = scmp.ne.s32.totalorder %s120, %s123
      %p129 = scmp.eq.s32.totalorder %s11, 0
      %p130 = por %p128, %p129
      %p131 = scmp.ne.s32.totalorder %s120, %s123
      %p132 = scmp.eq.s32.totalorder %s16, 3
      %p133 = por %p131, %p132
      %p134 = scmp.ne.s32.totalorder %s123, %s124
      %p135 = scmp.eq.s32.totalorder %s16, 0
      %p136 = por %p134, %p135
      %p137 = scmp.ne.s32.totalorder %s123, %s124
      %p138 = scmp.eq.s32.totalorder %s17, 3
      %p139 = por %p137, %p138
      %p141 = scmp.ne.s32.totalorder %s124, %s140
      %p142 = scmp.eq.s32.totalorder %s17, 0
      %p143 = por %p141, %p142
      %p144 = scmp.le.s32.totalorder 1, %s11
      %p145 = scmp.lt.s32.totalorder %s11, 5
      %p146 = pnand %p144, %p145
      %p147 = pneg %p146
      // Predicated region
      $region9: #{_lambda_.19} parent=5 // pred_check
        _
      $region10: #{_lambda_.19} parent=5 // pred_check_branch
        %149 = sbr.rel (%p146) target = $region12
      $region11: #{_lambda_.19} parent=5 // pred_region
        %s150 = ssub.s32 %s11, 1
        // Predicated region
        $region13: #{_lambda_.19} parent=11 // pred_check
          %p151 = pneg %p32
        $region14: #{_lambda_.19} parent=11 // pred_check_branch
          %153 = sbr.rel (%p151) target = $region16
        $region15: #{_lambda_.19} parent=11 // pred_region
          _
        $region16: #{_lambda_.19} parent=11 // pred_fallthru
          _
      $region12: #{_lambda_.19} parent=5 // pred_fallthru
        _
      %p154 = scmp.lt.s32.totalorder %s11, 4
      // Predicated region
      $region17: #{_lambda_.19} parent=5 // pred_check
        %p155 = pneg %p154
      $region18: #{_lambda_.19} parent=5 // pred_check_branch
        %157 = sbr.rel (%p155) target = $region20
      $region19: #{_lambda_.19} parent=5 // pred_region
        // Predicated region
        $region21: #{_lambda_.19} parent=19 // pred_check
          %p158 = pneg %p52
        $region22: #{_lambda_.19} parent=19 // pred_check_branch
          %160 = sbr.rel (%p158) target = $region24
        $region23: #{_lambda_.19} parent=19 // pred_region
          %s161 = sand.u32 %s42, 1
          %s162 = sand.u32 %s42, 1
          %s163 = smul.addr %s162, 608
          %s164 = scalar_lea.vmem [#allocation2], %s163
          %s165 = smul.u32 4, %s11
          %s166 = smul.addr %s165, 8
          %s167 = scalar_lea.vmem %s1, %s166
          // Predicated region
          $region25: #{_lambda_.19} parent=23 // pred_check
            _
          $region26: #{_lambda_.19} parent=23 // pred_check_branch
            %169 = sbr.rel (0) target = $region28
          $region27: #{_lambda_.19} parent=23 // pred_region
            // Predicated region
            $region29: #{_lambda_.19} parent=27 // pred_check
              _
            $region30: #{_lambda_.19} parent=27 // pred_check_branch
              %171 = sbr.rel (0) target = $region32
            $region31: #{_lambda_.19} parent=27 // pred_region
              loop: start=0, step=1, limit=1
              $region33: #{_lambda_.19} parent=31 // loop_pre_header
                _
              $region34: #{_lambda_.19} parent=31 // loop_header
                %s173 = sphi 0, %s177
                %p174 = scmp.ge.s32.totalorder %s173, 1
                %s178 = sphi %s167, %s167
                %s179 = sphi %s164, %s164
              $region35: #{_lambda_.19} parent=31 // loop_header_branch
                %176 = sbr.rel (%p174) target = $region39
              $region36: #{_lambda_.19} parent=31 // loop_body
                %v180 = vld [vmem:[%s178] sm:$0xff]
                %181 = vst [vmem:[%s179] sm:$0xff] %v180
                %v182 = vld [vmem:[%s178 + $0x8] sm:$0xff]
                %183 = vst [vmem:[%s179 + $0x8] sm:$0xff] %v182
                %v184 = vld [vmem:[%s178 + $0x10] sm:$0xff]
                %185 = vst [vmem:[%s179 + $0x10] sm:$0xff] %v184
                %v186 = vld [vmem:[%s178 + $0x18] sm:$0xff]
                %187 = vst [vmem:[%s179 + $0x18] sm:$0xff] %v186
                %v188 = vld [vmem:[%s178 + $0x80] sm:$0xff]
                %189 = vst [vmem:[%s179 + $0x20] sm:$0xff] %v188
                %v190 = vld [vmem:[%s178 + $0x88] sm:$0xff]
                %191 = vst [vmem:[%s179 + $0x28] sm:$0xff] %v190
                %v192 = vld [vmem:[%s178 + $0x90] sm:$0xff]
                %193 = vst [vmem:[%s179 + $0x30] sm:$0xff] %v192
                %v194 = vld [vmem:[%s178 + $0x98] sm:$0xff]
                %195 = vst [vmem:[%s179 + $0x38] sm:$0xff] %v194
                %v196 = vld [vmem:[%s178 + $0x100] sm:$0xff]
                %197 = vst [vmem:[%s179 + $0x40] sm:$0xff] %v196
                %v198 = vld [vmem:[%s178 + $0x108] sm:$0xff]
                %199 = vst [vmem:[%s179 + $0x48] sm:$0xff] %v198
                %v200 = vld [vmem:[%s178 + $0x110] sm:$0xff]
                %201 = vst [vmem:[%s179 + $0x50] sm:$0xff] %v200
                %v202 = vld [vmem:[%s178 + $0x118] sm:$0xff]
                %203 = vst [vmem:[%s179 + $0x58] sm:$0xff] %v202
                %v204 = vld [vmem:[%s178 + $0x180] sm:$0xff]
                %205 = vst [vmem:[%s179 + $0x60] sm:$0xff] %v204
                %v206 = vld [vmem:[%s178 + $0x188] sm:$0xff]
                %207 = vst [vmem:[%s179 + $0x68] sm:$0xff] %v206
                %v208 = vld [vmem:[%s178 + $0x190] sm:$0xff]
                %209 = vst [vmem:[%s179 + $0x70] sm:$0xff] %v208
                %v210 = vld [vmem:[%s178 + $0x198] sm:$0xff]
                %211 = vst [vmem:[%s179 + $0x78] sm:$0xff] %v210
                %v212 = vld [vmem:[%s178 + $0x200] sm:$0xff]
                %213 = vst [vmem:[%s179 + $0x80] sm:$0xff] %v212
                %v214 = vld [vmem:[%s178 + $0x208] sm:$0xff]
                %215 = vst [vmem:[%s179 + $0x88] sm:$0xff] %v214
                %v216 = vld [vmem:[%s178 + $0x210] sm:$0xff]
                %217 = vst [vmem:[%s179 + $0x90] sm:$0xff] %v216
                %v218 = vld [vmem:[%s178 + $0x218] sm:$0xff]
                %219 = vst [vmem:[%s179 + $0x98] sm:$0xff] %v218
                %v220 = vld [vmem:[%s178 + $0x280] sm:$0xff]
                %221 = vst [vmem:[%s179 + $0xa0] sm:$0xff] %v220
                %v222 = vld [vmem:[%s178 + $0x288] sm:$0xff]
                %223 = vst [vmem:[%s179 + $0xa8] sm:$0xff] %v222
                %v224 = vld [vmem:[%s178 + $0x290] sm:$0xff]
                %225 = vst [vmem:[%s179 + $0xb0] sm:$0xff] %v224
                %v226 = vld [vmem:[%s178 + $0x298] sm:$0xff]
                %227 = vst [vmem:[%s179 + $0xb8] sm:$0xff] %v226
                %v228 = vld [vmem:[%s178 + $0x300] sm:$0xff]
                %229 = vst [vmem:[%s179 + $0xc0] sm:$0xff] %v228
                %v230 = vld [vmem:[%s178 + $0x308] sm:$0xff]
                %231 = vst [vmem:[%s179 + $0xc8] sm:$0xff] %v230
                %v232 = vld [vmem:[%s178 + $0x310] sm:$0xff]
                %233 = vst [vmem:[%s179 + $0xd0] sm:$0xff] %v232
                %v234 = vld [vmem:[%s178 + $0x318] sm:$0xff]
                %235 = vst [vmem:[%s179 + $0xd8] sm:$0xff] %v234
                %v236 = vld [vmem:[%s178 + $0x380] sm:$0xff]
                %237 = vst [vmem:[%s179 + $0xe0] sm:$0xff] %v236
                %v238 = vld [vmem:[%s178 + $0x388] sm:$0xff]
                %239 = vst [vmem:[%s179 + $0xe8] sm:$0xff] %v238
                %v240 = vld [vmem:[%s178 + $0x390] sm:$0xff]
                %241 = vst [vmem:[%s179 + $0xf0] sm:$0xff] %v240
                %v242 = vld [vmem:[%s178 + $0x398] sm:$0xff]
                %243 = vst [vmem:[%s179 + $0xf8] sm:$0xff] %v242
                %v244 = vld [vmem:[%s178 + $0x400] sm:$0xff]
                %245 = vst [vmem:[%s179 + $0x100] sm:$0xff] %v244
                %v246 = vld [vmem:[%s178 + $0x408] sm:$0xff]
                %247 = vst [vmem:[%s179 + $0x108] sm:$0xff] %v246
                %v248 = vld [vmem:[%s178 + $0x410] sm:$0xff]
                %249 = vst [vmem:[%s179 + $0x110] sm:$0xff] %v248
                %v250 = vld [vmem:[%s178 + $0x418] sm:$0xff]
                %251 = vst [vmem:[%s179 + $0x118] sm:$0xff] %v250
                %v252 = vld [vmem:[%s178 + $0x480] sm:$0xff]
                %253 = vst [vmem:[%s179 + $0x120] sm:$0xff] %v252
                %v254 = vld [vmem:[%s178 + $0x488] sm:$0xff]
                %255 = vst [vmem:[%s179 + $0x128] sm:$0xff] %v254
                %v256 = vld [vmem:[%s178 + $0x490] sm:$0xff]
                %257 = vst [vmem:[%s179 + $0x130] sm:$0xff] %v256
                %v258 = vld [vmem:[%s178 + $0x498] sm:$0xff]
                %259 = vst [vmem:[%s179 + $0x138] sm:$0xff] %v258
                %v260 = vld [vmem:[%s178 + $0x500] sm:$0xff]
                %261 = vst [vmem:[%s179 + $0x140] sm:$0xff] %v260
                %v262 = vld [vmem:[%s178 + $0x508] sm:$0xff]
                %263 = vst [vmem:[%s179 + $0x148] sm:$0xff] %v262
                %v264 = vld [vmem:[%s178 + $0x510] sm:$0xff]
                %265 = vst [vmem:[%s179 + $0x150] sm:$0xff] %v264
                %v266 = vld [vmem:[%s178 + $0x518] sm:$0xff]
                %267 = vst [vmem:[%s179 + $0x158] sm:$0xff] %v266
                %v268 = vld [vmem:[%s178 + $0x580] sm:$0xff]
                %269 = vst [vmem:[%s179 + $0x160] sm:$0xff] %v268
                %v270 = vld [vmem:[%s178 + $0x588] sm:$0xff]
                %271 = vst [vmem:[%s179 + $0x168] sm:$0xff] %v270
                %v272 = vld [vmem:[%s178 + $0x590] sm:$0xff]
                %273 = vst [vmem:[%s179 + $0x170] sm:$0xff] %v272
                %v274 = vld [vmem:[%s178 + $0x598] sm:$0xff]
                %275 = vst [vmem:[%s179 + $0x178] sm:$0xff] %v274
                %v276 = vld [vmem:[%s178 + $0x600] sm:$0xff]
                %277 = vst [vmem:[%s179 + $0x180] sm:$0xff] %v276
                %v278 = vld [vmem:[%s178 + $0x608] sm:$0xff]
                %279 = vst [vmem:[%s179 + $0x188] sm:$0xff] %v278
                %v280 = vld [vmem:[%s178 + $0x610] sm:$0xff]
                %281 = vst [vmem:[%s179 + $0x190] sm:$0xff] %v280
                %v282 = vld [vmem:[%s178 + $0x618] sm:$0xff]
                %283 = vst [vmem:[%s179 + $0x198] sm:$0xff] %v282
                %v284 = vld [vmem:[%s178 + $0x680] sm:$0xff]
                %285 = vst [vmem:[%s179 + $0x1a0] sm:$0xff] %v284
                %v286 = vld [vmem:[%s178 + $0x688] sm:$0xff]
                %287 = vst [vmem:[%s179 + $0x1a8] sm:$0xff] %v286
                %v288 = vld [vmem:[%s178 + $0x690] sm:$0xff]
                %289 = vst [vmem:[%s179 + $0x1b0] sm:$0xff] %v288
                %v290 = vld [vmem:[%s178 + $0x698] sm:$0xff]
                %291 = vst [vmem:[%s179 + $0x1b8] sm:$0xff] %v290
                %v292 = vld [vmem:[%s178 + $0x700] sm:$0xff]
                %293 = vst [vmem:[%s179 + $0x1c0] sm:$0xff] %v292
                %v294 = vld [vmem:[%s178 + $0x708] sm:$0xff]
                %295 = vst [vmem:[%s179 + $0x1c8] sm:$0xff] %v294
                %v296 = vld [vmem:[%s178 + $0x710] sm:$0xff]
                %297 = vst [vmem:[%s179 + $0x1d0] sm:$0xff] %v296
                %v298 = vld [vmem:[%s178 + $0x718] sm:$0xff]
                %299 = vst [vmem:[%s179 + $0x1d8] sm:$0xff] %v298
                %v300 = vld [vmem:[%s178 + $0x780] sm:$0xff]
                %301 = vst [vmem:[%s179 + $0x1e0] sm:$0xff] %v300
                %v302 = vld [vmem:[%s178 + $0x788] sm:$0xff]
                %303 = vst [vmem:[%s179 + $0x1e8] sm:$0xff] %v302
                %v304 = vld [vmem:[%s178 + $0x790] sm:$0xff]
                %305 = vst [vmem:[%s179 + $0x1f0] sm:$0xff] %v304
                %v306 = vld [vmem:[%s178 + $0x798] sm:$0xff]
                %307 = vst [vmem:[%s179 + $0x1f8] sm:$0xff] %v306
                %v308 = vld [vmem:[%s178 + $0x800] sm:$0xff]
                %309 = vst [vmem:[%s179 + $0x200] sm:$0xff] %v308
                %v310 = vld [vmem:[%s178 + $0x808] sm:$0xff]
                %311 = vst [vmem:[%s179 + $0x208] sm:$0xff] %v310
                %v312 = vld [vmem:[%s178 + $0x810] sm:$0xff]
                %313 = vst [vmem:[%s179 + $0x210] sm:$0xff] %v312
                %v314 = vld [vmem:[%s178 + $0x818] sm:$0xff]
                %315 = vst [vmem:[%s179 + $0x218] sm:$0xff] %v314
                %v316 = vld [vmem:[%s178 + $0x880] sm:$0xff]
                %317 = vst [vmem:[%s179 + $0x220] sm:$0xff] %v316
                %v318 = vld [vmem:[%s178 + $0x888] sm:$0xff]
                %319 = vst [vmem:[%s179 + $0x228] sm:$0xff] %v318
                %v320 = vld [vmem:[%s178 + $0x890] sm:$0xff]
                %321 = vst [vmem:[%s179 + $0x230] sm:$0xff] %v320
                %v322 = vld [vmem:[%s178 + $0x898] sm:$0xff]
                %323 = vst [vmem:[%s179 + $0x238] sm:$0xff] %v322
                %v324 = vld [vmem:[%s178 + $0x900] sm:$0xff]
                %325 = vst [vmem:[%s179 + $0x240] sm:$0xff] %v324
                %v326 = vld [vmem:[%s178 + $0x908] sm:$0xff]
                %327 = vst [vmem:[%s179 + $0x248] sm:$0xff] %v326
                %v328 = vld [vmem:[%s178 + $0x910] sm:$0xff]
                %329 = vst [vmem:[%s179 + $0x250] sm:$0xff] %v328
                %v330 = vld [vmem:[%s178 + $0x918] sm:$0xff]
                %331 = vst [vmem:[%s179 + $0x258] sm:$0xff] %v330
              $region37: #{_lambda_.19} parent=31 // loop_footer
                %s177 = sadd.s32 1, %s173
              $region38: #{_lambda_.19} parent=31 // loop_footer_branch
                %172 = sbr.rel target = $region34
              $region39: #{_lambda_.19} parent=31 // loop_exit
                _
            $region32: #{_lambda_.19} parent=27 // pred_fallthru
              _
            // Predicated region
            $region40: #{_lambda_.19} parent=27 // pred_check
              _
            $region41: #{_lambda_.19} parent=27 // pred_check_branch
              %333 = sbr.rel target = $region43
            $region42: #{_lambda_.19} parent=27 // pred_region
              _
            $region43: #{_lambda_.19} parent=27 // pred_fallthru
              _
          $region28: #{_lambda_.19} parent=23 // pred_fallthru
            _
          %334 = vnop
        $region24: #{_lambda_.19} parent=19 // pred_fallthru
          _
      $region20: #{_lambda_.19} parent=5 // pred_fallthru
        _
      %p335 = scmp.le.s32.totalorder 1, %s11
      %p336 = scmp.lt.s32.totalorder %s11, 5
      %p337 = pnand %p335, %p336
      %p338 = pneg %p337
      // Predicated region
      $region44: #{_lambda_.19} parent=5 // pred_check
        _
      $region45: #{_lambda_.19} parent=5 // pred_check_branch
        %340 = sbr.rel (%p337) target = $region47
      $region46: #{_lambda_.19} parent=5 // pred_region
        %s341 = ssub.s32 %s11, 1
        %s342 = sand.u32 %s45, 1
        %s343 = sand.u32 %s45, 1
        %s344 = smul.addr %s343, 608
        %s345 = scalar_lea.vmem [#allocation2], %s344
        // Predicated region
        $region48: #{_lambda_.19} parent=46 // pred_check
          %p346 = pneg %p58
        $region49: #{_lambda_.19} parent=46 // pred_check_branch
          %348 = sbr.rel (%p346) target = $region51
        $region50: #{_lambda_.19} parent=46 // pred_region
          _
        $region51: #{_lambda_.19} parent=46 // pred_fallthru
          _
        %p349 = pneg %p32
        %p350 = pneg %p29
        %s351 = sand.u32 %s45, 1
        %s352 = sand.u32 %s45, 1
        %s353 = smul.addr %s352, 608
        %s354 = scalar_lea.vmem [#allocation2], %s353
        %p355 = pneg %p58
        %p356 = pneg %p55
        %p357 = pneg %p84
        %p358 = pneg %p81
        %s359 = sand.u32 %s71, 1
        %s360 = sand.u32 %s71, 1
        %s361 = smul.addr %s360, 64
        %s362 = scalar_lea.vmem [#allocation3], %s361
        %p363 = pneg %p110
        %p364 = pneg %p107
        %p365 = scmp.lt.s32.totalorder %s16, 3
        %s366 = scalar_select %p365, %s16, 3
        %s367 = smul.addr %s366, 2
        %s368 = smul.addr %s367, 8
        %s369 = scalar_lea.vmem %s3, %s368
        %p370 = pneg %p136
        %p371 = pneg %p133
        %p372 = scmp.lt.s32.totalorder %s16, 3
        %s373 = scalar_select %p372, %s16, 3
        %s374 = smul.addr %s373, 2
        %s375 = smul.addr %s374, 8
        %s376 = scalar_lea.vmem %s4, %s375
        %s377 = smul.u32 4, %s16
        %s378 = smul.u32 4, %s16
        %p379 = scmp.lt.s32.totalorder %s16, 3
        %s380 = scalar_select %p379, %s16, 3
        %s381 = smul.addr %s380, 2
        %s382 = smul.addr %s381, 8
        %s383 = scalar_lea.vmem %s3, %s382
        %p384 = scmp.lt.s32.totalorder %s16, 3
        %s385 = scalar_select %p384, %s16, 3
        %s386 = smul.addr %s385, 2
        %s387 = smul.addr %s386, 8
        %s388 = scalar_lea.vmem %s4, %s387
        %v389 = vld [vmem:[%s0] sm:$0xff]
        %v390 = vld [vmem:[%s0 + $0x8] sm:$0xff]
        %v391 = vld [vmem:[%s0 + $0x10] sm:$0xff]
        %v392 = vld [vmem:[%s0 + $0x18] sm:$0xff]
        %v393 = vld [vmem:[%s345] sm:$0xff]
        %v394 = vld [vmem:[%s345 + $0x8] sm:$0xff]
        %v395 = vld [vmem:[%s345 + $0x10] sm:$0xff]
        %v396 = vld [vmem:[%s345 + $0x18] sm:$0xff]
        %v397 = vld [vmem:[%s345 + $0x20] sm:$0xff]
        %v398 = vld [vmem:[%s345 + $0x28] sm:$0xff]
        %v399 = vld [vmem:[%s345 + $0x30] sm:$0xff]
        %v400 = vld [vmem:[%s345 + $0x38] sm:$0xff]
        %v401 = vld [vmem:[%s345 + $0x40] sm:$0xff]
        %v402 = vld [vmem:[%s345 + $0x48] sm:$0xff]
        %v403 = vld [vmem:[%s345 + $0x50] sm:$0xff]
        %v404 = vld [vmem:[%s345 + $0x58] sm:$0xff]
        %v405 = vld [vmem:[%s345 + $0x60] sm:$0xff]
        %v406 = vld [vmem:[%s345 + $0x68] sm:$0xff]
        %v407 = vld [vmem:[%s345 + $0x70] sm:$0xff]
        %v408 = vld [vmem:[%s345 + $0x78] sm:$0xff]
        %v409 = vld [vmem:[%s345 + $0x80] sm:$0xff]
        %v410 = vld [vmem:[%s345 + $0x88] sm:$0xff]
        %v411 = vld [vmem:[%s345 + $0x90] sm:$0xff]
        %v412 = vld [vmem:[%s345 + $0x98] sm:$0xff]
        %v413 = vld [vmem:[%s345 + $0xa0] sm:$0xff]
        %v414 = vld [vmem:[%s345 + $0xa8] sm:$0xff]
        %v415 = vld [vmem:[%s345 + $0xb0] sm:$0xff]
        %v416 = vld [vmem:[%s345 + $0xb8] sm:$0xff]
        %v417 = vld [vmem:[%s345 + $0xc0] sm:$0xff]
        %v418 = vld [vmem:[%s345 + $0xc8] sm:$0xff]
        %v419 = vld [vmem:[%s345 + $0xd0] sm:$0xff]
        %v420 = vld [vmem:[%s345 + $0xd8] sm:$0xff]
        %v421 = vld [vmem:[%s345 + $0xe0] sm:$0xff]
        %v422 = vld [vmem:[%s345 + $0xe8] sm:$0xff]
        %v423 = vld [vmem:[%s345 + $0xf0] sm:$0xff]
        %v424 = vld [vmem:[%s345 + $0xf8] sm:$0xff]
        %v425 = vld [vmem:[%s345 + $0x100] sm:$0xff]
        %v426 = vld [vmem:[%s345 + $0x108] sm:$0xff]
        %v427 = vld [vmem:[%s345 + $0x110] sm:$0xff]
        %v428 = vld [vmem:[%s345 + $0x118] sm:$0xff]
        %v429 = vld [vmem:[%s345 + $0x120] sm:$0xff]
        %v430 = vld [vmem:[%s345 + $0x128] sm:$0xff]
        %v431 = vld [vmem:[%s345 + $0x130] sm:$0xff]
        %v432 = vld [vmem:[%s345 + $0x138] sm:$0xff]
        %v433 = vld [vmem:[%s345 + $0x140] sm:$0xff]
        %v434 = vld [vmem:[%s345 + $0x148] sm:$0xff]
        %v435 = vld [vmem:[%s345 + $0x150] sm:$0xff]
        %v436 = vld [vmem:[%s345 + $0x158] sm:$0xff]
        %v437 = vld [vmem:[%s345 + $0x160] sm:$0xff]
        %v438 = vld [vmem:[%s345 + $0x168] sm:$0xff]
        %v439 = vld [vmem:[%s345 + $0x170] sm:$0xff]
        %v440 = vld [vmem:[%s345 + $0x178] sm:$0xff]
        %v441 = vld [vmem:[%s345 + $0x180] sm:$0xff]
        %v442 = vld [vmem:[%s345 + $0x188] sm:$0xff]
        %v443 = vld [vmem:[%s345 + $0x190] sm:$0xff]
        %v444 = vld [vmem:[%s345 + $0x198] sm:$0xff]
        %v445 = vld [vmem:[%s345 + $0x1a0] sm:$0xff]
        %v446 = vld [vmem:[%s345 + $0x1a8] sm:$0xff]
        %v447 = vld [vmem:[%s345 + $0x1b0] sm:$0xff]
        %v448 = vld [vmem:[%s345 + $0x1b8] sm:$0xff]
        %v449 = vld [vmem:[%s345 + $0x1c0] sm:$0xff]
        %v450 = vld [vmem:[%s345 + $0x1c8] sm:$0xff]
        %v451 = vld [vmem:[%s345 + $0x1d0] sm:$0xff]
        %v452 = vld [vmem:[%s345 + $0x1d8] sm:$0xff]
        %v453 = vld [vmem:[%s345 + $0x1e0] sm:$0xff]
        %v454 = vld [vmem:[%s345 + $0x1e8] sm:$0xff]
        %v455 = vld [vmem:[%s345 + $0x1f0] sm:$0xff]
        %v456 = vld [vmem:[%s345 + $0x1f8] sm:$0xff]
        %v457 = vld [vmem:[%s345 + $0x200] sm:$0xff]
        %v458 = vld [vmem:[%s345 + $0x208] sm:$0xff]
        %v459 = vld [vmem:[%s345 + $0x210] sm:$0xff]
        %v460 = vld [vmem:[%s345 + $0x218] sm:$0xff]
        %v461 = vld [vmem:[%s345 + $0x220] sm:$0xff]
        %v462 = vld [vmem:[%s345 + $0x228] sm:$0xff]
        %v463 = vld [vmem:[%s345 + $0x230] sm:$0xff]
        %v464 = vld [vmem:[%s345 + $0x238] sm:$0xff]
        %v465 = vld [vmem:[%s345 + $0x240] sm:$0x7]
        %v466 = vld [vmem:[%s345 + $0x248] sm:$0x7]
        %v467 = vld [vmem:[%s345 + $0x250] sm:$0x7]
        %v468 = vld [vmem:[%s345 + $0x258] sm:$0x7]
        %vm469 = vcmask 154624
        %v471 = vsel %vm469, %v390, 0
        %v474 = vsel %vm469, %v392, 0
        %vm476 = vcmask 1042432
        %v478 = vsel %vm476, %v465, 0
        %v481 = vsel %vm476, %v466, 0
        %v484 = vsel %vm476, %v467, 0
        %v487 = vsel %vm476, %v468, 0
        %489 = vmatpush.msra.mxu0 %v453
        %490 = vmatpush.msra.mxu0 %v449
        %491 = vmatpush.msra.mxu0 %v445
        %492 = vmatpush.msra.mxu0 %v441
        %493 = vmatpush.msra.mxu0 %v437
        %494 = vmatpush.msra.mxu0 %v433
        %495 = vmatpush.msra.mxu0 %v429
        %496 = vmatpush.msra.mxu0 %v425
        %497 = vmatpush.msra.mxu0 %v421
        %498 = vmatpush.msra.mxu0 %v417
        %499 = vmatpush.msra.mxu0 %v413
        %500 = vmatpush.msra.mxu0 %v409
        %501 = vmatpush.msra.mxu0 %v405
        %502 = vmatpush.msra.mxu0 %v401
        %503 = vmatpush.msra.mxu0 %v397
        %504 = vmatpush.msra.mxu0 %v393
        %505 = vmatmul.f32.gmra.mxu0 %v389
        %v506 = vpop.f32.mrf.mxu0
        %v507 = vadd.f32 0.0, %v506
        %508 = vmatmul.f32.gmra.mxu0 %v391
        %v509 = vpop.f32.mrf.mxu0
        %v510 = vadd.f32 0.0, %v509
        %511 = vdwg.mxu0
        %512 = vmatpush.msra.mxu0 0.0
        %513 = vmatpush.msra.mxu0 0.0
        %514 = vmatpush.msra.mxu0 0.0
        %515 = vmatpush.msra.mxu0 0.0
        %516 = vmatpush.msra.mxu0 0.0
        %517 = vmatpush.msra.mxu0 0.0
        %518 = vmatpush.msra.mxu0 0.0
        %519 = vmatpush.msra.mxu0 0.0
        %520 = vmatpush.msra.mxu0 0.0
        %521 = vmatpush.msra.mxu0 0.0
        %522 = vmatpush.msra.mxu0 0.0
        %523 = vmatpush.msra.mxu0 0.0
        %524 = vmatpush.msra.mxu0 0.0
        %525 = vmatpush.msra.mxu0 %v478
        %526 = vmatpush.msra.mxu0 %v461
        %527 = vmatpush.msra.mxu0 %v457
        %528 = vmatmul.f32.gmra.mxu0 %v471
        %v529 = vpop.f32.mrf.mxu0
        %v530 = vadd.f32 %v507, %v529
        %531 = vmatmul.f32.gmra.mxu0 %v474
        %v532 = vpop.f32.mrf.mxu0
        %v533 = vadd.f32 %v510, %v532
        %534 = vdwg.mxu0
        %535 = vmatpush.msra.mxu0 %v454
        %536 = vmatpush.msra.mxu0 %v450
        %537 = vmatpush.msra.mxu0 %v446
        %538 = vmatpush.msra.mxu0 %v442
        %539 = vmatpush.msra.mxu0 %v438
        %540 = vmatpush.msra.mxu0 %v434
        %541 = vmatpush.msra.mxu0 %v430
        %542 = vmatpush.msra.mxu0 %v426
        %543 = vmatpush.msra.mxu0 %v422
        %544 = vmatpush.msra.mxu0 %v418
        %545 = vmatpush.msra.mxu0 %v414
        %546 = vmatpush.msra.mxu0 %v410
        %547 = vmatpush.msra.mxu0 %v406
        %548 = vmatpush.msra.mxu0 %v402
        %549 = vmatpush.msra.mxu0 %v398
        %550 = vmatpush.msra.mxu0 %v394
        %551 = vmatmul.f32.gmra.mxu0 %v389
        %v552 = vpop.f32.mrf.mxu0
        %v553 = vadd.f32 0.0, %v552
        %554 = vmatmul.f32.gmra.mxu0 %v391
        %v555 = vpop.f32.mrf.mxu0
        %v556 = vadd.f32 0.0, %v555
        %557 = vdwg.mxu0
        %558 = vmatpush.msra.mxu0 0.0
        %559 = vmatpush.msra.mxu0 0.0
        %560 = vmatpush.msra.mxu0 0.0
        %561 = vmatpush.msra.mxu0 0.0
        %562 = vmatpush.msra.mxu0 0.0
        %563 = vmatpush.msra.mxu0 0.0
        %564 = vmatpush.msra.mxu0 0.0
        %565 = vmatpush.msra.mxu0 0.0
        %566 = vmatpush.msra.mxu0 0.0
        %567 = vmatpush.msra.mxu0 0.0
        %568 = vmatpush.msra.mxu0 0.0
        %569 = vmatpush.msra.mxu0 0.0
        %570 = vmatpush.msra.mxu0 0.0
        %571 = vmatpush.msra.mxu0 %v481
        %572 = vmatpush.msra.mxu0 %v462
        %573 = vmatpush.msra.mxu0 %v458
        %574 = vmatmul.f32.gmra.mxu0 %v471
        %v575 = vpop.f32.mrf.mxu0
        %v576 = vadd.f32 %v553, %v575
        %577 = vmatmul.f32.gmra.mxu0 %v474
        %v578 = vpop.f32.mrf.mxu0
        %v579 = vadd.f32 %v556, %v578
        %580 = vdwg.mxu0
        %581 = vmatpush.msra.mxu0 %v455
        %582 = vmatpush.msra.mxu0 %v451
        %583 = vmatpush.msra.mxu0 %v447
        %584 = vmatpush.msra.mxu0 %v443
        %585 = vmatpush.msra.mxu0 %v439
        %586 = vmatpush.msra.mxu0 %v435
        %587 = vmatpush.msra.mxu0 %v431
        %588 = vmatpush.msra.mxu0 %v427
        %589 = vmatpush.msra.mxu0 %v423
        %590 = vmatpush.msra.mxu0 %v419
        %591 = vmatpush.msra.mxu0 %v415
        %592 = vmatpush.msra.mxu0 %v411
        %593 = vmatpush.msra.mxu0 %v407
        %594 = vmatpush.msra.mxu0 %v403
        %595 = vmatpush.msra.mxu0 %v399
        %596 = vmatpush.msra.mxu0 %v395
        %597 = vmatmul.f32.gmra.mxu0 %v389
        %v598 = vpop.f32.mrf.mxu0
        %v599 = vadd.f32 0.0, %v598
        %600 = vmatmul.f32.gmra.mxu0 %v391
        %v601 = vpop.f32.mrf.mxu0
        %v602 = vadd.f32 0.0, %v601
        %603 = vdwg.mxu0
        %604 = vmatpush.msra.mxu0 0.0
        %605 = vmatpush.msra.mxu0 0.0
        %606 = vmatpush.msra.mxu0 0.0
        %607 = vmatpush.msra.mxu0 0.0
        %608 = vmatpush.msra.mxu0 0.0
        %609 = vmatpush.msra.mxu0 0.0
        %610 = vmatpush.msra.mxu0 0.0
        %611 = vmatpush.msra.mxu0 0.0
        %612 = vmatpush.msra.mxu0 0.0
        %613 = vmatpush.msra.mxu0 0.0
        %614 = vmatpush.msra.mxu0 0.0
        %615 = vmatpush.msra.mxu0 0.0
        %616 = vmatpush.msra.mxu0 0.0
        %617 = vmatpush.msra.mxu0 %v484
        %618 = vmatpush.msra.mxu0 %v463
        %619 = vmatpush.msra.mxu0 %v459
        %620 = vmatmul.f32.gmra.mxu0 %v471
        %v621 = vpop.f32.mrf.mxu0
        %v622 = vadd.f32 %v599, %v621
        %623 = vmatmul.f32.gmra.mxu0 %v474
        %v624 = vpop.f32.mrf.mxu0
        %v625 = vadd.f32 %v602, %v624
        %626 = vdwg.mxu0
        %627 = vmatpush.msra.mxu0 %v456
        %628 = vmatpush.msra.mxu0 %v452
        %629 = vmatpush.msra.mxu0 %v448
        %630 = vmatpush.msra.mxu0 %v444
        %631 = vmatpush.msra.mxu0 %v440
        %632 = vmatpush.msra.mxu0 %v436
        %633 = vmatpush.msra.mxu0 %v432
        %634 = vmatpush.msra.mxu0 %v428
        %635 = vmatpush.msra.mxu0 %v424
        %636 = vmatpush.msra.mxu0 %v420
        %637 = vmatpush.msra.mxu0 %v416
        %638 = vmatpush.msra.mxu0 %v412
        %639 = vmatpush.msra.mxu0 %v408
        %640 = vmatpush.msra.mxu0 %v404
        %641 = vmatpush.msra.mxu0 %v400
        %642 = vmatpush.msra.mxu0 %v396
        %643 = vmatmul.f32.gmra.mxu0 %v389
        %v644 = vpop.f32.mrf.mxu0
        %v645 = vadd.f32 0.0, %v644
        %646 = vmatmul.f32.gmra.mxu0 %v391
        %v647 = vpop.f32.mrf.mxu0
        %v648 = vadd.f32 0.0, %v647
        %649 = vdwg.mxu0
        %650 = vmatpush.msra.mxu0 0.0
        %651 = vmatpush.msra.mxu0 0.0
        %652 = vmatpush.msra.mxu0 0.0
        %653 = vmatpush.msra.mxu0 0.0
        %654 = vmatpush.msra.mxu0 0.0
        %655 = vmatpush.msra.mxu0 0.0
        %656 = vmatpush.msra.mxu0 0.0
        %657 = vmatpush.msra.mxu0 0.0
        %658 = vmatpush.msra.mxu0 0.0
        %659 = vmatpush.msra.mxu0 0.0
        %660 = vmatpush.msra.mxu0 0.0
        %661 = vmatpush.msra.mxu0 0.0
        %662 = vmatpush.msra.mxu0 0.0
        %663 = vmatpush.msra.mxu0 %v487
        %664 = vmatpush.msra.mxu0 %v464
        %665 = vmatpush.msra.mxu0 %v460
        %666 = vmatmul.f32.gmra.mxu0 %v471
        %v667 = vpop.f32.mrf.mxu0
        %v668 = vadd.f32 %v645, %v667
        %669 = vmatmul.f32.gmra.mxu0 %v474
        %v670 = vpop.f32.mrf.mxu0
        %v671 = vadd.f32 %v648, %v670
        %672 = vdwg.mxu0
        %673 = vst [vmem:[%s362] sm:$0xff] %v530
        %674 = vst [vmem:[%s362 + $0x8] sm:$0xff] %v576
        %675 = vst [vmem:[%s362 + $0x10] sm:$0xff] %v622
        %676 = vst [vmem:[%s362 + $0x18] sm:$0xff] %v668
        %677 = vst [vmem:[%s362 + $0x20] sm:$0xff] %v533
        %678 = vst [vmem:[%s362 + $0x28] sm:$0xff] %v579
        %679 = vst [vmem:[%s362 + $0x30] sm:$0xff] %v625
        %680 = vst [vmem:[%s362 + $0x38] sm:$0xff] %v671
        %v681 = vadd.f32 %v530, %v576
        %v682 = vadd.f32 %v681, %v622
        %v683 = vadd.f32 %v682, %v668
        %684 = vadd.xlane.f32.xlu0 %v683
        %v685 = vpop.xlane.xlu0 %684
        %v686 = vadd.f32 %v533, %v579
        %v687 = vadd.f32 %v686, %v625
        %v688 = vadd.f32 %v687, %v671
        %689 = vadd.xlane.f32.xlu0 %v688
        %v690 = vpop.xlane.xlu0 %689
        %vm691 = vcmask 7168
        %692 = vst.msk [vmem:[%s383] sm:$0xff] %vm691, %v685
        %693 = vst.msk [vmem:[%s383 + $0x8] sm:$0xff] %vm691, %v690
        %v694 = vmul.f32 %v530, %v530
        %v695 = vmul.f32 %v576, %v576
        %v696 = vmul.f32 %v622, %v622
        %v697 = vmul.f32 %v668, %v668
        %v698 = vmul.f32 %v533, %v533
        %v699 = vmul.f32 %v579, %v579
        %v700 = vmul.f32 %v625, %v625
        %v701 = vmul.f32 %v671, %v671
        %v702 = vadd.f32 %v694, %v695
        %v703 = vadd.f32 %v702, %v696
        %v704 = vadd.f32 %v703, %v697
        %705 = vadd.xlane.f32.xlu0 %v704
        %v706 = vpop.xlane.xlu0 %705
        %v707 = vadd.f32 %v698, %v699
        %v708 = vadd.f32 %v707, %v700
        %v709 = vadd.f32 %v708, %v701
        %710 = vadd.xlane.f32.xlu0 %v709
        %v711 = vpop.xlane.xlu0 %710
        %712 = vst.msk [vmem:[%s388] sm:$0xff] %vm691, %v706
        %713 = vst.msk [vmem:[%s388 + $0x8] sm:$0xff] %vm691, %v711
        %s714 = sand.u32 %s71, 1
        %s715 = sand.u32 %s71, 1
        %s716 = smul.addr %s715, 64
        %s717 = scalar_lea.vmem [#allocation3], %s716
        %p718 = scmp.lt.s32.totalorder %s16, 3
        %s719 = scalar_select %p718, %s16, 3
        %s720 = smul.addr %s719, 2
        %s721 = smul.addr %s720, 8
        %s722 = scalar_lea.vmem %s3, %s721
        %p723 = scmp.lt.s32.totalorder %s16, 3
        %s724 = scalar_select %p723, %s16, 3
        %s725 = smul.addr %s724, 2
        %s726 = smul.addr %s725, 8
        %s727 = scalar_lea.vmem %s4, %s726
        // Predicated region
        $region52: #{_lambda_.19} parent=46 // pred_check
          %p728 = pneg %p81
        $region53: #{_lambda_.19} parent=46 // pred_check_branch
          %730 = sbr.rel (%p728) target = $region55
        $region54: #{_lambda_.19} parent=46 // pred_region
          %s731 = smul.u32 4, %s16
          %s732 = smul.addr %s731, 8
          %s733 = scalar_lea.vmem %s2, %s732
          // Predicated region
          $region56: #{_lambda_.19} parent=54 // pred_check
            _
          $region57: #{_lambda_.19} parent=54 // pred_check_branch
            %735 = sbr.rel (0) target = $region59
          $region58: #{_lambda_.19} parent=54 // pred_region
            // Predicated region
            $region60: #{_lambda_.19} parent=58 // pred_check
              _
            $region61: #{_lambda_.19} parent=58 // pred_check_branch
              %737 = sbr.rel (0) target = $region63
            $region62: #{_lambda_.19} parent=58 // pred_region
              loop: start=0, step=1, limit=1
              $region64: #{_lambda_.19} parent=62 // loop_pre_header
                _
              $region65: #{_lambda_.19} parent=62 // loop_header
                %s739 = sphi 0, %s743
                %p740 = scmp.ge.s32.totalorder %s739, 1
                %s744 = sphi %s717, %s717
                %s745 = sphi %s733, %s733
              $region66: #{_lambda_.19} parent=62 // loop_header_branch
                %742 = sbr.rel (%p740) target = $region70
              $region67: #{_lambda_.19} parent=62 // loop_body
                %v746 = vld [vmem:[%s744] sm:$0xff]
                %747 = vst [vmem:[%s745] sm:$0xff] %v746
                %v748 = vld [vmem:[%s744 + $0x8] sm:$0xff]
                %749 = vst [vmem:[%s745 + $0x8] sm:$0xff] %v748
                %v750 = vld [vmem:[%s744 + $0x10] sm:$0xff]
                %751 = vst [vmem:[%s745 + $0x10] sm:$0xff] %v750
                %v752 = vld [vmem:[%s744 + $0x18] sm:$0xff]
                %753 = vst [vmem:[%s745 + $0x18] sm:$0xff] %v752
                %v754 = vld [vmem:[%s744 + $0x20] sm:$0xff]
                %755 = vst [vmem:[%s745 + $0x80] sm:$0xff] %v754
                %v756 = vld [vmem:[%s744 + $0x28] sm:$0xff]
                %757 = vst [vmem:[%s745 + $0x88] sm:$0xff] %v756
                %v758 = vld [vmem:[%s744 + $0x30] sm:$0xff]
                %759 = vst [vmem:[%s745 + $0x90] sm:$0xff] %v758
                %v760 = vld [vmem:[%s744 + $0x38] sm:$0xff]
                %761 = vst [vmem:[%s745 + $0x98] sm:$0xff] %v760
              $region68: #{_lambda_.19} parent=62 // loop_footer
                %s743 = sadd.s32 1, %s739
              $region69: #{_lambda_.19} parent=62 // loop_footer_branch
                %738 = sbr.rel target = $region65
              $region70: #{_lambda_.19} parent=62 // loop_exit
                _
            $region63: #{_lambda_.19} parent=58 // pred_fallthru
              _
            // Predicated region
            $region71: #{_lambda_.19} parent=58 // pred_check
              _
            $region72: #{_lambda_.19} parent=58 // pred_check_branch
              %763 = sbr.rel target = $region74
            $region73: #{_lambda_.19} parent=58 // pred_region
              _
            $region74: #{_lambda_.19} parent=58 // pred_fallthru
              _
          $region59: #{_lambda_.19} parent=54 // pred_fallthru
            _
          %764 = vnop
        $region55: #{_lambda_.19} parent=46 // pred_fallthru
          _
        // Predicated region
        $region75: #{_lambda_.19} parent=46 // pred_check
          %p765 = pneg %p107
        $region76: #{_lambda_.19} parent=46 // pred_check_branch
          %767 = sbr.rel (%p765) target = $region78
        $region77: #{_lambda_.19} parent=46 // pred_region
          _
        $region78: #{_lambda_.19} parent=46 // pred_fallthru
          _
        // Predicated region
        $region79: #{_lambda_.19} parent=46 // pred_check
          %p768 = pneg %p133
        $region80: #{_lambda_.19} parent=46 // pred_check_branch
          %770 = sbr.rel (%p768) target = $region82
        $region81: #{_lambda_.19} parent=46 // pred_region
          _
        $region82: #{_lambda_.19} parent=46 // pred_fallthru
          _
      $region47: #{_lambda_.19} parent=5 // pred_fallthru
        _
      %p771 = scmp.le.s32.totalorder 2, %s11
      // Predicated region
      $region83: #{_lambda_.19} parent=5 // pred_check
        %p772 = pneg %p771
      $region84: #{_lambda_.19} parent=5 // pred_check_branch
        %774 = sbr.rel (%p772) target = $region86
      $region85: #{_lambda_.19} parent=5 // pred_region
        %s775 = ssub.s32 %s11, 2
        // Predicated region
        $region87: #{_lambda_.19} parent=85 // pred_check
          %p776 = pneg %p87
        $region88: #{_lambda_.19} parent=85 // pred_check_branch
          %778 = sbr.rel (%p776) target = $region90
        $region89: #{_lambda_.19} parent=85 // pred_region
          %s779 = sand.u32 %s72, 1
          %s780 = sand.u32 %s72, 1
          %s781 = smul.addr %s780, 64
          %s782 = scalar_lea.vmem [#allocation3], %s781
        $region90: #{_lambda_.19} parent=85 // pred_fallthru
          _
        // Predicated region
        $region91: #{_lambda_.19} parent=85 // pred_check
          %p783 = pneg %p113
        $region92: #{_lambda_.19} parent=85 // pred_check_branch
          %785 = sbr.rel (%p783) target = $region94
        $region93: #{_lambda_.19} parent=85 // pred_region
          %p786 = scmp.lt.s32.totalorder %s17, 3
          %s787 = scalar_select %p786, %s17, 3
          %s788 = smul.addr %s787, 2
          %s789 = smul.addr %s788, 8
          %s790 = scalar_lea.vmem %s3, %s789
        $region94: #{_lambda_.19} parent=85 // pred_fallthru
          _
        // Predicated region
        $region95: #{_lambda_.19} parent=85 // pred_check
          %p791 = pneg %p139
        $region96: #{_lambda_.19} parent=85 // pred_check_branch
          %793 = sbr.rel (%p791) target = $region98
        $region97: #{_lambda_.19} parent=85 // pred_region
          %p794 = scmp.lt.s32.totalorder %s17, 3
          %s795 = scalar_select %p794, %s17, 3
          %s796 = smul.addr %s795, 2
          %s797 = smul.addr %s796, 8
          %s798 = scalar_lea.vmem %s4, %s797
        $region98: #{_lambda_.19} parent=85 // pred_fallthru
          _
      $region86: #{_lambda_.19} parent=5 // pred_fallthru
        _
    $region6: #{_lambda_.19} parent=1 // loop_footer
      %s15 = sadd.s32 1, %s11
    $region7: #{_lambda_.19} parent=1 // loop_footer_branch
      %10 = sbr.rel target = $region3
    $region8: #{_lambda_.19} parent=1 // loop_exit
      _

// kernel: _lambda_.21
$region0: #{_lambda_.21}
  #allocation0 [shape = 'u32[]', space=smem, size = 0x4, offset = 0x4, fixed_abs, tag = 'smem constant byte address 0x4 - core index']
  #allocation1 [shape = 'u32[72,128]{1,0:T(1,128)}', space=vmem, size = 0x9000, scoped, tag = 'internal scratch']
  %s0 = inlined_call_operand.vmem [shape: f32[32,144], index: 0, kind: input, shape index: {}]
  %s1 = inlined_call_operand.vmem [shape: f32[144,512], index: 1, kind: input, shape index: {}]
  %s2 = inlined_call_operand.vmem [shape: f32[32,512], index: 2, kind: output, shape index: {0}]
  %s3 = inlined_call_operand.vmem [shape: f32[1,32,1], index: 3, kind: output, shape index: {1}]
  %s4 = inlined_call_operand.vmem [shape: f32[1,32,1], index: 4, kind: output, shape index: {2}]
  %5 = xla_tuple %s2, %s3, %s4
  %s6 = sld [smem:[#allocation0]]
  $region34: #{_lambda_.21} parent=0
    _
  %s8 = ssub.s32 1, %s6
  %s9 = scalar_select 0, %s8, %s6
  // Predicated region
  $region2: #{_lambda_.21} parent=0 // pred_check
    _
  $region3: #{_lambda_.21} parent=0 // pred_check_branch
    %11 = sbr.rel (0) target = $region5
  $region4: #{_lambda_.21} parent=0 // pred_region
    _
  $region5: #{_lambda_.21} parent=0 // pred_fallthru
    _
  // Predicated region
  $region6: #{_lambda_.21} parent=0 // pred_check
    _
  $region7: #{_lambda_.21} parent=0 // pred_check_branch
    %13 = sbr.rel (0) target = $region9
  $region8: #{_lambda_.21} parent=0 // pred_region
    _
  $region9: #{_lambda_.21} parent=0 // pred_fallthru
    _
  %v14 = vld [vmem:[%s0] sm:$0xff]
  %v15 = vld [vmem:[%s0 + $0x8] sm:$0xff]
  %v16 = vld [vmem:[%s0 + $0x10] sm:$0xff]
  %v17 = vld [vmem:[%s0 + $0x18] sm:$0xff]
  %v18 = vld [vmem:[%s0 + $0x20] sm:$0xff]
  %v19 = vld [vmem:[%s0 + $0x28] sm:$0xff]
  %v20 = vld [vmem:[%s0 + $0x30] sm:$0xff]
  %v21 = vld [vmem:[%s0 + $0x38] sm:$0xff]
  %v22 = vld [vmem:[%s1] sm:$0xff]
  %v23 = vld [vmem:[%s1 + $0x8] sm:$0xff]
  %v24 = vld [vmem:[%s1 + $0x10] sm:$0xff]
  %v25 = vld [vmem:[%s1 + $0x18] sm:$0xff]
  %v26 = vld [vmem:[%s1 + $0x20] sm:$0xff]
  %v27 = vld [vmem:[%s1 + $0x28] sm:$0xff]
  %v28 = vld [vmem:[%s1 + $0x30] sm:$0xff]
  %v29 = vld [vmem:[%s1 + $0x38] sm:$0xff]
  %v30 = vld [vmem:[%s1 + $0x40] sm:$0xff]
  %v31 = vld [vmem:[%s1 + $0x48] sm:$0xff]
  %v32 = vld [vmem:[%s1 + $0x50] sm:$0xff]
  %v33 = vld [vmem:[%s1 + $0x58] sm:$0xff]
  %v34 = vld [vmem:[%s1 + $0x60] sm:$0xff]
  %v35 = vld [vmem:[%s1 + $0x68] sm:$0xff]
  %v36 = vld [vmem:[%s1 + $0x70] sm:$0xff]
  %v37 = vld [vmem:[%s1 + $0x78] sm:$0xff]
  %v38 = vld [vmem:[%s1 + $0x80] sm:$0xff]
  %v39 = vld [vmem:[%s1 + $0x88] sm:$0xff]
  %v40 = vld [vmem:[%s1 + $0x90] sm:$0xff]
  %v41 = vld [vmem:[%s1 + $0x98] sm:$0xff]
  %v42 = vld [vmem:[%s1 + $0xa0] sm:$0xff]
  %v43 = vld [vmem:[%s1 + $0xa8] sm:$0xff]
  %v44 = vld [vmem:[%s1 + $0xb0] sm:$0xff]
  %v45 = vld [vmem:[%s1 + $0xb8] sm:$0xff]
  %v46 = vld [vmem:[%s1 + $0xc0] sm:$0xff]
  %v47 = vld [vmem:[%s1 + $0xc8] sm:$0xff]
  %v48 = vld [vmem:[%s1 + $0xd0] sm:$0xff]
  %v49 = vld [vmem:[%s1 + $0xd8] sm:$0xff]
  %v50 = vld [vmem:[%s1 + $0xe0] sm:$0xff]
  %v51 = vld [vmem:[%s1 + $0xe8] sm:$0xff]
  %v52 = vld [vmem:[%s1 + $0xf0] sm:$0xff]
  %v53 = vld [vmem:[%s1 + $0xf8] sm:$0xff]
  %v54 = vld [vmem:[%s1 + $0x100] sm:$0xff]
  %v55 = vld [vmem:[%s1 + $0x108] sm:$0xff]
  %v56 = vld [vmem:[%s1 + $0x110] sm:$0xff]
  %v57 = vld [vmem:[%s1 + $0x118] sm:$0xff]
  %v58 = vld [vmem:[%s1 + $0x120] sm:$0xff]
  %v59 = vld [vmem:[%s1 + $0x128] sm:$0xff]
  %v60 = vld [vmem:[%s1 + $0x130] sm:$0xff]
  %v61 = vld [vmem:[%s1 + $0x138] sm:$0xff]
  %v62 = vld [vmem:[%s1 + $0x140] sm:$0xff]
  %v63 = vld [vmem:[%s1 + $0x148] sm:$0xff]
  %v64 = vld [vmem:[%s1 + $0x150] sm:$0xff]
  %v65 = vld [vmem:[%s1 + $0x158] sm:$0xff]
  %v66 = vld [vmem:[%s1 + $0x160] sm:$0xff]
  %v67 = vld [vmem:[%s1 + $0x168] sm:$0xff]
  %v68 = vld [vmem:[%s1 + $0x170] sm:$0xff]
  %v69 = vld [vmem:[%s1 + $0x178] sm:$0xff]
  %v70 = vld [vmem:[%s1 + $0x180] sm:$0xff]
  %v71 = vld [vmem:[%s1 + $0x188] sm:$0xff]
  %v72 = vld [vmem:[%s1 + $0x190] sm:$0xff]
  %v73 = vld [vmem:[%s1 + $0x198] sm:$0xff]
  %v74 = vld [vmem:[%s1 + $0x1a0] sm:$0xff]
  %v75 = vld [vmem:[%s1 + $0x1a8] sm:$0xff]
  %v76 = vld [vmem:[%s1 + $0x1b0] sm:$0xff]
  %v77 = vld [vmem:[%s1 + $0x1b8] sm:$0xff]
  %v78 = vld [vmem:[%s1 + $0x1c0] sm:$0xff]
  %v79 = vld [vmem:[%s1 + $0x1c8] sm:$0xff]
  %v80 = vld [vmem:[%s1 + $0x1d0] sm:$0xff]
  %v81 = vld [vmem:[%s1 + $0x1d8] sm:$0xff]
  %v82 = vld [vmem:[%s1 + $0x1e0] sm:$0xff]
  %v83 = vld [vmem:[%s1 + $0x1e8] sm:$0xff]
  %v84 = vld [vmem:[%s1 + $0x1f0] sm:$0xff]
  %v85 = vld [vmem:[%s1 + $0x1f8] sm:$0xff]
  %v86 = vld [vmem:[%s1 + $0x200] sm:$0xff]
  %v87 = vld [vmem:[%s1 + $0x208] sm:$0xff]
  %v88 = vld [vmem:[%s1 + $0x210] sm:$0xff]
  %v89 = vld [vmem:[%s1 + $0x218] sm:$0xff]
  %v90 = vld [vmem:[%s1 + $0x220] sm:$0xff]
  %v91 = vld [vmem:[%s1 + $0x228] sm:$0xff]
  %v92 = vld [vmem:[%s1 + $0x230] sm:$0xff]
  %v93 = vld [vmem:[%s1 + $0x238] sm:$0xff]
  %vm94 = vcmask 130048
  %v96 = vsel %vm94, %v15, 0
  %v99 = vsel %vm94, %v17, 0
  %v102 = vsel %vm94, %v19, 0
  %v105 = vsel %vm94, %v21, 0
  %107 = vmatpush.msra.mxu0 %v82
  %108 = vmatpush.msra.mxu0 %v78
  %109 = vmatpush.msra.mxu0 %v74
  %110 = vmatpush.msra.mxu0 %v70
  %111 = vmatpush.msra.mxu0 %v66
  %112 = vmatpush.msra.mxu0 %v62
  %113 = vmatpush.msra.mxu0 %v58
  %114 = vmatpush.msra.mxu0 %v54
  %115 = vmatpush.msra.mxu0 %v50
  %116 = vmatpush.msra.mxu0 %v46
  %117 = vmatpush.msra.mxu0 %v42
  %118 = vmatpush.msra.mxu0 %v38
  %119 = vmatpush.msra.mxu0 %v34
  %120 = vmatpush.msra.mxu0 %v30
  %121 = vmatpush.msra.mxu0 %v26
  %122 = vmatpush.msra.mxu0 %v22
  %123 = vmatmul.f32.gmra.mxu0 %v14
  %v124 = vpop.f32.mrf.mxu0
  %v125 = vadd.f32 0.0, %v124
  %126 = vmatmul.f32.gmra.mxu0 %v16
  %v127 = vpop.f32.mrf.mxu0
  %v128 = vadd.f32 0.0, %v127
  %129 = vmatmul.f32.gmra.mxu0 %v18
  %v130 = vpop.f32.mrf.mxu0
  %v131 = vadd.f32 0.0, %v130
  %132 = vmatmul.f32.gmra.mxu0 %v20
  %v133 = vpop.f32.mrf.mxu0
  %v134 = vadd.f32 0.0, %v133
  %135 = vdwg.mxu0
  %136 = vmatpush.msra.mxu0 0.0
  %137 = vmatpush.msra.mxu0 0.0
  %138 = vmatpush.msra.mxu0 0.0
  %139 = vmatpush.msra.mxu0 0.0
  %140 = vmatpush.msra.mxu0 0.0
  %141 = vmatpush.msra.mxu0 0.0
  %142 = vmatpush.msra.mxu0 0.0
  %143 = vmatpush.msra.mxu0 0.0
  %144 = vmatpush.msra.mxu0 0.0
  %145 = vmatpush.msra.mxu0 0.0
  %146 = vmatpush.msra.mxu0 0.0
  %147 = vmatpush.msra.mxu0 0.0
  %148 = vmatpush.msra.mxu0 0.0
  %149 = vmatpush.msra.mxu0 0.0
  %150 = vmatpush.msra.mxu0 %v90
  %151 = vmatpush.msra.mxu0 %v86
  %152 = vmatmul.f32.gmra.mxu0 %v96
  %v153 = vpop.f32.mrf.mxu0
  %v154 = vadd.f32 %v125, %v153
  %155 = vmatmul.f32.gmra.mxu0 %v99
  %v156 = vpop.f32.mrf.mxu0
  %v157 = vadd.f32 %v128, %v156
  %158 = vmatmul.f32.gmra.mxu0 %v102
  %v159 = vpop.f32.mrf.mxu0
  %v160 = vadd.f32 %v131, %v159
  %161 = vmatmul.f32.gmra.mxu0 %v105
  %v162 = vpop.f32.mrf.mxu0
  %v163 = vadd.f32 %v134, %v162
  %164 = vdwg.mxu0
  %165 = vmatpush.msra.mxu0 %v83
  %166 = vmatpush.msra.mxu0 %v79
  %167 = vmatpush.msra.mxu0 %v75
  %168 = vmatpush.msra.mxu0 %v71
  %169 = vmatpush.msra.mxu0 %v67
  %170 = vmatpush.msra.mxu0 %v63
  %171 = vmatpush.msra.mxu0 %v59
  %172 = vmatpush.msra.mxu0 %v55
  %173 = vmatpush.msra.mxu0 %v51
  %174 = vmatpush.msra.mxu0 %v47
  %175 = vmatpush.msra.mxu0 %v43
  %176 = vmatpush.msra.mxu0 %v39
  %177 = vmatpush.msra.mxu0 %v35
  %178 = vmatpush.msra.mxu0 %v31
  %179 = vmatpush.msra.mxu0 %v27
  %180 = vmatpush.msra.mxu0 %v23
  %181 = vmatmul.f32.gmra.mxu0 %v14
  %v182 = vpop.f32.mrf.mxu0
  %v183 = vadd.f32 0.0, %v182
  %184 = vmatmul.f32.gmra.mxu0 %v16
  %v185 = vpop.f32.mrf.mxu0
  %v186 = vadd.f32 0.0, %v185
  %187 = vmatmul.f32.gmra.mxu0 %v18
  %v188 = vpop.f32.mrf.mxu0
  %v189 = vadd.f32 0.0, %v188
  %190 = vmatmul.f32.gmra.mxu0 %v20
  %v191 = vpop.f32.mrf.mxu0
  %v192 = vadd.f32 0.0, %v191
  %193 = vdwg.mxu0
  %194 = vmatpush.msra.mxu0 0.0
  %195 = vmatpush.msra.mxu0 0.0
  %196 = vmatpush.msra.mxu0 0.0
  %197 = vmatpush.msra.mxu0 0.0
  %198 = vmatpush.msra.mxu0 0.0
  %199 = vmatpush.msra.mxu0 0.0
  %200 = vmatpush.msra.mxu0 0.0
  %201 = vmatpush.msra.mxu0 0.0
  %202 = vmatpush.msra.mxu0 0.0
  %203 = vmatpush.msra.mxu0 0.0
  %204 = vmatpush.msra.mxu0 0.0
  %205 = vmatpush.msra.mxu0 0.0
  %206 = vmatpush.msra.mxu0 0.0
  %207 = vmatpush.msra.mxu0 0.0
  %208 = vmatpush.msra.mxu0 %v91
  %209 = vmatpush.msra.mxu0 %v87
  %210 = vmatmul.f32.gmra.mxu0 %v96
  %v211 = vpop.f32.mrf.mxu0
  %v212 = vadd.f32 %v183, %v211
  %213 = vmatmul.f32.gmra.mxu0 %v99
  %v214 = vpop.f32.mrf.mxu0
  %v215 = vadd.f32 %v186, %v214
  %216 = vmatmul.f32.gmra.mxu0 %v102
  %v217 = vpop.f32.mrf.mxu0
  %v218 = vadd.f32 %v189, %v217
  %219 = vmatmul.f32.gmra.mxu0 %v105
  %v220 = vpop.f32.mrf.mxu0
  %v221 = vadd.f32 %v192, %v220
  %222 = vdwg.mxu0
  %223 = vmatpush.msra.mxu0 %v84
  %224 = vmatpush.msra.mxu0 %v80
  %225 = vmatpush.msra.mxu0 %v76
  %226 = vmatpush.msra.mxu0 %v72
  %227 = vmatpush.msra.mxu0 %v68
  %228 = vmatpush.msra.mxu0 %v64
  %229 = vmatpush.msra.mxu0 %v60
  %230 = vmatpush.msra.mxu0 %v56
  %231 = vmatpush.msra.mxu0 %v52
  %232 = vmatpush.msra.mxu0 %v48
  %233 = vmatpush.msra.mxu0 %v44
  %234 = vmatpush.msra.mxu0 %v40
  %235 = vmatpush.msra.mxu0 %v36
  %236 = vmatpush.msra.mxu0 %v32
  %237 = vmatpush.msra.mxu0 %v28
  %238 = vmatpush.msra.mxu0 %v24
  %239 = vmatmul.f32.gmra.mxu0 %v14
  %v240 = vpop.f32.mrf.mxu0
  %v241 = vadd.f32 0.0, %v240
  %242 = vmatmul.f32.gmra.mxu0 %v16
  %v243 = vpop.f32.mrf.mxu0
  %v244 = vadd.f32 0.0, %v243
  %245 = vmatmul.f32.gmra.mxu0 %v18
  %v246 = vpop.f32.mrf.mxu0
  %v247 = vadd.f32 0.0, %v246
  %248 = vmatmul.f32.gmra.mxu0 %v20
  %v249 = vpop.f32.mrf.mxu0
  %v250 = vadd.f32 0.0, %v249
  %251 = vdwg.mxu0
  %252 = vmatpush.msra.mxu0 0.0
  %253 = vmatpush.msra.mxu0 0.0
  %254 = vmatpush.msra.mxu0 0.0
  %255 = vmatpush.msra.mxu0 0.0
  %256 = vmatpush.msra.mxu0 0.0
  %257 = vmatpush.msra.mxu0 0.0
  %258 = vmatpush.msra.mxu0 0.0
  %259 = vmatpush.msra.mxu0 0.0
  %260 = vmatpush.msra.mxu0 0.0
  %261 = vmatpush.msra.mxu0 0.0
  %262 = vmatpush.msra.mxu0 0.0
  %263 = vmatpush.msra.mxu0 0.0
  %264 = vmatpush.msra.mxu0 0.0
  %265 = vmatpush.msra.mxu0 0.0
  %266 = vmatpush.msra.mxu0 %v92
  %267 = vmatpush.msra.mxu0 %v88
  %268 = vmatmul.f32.gmra.mxu0 %v96
  %v269 = vpop.f32.mrf.mxu0
  %v270 = vadd.f32 %v241, %v269
  %271 = vmatmul.f32.gmra.mxu0 %v99
  %v272 = vpop.f32.mrf.mxu0
  %v273 = vadd.f32 %v244, %v272
  %274 = vmatmul.f32.gmra.mxu0 %v102
  %v275 = vpop.f32.mrf.mxu0
  %v276 = vadd.f32 %v247, %v275
  %277 = vmatmul.f32.gmra.mxu0 %v105
  %v278 = vpop.f32.mrf.mxu0
  %v279 = vadd.f32 %v250, %v278
  %280 = vdwg.mxu0
  %281 = vmatpush.msra.mxu0 %v85
  %282 = vmatpush.msra.mxu0 %v81
  %283 = vmatpush.msra.mxu0 %v77
  %284 = vmatpush.msra.mxu0 %v73
  %285 = vmatpush.msra.mxu0 %v69
  %286 = vmatpush.msra.mxu0 %v65
  %287 = vmatpush.msra.mxu0 %v61
  %288 = vmatpush.msra.mxu0 %v57
  %289 = vmatpush.msra.mxu0 %v53
  %290 = vmatpush.msra.mxu0 %v49
  %291 = vmatpush.msra.mxu0 %v45
  %292 = vmatpush.msra.mxu0 %v41
  %293 = vmatpush.msra.mxu0 %v37
  %294 = vmatpush.msra.mxu0 %v33
  %295 = vmatpush.msra.mxu0 %v29
  %296 = vmatpush.msra.mxu0 %v25
  %297 = vmatmul.f32.gmra.mxu0 %v14
  %v298 = vpop.f32.mrf.mxu0
  %v299 = vadd.f32 0.0, %v298
  %300 = vmatmul.f32.gmra.mxu0 %v16
  %v301 = vpop.f32.mrf.mxu0
  %v302 = vadd.f32 0.0, %v301
  %303 = vmatmul.f32.gmra.mxu0 %v18
  %v304 = vpop.f32.mrf.mxu0
  %v305 = vadd.f32 0.0, %v304
  %306 = vmatmul.f32.gmra.mxu0 %v20
  %v307 = vpop.f32.mrf.mxu0
  %v308 = vadd.f32 0.0, %v307
  %309 = vdwg.mxu0
  %310 = vmatpush.msra.mxu0 0.0
  %311 = vmatpush.msra.mxu0 0.0
  %312 = vmatpush.msra.mxu0 0.0
  %313 = vmatpush.msra.mxu0 0.0
  %314 = vmatpush.msra.mxu0 0.0
  %315 = vmatpush.msra.mxu0 0.0
  %316 = vmatpush.msra.mxu0 0.0
  %317 = vmatpush.msra.mxu0 0.0
  %318 = vmatpush.msra.mxu0 0.0
  %319 = vmatpush.msra.mxu0 0.0
  %320 = vmatpush.msra.mxu0 0.0
  %321 = vmatpush.msra.mxu0 0.0
  %322 = vmatpush.msra.mxu0 0.0
  %323 = vmatpush.msra.mxu0 0.0
  %324 = vmatpush.msra.mxu0 %v93
  %325 = vmatpush.msra.mxu0 %v89
  %326 = vmatmul.f32.gmra.mxu0 %v96
  %v327 = vpop.f32.mrf.mxu0
  %v328 = vadd.f32 %v299, %v327
  %329 = vmatmul.f32.gmra.mxu0 %v99
  %v330 = vpop.f32.mrf.mxu0
  %v331 = vadd.f32 %v302, %v330
  %332 = vmatmul.f32.gmra.mxu0 %v102
  %v333 = vpop.f32.mrf.mxu0
  %v334 = vadd.f32 %v305, %v333
  %335 = vmatmul.f32.gmra.mxu0 %v105
  %v336 = vpop.f32.mrf.mxu0
  %v337 = vadd.f32 %v308, %v336
  %338 = vdwg.mxu0
  %339 = vst [vmem:[%s2] sm:$0xff] %v154
  %340 = vst [vmem:[%s2 + $0x8] sm:$0xff] %v212
  %341 = vst [vmem:[%s2 + $0x10] sm:$0xff] %v270
  %342 = vst [vmem:[%s2 + $0x18] sm:$0xff] %v328
  %343 = vst [vmem:[%s2 + $0x20] sm:$0xff] %v157
  %344 = vst [vmem:[%s2 + $0x28] sm:$0xff] %v215
  %345 = vst [vmem:[%s2 + $0x30] sm:$0xff] %v273
  %346 = vst [vmem:[%s2 + $0x38] sm:$0xff] %v331
  %347 = vst [vmem:[%s2 + $0x40] sm:$0xff] %v160
  %348 = vst [vmem:[%s2 + $0x48] sm:$0xff] %v218
  %349 = vst [vmem:[%s2 + $0x50] sm:$0xff] %v276
  %350 = vst [vmem:[%s2 + $0x58] sm:$0xff] %v334
  %351 = vst [vmem:[%s2 + $0x60] sm:$0xff] %v163
  %352 = vst [vmem:[%s2 + $0x68] sm:$0xff] %v221
  %353 = vst [vmem:[%s2 + $0x70] sm:$0xff] %v279
  %354 = vst [vmem:[%s2 + $0x78] sm:$0xff] %v337
  %v355 = vadd.f32 %v154, %v212
  %v356 = vadd.f32 %v355, %v270
  %v357 = vadd.f32 %v356, %v328
  %358 = vadd.xlane.f32.xlu0 %v357
  %v359 = vpop.xlane.xlu0 %358
  %v360 = vadd.f32 %v157, %v215
  %v361 = vadd.f32 %v360, %v273
  %v362 = vadd.f32 %v361, %v331
  %363 = vadd.xlane.f32.xlu0 %v362
  %v364 = vpop.xlane.xlu0 %363
  %v365 = vadd.f32 %v160, %v218
  %v366 = vadd.f32 %v365, %v276
  %v367 = vadd.f32 %v366, %v334
  %368 = vadd.xlane.f32.xlu0 %v367
  %v369 = vpop.xlane.xlu0 %368
  %v370 = vadd.f32 %v163, %v221
  %v371 = vadd.f32 %v370, %v279
  %v372 = vadd.f32 %v371, %v337
  %373 = vadd.xlane.f32.xlu0 %v372
  %v374 = vpop.xlane.xlu0 %373
  %vm375 = vcmask 7168
  %376 = vst.msk [vmem:[%s3] sm:$0xff] %vm375, %v359
  %377 = vst.msk [vmem:[%s3 + $0x8] sm:$0xff] %vm375, %v364
  %378 = vst.msk [vmem:[%s3 + $0x10] sm:$0xff] %vm375, %v369
  %379 = vst.msk [vmem:[%s3 + $0x18] sm:$0xff] %vm375, %v374
  %v380 = vmul.f32 %v154, %v154
  %v381 = vmul.f32 %v212, %v212
  %v382 = vmul.f32 %v270, %v270
  %v383 = vmul.f32 %v328, %v328
  %v384 = vmul.f32 %v157, %v157
  %v385 = vmul.f32 %v215, %v215
  %v386 = vmul.f32 %v273, %v273
  %v387 = vmul.f32 %v331, %v331
  %v388 = vmul.f32 %v160, %v160
  %v389 = vmul.f32 %v218, %v218
  %v390 = vmul.f32 %v276, %v276
  %v391 = vmul.f32 %v334, %v334
  %v392 = vmul.f32 %v163, %v163
  %v393 = vmul.f32 %v221, %v221
  %v394 = vmul.f32 %v279, %v279
  %v395 = vmul.f32 %v337, %v337
  %v396 = vadd.f32 %v380, %v381
  %v397 = vadd.f32 %v396, %v382
  %v398 = vadd.f32 %v397, %v383
  %399 = vadd.xlane.f32.xlu0 %v398
  %v400 = vpop.xlane.xlu0 %399
  %v401 = vadd.f32 %v384, %v385
  %v402 = vadd.f32 %v401, %v386
  %v403 = vadd.f32 %v402, %v387
  %404 = vadd.xlane.f32.xlu0 %v403
  %v405 = vpop.xlane.xlu0 %404
  %v406 = vadd.f32 %v388, %v389
  %v407 = vadd.f32 %v406, %v390
  %v408 = vadd.f32 %v407, %v391
  %409 = vadd.xlane.f32.xlu0 %v408
  %v410 = vpop.xlane.xlu0 %409
  %v411 = vadd.f32 %v392, %v393
  %v412 = vadd.f32 %v411, %v394
  %v413 = vadd.f32 %v412, %v395
  %414 = vadd.xlane.f32.xlu0 %v413
  %v415 = vpop.xlane.xlu0 %414
  %416 = vst.msk [vmem:[%s4] sm:$0xff] %vm375, %v400
  %417 = vst.msk [vmem:[%s4 + $0x8] sm:$0xff] %vm375, %v405
  %418 = vst.msk [vmem:[%s4 + $0x10] sm:$0xff] %vm375, %v410
  %419 = vst.msk [vmem:[%s4 + $0x18] sm:$0xff] %vm375, %v415
  // Predicated region
  $region10: #{_lambda_.21} parent=0 // pred_check
    _
  $region11: #{_lambda_.21} parent=0 // pred_check_branch
    %421 = sbr.rel (0) target = $region13
  $region12: #{_lambda_.21} parent=0 // pred_region
    _
  $region13: #{_lambda_.21} parent=0 // pred_fallthru
    _
  // Predicated region
  $region14: #{_lambda_.21} parent=0 // pred_check
    _
  $region15: #{_lambda_.21} parent=0 // pred_check_branch
    %423 = sbr.rel (0) target = $region17
  $region16: #{_lambda_.21} parent=0 // pred_region
    _
  $region17: #{_lambda_.21} parent=0 // pred_fallthru
    _
  // Predicated region
  $region18: #{_lambda_.21} parent=0 // pred_check
    _
  $region19: #{_lambda_.21} parent=0 // pred_check_branch
    %425 = sbr.rel (0) target = $region21
  $region20: #{_lambda_.21} parent=0 // pred_region
    _
  $region21: #{_lambda_.21} parent=0 // pred_fallthru
    _
  // Predicated region
  $region22: #{_lambda_.21} parent=0 // pred_check
    _
  $region23: #{_lambda_.21} parent=0 // pred_check_branch
    %427 = sbr.rel (0) target = $region25
  $region24: #{_lambda_.21} parent=0 // pred_region
    _
  $region25: #{_lambda_.21} parent=0 // pred_fallthru
    _
  // Predicated region
  $region26: #{_lambda_.21} parent=0 // pred_check
    _
  $region27: #{_lambda_.21} parent=0 // pred_check_branch
    %429 = sbr.rel (0) target = $region29
  $region28: #{_lambda_.21} parent=0 // pred_region
    _
  $region29: #{_lambda_.21} parent=0 // pred_fallthru
    _
  // Predicated region
  $region30: #{_lambda_.21} parent=0 // pred_check
    _
  $region31: #{_lambda_.21} parent=0 // pred_check_branch
    %431 = sbr.rel (0) target = $region33
  $region32: #{_lambda_.21} parent=0 // pred_region
    _
  $region33: #{_lambda_.21} parent=0 // pred_fallthru
    _

// kernel: _lambda_.22
$region0: #{_lambda_.22}
  #allocation0 [shape = 'u32[]', space=smem, size = 0x4, offset = 0x4, fixed_abs, tag = 'smem constant byte address 0x4 - core index']
  #allocation1 [shape = 'u32[72,128]{1,0:T(1,128)}', space=vmem, size = 0x9000, scoped, tag = 'internal scratch']
  %s0 = inlined_call_operand.vmem [shape: f32[32,512], index: 0, kind: input, shape index: {}]
  %s1 = inlined_call_operand.vmem [shape: f32[32,1], index: 1, kind: input, shape index: {}]
  %s2 = inlined_call_operand.vmem [shape: f32[32,1], index: 2, kind: input, shape index: {}]
  %s3 = inlined_call_operand.vmem [shape: f32[32,512], index: 3, kind: output, shape index: {}]
  %s4 = sld [smem:[#allocation0]]
  $region22: #{_lambda_.22} parent=0
    _
  %s6 = ssub.s32 1, %s4
  %s7 = scalar_select 0, %s6, %s4
  // Predicated region
  $region2: #{_lambda_.22} parent=0 // pred_check
    _
  $region3: #{_lambda_.22} parent=0 // pred_check_branch
    %9 = sbr.rel (0) target = $region5
  $region4: #{_lambda_.22} parent=0 // pred_region
    _
  $region5: #{_lambda_.22} parent=0 // pred_fallthru
    _
  // Predicated region
  $region6: #{_lambda_.22} parent=0 // pred_check
    _
  $region7: #{_lambda_.22} parent=0 // pred_check_branch
    %11 = sbr.rel (0) target = $region9
  $region8: #{_lambda_.22} parent=0 // pred_region
    _
  $region9: #{_lambda_.22} parent=0 // pred_fallthru
    _
  // Predicated region
  $region10: #{_lambda_.22} parent=0 // pred_check
    _
  $region11: #{_lambda_.22} parent=0 // pred_check_branch
    %13 = sbr.rel (0) target = $region13
  $region12: #{_lambda_.22} parent=0 // pred_region
    _
  $region13: #{_lambda_.22} parent=0 // pred_fallthru
    _
  %v14 = vld [vmem:[%s0] sm:$0xff]
  %v15 = vld [vmem:[%s0 + $0x8] sm:$0xff]
  %v16 = vld [vmem:[%s0 + $0x10] sm:$0xff]
  %v17 = vld [vmem:[%s0 + $0x18] sm:$0xff]
  %v18 = vld [vmem:[%s0 + $0x20] sm:$0xff]
  %v19 = vld [vmem:[%s0 + $0x28] sm:$0xff]
  %v20 = vld [vmem:[%s0 + $0x30] sm:$0xff]
  %v21 = vld [vmem:[%s0 + $0x38] sm:$0xff]
  %v22 = vld [vmem:[%s0 + $0x40] sm:$0xff]
  %v23 = vld [vmem:[%s0 + $0x48] sm:$0xff]
  %v24 = vld [vmem:[%s0 + $0x50] sm:$0xff]
  %v25 = vld [vmem:[%s0 + $0x58] sm:$0xff]
  %v26 = vld [vmem:[%s0 + $0x60] sm:$0xff]
  %v27 = vld [vmem:[%s0 + $0x68] sm:$0xff]
  %v28 = vld [vmem:[%s0 + $0x70] sm:$0xff]
  %v29 = vld [vmem:[%s0 + $0x78] sm:$0xff]
  %v30 = vld [vmem:[%s1] sm:$0xff]
  %v31 = vld [vmem:[%s1 + $0x8] sm:$0xff]
  %v32 = vld [vmem:[%s1 + $0x10] sm:$0xff]
  %v33 = vld [vmem:[%s1 + $0x18] sm:$0xff]
  %35 = vset.pattern.permute.xlu0 0
  %36 = vperm.xlu0 %35, %v30
  %v37 = vpop.permute.xlu0 %36
  %40 = vset.pattern.permute.xlu0 0
  %41 = vperm.xlu0 %40, %v31
  %v42 = vpop.permute.xlu0 %41
  %45 = vset.pattern.permute.xlu0 0
  %46 = vperm.xlu0 %45, %v32
  %v47 = vpop.permute.xlu0 %46
  %50 = vset.pattern.permute.xlu0 0
  %51 = vperm.xlu0 %50, %v33
  %v52 = vpop.permute.xlu0 %51
  %v54 = vmul.f32 %v14, %v37
  %v55 = vmul.f32 %v15, %v37
  %v56 = vmul.f32 %v16, %v37
  %v57 = vmul.f32 %v17, %v37
  %v58 = vmul.f32 %v18, %v42
  %v59 = vmul.f32 %v19, %v42
  %v60 = vmul.f32 %v20, %v42
  %v61 = vmul.f32 %v21, %v42
  %v62 = vmul.f32 %v22, %v47
  %v63 = vmul.f32 %v23, %v47
  %v64 = vmul.f32 %v24, %v47
  %v65 = vmul.f32 %v25, %v47
  %v66 = vmul.f32 %v26, %v52
  %v67 = vmul.f32 %v27, %v52
  %v68 = vmul.f32 %v28, %v52
  %v69 = vmul.f32 %v29, %v52
  %v70 = vld [vmem:[%s2] sm:$0xff]
  %v71 = vld [vmem:[%s2 + $0x8] sm:$0xff]
  %v72 = vld [vmem:[%s2 + $0x10] sm:$0xff]
  %v73 = vld [vmem:[%s2 + $0x18] sm:$0xff]
  %75 = vset.pattern.permute.xlu0 0
  %76 = vperm.xlu0 %75, %v70
  %v77 = vpop.permute.xlu0 %76
  %80 = vset.pattern.permute.xlu0 0
  %81 = vperm.xlu0 %80, %v71
  %v82 = vpop.permute.xlu0 %81
  %85 = vset.pattern.permute.xlu0 0
  %86 = vperm.xlu0 %85, %v72
  %v87 = vpop.permute.xlu0 %86
  %90 = vset.pattern.permute.xlu0 0
  %91 = vperm.xlu0 %90, %v73
  %v92 = vpop.permute.xlu0 %91
  %v94 = vadd.f32 %v54, %v77
  %v95 = vadd.f32 %v55, %v77
  %v96 = vadd.f32 %v56, %v77
  %v97 = vadd.f32 %v57, %v77
  %v98 = vadd.f32 %v58, %v82
  %v99 = vadd.f32 %v59, %v82
  %v100 = vadd.f32 %v60, %v82
  %v101 = vadd.f32 %v61, %v82
  %v102 = vadd.f32 %v62, %v87
  %v103 = vadd.f32 %v63, %v87
  %v104 = vadd.f32 %v64, %v87
  %v105 = vadd.f32 %v65, %v87
  %v106 = vadd.f32 %v66, %v92
  %v107 = vadd.f32 %v67, %v92
  %v108 = vadd.f32 %v68, %v92
  %v109 = vadd.f32 %v69, %v92
  %v110 = vmax.f32 %v94, 0.0
  %v111 = vmax.f32 %v95, 0.0
  %v112 = vmax.f32 %v96, 0.0
  %v113 = vmax.f32 %v97, 0.0
  %v114 = vmax.f32 %v98, 0.0
  %v115 = vmax.f32 %v99, 0.0
  %v116 = vmax.f32 %v100, 0.0
  %v117 = vmax.f32 %v101, 0.0
  %v118 = vmax.f32 %v102, 0.0
  %v119 = vmax.f32 %v103, 0.0
  %v120 = vmax.f32 %v104, 0.0
  %v121 = vmax.f32 %v105, 0.0
  %v122 = vmax.f32 %v106, 0.0
  %v123 = vmax.f32 %v107, 0.0
  %v124 = vmax.f32 %v108, 0.0
  %v125 = vmax.f32 %v109, 0.0
  %126 = vst [vmem:[%s3] sm:$0xff] %v110
  %127 = vst [vmem:[%s3 + $0x8] sm:$0xff] %v111
  %128 = vst [vmem:[%s3 + $0x10] sm:$0xff] %v112
  %129 = vst [vmem:[%s3 + $0x18] sm:$0xff] %v113
  %130 = vst [vmem:[%s3 + $0x20] sm:$0xff] %v114
  %131 = vst [vmem:[%s3 + $0x28] sm:$0xff] %v115
  %132 = vst [vmem:[%s3 + $0x30] sm:$0xff] %v116
  %133 = vst [vmem:[%s3 + $0x38] sm:$0xff] %v117
  %134 = vst [vmem:[%s3 + $0x40] sm:$0xff] %v118
  %135 = vst [vmem:[%s3 + $0x48] sm:$0xff] %v119
  %136 = vst [vmem:[%s3 + $0x50] sm:$0xff] %v120
  %137 = vst [vmem:[%s3 + $0x58] sm:$0xff] %v121
  %138 = vst [vmem:[%s3 + $0x60] sm:$0xff] %v122
  %139 = vst [vmem:[%s3 + $0x68] sm:$0xff] %v123
  %140 = vst [vmem:[%s3 + $0x70] sm:$0xff] %v124
  %141 = vst [vmem:[%s3 + $0x78] sm:$0xff] %v125
  // Predicated region
  $region14: #{_lambda_.22} parent=0 // pred_check
    _
  $region15: #{_lambda_.22} parent=0 // pred_check_branch
    %143 = sbr.rel (0) target = $region17
  $region16: #{_lambda_.22} parent=0 // pred_region
    _
  $region17: #{_lambda_.22} parent=0 // pred_fallthru
    _
  // Predicated region
  $region18: #{_lambda_.22} parent=0 // pred_check
    _
  $region19: #{_lambda_.22} parent=0 // pred_check_branch
    %145 = sbr.rel (0) target = $region21
  $region20: #{_lambda_.22} parent=0 // pred_region
    _
  $region21: #{_lambda_.22} parent=0 // pred_fallthru
    _

// kernel: _lambda_.23
$region0: #{_lambda_.23}
  #allocation0 [shape = 'u32[]', space=smem, size = 0x4, offset = 0x4, fixed_abs, tag = 'smem constant byte address 0x4 - core index']
  #allocation1 [shape = 'u32[72,128]{1,0:T(1,128)}', space=vmem, size = 0x9000, scoped, tag = 'internal scratch']
  %s0 = inlined_call_operand.vmem [shape: f32[64,288], index: 0, kind: input, shape index: {}]
  %s1 = inlined_call_operand.vmem [shape: f32[288,128], index: 1, kind: input, shape index: {}]
  %s2 = inlined_call_operand.vmem [shape: f32[64,128], index: 2, kind: output, shape index: {0}]
  %s3 = inlined_call_operand.vmem [shape: f32[1,64,1], index: 3, kind: output, shape index: {1}]
  %s4 = inlined_call_operand.vmem [shape: f32[1,64,1], index: 4, kind: output, shape index: {2}]
  %5 = xla_tuple %s2, %s3, %s4
  %s6 = sld [smem:[#allocation0]]
  $region34: #{_lambda_.23} parent=0
    _
  %s8 = ssub.s32 1, %s6
  %s9 = scalar_select 0, %s8, %s6
  // Predicated region
  $region2: #{_lambda_.23} parent=0 // pred_check
    _
  $region3: #{_lambda_.23} parent=0 // pred_check_branch
    %11 = sbr.rel (0) target = $region5
  $region4: #{_lambda_.23} parent=0 // pred_region
    _
  $region5: #{_lambda_.23} parent=0 // pred_fallthru
    _
  // Predicated region
  $region6: #{_lambda_.23} parent=0 // pred_check
    _
  $region7: #{_lambda_.23} parent=0 // pred_check_branch
    %13 = sbr.rel (0) target = $region9
  $region8: #{_lambda_.23} parent=0 // pred_region
    _
  $region9: #{_lambda_.23} parent=0 // pred_fallthru
    _
  %v14 = vld [vmem:[%s0] sm:$0xff]
  %v15 = vld [vmem:[%s0 + $0x8] sm:$0xff]
  %v16 = vld [vmem:[%s0 + $0x10] sm:$0xff]
  %v17 = vld [vmem:[%s0 + $0x18] sm:$0xff]
  %v18 = vld [vmem:[%s0 + $0x20] sm:$0xff]
  %v19 = vld [vmem:[%s0 + $0x28] sm:$0xff]
  %v20 = vld [vmem:[%s0 + $0x30] sm:$0xff]
  %v21 = vld [vmem:[%s0 + $0x38] sm:$0xff]
  %v22 = vld [vmem:[%s0 + $0x40] sm:$0xff]
  %v23 = vld [vmem:[%s0 + $0x48] sm:$0xff]
  %v24 = vld [vmem:[%s0 + $0x50] sm:$0xff]
  %v25 = vld [vmem:[%s0 + $0x58] sm:$0xff]
  %v26 = vld [vmem:[%s0 + $0x60] sm:$0xff]
  %v27 = vld [vmem:[%s0 + $0x68] sm:$0xff]
  %v28 = vld [vmem:[%s0 + $0x70] sm:$0xff]
  %v29 = vld [vmem:[%s0 + $0x78] sm:$0xff]
  %v30 = vld [vmem:[%s0 + $0x80] sm:$0xff]
  %v31 = vld [vmem:[%s0 + $0x88] sm:$0xff]
  %v32 = vld [vmem:[%s0 + $0x90] sm:$0xff]
  %v33 = vld [vmem:[%s0 + $0x98] sm:$0xff]
  %v34 = vld [vmem:[%s0 + $0xa0] sm:$0xff]
  %v35 = vld [vmem:[%s0 + $0xa8] sm:$0xff]
  %v36 = vld [vmem:[%s0 + $0xb0] sm:$0xff]
  %v37 = vld [vmem:[%s0 + $0xb8] sm:$0xff]
  %v38 = vld [vmem:[%s1] sm:$0xff]
  %v39 = vld [vmem:[%s1 + $0x8] sm:$0xff]
  %v40 = vld [vmem:[%s1 + $0x10] sm:$0xff]
  %v41 = vld [vmem:[%s1 + $0x18] sm:$0xff]
  %v42 = vld [vmem:[%s1 + $0x20] sm:$0xff]
  %v43 = vld [vmem:[%s1 + $0x28] sm:$0xff]
  %v44 = vld [vmem:[%s1 + $0x30] sm:$0xff]
  %v45 = vld [vmem:[%s1 + $0x38] sm:$0xff]
  %v46 = vld [vmem:[%s1 + $0x40] sm:$0xff]
  %v47 = vld [vmem:[%s1 + $0x48] sm:$0xff]
  %v48 = vld [vmem:[%s1 + $0x50] sm:$0xff]
  %v49 = vld [vmem:[%s1 + $0x58] sm:$0xff]
  %v50 = vld [vmem:[%s1 + $0x60] sm:$0xff]
  %v51 = vld [vmem:[%s1 + $0x68] sm:$0xff]
  %v52 = vld [vmem:[%s1 + $0x70] sm:$0xff]
  %v53 = vld [vmem:[%s1 + $0x78] sm:$0xff]
  %v54 = vld [vmem:[%s1 + $0x80] sm:$0xff]
  %v55 = vld [vmem:[%s1 + $0x88] sm:$0xff]
  %v56 = vld [vmem:[%s1 + $0x90] sm:$0xff]
  %v57 = vld [vmem:[%s1 + $0x98] sm:$0xff]
  %v58 = vld [vmem:[%s1 + $0xa0] sm:$0xff]
  %v59 = vld [vmem:[%s1 + $0xa8] sm:$0xff]
  %v60 = vld [vmem:[%s1 + $0xb0] sm:$0xff]
  %v61 = vld [vmem:[%s1 + $0xb8] sm:$0xff]
  %v62 = vld [vmem:[%s1 + $0xc0] sm:$0xff]
  %v63 = vld [vmem:[%s1 + $0xc8] sm:$0xff]
  %v64 = vld [vmem:[%s1 + $0xd0] sm:$0xff]
  %v65 = vld [vmem:[%s1 + $0xd8] sm:$0xff]
  %v66 = vld [vmem:[%s1 + $0xe0] sm:$0xff]
  %v67 = vld [vmem:[%s1 + $0xe8] sm:$0xff]
  %v68 = vld [vmem:[%s1 + $0xf0] sm:$0xff]
  %v69 = vld [vmem:[%s1 + $0xf8] sm:$0xff]
  %v70 = vld [vmem:[%s1 + $0x100] sm:$0xff]
  %v71 = vld [vmem:[%s1 + $0x108] sm:$0xff]
  %v72 = vld [vmem:[%s1 + $0x110] sm:$0xff]
  %v73 = vld [vmem:[%s1 + $0x118] sm:$0xff]
  %vm74 = vcmask 261120
  %v76 = vsel %vm74, %v16, 0
  %v79 = vsel %vm74, %v19, 0
  %v82 = vsel %vm74, %v22, 0
  %v85 = vsel %vm74, %v25, 0
  %v88 = vsel %vm74, %v28, 0
  %v91 = vsel %vm74, %v31, 0
  %v94 = vsel %vm74, %v34, 0
  %v97 = vsel %vm74, %v37, 0
  %99 = vmatpush.msra.mxu0 %v53
  %100 = vmatpush.msra.mxu0 %v52
  %101 = vmatpush.msra.mxu0 %v51
  %102 = vmatpush.msra.mxu0 %v50
  %103 = vmatpush.msra.mxu0 %v49
  %104 = vmatpush.msra.mxu0 %v48
  %105 = vmatpush.msra.mxu0 %v47
  %106 = vmatpush.msra.mxu0 %v46
  %107 = vmatpush.msra.mxu0 %v45
  %108 = vmatpush.msra.mxu0 %v44
  %109 = vmatpush.msra.mxu0 %v43
  %110 = vmatpush.msra.mxu0 %v42
  %111 = vmatpush.msra.mxu0 %v41
  %112 = vmatpush.msra.mxu0 %v40
  %113 = vmatpush.msra.mxu0 %v39
  %114 = vmatpush.msra.mxu0 %v38
  %115 = vmatmul.f32.gmra.mxu0 %v14
  %v116 = vpop.f32.mrf.mxu0
  %v117 = vadd.f32 0.0, %v116
  %118 = vmatmul.f32.gmra.mxu0 %v17
  %v119 = vpop.f32.mrf.mxu0
  %v120 = vadd.f32 0.0, %v119
  %121 = vmatmul.f32.gmra.mxu0 %v20
  %v122 = vpop.f32.mrf.mxu0
  %v123 = vadd.f32 0.0, %v122
  %124 = vmatmul.f32.gmra.mxu0 %v23
  %v125 = vpop.f32.mrf.mxu0
  %v126 = vadd.f32 0.0, %v125
  %127 = vmatmul.f32.gmra.mxu0 %v26
  %v128 = vpop.f32.mrf.mxu0
  %v129 = vadd.f32 0.0, %v128
  %130 = vmatmul.f32.gmra.mxu0 %v29
  %v131 = vpop.f32.mrf.mxu0
  %v132 = vadd.f32 0.0, %v131
  %133 = vmatmul.f32.gmra.mxu0 %v32
  %v134 = vpop.f32.mrf.mxu0
  %v135 = vadd.f32 0.0, %v134
  %136 = vmatmul.f32.gmra.mxu0 %v35
  %v137 = vpop.f32.mrf.mxu0
  %v138 = vadd.f32 0.0, %v137
  %139 = vdwg.mxu0
  %140 = vmatpush.msra.mxu0 %v69
  %141 = vmatpush.msra.mxu0 %v68
  %142 = vmatpush.msra.mxu0 %v67
  %143 = vmatpush.msra.mxu0 %v66
  %144 = vmatpush.msra.mxu0 %v65
  %145 = vmatpush.msra.mxu0 %v64
  %146 = vmatpush.msra.mxu0 %v63
  %147 = vmatpush.msra.mxu0 %v62
  %148 = vmatpush.msra.mxu0 %v61
  %149 = vmatpush.msra.mxu0 %v60
  %150 = vmatpush.msra.mxu0 %v59
  %151 = vmatpush.msra.mxu0 %v58
  %152 = vmatpush.msra.mxu0 %v57
  %153 = vmatpush.msra.mxu0 %v56
  %154 = vmatpush.msra.mxu0 %v55
  %155 = vmatpush.msra.mxu0 %v54
  %156 = vmatmul.f32.gmra.mxu0 %v15
  %v157 = vpop.f32.mrf.mxu0
  %v158 = vadd.f32 %v117, %v157
  %159 = vmatmul.f32.gmra.mxu0 %v18
  %v160 = vpop.f32.mrf.mxu0
  %v161 = vadd.f32 %v120, %v160
  %162 = vmatmul.f32.gmra.mxu0 %v21
  %v163 = vpop.f32.mrf.mxu0
  %v164 = vadd.f32 %v123, %v163
  %165 = vmatmul.f32.gmra.mxu0 %v24
  %v166 = vpop.f32.mrf.mxu0
  %v167 = vadd.f32 %v126, %v166
  %168 = vmatmul.f32.gmra.mxu0 %v27
  %v169 = vpop.f32.mrf.mxu0
  %v170 = vadd.f32 %v129, %v169
  %171 = vmatmul.f32.gmra.mxu0 %v30
  %v172 = vpop.f32.mrf.mxu0
  %v173 = vadd.f32 %v132, %v172
  %174 = vmatmul.f32.gmra.mxu0 %v33
  %v175 = vpop.f32.mrf.mxu0
  %v176 = vadd.f32 %v135, %v175
  %177 = vmatmul.f32.gmra.mxu0 %v36
  %v178 = vpop.f32.mrf.mxu0
  %v179 = vadd.f32 %v138, %v178
  %180 = vdwg.mxu0
  %181 = vmatpush.msra.mxu0 0.0
  %182 = vmatpush.msra.mxu0 0.0
  %183 = vmatpush.msra.mxu0 0.0
  %184 = vmatpush.msra.mxu0 0.0
  %185 = vmatpush.msra.mxu0 0.0
  %186 = vmatpush.msra.mxu0 0.0
  %187 = vmatpush.msra.mxu0 0.0
  %188 = vmatpush.msra.mxu0 0.0
  %189 = vmatpush.msra.mxu0 0.0
  %190 = vmatpush.msra.mxu0 0.0
  %191 = vmatpush.msra.mxu0 0.0
  %192 = vmatpush.msra.mxu0 0.0
  %193 = vmatpush.msra.mxu0 %v73
  %194 = vmatpush.msra.mxu0 %v72
  %195 = vmatpush.msra.mxu0 %v71
  %196 = vmatpush.msra.mxu0 %v70
  %197 = vmatmul.f32.gmra.mxu0 %v76
  %v198 = vpop.f32.mrf.mxu0
  %v199 = vadd.f32 %v158, %v198
  %200 = vmatmul.f32.gmra.mxu0 %v79
  %v201 = vpop.f32.mrf.mxu0
  %v202 = vadd.f32 %v161, %v201
  %203 = vmatmul.f32.gmra.mxu0 %v82
  %v204 = vpop.f32.mrf.mxu0
  %v205 = vadd.f32 %v164, %v204
  %206 = vmatmul.f32.gmra.mxu0 %v85
  %v207 = vpop.f32.mrf.mxu0
  %v208 = vadd.f32 %v167, %v207
  %209 = vmatmul.f32.gmra.mxu0 %v88
  %v210 = vpop.f32.mrf.mxu0
  %v211 = vadd.f32 %v170, %v210
  %212 = vmatmul.f32.gmra.mxu0 %v91
  %v213 = vpop.f32.mrf.mxu0
  %v214 = vadd.f32 %v173, %v213
  %215 = vmatmul.f32.gmra.mxu0 %v94
  %v216 = vpop.f32.mrf.mxu0
  %v217 = vadd.f32 %v176, %v216
  %218 = vmatmul.f32.gmra.mxu0 %v97
  %v219 = vpop.f32.mrf.mxu0
  %v220 = vadd.f32 %v179, %v219
  %221 = vdwg.mxu0
  %222 = vst [vmem:[%s2] sm:$0xff] %v199
  %223 = vst [vmem:[%s2 + $0x8] sm:$0xff] %v202
  %224 = vst [vmem:[%s2 + $0x10] sm:$0xff] %v205
  %225 = vst [vmem:[%s2 + $0x18] sm:$0xff] %v208
  %226 = vst [vmem:[%s2 + $0x20] sm:$0xff] %v211
  %227 = vst [vmem:[%s2 + $0x28] sm:$0xff] %v214
  %228 = vst [vmem:[%s2 + $0x30] sm:$0xff] %v217
  %229 = vst [vmem:[%s2 + $0x38] sm:$0xff] %v220
  %230 = vadd.xlane.f32.xlu0 %v199
  %v231 = vpop.xlane.xlu0 %230
  %232 = vadd.xlane.f32.xlu0 %v202
  %v233 = vpop.xlane.xlu0 %232
  %234 = vadd.xlane.f32.xlu0 %v205
  %v235 = vpop.xlane.xlu0 %234
  %236 = vadd.xlane.f32.xlu0 %v208
  %v237 = vpop.xlane.xlu0 %236
  %238 = vadd.xlane.f32.xlu0 %v211
  %v239 = vpop.xlane.xlu0 %238
  %240 = vadd.xlane.f32.xlu0 %v214
  %v241 = vpop.xlane.xlu0 %240
  %242 = vadd.xlane.f32.xlu0 %v217
  %v243 = vpop.xlane.xlu0 %242
  %244 = vadd.xlane.f32.xlu0 %v220
  %v245 = vpop.xlane.xlu0 %244
  %vm246 = vcmask 7168
  %247 = vst.msk [vmem:[%s3] sm:$0xff] %vm246, %v231
  %248 = vst.msk [vmem:[%s3 + $0x8] sm:$0xff] %vm246, %v233
  %249 = vst.msk [vmem:[%s3 + $0x10] sm:$0xff] %vm246, %v235
  %250 = vst.msk [vmem:[%s3 + $0x18] sm:$0xff] %vm246, %v237
  %251 = vst.msk [vmem:[%s3 + $0x20] sm:$0xff] %vm246, %v239
  %252 = vst.msk [vmem:[%s3 + $0x28] sm:$0xff] %vm246, %v241
  %253 = vst.msk [vmem:[%s3 + $0x30] sm:$0xff] %vm246, %v243
  %254 = vst.msk [vmem:[%s3 + $0x38] sm:$0xff] %vm246, %v245
  %v255 = vmul.f32 %v199, %v199
  %v256 = vmul.f32 %v202, %v202
  %v257 = vmul.f32 %v205, %v205
  %v258 = vmul.f32 %v208, %v208
  %v259 = vmul.f32 %v211, %v211
  %v260 = vmul.f32 %v214, %v214
  %v261 = vmul.f32 %v217, %v217
  %v262 = vmul.f32 %v220, %v220
  %263 = vadd.xlane.f32.xlu0 %v255
  %v264 = vpop.xlane.xlu0 %263
  %265 = vadd.xlane.f32.xlu0 %v256
  %v266 = vpop.xlane.xlu0 %265
  %267 = vadd.xlane.f32.xlu0 %v257
  %v268 = vpop.xlane.xlu0 %267
  %269 = vadd.xlane.f32.xlu0 %v258
  %v270 = vpop.xlane.xlu0 %269
  %271 = vadd.xlane.f32.xlu0 %v259
  %v272 = vpop.xlane.xlu0 %271
  %273 = vadd.xlane.f32.xlu0 %v260
  %v274 = vpop.xlane.xlu0 %273
  %275 = vadd.xlane.f32.xlu0 %v261
  %v276 = vpop.xlane.xlu0 %275
  %277 = vadd.xlane.f32.xlu0 %v262
  %v278 = vpop.xlane.xlu0 %277
  %279 = vst.msk [vmem:[%s4] sm:$0xff] %vm246, %v264
  %280 = vst.msk [vmem:[%s4 + $0x8] sm:$0xff] %vm246, %v266
  %281 = vst.msk [vmem:[%s4 + $0x10] sm:$0xff] %vm246, %v268
  %282 = vst.msk [vmem:[%s4 + $0x18] sm:$0xff] %vm246, %v270
  %283 = vst.msk [vmem:[%s4 + $0x20] sm:$0xff] %vm246, %v272
  %284 = vst.msk [vmem:[%s4 + $0x28] sm:$0xff] %vm246, %v274
  %285 = vst.msk [vmem:[%s4 + $0x30] sm:$0xff] %vm246, %v276
  %286 = vst.msk [vmem:[%s4 + $0x38] sm:$0xff] %vm246, %v278
  // Predicated region
  $region10: #{_lambda_.23} parent=0 // pred_check
    _
  $region11: #{_lambda_.23} parent=0 // pred_check_branch
    %288 = sbr.rel (0) target = $region13
  $region12: #{_lambda_.23} parent=0 // pred_region
    _
  $region13: #{_lambda_.23} parent=0 // pred_fallthru
    _
  // Predicated region
  $region14: #{_lambda_.23} parent=0 // pred_check
    _
  $region15: #{_lambda_.23} parent=0 // pred_check_branch
    %290 = sbr.rel (0) target = $region17
  $region16: #{_lambda_.23} parent=0 // pred_region
    _
  $region17: #{_lambda_.23} parent=0 // pred_fallthru
    _
  // Predicated region
  $region18: #{_lambda_.23} parent=0 // pred_check
    _
  $region19: #{_lambda_.23} parent=0 // pred_check_branch
    %292 = sbr.rel (0) target = $region21
  $region20: #{_lambda_.23} parent=0 // pred_region
    _
  $region21: #{_lambda_.23} parent=0 // pred_fallthru
    _
  // Predicated region
  $region22: #{_lambda_.23} parent=0 // pred_check
    _
  $region23: #{_lambda_.23} parent=0 // pred_check_branch
    %294 = sbr.rel (0) target = $region25
  $region24: #{_lambda_.23} parent=0 // pred_region
    _
  $region25: #{_lambda_.23} parent=0 // pred_fallthru
    _
  // Predicated region
  $region26: #{_lambda_.23} parent=0 // pred_check
    _
  $region27: #{_lambda_.23} parent=0 // pred_check_branch
    %296 = sbr.rel (0) target = $region29
  $region28: #{_lambda_.23} parent=0 // pred_region
    _
  $region29: #{_lambda_.23} parent=0 // pred_fallthru
    _
  // Predicated region
  $region30: #{_lambda_.23} parent=0 // pred_check
    _
  $region31: #{_lambda_.23} parent=0 // pred_check_branch
    %298 = sbr.rel (0) target = $region33
  $region32: #{_lambda_.23} parent=0 // pred_region
    _
  $region33: #{_lambda_.23} parent=0 // pred_fallthru
    _

// kernel: _lambda_.24
$region0: #{_lambda_.24}
  #allocation0 [shape = 'u32[]', space=smem, size = 0x4, offset = 0x4, fixed_abs, tag = 'smem constant byte address 0x4 - core index']
  #allocation1 [shape = 'u32[72,128]{1,0:T(1,128)}', space=vmem, size = 0x9000, scoped, tag = 'internal scratch']
  %s0 = inlined_call_operand.vmem [shape: f32[64,128], index: 0, kind: input, shape index: {}]
  %s1 = inlined_call_operand.vmem [shape: f32[64,1], index: 1, kind: input, shape index: {}]
  %s2 = inlined_call_operand.vmem [shape: f32[64,1], index: 2, kind: input, shape index: {}]
  %s3 = inlined_call_operand.vmem [shape: f32[64,128], index: 3, kind: output, shape index: {}]
  %s4 = sld [smem:[#allocation0]]
  $region22: #{_lambda_.24} parent=0
    _
  %s6 = ssub.s32 1, %s4
  %s7 = scalar_select 0, %s6, %s4
  // Predicated region
  $region2: #{_lambda_.24} parent=0 // pred_check
    _
  $region3: #{_lambda_.24} parent=0 // pred_check_branch
    %9 = sbr.rel (0) target = $region5
  $region4: #{_lambda_.24} parent=0 // pred_region
    _
  $region5: #{_lambda_.24} parent=0 // pred_fallthru
    _
  // Predicated region
  $region6: #{_lambda_.24} parent=0 // pred_check
    _
  $region7: #{_lambda_.24} parent=0 // pred_check_branch
    %11 = sbr.rel (0) target = $region9
  $region8: #{_lambda_.24} parent=0 // pred_region
    _
  $region9: #{_lambda_.24} parent=0 // pred_fallthru
    _
  // Predicated region
  $region10: #{_lambda_.24} parent=0 // pred_check
    _
  $region11: #{_lambda_.24} parent=0 // pred_check_branch
    %13 = sbr.rel (0) target = $region13
  $region12: #{_lambda_.24} parent=0 // pred_region
    _
  $region13: #{_lambda_.24} parent=0 // pred_fallthru
    _
  %v14 = vld [vmem:[%s0] sm:$0xff]
  %v15 = vld [vmem:[%s0 + $0x8] sm:$0xff]
  %v16 = vld [vmem:[%s0 + $0x10] sm:$0xff]
  %v17 = vld [vmem:[%s0 + $0x18] sm:$0xff]
  %v18 = vld [vmem:[%s0 + $0x20] sm:$0xff]
  %v19 = vld [vmem:[%s0 + $0x28] sm:$0xff]
  %v20 = vld [vmem:[%s0 + $0x30] sm:$0xff]
  %v21 = vld [vmem:[%s0 + $0x38] sm:$0xff]
  %v22 = vld [vmem:[%s1] sm:$0xff]
  %v23 = vld [vmem:[%s1 + $0x8] sm:$0xff]
  %v24 = vld [vmem:[%s1 + $0x10] sm:$0xff]
  %v25 = vld [vmem:[%s1 + $0x18] sm:$0xff]
  %v26 = vld [vmem:[%s1 + $0x20] sm:$0xff]
  %v27 = vld [vmem:[%s1 + $0x28] sm:$0xff]
  %v28 = vld [vmem:[%s1 + $0x30] sm:$0xff]
  %v29 = vld [vmem:[%s1 + $0x38] sm:$0xff]
  %31 = vset.pattern.permute.xlu0 0
  %32 = vperm.xlu0 %31, %v22
  %v33 = vpop.permute.xlu0 %32
  %36 = vset.pattern.permute.xlu0 0
  %37 = vperm.xlu0 %36, %v23
  %v38 = vpop.permute.xlu0 %37
  %41 = vset.pattern.permute.xlu0 0
  %42 = vperm.xlu0 %41, %v24
  %v43 = vpop.permute.xlu0 %42
  %46 = vset.pattern.permute.xlu0 0
  %47 = vperm.xlu0 %46, %v25
  %v48 = vpop.permute.xlu0 %47
  %51 = vset.pattern.permute.xlu0 0
  %52 = vperm.xlu0 %51, %v26
  %v53 = vpop.permute.xlu0 %52
  %56 = vset.pattern.permute.xlu0 0
  %57 = vperm.xlu0 %56, %v27
  %v58 = vpop.permute.xlu0 %57
  %61 = vset.pattern.permute.xlu0 0
  %62 = vperm.xlu0 %61, %v28
  %v63 = vpop.permute.xlu0 %62
  %66 = vset.pattern.permute.xlu0 0
  %67 = vperm.xlu0 %66, %v29
  %v68 = vpop.permute.xlu0 %67
  %v70 = vmul.f32 %v14, %v33
  %v71 = vmul.f32 %v15, %v38
  %v72 = vmul.f32 %v16, %v43
  %v73 = vmul.f32 %v17, %v48
  %v74 = vmul.f32 %v18, %v53
  %v75 = vmul.f32 %v19, %v58
  %v76 = vmul.f32 %v20, %v63
  %v77 = vmul.f32 %v21, %v68
  %v78 = vld [vmem:[%s2] sm:$0xff]
  %v79 = vld [vmem:[%s2 + $0x8] sm:$0xff]
  %v80 = vld [vmem:[%s2 + $0x10] sm:$0xff]
  %v81 = vld [vmem:[%s2 + $0x18] sm:$0xff]
  %v82 = vld [vmem:[%s2 + $0x20] sm:$0xff]
  %v83 = vld [vmem:[%s2 + $0x28] sm:$0xff]
  %v84 = vld [vmem:[%s2 + $0x30] sm:$0xff]
  %v85 = vld [vmem:[%s2 + $0x38] sm:$0xff]
  %87 = vset.pattern.permute.xlu0 0
  %88 = vperm.xlu0 %87, %v78
  %v89 = vpop.permute.xlu0 %88
  %92 = vset.pattern.permute.xlu0 0
  %93 = vperm.xlu0 %92, %v79
  %v94 = vpop.permute.xlu0 %93
  %97 = vset.pattern.permute.xlu0 0
  %98 = vperm.xlu0 %97, %v80
  %v99 = vpop.permute.xlu0 %98
  %102 = vset.pattern.permute.xlu0 0
  %103 = vperm.xlu0 %102, %v81
  %v104 = vpop.permute.xlu0 %103
  %107 = vset.pattern.permute.xlu0 0
  %108 = vperm.xlu0 %107, %v82
  %v109 = vpop.permute.xlu0 %108
  %112 = vset.pattern.permute.xlu0 0
  %113 = vperm.xlu0 %112, %v83
  %v114 = vpop.permute.xlu0 %113
  %117 = vset.pattern.permute.xlu0 0
  %118 = vperm.xlu0 %117, %v84
  %v119 = vpop.permute.xlu0 %118
  %122 = vset.pattern.permute.xlu0 0
  %123 = vperm.xlu0 %122, %v85
  %v124 = vpop.permute.xlu0 %123
  %v126 = vadd.f32 %v70, %v89
  %v127 = vadd.f32 %v71, %v94
  %v128 = vadd.f32 %v72, %v99
  %v129 = vadd.f32 %v73, %v104
  %v130 = vadd.f32 %v74, %v109
  %v131 = vadd.f32 %v75, %v114
  %v132 = vadd.f32 %v76, %v119
  %v133 = vadd.f32 %v77, %v124
  %v134 = vmax.f32 %v126, 0.0
  %v135 = vmax.f32 %v127, 0.0
  %v136 = vmax.f32 %v128, 0.0
  %v137 = vmax.f32 %v129, 0.0
  %v138 = vmax.f32 %v130, 0.0
  %v139 = vmax.f32 %v131, 0.0
  %v140 = vmax.f32 %v132, 0.0
  %v141 = vmax.f32 %v133, 0.0
  %142 = vst [vmem:[%s3] sm:$0xff] %v134
  %143 = vst [vmem:[%s3 + $0x8] sm:$0xff] %v135
  %144 = vst [vmem:[%s3 + $0x10] sm:$0xff] %v136
  %145 = vst [vmem:[%s3 + $0x18] sm:$0xff] %v137
  %146 = vst [vmem:[%s3 + $0x20] sm:$0xff] %v138
  %147 = vst [vmem:[%s3 + $0x28] sm:$0xff] %v139
  %148 = vst [vmem:[%s3 + $0x30] sm:$0xff] %v140
  %149 = vst [vmem:[%s3 + $0x38] sm:$0xff] %v141
  // Predicated region
  $region14: #{_lambda_.24} parent=0 // pred_check
    _
  $region15: #{_lambda_.24} parent=0 // pred_check_branch
    %151 = sbr.rel (0) target = $region17
  $region16: #{_lambda_.24} parent=0 // pred_region
    _
  $region17: #{_lambda_.24} parent=0 // pred_fallthru
    _
  // Predicated region
  $region18: #{_lambda_.24} parent=0 // pred_check
    _
  $region19: #{_lambda_.24} parent=0 // pred_check_branch
    %153 = sbr.rel (0) target = $region21
  $region20: #{_lambda_.24} parent=0 // pred_region
    _
  $region21: #{_lambda_.24} parent=0 // pred_fallthru
    _

// kernel: _lambda_.25
$region0: #{_lambda_.25}
  #allocation0 [shape = 'u32[]', space=smem, size = 0x4, offset = 0x4, fixed_abs, tag = 'smem constant byte address 0x4 - core index']
  #allocation1 [shape = 'u32[72,128]{1,0:T(1,128)}', space=vmem, size = 0x9000, scoped, tag = 'internal scratch']
  %s0 = inlined_call_operand.vmem [shape: f32[64,576], index: 0, kind: input, shape index: {}]
  %s1 = inlined_call_operand.vmem [shape: f32[576,128], index: 1, kind: input, shape index: {}]
  %s2 = inlined_call_operand.vmem [shape: f32[64,128], index: 2, kind: output, shape index: {0}]
  %s3 = inlined_call_operand.vmem [shape: f32[1,64,1], index: 3, kind: output, shape index: {1}]
  %s4 = inlined_call_operand.vmem [shape: f32[1,64,1], index: 4, kind: output, shape index: {2}]
  %5 = xla_tuple %s2, %s3, %s4
  %s6 = sld [smem:[#allocation0]]
  $region34: #{_lambda_.25} parent=0
    _
  %s8 = ssub.s32 1, %s6
  %s9 = scalar_select 0, %s8, %s6
  // Predicated region
  $region2: #{_lambda_.25} parent=0 // pred_check
    _
  $region3: #{_lambda_.25} parent=0 // pred_check_branch
    %11 = sbr.rel (0) target = $region5
  $region4: #{_lambda_.25} parent=0 // pred_region
    _
  $region5: #{_lambda_.25} parent=0 // pred_fallthru
    _
  // Predicated region
  $region6: #{_lambda_.25} parent=0 // pred_check
    _
  $region7: #{_lambda_.25} parent=0 // pred_check_branch
    %13 = sbr.rel (0) target = $region9
  $region8: #{_lambda_.25} parent=0 // pred_region
    _
  $region9: #{_lambda_.25} parent=0 // pred_fallthru
    _
  %v14 = vld [vmem:[%s0] sm:$0xff]
  %v15 = vld [vmem:[%s0 + $0x8] sm:$0xff]
  %v16 = vld [vmem:[%s0 + $0x10] sm:$0xff]
  %v17 = vld [vmem:[%s0 + $0x18] sm:$0xff]
  %v18 = vld [vmem:[%s0 + $0x20] sm:$0xff]
  %v19 = vld [vmem:[%s0 + $0x28] sm:$0xff]
  %v20 = vld [vmem:[%s0 + $0x30] sm:$0xff]
  %v21 = vld [vmem:[%s0 + $0x38] sm:$0xff]
  %v22 = vld [vmem:[%s0 + $0x40] sm:$0xff]
  %v23 = vld [vmem:[%s0 + $0x48] sm:$0xff]
  %v24 = vld [vmem:[%s0 + $0x50] sm:$0xff]
  %v25 = vld [vmem:[%s0 + $0x58] sm:$0xff]
  %v26 = vld [vmem:[%s0 + $0x60] sm:$0xff]
  %v27 = vld [vmem:[%s0 + $0x68] sm:$0xff]
  %v28 = vld [vmem:[%s0 + $0x70] sm:$0xff]
  %v29 = vld [vmem:[%s0 + $0x78] sm:$0xff]
  %v30 = vld [vmem:[%s0 + $0x80] sm:$0xff]
  %v31 = vld [vmem:[%s0 + $0x88] sm:$0xff]
  %v32 = vld [vmem:[%s0 + $0x90] sm:$0xff]
  %v33 = vld [vmem:[%s0 + $0x98] sm:$0xff]
  %v34 = vld [vmem:[%s0 + $0xa0] sm:$0xff]
  %v35 = vld [vmem:[%s0 + $0xa8] sm:$0xff]
  %v36 = vld [vmem:[%s0 + $0xb0] sm:$0xff]
  %v37 = vld [vmem:[%s0 + $0xb8] sm:$0xff]
  %v38 = vld [vmem:[%s0 + $0xc0] sm:$0xff]
  %v39 = vld [vmem:[%s0 + $0xc8] sm:$0xff]
  %v40 = vld [vmem:[%s0 + $0xd0] sm:$0xff]
  %v41 = vld [vmem:[%s0 + $0xd8] sm:$0xff]
  %v42 = vld [vmem:[%s0 + $0xe0] sm:$0xff]
  %v43 = vld [vmem:[%s0 + $0xe8] sm:$0xff]
  %v44 = vld [vmem:[%s0 + $0xf0] sm:$0xff]
  %v45 = vld [vmem:[%s0 + $0xf8] sm:$0xff]
  %v46 = vld [vmem:[%s0 + $0x100] sm:$0xff]
  %v47 = vld [vmem:[%s0 + $0x108] sm:$0xff]
  %v48 = vld [vmem:[%s0 + $0x110] sm:$0xff]
  %v49 = vld [vmem:[%s0 + $0x118] sm:$0xff]
  %v50 = vld [vmem:[%s0 + $0x120] sm:$0xff]
  %v51 = vld [vmem:[%s0 + $0x128] sm:$0xff]
  %v52 = vld [vmem:[%s0 + $0x130] sm:$0xff]
  %v53 = vld [vmem:[%s0 + $0x138] sm:$0xff]
  %v54 = vld [vmem:[%s1] sm:$0xff]
  %v55 = vld [vmem:[%s1 + $0x8] sm:$0xff]
  %v56 = vld [vmem:[%s1 + $0x10] sm:$0xff]
  %v57 = vld [vmem:[%s1 + $0x18] sm:$0xff]
  %v58 = vld [vmem:[%s1 + $0x20] sm:$0xff]
  %v59 = vld [vmem:[%s1 + $0x28] sm:$0xff]
  %v60 = vld [vmem:[%s1 + $0x30] sm:$0xff]
  %v61 = vld [vmem:[%s1 + $0x38] sm:$0xff]
  %v62 = vld [vmem:[%s1 + $0x40] sm:$0xff]
  %v63 = vld [vmem:[%s1 + $0x48] sm:$0xff]
  %v64 = vld [vmem:[%s1 + $0x50] sm:$0xff]
  %v65 = vld [vmem:[%s1 + $0x58] sm:$0xff]
  %v66 = vld [vmem:[%s1 + $0x60] sm:$0xff]
  %v67 = vld [vmem:[%s1 + $0x68] sm:$0xff]
  %v68 = vld [vmem:[%s1 + $0x70] sm:$0xff]
  %v69 = vld [vmem:[%s1 + $0x78] sm:$0xff]
  %v70 = vld [vmem:[%s1 + $0x80] sm:$0xff]
  %v71 = vld [vmem:[%s1 + $0x88] sm:$0xff]
  %v72 = vld [vmem:[%s1 + $0x90] sm:$0xff]
  %v73 = vld [vmem:[%s1 + $0x98] sm:$0xff]
  %v74 = vld [vmem:[%s1 + $0xa0] sm:$0xff]
  %v75 = vld [vmem:[%s1 + $0xa8] sm:$0xff]
  %v76 = vld [vmem:[%s1 + $0xb0] sm:$0xff]
  %v77 = vld [vmem:[%s1 + $0xb8] sm:$0xff]
  %v78 = vld [vmem:[%s1 + $0xc0] sm:$0xff]
  %v79 = vld [vmem:[%s1 + $0xc8] sm:$0xff]
  %v80 = vld [vmem:[%s1 + $0xd0] sm:$0xff]
  %v81 = vld [vmem:[%s1 + $0xd8] sm:$0xff]
  %v82 = vld [vmem:[%s1 + $0xe0] sm:$0xff]
  %v83 = vld [vmem:[%s1 + $0xe8] sm:$0xff]
  %v84 = vld [vmem:[%s1 + $0xf0] sm:$0xff]
  %v85 = vld [vmem:[%s1 + $0xf8] sm:$0xff]
  %v86 = vld [vmem:[%s1 + $0x100] sm:$0xff]
  %v87 = vld [vmem:[%s1 + $0x108] sm:$0xff]
  %v88 = vld [vmem:[%s1 + $0x110] sm:$0xff]
  %v89 = vld [vmem:[%s1 + $0x118] sm:$0xff]
  %v90 = vld [vmem:[%s1 + $0x120] sm:$0xff]
  %v91 = vld [vmem:[%s1 + $0x128] sm:$0xff]
  %v92 = vld [vmem:[%s1 + $0x130] sm:$0xff]
  %v93 = vld [vmem:[%s1 + $0x138] sm:$0xff]
  %v94 = vld [vmem:[%s1 + $0x140] sm:$0xff]
  %v95 = vld [vmem:[%s1 + $0x148] sm:$0xff]
  %v96 = vld [vmem:[%s1 + $0x150] sm:$0xff]
  %v97 = vld [vmem:[%s1 + $0x158] sm:$0xff]
  %v98 = vld [vmem:[%s1 + $0x160] sm:$0xff]
  %v99 = vld [vmem:[%s1 + $0x168] sm:$0xff]
  %v100 = vld [vmem:[%s1 + $0x170] sm:$0xff]
  %v101 = vld [vmem:[%s1 + $0x178] sm:$0xff]
  %v102 = vld [vmem:[%s1 + $0x180] sm:$0xff]
  %v103 = vld [vmem:[%s1 + $0x188] sm:$0xff]
  %v104 = vld [vmem:[%s1 + $0x190] sm:$0xff]
  %v105 = vld [vmem:[%s1 + $0x198] sm:$0xff]
  %v106 = vld [vmem:[%s1 + $0x1a0] sm:$0xff]
  %v107 = vld [vmem:[%s1 + $0x1a8] sm:$0xff]
  %v108 = vld [vmem:[%s1 + $0x1b0] sm:$0xff]
  %v109 = vld [vmem:[%s1 + $0x1b8] sm:$0xff]
  %v110 = vld [vmem:[%s1 + $0x1c0] sm:$0xff]
  %v111 = vld [vmem:[%s1 + $0x1c8] sm:$0xff]
  %v112 = vld [vmem:[%s1 + $0x1d0] sm:$0xff]
  %v113 = vld [vmem:[%s1 + $0x1d8] sm:$0xff]
  %v114 = vld [vmem:[%s1 + $0x1e0] sm:$0xff]
  %v115 = vld [vmem:[%s1 + $0x1e8] sm:$0xff]
  %v116 = vld [vmem:[%s1 + $0x1f0] sm:$0xff]
  %v117 = vld [vmem:[%s1 + $0x1f8] sm:$0xff]
  %v118 = vld [vmem:[%s1 + $0x200] sm:$0xff]
  %v119 = vld [vmem:[%s1 + $0x208] sm:$0xff]
  %v120 = vld [vmem:[%s1 + $0x210] sm:$0xff]
  %v121 = vld [vmem:[%s1 + $0x218] sm:$0xff]
  %v122 = vld [vmem:[%s1 + $0x220] sm:$0xff]
  %v123 = vld [vmem:[%s1 + $0x228] sm:$0xff]
  %v124 = vld [vmem:[%s1 + $0x230] sm:$0xff]
  %v125 = vld [vmem:[%s1 + $0x238] sm:$0xff]
  %vm126 = vcmask 523264
  %v128 = vsel %vm126, %v18, 0
  %v131 = vsel %vm126, %v23, 0
  %v134 = vsel %vm126, %v28, 0
  %v137 = vsel %vm126, %v33, 0
  %v140 = vsel %vm126, %v38, 0
  %v143 = vsel %vm126, %v43, 0
  %v146 = vsel %vm126, %v48, 0
  %v149 = vsel %vm126, %v53, 0
  %151 = vmatpush.msra.mxu0 %v69
  %152 = vmatpush.msra.mxu0 %v68
  %153 = vmatpush.msra.mxu0 %v67
  %154 = vmatpush.msra.mxu0 %v66
  %155 = vmatpush.msra.mxu0 %v65
  %156 = vmatpush.msra.mxu0 %v64
  %157 = vmatpush.msra.mxu0 %v63
  %158 = vmatpush.msra.mxu0 %v62
  %159 = vmatpush.msra.mxu0 %v61
  %160 = vmatpush.msra.mxu0 %v60
  %161 = vmatpush.msra.mxu0 %v59
  %162 = vmatpush.msra.mxu0 %v58
  %163 = vmatpush.msra.mxu0 %v57
  %164 = vmatpush.msra.mxu0 %v56
  %165 = vmatpush.msra.mxu0 %v55
  %166 = vmatpush.msra.mxu0 %v54
  %167 = vmatmul.f32.gmra.mxu0 %v14
  %v168 = vpop.f32.mrf.mxu0
  %v169 = vadd.f32 0.0, %v168
  %170 = vmatmul.f32.gmra.mxu0 %v19
  %v171 = vpop.f32.mrf.mxu0
  %v172 = vadd.f32 0.0, %v171
  %173 = vmatmul.f32.gmra.mxu0 %v24
  %v174 = vpop.f32.mrf.mxu0
  %v175 = vadd.f32 0.0, %v174
  %176 = vmatmul.f32.gmra.mxu0 %v29
  %v177 = vpop.f32.mrf.mxu0
  %v178 = vadd.f32 0.0, %v177
  %179 = vmatmul.f32.gmra.mxu0 %v34
  %v180 = vpop.f32.mrf.mxu0
  %v181 = vadd.f32 0.0, %v180
  %182 = vmatmul.f32.gmra.mxu0 %v39
  %v183 = vpop.f32.mrf.mxu0
  %v184 = vadd.f32 0.0, %v183
  %185 = vmatmul.f32.gmra.mxu0 %v44
  %v186 = vpop.f32.mrf.mxu0
  %v187 = vadd.f32 0.0, %v186
  %188 = vmatmul.f32.gmra.mxu0 %v49
  %v189 = vpop.f32.mrf.mxu0
  %v190 = vadd.f32 0.0, %v189
  %191 = vdwg.mxu0
  %192 = vmatpush.msra.mxu0 %v85
  %193 = vmatpush.msra.mxu0 %v84
  %194 = vmatpush.msra.mxu0 %v83
  %195 = vmatpush.msra.mxu0 %v82
  %196 = vmatpush.msra.mxu0 %v81
  %197 = vmatpush.msra.mxu0 %v80
  %198 = vmatpush.msra.mxu0 %v79
  %199 = vmatpush.msra.mxu0 %v78
  %200 = vmatpush.msra.mxu0 %v77
  %201 = vmatpush.msra.mxu0 %v76
  %202 = vmatpush.msra.mxu0 %v75
  %203 = vmatpush.msra.mxu0 %v74
  %204 = vmatpush.msra.mxu0 %v73
  %205 = vmatpush.msra.mxu0 %v72
  %206 = vmatpush.msra.mxu0 %v71
  %207 = vmatpush.msra.mxu0 %v70
  %208 = vmatmul.f32.gmra.mxu0 %v15
  %v209 = vpop.f32.mrf.mxu0
  %v210 = vadd.f32 %v169, %v209
  %211 = vmatmul.f32.gmra.mxu0 %v20
  %v212 = vpop.f32.mrf.mxu0
  %v213 = vadd.f32 %v172, %v212
  %214 = vmatmul.f32.gmra.mxu0 %v25
  %v215 = vpop.f32.mrf.mxu0
  %v216 = vadd.f32 %v175, %v215
  %217 = vmatmul.f32.gmra.mxu0 %v30
  %v218 = vpop.f32.mrf.mxu0
  %v219 = vadd.f32 %v178, %v218
  %220 = vmatmul.f32.gmra.mxu0 %v35
  %v221 = vpop.f32.mrf.mxu0
  %v222 = vadd.f32 %v181, %v221
  %223 = vmatmul.f32.gmra.mxu0 %v40
  %v224 = vpop.f32.mrf.mxu0
  %v225 = vadd.f32 %v184, %v224
  %226 = vmatmul.f32.gmra.mxu0 %v45
  %v227 = vpop.f32.mrf.mxu0
  %v228 = vadd.f32 %v187, %v227
  %229 = vmatmul.f32.gmra.mxu0 %v50
  %v230 = vpop.f32.mrf.mxu0
  %v231 = vadd.f32 %v190, %v230
  %232 = vdwg.mxu0
  %233 = vmatpush.msra.mxu0 %v101
  %234 = vmatpush.msra.mxu0 %v100
  %235 = vmatpush.msra.mxu0 %v99
  %236 = vmatpush.msra.mxu0 %v98
  %237 = vmatpush.msra.mxu0 %v97
  %238 = vmatpush.msra.mxu0 %v96
  %239 = vmatpush.msra.mxu0 %v95
  %240 = vmatpush.msra.mxu0 %v94
  %241 = vmatpush.msra.mxu0 %v93
  %242 = vmatpush.msra.mxu0 %v92
  %243 = vmatpush.msra.mxu0 %v91
  %244 = vmatpush.msra.mxu0 %v90
  %245 = vmatpush.msra.mxu0 %v89
  %246 = vmatpush.msra.mxu0 %v88
  %247 = vmatpush.msra.mxu0 %v87
  %248 = vmatpush.msra.mxu0 %v86
  %249 = vmatmul.f32.gmra.mxu0 %v16
  %v250 = vpop.f32.mrf.mxu0
  %v251 = vadd.f32 %v210, %v250
  %252 = vmatmul.f32.gmra.mxu0 %v21
  %v253 = vpop.f32.mrf.mxu0
  %v254 = vadd.f32 %v213, %v253
  %255 = vmatmul.f32.gmra.mxu0 %v26
  %v256 = vpop.f32.mrf.mxu0
  %v257 = vadd.f32 %v216, %v256
  %258 = vmatmul.f32.gmra.mxu0 %v31
  %v259 = vpop.f32.mrf.mxu0
  %v260 = vadd.f32 %v219, %v259
  %261 = vmatmul.f32.gmra.mxu0 %v36
  %v262 = vpop.f32.mrf.mxu0
  %v263 = vadd.f32 %v222, %v262
  %264 = vmatmul.f32.gmra.mxu0 %v41
  %v265 = vpop.f32.mrf.mxu0
  %v266 = vadd.f32 %v225, %v265
  %267 = vmatmul.f32.gmra.mxu0 %v46
  %v268 = vpop.f32.mrf.mxu0
  %v269 = vadd.f32 %v228, %v268
  %270 = vmatmul.f32.gmra.mxu0 %v51
  %v271 = vpop.f32.mrf.mxu0
  %v272 = vadd.f32 %v231, %v271
  %273 = vdwg.mxu0
  %274 = vmatpush.msra.mxu0 %v117
  %275 = vmatpush.msra.mxu0 %v116
  %276 = vmatpush.msra.mxu0 %v115
  %277 = vmatpush.msra.mxu0 %v114
  %278 = vmatpush.msra.mxu0 %v113
  %279 = vmatpush.msra.mxu0 %v112
  %280 = vmatpush.msra.mxu0 %v111
  %281 = vmatpush.msra.mxu0 %v110
  %282 = vmatpush.msra.mxu0 %v109
  %283 = vmatpush.msra.mxu0 %v108
  %284 = vmatpush.msra.mxu0 %v107
  %285 = vmatpush.msra.mxu0 %v106
  %286 = vmatpush.msra.mxu0 %v105
  %287 = vmatpush.msra.mxu0 %v104
  %288 = vmatpush.msra.mxu0 %v103
  %289 = vmatpush.msra.mxu0 %v102
  %290 = vmatmul.f32.gmra.mxu0 %v17
  %v291 = vpop.f32.mrf.mxu0
  %v292 = vadd.f32 %v251, %v291
  %293 = vmatmul.f32.gmra.mxu0 %v22
  %v294 = vpop.f32.mrf.mxu0
  %v295 = vadd.f32 %v254, %v294
  %296 = vmatmul.f32.gmra.mxu0 %v27
  %v297 = vpop.f32.mrf.mxu0
  %v298 = vadd.f32 %v257, %v297
  %299 = vmatmul.f32.gmra.mxu0 %v32
  %v300 = vpop.f32.mrf.mxu0
  %v301 = vadd.f32 %v260, %v300
  %302 = vmatmul.f32.gmra.mxu0 %v37
  %v303 = vpop.f32.mrf.mxu0
  %v304 = vadd.f32 %v263, %v303
  %305 = vmatmul.f32.gmra.mxu0 %v42
  %v306 = vpop.f32.mrf.mxu0
  %v307 = vadd.f32 %v266, %v306
  %308 = vmatmul.f32.gmra.mxu0 %v47
  %v309 = vpop.f32.mrf.mxu0
  %v310 = vadd.f32 %v269, %v309
  %311 = vmatmul.f32.gmra.mxu0 %v52
  %v312 = vpop.f32.mrf.mxu0
  %v313 = vadd.f32 %v272, %v312
  %314 = vdwg.mxu0
  %315 = vmatpush.msra.mxu0 0.0
  %316 = vmatpush.msra.mxu0 0.0
  %317 = vmatpush.msra.mxu0 0.0
  %318 = vmatpush.msra.mxu0 0.0
  %319 = vmatpush.msra.mxu0 0.0
  %320 = vmatpush.msra.mxu0 0.0
  %321 = vmatpush.msra.mxu0 0.0
  %322 = vmatpush.msra.mxu0 0.0
  %323 = vmatpush.msra.mxu0 %v125
  %324 = vmatpush.msra.mxu0 %v124
  %325 = vmatpush.msra.mxu0 %v123
  %326 = vmatpush.msra.mxu0 %v122
  %327 = vmatpush.msra.mxu0 %v121
  %328 = vmatpush.msra.mxu0 %v120
  %329 = vmatpush.msra.mxu0 %v119
  %330 = vmatpush.msra.mxu0 %v118
  %331 = vmatmul.f32.gmra.mxu0 %v128
  %v332 = vpop.f32.mrf.mxu0
  %v333 = vadd.f32 %v292, %v332
  %334 = vmatmul.f32.gmra.mxu0 %v131
  %v335 = vpop.f32.mrf.mxu0
  %v336 = vadd.f32 %v295, %v335
  %337 = vmatmul.f32.gmra.mxu0 %v134
  %v338 = vpop.f32.mrf.mxu0
  %v339 = vadd.f32 %v298, %v338
  %340 = vmatmul.f32.gmra.mxu0 %v137
  %v341 = vpop.f32.mrf.mxu0
  %v342 = vadd.f32 %v301, %v341
  %343 = vmatmul.f32.gmra.mxu0 %v140
  %v344 = vpop.f32.mrf.mxu0
  %v345 = vadd.f32 %v304, %v344
  %346 = vmatmul.f32.gmra.mxu0 %v143
  %v347 = vpop.f32.mrf.mxu0
  %v348 = vadd.f32 %v307, %v347
  %349 = vmatmul.f32.gmra.mxu0 %v146
  %v350 = vpop.f32.mrf.mxu0
  %v351 = vadd.f32 %v310, %v350
  %352 = vmatmul.f32.gmra.mxu0 %v149
  %v353 = vpop.f32.mrf.mxu0
  %v354 = vadd.f32 %v313, %v353
  %355 = vdwg.mxu0
  %356 = vst [vmem:[%s2] sm:$0xff] %v333
  %357 = vst [vmem:[%s2 + $0x8] sm:$0xff] %v336
  %358 = vst [vmem:[%s2 + $0x10] sm:$0xff] %v339
  %359 = vst [vmem:[%s2 + $0x18] sm:$0xff] %v342
  %360 = vst [vmem:[%s2 + $0x20] sm:$0xff] %v345
  %361 = vst [vmem:[%s2 + $0x28] sm:$0xff] %v348
  %362 = vst [vmem:[%s2 + $0x30] sm:$0xff] %v351
  %363 = vst [vmem:[%s2 + $0x38] sm:$0xff] %v354
  %364 = vadd.xlane.f32.xlu0 %v333
  %v365 = vpop.xlane.xlu0 %364
  %366 = vadd.xlane.f32.xlu0 %v336
  %v367 = vpop.xlane.xlu0 %366
  %368 = vadd.xlane.f32.xlu0 %v339
  %v369 = vpop.xlane.xlu0 %368
  %370 = vadd.xlane.f32.xlu0 %v342
  %v371 = vpop.xlane.xlu0 %370
  %372 = vadd.xlane.f32.xlu0 %v345
  %v373 = vpop.xlane.xlu0 %372
  %374 = vadd.xlane.f32.xlu0 %v348
  %v375 = vpop.xlane.xlu0 %374
  %376 = vadd.xlane.f32.xlu0 %v351
  %v377 = vpop.xlane.xlu0 %376
  %378 = vadd.xlane.f32.xlu0 %v354
  %v379 = vpop.xlane.xlu0 %378
  %vm380 = vcmask 7168
  %381 = vst.msk [vmem:[%s3] sm:$0xff] %vm380, %v365
  %382 = vst.msk [vmem:[%s3 + $0x8] sm:$0xff] %vm380, %v367
  %383 = vst.msk [vmem:[%s3 + $0x10] sm:$0xff] %vm380, %v369
  %384 = vst.msk [vmem:[%s3 + $0x18] sm:$0xff] %vm380, %v371
  %385 = vst.msk [vmem:[%s3 + $0x20] sm:$0xff] %vm380, %v373
  %386 = vst.msk [vmem:[%s3 + $0x28] sm:$0xff] %vm380, %v375
  %387 = vst.msk [vmem:[%s3 + $0x30] sm:$0xff] %vm380, %v377
  %388 = vst.msk [vmem:[%s3 + $0x38] sm:$0xff] %vm380, %v379
  %v389 = vmul.f32 %v333, %v333
  %v390 = vmul.f32 %v336, %v336
  %v391 = vmul.f32 %v339, %v339
  %v392 = vmul.f32 %v342, %v342
  %v393 = vmul.f32 %v345, %v345
  %v394 = vmul.f32 %v348, %v348
  %v395 = vmul.f32 %v351, %v351
  %v396 = vmul.f32 %v354, %v354
  %397 = vadd.xlane.f32.xlu0 %v389
  %v398 = vpop.xlane.xlu0 %397
  %399 = vadd.xlane.f32.xlu0 %v390
  %v400 = vpop.xlane.xlu0 %399
  %401 = vadd.xlane.f32.xlu0 %v391
  %v402 = vpop.xlane.xlu0 %401
  %403 = vadd.xlane.f32.xlu0 %v392
  %v404 = vpop.xlane.xlu0 %403
  %405 = vadd.xlane.f32.xlu0 %v393
  %v406 = vpop.xlane.xlu0 %405
  %407 = vadd.xlane.f32.xlu0 %v394
  %v408 = vpop.xlane.xlu0 %407
  %409 = vadd.xlane.f32.xlu0 %v395
  %v410 = vpop.xlane.xlu0 %409
  %411 = vadd.xlane.f32.xlu0 %v396
  %v412 = vpop.xlane.xlu0 %411
  %413 = vst.msk [vmem:[%s4] sm:$0xff] %vm380, %v398
  %414 = vst.msk [vmem:[%s4 + $0x8] sm:$0xff] %vm380, %v400
  %415 = vst.msk [vmem:[%s4 + $0x10] sm:$0xff] %vm380, %v402
  %416 = vst.msk [vmem:[%s4 + $0x18] sm:$0xff] %vm380, %v404
  %417 = vst.msk [vmem:[%s4 + $0x20] sm:$0xff] %vm380, %v406
  %418 = vst.msk [vmem:[%s4 + $0x28] sm:$0xff] %vm380, %v408
  %419 = vst.msk [vmem:[%s4 + $0x30] sm:$0xff] %vm380, %v410
  %420 = vst.msk [vmem:[%s4 + $0x38] sm:$0xff] %vm380, %v412
  // Predicated region
  $region10: #{_lambda_.25} parent=0 // pred_check
    _
  $region11: #{_lambda_.25} parent=0 // pred_check_branch
    %422 = sbr.rel (0) target = $region13
  $region12: #{_lambda_.25} parent=0 // pred_region
    _
  $region13: #{_lambda_.25} parent=0 // pred_fallthru
    _
  // Predicated region
  $region14: #{_lambda_.25} parent=0 // pred_check
    _
  $region15: #{_lambda_.25} parent=0 // pred_check_branch
    %424 = sbr.rel (0) target = $region17
  $region16: #{_lambda_.25} parent=0 // pred_region
    _
  $region17: #{_lambda_.25} parent=0 // pred_fallthru
    _
  // Predicated region
  $region18: #{_lambda_.25} parent=0 // pred_check
    _
  $region19: #{_lambda_.25} parent=0 // pred_check_branch
    %426 = sbr.rel (0) target = $region21
  $region20: #{_lambda_.25} parent=0 // pred_region
    _
  $region21: #{_lambda_.25} parent=0 // pred_fallthru
    _
  // Predicated region
  $region22: #{_lambda_.25} parent=0 // pred_check
    _
  $region23: #{_lambda_.25} parent=0 // pred_check_branch
    %428 = sbr.rel (0) target = $region25
  $region24: #{_lambda_.25} parent=0 // pred_region
    _
  $region25: #{_lambda_.25} parent=0 // pred_fallthru
    _
  // Predicated region
  $region26: #{_lambda_.25} parent=0 // pred_check
    _
  $region27: #{_lambda_.25} parent=0 // pred_check_branch
    %430 = sbr.rel (0) target = $region29
  $region28: #{_lambda_.25} parent=0 // pred_region
    _
  $region29: #{_lambda_.25} parent=0 // pred_fallthru
    _
  // Predicated region
  $region30: #{_lambda_.25} parent=0 // pred_check
    _
  $region31: #{_lambda_.25} parent=0 // pred_check_branch
    %432 = sbr.rel (0) target = $region33
  $region32: #{_lambda_.25} parent=0 // pred_region
    _
  $region33: #{_lambda_.25} parent=0 // pred_fallthru
    _

// kernel: _lambda_.28
$region0: #{_lambda_.28}
  #allocation0 [shape = 'u32[]', space=smem, size = 0x4, offset = 0x4, fixed_abs, tag = 'smem constant byte address 0x4 - core index']
  #allocation1 [shape = 'u32[72,128]{1,0:T(1,128)}', space=vmem, size = 0x9000, scoped, tag = 'internal scratch']
  %s0 = inlined_call_operand.vmem [shape: f32[64,128], index: 0, kind: input, shape index: {}]
  %s1 = inlined_call_operand.vmem [shape: f32[64,1], index: 1, kind: input, shape index: {}]
  %s2 = inlined_call_operand.vmem [shape: f32[64,1], index: 2, kind: input, shape index: {}]
  %s3 = inlined_call_operand.vmem [shape: f32[64,128], index: 3, kind: input, shape index: {}]
  %s4 = inlined_call_operand.vmem [shape: f32[64,128], index: 4, kind: output, shape index: {}]
  %s5 = sld [smem:[#allocation0]]
  $region26: #{_lambda_.28} parent=0
    _
  %s7 = ssub.s32 1, %s5
  %s8 = scalar_select 0, %s7, %s5
  // Predicated region
  $region2: #{_lambda_.28} parent=0 // pred_check
    _
  $region3: #{_lambda_.28} parent=0 // pred_check_branch
    %10 = sbr.rel (0) target = $region5
  $region4: #{_lambda_.28} parent=0 // pred_region
    _
  $region5: #{_lambda_.28} parent=0 // pred_fallthru
    _
  // Predicated region
  $region6: #{_lambda_.28} parent=0 // pred_check
    _
  $region7: #{_lambda_.28} parent=0 // pred_check_branch
    %12 = sbr.rel (0) target = $region9
  $region8: #{_lambda_.28} parent=0 // pred_region
    _
  $region9: #{_lambda_.28} parent=0 // pred_fallthru
    _
  // Predicated region
  $region10: #{_lambda_.28} parent=0 // pred_check
    _
  $region11: #{_lambda_.28} parent=0 // pred_check_branch
    %14 = sbr.rel (0) target = $region13
  $region12: #{_lambda_.28} parent=0 // pred_region
    _
  $region13: #{_lambda_.28} parent=0 // pred_fallthru
    _
  // Predicated region
  $region14: #{_lambda_.28} parent=0 // pred_check
    _
  $region15: #{_lambda_.28} parent=0 // pred_check_branch
    %16 = sbr.rel (0) target = $region17
  $region16: #{_lambda_.28} parent=0 // pred_region
    _
  $region17: #{_lambda_.28} parent=0 // pred_fallthru
    _
  %v17 = vld [vmem:[%s0] sm:$0xff]
  %v18 = vld [vmem:[%s0 + $0x8] sm:$0xff]
  %v19 = vld [vmem:[%s0 + $0x10] sm:$0xff]
  %v20 = vld [vmem:[%s0 + $0x18] sm:$0xff]
  %v21 = vld [vmem:[%s0 + $0x20] sm:$0xff]
  %v22 = vld [vmem:[%s0 + $0x28] sm:$0xff]
  %v23 = vld [vmem:[%s0 + $0x30] sm:$0xff]
  %v24 = vld [vmem:[%s0 + $0x38] sm:$0xff]
  %v25 = vld [vmem:[%s1] sm:$0xff]
  %v26 = vld [vmem:[%s1 + $0x8] sm:$0xff]
  %v27 = vld [vmem:[%s1 + $0x10] sm:$0xff]
  %v28 = vld [vmem:[%s1 + $0x18] sm:$0xff]
  %v29 = vld [vmem:[%s1 + $0x20] sm:$0xff]
  %v30 = vld [vmem:[%s1 + $0x28] sm:$0xff]
  %v31 = vld [vmem:[%s1 + $0x30] sm:$0xff]
  %v32 = vld [vmem:[%s1 + $0x38] sm:$0xff]
  %34 = vset.pattern.permute.xlu0 0
  %35 = vperm.xlu0 %34, %v25
  %v36 = vpop.permute.xlu0 %35
  %39 = vset.pattern.permute.xlu0 0
  %40 = vperm.xlu0 %39, %v26
  %v41 = vpop.permute.xlu0 %40
  %44 = vset.pattern.permute.xlu0 0
  %45 = vperm.xlu0 %44, %v27
  %v46 = vpop.permute.xlu0 %45
  %49 = vset.pattern.permute.xlu0 0
  %50 = vperm.xlu0 %49, %v28
  %v51 = vpop.permute.xlu0 %50
  %54 = vset.pattern.permute.xlu0 0
  %55 = vperm.xlu0 %54, %v29
  %v56 = vpop.permute.xlu0 %55
  %59 = vset.pattern.permute.xlu0 0
  %60 = vperm.xlu0 %59, %v30
  %v61 = vpop.permute.xlu0 %60
  %64 = vset.pattern.permute.xlu0 0
  %65 = vperm.xlu0 %64, %v31
  %v66 = vpop.permute.xlu0 %65
  %69 = vset.pattern.permute.xlu0 0
  %70 = vperm.xlu0 %69, %v32
  %v71 = vpop.permute.xlu0 %70
  %v73 = vmul.f32 %v17, %v36
  %v74 = vmul.f32 %v18, %v41
  %v75 = vmul.f32 %v19, %v46
  %v76 = vmul.f32 %v20, %v51
  %v77 = vmul.f32 %v21, %v56
  %v78 = vmul.f32 %v22, %v61
  %v79 = vmul.f32 %v23, %v66
  %v80 = vmul.f32 %v24, %v71
  %v81 = vld [vmem:[%s2] sm:$0xff]
  %v82 = vld [vmem:[%s2 + $0x8] sm:$0xff]
  %v83 = vld [vmem:[%s2 + $0x10] sm:$0xff]
  %v84 = vld [vmem:[%s2 + $0x18] sm:$0xff]
  %v85 = vld [vmem:[%s2 + $0x20] sm:$0xff]
  %v86 = vld [vmem:[%s2 + $0x28] sm:$0xff]
  %v87 = vld [vmem:[%s2 + $0x30] sm:$0xff]
  %v88 = vld [vmem:[%s2 + $0x38] sm:$0xff]
  %90 = vset.pattern.permute.xlu0 0
  %91 = vperm.xlu0 %90, %v81
  %v92 = vpop.permute.xlu0 %91
  %95 = vset.pattern.permute.xlu0 0
  %96 = vperm.xlu0 %95, %v82
  %v97 = vpop.permute.xlu0 %96
  %100 = vset.pattern.permute.xlu0 0
  %101 = vperm.xlu0 %100, %v83
  %v102 = vpop.permute.xlu0 %101
  %105 = vset.pattern.permute.xlu0 0
  %106 = vperm.xlu0 %105, %v84
  %v107 = vpop.permute.xlu0 %106
  %110 = vset.pattern.permute.xlu0 0
  %111 = vperm.xlu0 %110, %v85
  %v112 = vpop.permute.xlu0 %111
  %115 = vset.pattern.permute.xlu0 0
  %116 = vperm.xlu0 %115, %v86
  %v117 = vpop.permute.xlu0 %116
  %120 = vset.pattern.permute.xlu0 0
  %121 = vperm.xlu0 %120, %v87
  %v122 = vpop.permute.xlu0 %121
  %125 = vset.pattern.permute.xlu0 0
  %126 = vperm.xlu0 %125, %v88
  %v127 = vpop.permute.xlu0 %126
  %v129 = vadd.f32 %v73, %v92
  %v130 = vadd.f32 %v74, %v97
  %v131 = vadd.f32 %v75, %v102
  %v132 = vadd.f32 %v76, %v107
  %v133 = vadd.f32 %v77, %v112
  %v134 = vadd.f32 %v78, %v117
  %v135 = vadd.f32 %v79, %v122
  %v136 = vadd.f32 %v80, %v127
  %v137 = vld [vmem:[%s3] sm:$0xff]
  %v138 = vld [vmem:[%s3 + $0x8] sm:$0xff]
  %v139 = vld [vmem:[%s3 + $0x10] sm:$0xff]
  %v140 = vld [vmem:[%s3 + $0x18] sm:$0xff]
  %v141 = vld [vmem:[%s3 + $0x20] sm:$0xff]
  %v142 = vld [vmem:[%s3 + $0x28] sm:$0xff]
  %v143 = vld [vmem:[%s3 + $0x30] sm:$0xff]
  %v144 = vld [vmem:[%s3 + $0x38] sm:$0xff]
  %v145 = vadd.f32 %v129, %v137
  %v146 = vadd.f32 %v130, %v138
  %v147 = vadd.f32 %v131, %v139
  %v148 = vadd.f32 %v132, %v140
  %v149 = vadd.f32 %v133, %v141
  %v150 = vadd.f32 %v134, %v142
  %v151 = vadd.f32 %v135, %v143
  %v152 = vadd.f32 %v136, %v144
  %153 = vst [vmem:[%s4] sm:$0xff] %v145
  %154 = vst [vmem:[%s4 + $0x8] sm:$0xff] %v146
  %155 = vst [vmem:[%s4 + $0x10] sm:$0xff] %v147
  %156 = vst [vmem:[%s4 + $0x18] sm:$0xff] %v148
  %157 = vst [vmem:[%s4 + $0x20] sm:$0xff] %v149
  %158 = vst [vmem:[%s4 + $0x28] sm:$0xff] %v150
  %159 = vst [vmem:[%s4 + $0x30] sm:$0xff] %v151
  %160 = vst [vmem:[%s4 + $0x38] sm:$0xff] %v152
  // Predicated region
  $region18: #{_lambda_.28} parent=0 // pred_check
    _
  $region19: #{_lambda_.28} parent=0 // pred_check_branch
    %162 = sbr.rel (0) target = $region21
  $region20: #{_lambda_.28} parent=0 // pred_region
    _
  $region21: #{_lambda_.28} parent=0 // pred_fallthru
    _
  // Predicated region
  $region22: #{_lambda_.28} parent=0 // pred_check
    _
  $region23: #{_lambda_.28} parent=0 // pred_check_branch
    %164 = sbr.rel (0) target = $region25
  $region24: #{_lambda_.28} parent=0 // pred_region
    _
  $region25: #{_lambda_.28} parent=0 // pred_fallthru
    _

// kernel: _lambda_.33
$region0: #{_lambda_.33}
  #allocation0 [shape = 'u32[]', space=smem, size = 0x4, offset = 0x4, fixed_abs, tag = 'smem constant byte address 0x4 - core index']
  #allocation1 [shape = 'u32[72,128]{1,0:T(1,128)}', space=vmem, size = 0x9000, scoped, tag = 'internal scratch']
  %s0 = inlined_call_operand.vmem [shape: f32[32,576], index: 0, kind: input, shape index: {}]
  %s1 = inlined_call_operand.vmem [shape: f32[576,512], index: 1, kind: input, shape index: {}]
  %s2 = inlined_call_operand.vmem [shape: f32[32,512], index: 2, kind: output, shape index: {0}]
  %s3 = inlined_call_operand.vmem [shape: f32[1,32,1], index: 3, kind: output, shape index: {1}]
  %s4 = inlined_call_operand.vmem [shape: f32[1,32,1], index: 4, kind: output, shape index: {2}]
  %5 = xla_tuple %s2, %s3, %s4
  %s6 = sld [smem:[#allocation0]]
  $region34: #{_lambda_.33} parent=0
    _
  %s8 = ssub.s32 1, %s6
  %s9 = scalar_select 0, %s8, %s6
  // Predicated region
  $region2: #{_lambda_.33} parent=0 // pred_check
    _
  $region3: #{_lambda_.33} parent=0 // pred_check_branch
    %11 = sbr.rel (0) target = $region5
  $region4: #{_lambda_.33} parent=0 // pred_region
    _
  $region5: #{_lambda_.33} parent=0 // pred_fallthru
    _
  // Predicated region
  $region6: #{_lambda_.33} parent=0 // pred_check
    _
  $region7: #{_lambda_.33} parent=0 // pred_check_branch
    %13 = sbr.rel (0) target = $region9
  $region8: #{_lambda_.33} parent=0 // pred_region
    _
  $region9: #{_lambda_.33} parent=0 // pred_fallthru
    _
  %v14 = vld [vmem:[%s0] sm:$0xff]
  %v15 = vld [vmem:[%s0 + $0x8] sm:$0xff]
  %v16 = vld [vmem:[%s0 + $0x10] sm:$0xff]
  %v17 = vld [vmem:[%s0 + $0x18] sm:$0xff]
  %v18 = vld [vmem:[%s0 + $0x20] sm:$0xff]
  %v19 = vld [vmem:[%s0 + $0x28] sm:$0xff]
  %v20 = vld [vmem:[%s0 + $0x30] sm:$0xff]
  %v21 = vld [vmem:[%s0 + $0x38] sm:$0xff]
  %v22 = vld [vmem:[%s0 + $0x40] sm:$0xff]
  %v23 = vld [vmem:[%s0 + $0x48] sm:$0xff]
  %v24 = vld [vmem:[%s0 + $0x50] sm:$0xff]
  %v25 = vld [vmem:[%s0 + $0x58] sm:$0xff]
  %v26 = vld [vmem:[%s0 + $0x60] sm:$0xff]
  %v27 = vld [vmem:[%s0 + $0x68] sm:$0xff]
  %v28 = vld [vmem:[%s0 + $0x70] sm:$0xff]
  %v29 = vld [vmem:[%s0 + $0x78] sm:$0xff]
  %v30 = vld [vmem:[%s0 + $0x80] sm:$0xff]
  %v31 = vld [vmem:[%s0 + $0x88] sm:$0xff]
  %v32 = vld [vmem:[%s0 + $0x90] sm:$0xff]
  %v33 = vld [vmem:[%s0 + $0x98] sm:$0xff]
  %v34 = vld [vmem:[%s1] sm:$0xff]
  %v35 = vld [vmem:[%s1 + $0x8] sm:$0xff]
  %v36 = vld [vmem:[%s1 + $0x10] sm:$0xff]
  %v37 = vld [vmem:[%s1 + $0x18] sm:$0xff]
  %v38 = vld [vmem:[%s1 + $0x20] sm:$0xff]
  %v39 = vld [vmem:[%s1 + $0x28] sm:$0xff]
  %v40 = vld [vmem:[%s1 + $0x30] sm:$0xff]
  %v41 = vld [vmem:[%s1 + $0x38] sm:$0xff]
  %v42 = vld [vmem:[%s1 + $0x40] sm:$0xff]
  %v43 = vld [vmem:[%s1 + $0x48] sm:$0xff]
  %v44 = vld [vmem:[%s1 + $0x50] sm:$0xff]
  %v45 = vld [vmem:[%s1 + $0x58] sm:$0xff]
  %v46 = vld [vmem:[%s1 + $0x60] sm:$0xff]
  %v47 = vld [vmem:[%s1 + $0x68] sm:$0xff]
  %v48 = vld [vmem:[%s1 + $0x70] sm:$0xff]
  %v49 = vld [vmem:[%s1 + $0x78] sm:$0xff]
  %v50 = vld [vmem:[%s1 + $0x80] sm:$0xff]
  %v51 = vld [vmem:[%s1 + $0x88] sm:$0xff]
  %v52 = vld [vmem:[%s1 + $0x90] sm:$0xff]
  %v53 = vld [vmem:[%s1 + $0x98] sm:$0xff]
  %v54 = vld [vmem:[%s1 + $0xa0] sm:$0xff]
  %v55 = vld [vmem:[%s1 + $0xa8] sm:$0xff]
  %v56 = vld [vmem:[%s1 + $0xb0] sm:$0xff]
  %v57 = vld [vmem:[%s1 + $0xb8] sm:$0xff]
  %v58 = vld [vmem:[%s1 + $0xc0] sm:$0xff]
  %v59 = vld [vmem:[%s1 + $0xc8] sm:$0xff]
  %v60 = vld [vmem:[%s1 + $0xd0] sm:$0xff]
  %v61 = vld [vmem:[%s1 + $0xd8] sm:$0xff]
  %v62 = vld [vmem:[%s1 + $0xe0] sm:$0xff]
  %v63 = vld [vmem:[%s1 + $0xe8] sm:$0xff]
  %v64 = vld [vmem:[%s1 + $0xf0] sm:$0xff]
  %v65 = vld [vmem:[%s1 + $0xf8] sm:$0xff]
  %v66 = vld [vmem:[%s1 + $0x100] sm:$0xff]
  %v67 = vld [vmem:[%s1 + $0x108] sm:$0xff]
  %v68 = vld [vmem:[%s1 + $0x110] sm:$0xff]
  %v69 = vld [vmem:[%s1 + $0x118] sm:$0xff]
  %v70 = vld [vmem:[%s1 + $0x120] sm:$0xff]
  %v71 = vld [vmem:[%s1 + $0x128] sm:$0xff]
  %v72 = vld [vmem:[%s1 + $0x130] sm:$0xff]
  %v73 = vld [vmem:[%s1 + $0x138] sm:$0xff]
  %v74 = vld [vmem:[%s1 + $0x140] sm:$0xff]
  %v75 = vld [vmem:[%s1 + $0x148] sm:$0xff]
  %v76 = vld [vmem:[%s1 + $0x150] sm:$0xff]
  %v77 = vld [vmem:[%s1 + $0x158] sm:$0xff]
  %v78 = vld [vmem:[%s1 + $0x160] sm:$0xff]
  %v79 = vld [vmem:[%s1 + $0x168] sm:$0xff]
  %v80 = vld [vmem:[%s1 + $0x170] sm:$0xff]
  %v81 = vld [vmem:[%s1 + $0x178] sm:$0xff]
  %v82 = vld [vmem:[%s1 + $0x180] sm:$0xff]
  %v83 = vld [vmem:[%s1 + $0x188] sm:$0xff]
  %v84 = vld [vmem:[%s1 + $0x190] sm:$0xff]
  %v85 = vld [vmem:[%s1 + $0x198] sm:$0xff]
  %v86 = vld [vmem:[%s1 + $0x1a0] sm:$0xff]
  %v87 = vld [vmem:[%s1 + $0x1a8] sm:$0xff]
  %v88 = vld [vmem:[%s1 + $0x1b0] sm:$0xff]
  %v89 = vld [vmem:[%s1 + $0x1b8] sm:$0xff]
  %v90 = vld [vmem:[%s1 + $0x1c0] sm:$0xff]
  %v91 = vld [vmem:[%s1 + $0x1c8] sm:$0xff]
  %v92 = vld [vmem:[%s1 + $0x1d0] sm:$0xff]
  %v93 = vld [vmem:[%s1 + $0x1d8] sm:$0xff]
  %v94 = vld [vmem:[%s1 + $0x1e0] sm:$0xff]
  %v95 = vld [vmem:[%s1 + $0x1e8] sm:$0xff]
  %v96 = vld [vmem:[%s1 + $0x1f0] sm:$0xff]
  %v97 = vld [vmem:[%s1 + $0x1f8] sm:$0xff]
  %v98 = vld [vmem:[%s1 + $0x200] sm:$0xff]
  %v99 = vld [vmem:[%s1 + $0x208] sm:$0xff]
  %v100 = vld [vmem:[%s1 + $0x210] sm:$0xff]
  %v101 = vld [vmem:[%s1 + $0x218] sm:$0xff]
  %v102 = vld [vmem:[%s1 + $0x220] sm:$0xff]
  %v103 = vld [vmem:[%s1 + $0x228] sm:$0xff]
  %v104 = vld [vmem:[%s1 + $0x230] sm:$0xff]
  %v105 = vld [vmem:[%s1 + $0x238] sm:$0xff]
  %v106 = vld [vmem:[%s1 + $0x240] sm:$0xff]
  %v107 = vld [vmem:[%s1 + $0x248] sm:$0xff]
  %v108 = vld [vmem:[%s1 + $0x250] sm:$0xff]
  %v109 = vld [vmem:[%s1 + $0x258] sm:$0xff]
  %v110 = vld [vmem:[%s1 + $0x260] sm:$0xff]
  %v111 = vld [vmem:[%s1 + $0x268] sm:$0xff]
  %v112 = vld [vmem:[%s1 + $0x270] sm:$0xff]
  %v113 = vld [vmem:[%s1 + $0x278] sm:$0xff]
  %v114 = vld [vmem:[%s1 + $0x280] sm:$0xff]
  %v115 = vld [vmem:[%s1 + $0x288] sm:$0xff]
  %v116 = vld [vmem:[%s1 + $0x290] sm:$0xff]
  %v117 = vld [vmem:[%s1 + $0x298] sm:$0xff]
  %v118 = vld [vmem:[%s1 + $0x2a0] sm:$0xff]
  %v119 = vld [vmem:[%s1 + $0x2a8] sm:$0xff]
  %v120 = vld [vmem:[%s1 + $0x2b0] sm:$0xff]
  %v121 = vld [vmem:[%s1 + $0x2b8] sm:$0xff]
  %v122 = vld [vmem:[%s1 + $0x2c0] sm:$0xff]
  %v123 = vld [vmem:[%s1 + $0x2c8] sm:$0xff]
  %v124 = vld [vmem:[%s1 + $0x2d0] sm:$0xff]
  %v125 = vld [vmem:[%s1 + $0x2d8] sm:$0xff]
  %v126 = vld [vmem:[%s1 + $0x2e0] sm:$0xff]
  %v127 = vld [vmem:[%s1 + $0x2e8] sm:$0xff]
  %v128 = vld [vmem:[%s1 + $0x2f0] sm:$0xff]
  %v129 = vld [vmem:[%s1 + $0x2f8] sm:$0xff]
  %v130 = vld [vmem:[%s1 + $0x300] sm:$0xff]
  %v131 = vld [vmem:[%s1 + $0x308] sm:$0xff]
  %v132 = vld [vmem:[%s1 + $0x310] sm:$0xff]
  %v133 = vld [vmem:[%s1 + $0x318] sm:$0xff]
  %v134 = vld [vmem:[%s1 + $0x320] sm:$0xff]
  %v135 = vld [vmem:[%s1 + $0x328] sm:$0xff]
  %v136 = vld [vmem:[%s1 + $0x330] sm:$0xff]
  %v137 = vld [vmem:[%s1 + $0x338] sm:$0xff]
  %v138 = vld [vmem:[%s1 + $0x340] sm:$0xff]
  %v139 = vld [vmem:[%s1 + $0x348] sm:$0xff]
  %v140 = vld [vmem:[%s1 + $0x350] sm:$0xff]
  %v141 = vld [vmem:[%s1 + $0x358] sm:$0xff]
  %v142 = vld [vmem:[%s1 + $0x360] sm:$0xff]
  %v143 = vld [vmem:[%s1 + $0x368] sm:$0xff]
  %v144 = vld [vmem:[%s1 + $0x370] sm:$0xff]
  %v145 = vld [vmem:[%s1 + $0x378] sm:$0xff]
  %v146 = vld [vmem:[%s1 + $0x380] sm:$0xff]
  %v147 = vld [vmem:[%s1 + $0x388] sm:$0xff]
  %v148 = vld [vmem:[%s1 + $0x390] sm:$0xff]
  %v149 = vld [vmem:[%s1 + $0x398] sm:$0xff]
  %v150 = vld [vmem:[%s1 + $0x3a0] sm:$0xff]
  %v151 = vld [vmem:[%s1 + $0x3a8] sm:$0xff]
  %v152 = vld [vmem:[%s1 + $0x3b0] sm:$0xff]
  %v153 = vld [vmem:[%s1 + $0x3b8] sm:$0xff]
  %v154 = vld [vmem:[%s1 + $0x3c0] sm:$0xff]
  %v155 = vld [vmem:[%s1 + $0x3c8] sm:$0xff]
  %v156 = vld [vmem:[%s1 + $0x3d0] sm:$0xff]
  %v157 = vld [vmem:[%s1 + $0x3d8] sm:$0xff]
  %v158 = vld [vmem:[%s1 + $0x3e0] sm:$0xff]
  %v159 = vld [vmem:[%s1 + $0x3e8] sm:$0xff]
  %v160 = vld [vmem:[%s1 + $0x3f0] sm:$0xff]
  %v161 = vld [vmem:[%s1 + $0x3f8] sm:$0xff]
  %v162 = vld [vmem:[%s1 + $0x400] sm:$0xff]
  %v163 = vld [vmem:[%s1 + $0x408] sm:$0xff]
  %v164 = vld [vmem:[%s1 + $0x410] sm:$0xff]
  %v165 = vld [vmem:[%s1 + $0x418] sm:$0xff]
  %v166 = vld [vmem:[%s1 + $0x420] sm:$0xff]
  %v167 = vld [vmem:[%s1 + $0x428] sm:$0xff]
  %v168 = vld [vmem:[%s1 + $0x430] sm:$0xff]
  %v169 = vld [vmem:[%s1 + $0x438] sm:$0xff]
  %v170 = vld [vmem:[%s1 + $0x440] sm:$0xff]
  %v171 = vld [vmem:[%s1 + $0x448] sm:$0xff]
  %v172 = vld [vmem:[%s1 + $0x450] sm:$0xff]
  %v173 = vld [vmem:[%s1 + $0x458] sm:$0xff]
  %v174 = vld [vmem:[%s1 + $0x460] sm:$0xff]
  %v175 = vld [vmem:[%s1 + $0x468] sm:$0xff]
  %v176 = vld [vmem:[%s1 + $0x470] sm:$0xff]
  %v177 = vld [vmem:[%s1 + $0x478] sm:$0xff]
  %v178 = vld [vmem:[%s1 + $0x480] sm:$0xff]
  %v179 = vld [vmem:[%s1 + $0x488] sm:$0xff]
  %v180 = vld [vmem:[%s1 + $0x490] sm:$0xff]
  %v181 = vld [vmem:[%s1 + $0x498] sm:$0xff]
  %v182 = vld [vmem:[%s1 + $0x4a0] sm:$0xff]
  %v183 = vld [vmem:[%s1 + $0x4a8] sm:$0xff]
  %v184 = vld [vmem:[%s1 + $0x4b0] sm:$0xff]
  %v185 = vld [vmem:[%s1 + $0x4b8] sm:$0xff]
  %v186 = vld [vmem:[%s1 + $0x4c0] sm:$0xff]
  %v187 = vld [vmem:[%s1 + $0x4c8] sm:$0xff]
  %v188 = vld [vmem:[%s1 + $0x4d0] sm:$0xff]
  %v189 = vld [vmem:[%s1 + $0x4d8] sm:$0xff]
  %v190 = vld [vmem:[%s1 + $0x4e0] sm:$0xff]
  %v191 = vld [vmem:[%s1 + $0x4e8] sm:$0xff]
  %v192 = vld [vmem:[%s1 + $0x4f0] sm:$0xff]
  %v193 = vld [vmem:[%s1 + $0x4f8] sm:$0xff]
  %v194 = vld [vmem:[%s1 + $0x500] sm:$0xff]
  %v195 = vld [vmem:[%s1 + $0x508] sm:$0xff]
  %v196 = vld [vmem:[%s1 + $0x510] sm:$0xff]
  %v197 = vld [vmem:[%s1 + $0x518] sm:$0xff]
  %v198 = vld [vmem:[%s1 + $0x520] sm:$0xff]
  %v199 = vld [vmem:[%s1 + $0x528] sm:$0xff]
  %v200 = vld [vmem:[%s1 + $0x530] sm:$0xff]
  %v201 = vld [vmem:[%s1 + $0x538] sm:$0xff]
  %v202 = vld [vmem:[%s1 + $0x540] sm:$0xff]
  %v203 = vld [vmem:[%s1 + $0x548] sm:$0xff]
  %v204 = vld [vmem:[%s1 + $0x550] sm:$0xff]
  %v205 = vld [vmem:[%s1 + $0x558] sm:$0xff]
  %v206 = vld [vmem:[%s1 + $0x560] sm:$0xff]
  %v207 = vld [vmem:[%s1 + $0x568] sm:$0xff]
  %v208 = vld [vmem:[%s1 + $0x570] sm:$0xff]
  %v209 = vld [vmem:[%s1 + $0x578] sm:$0xff]
  %v210 = vld [vmem:[%s1 + $0x580] sm:$0xff]
  %v211 = vld [vmem:[%s1 + $0x588] sm:$0xff]
  %v212 = vld [vmem:[%s1 + $0x590] sm:$0xff]
  %v213 = vld [vmem:[%s1 + $0x598] sm:$0xff]
  %v214 = vld [vmem:[%s1 + $0x5a0] sm:$0xff]
  %v215 = vld [vmem:[%s1 + $0x5a8] sm:$0xff]
  %v216 = vld [vmem:[%s1 + $0x5b0] sm:$0xff]
  %v217 = vld [vmem:[%s1 + $0x5b8] sm:$0xff]
  %v218 = vld [vmem:[%s1 + $0x5c0] sm:$0xff]
  %v219 = vld [vmem:[%s1 + $0x5c8] sm:$0xff]
  %v220 = vld [vmem:[%s1 + $0x5d0] sm:$0xff]
  %v221 = vld [vmem:[%s1 + $0x5d8] sm:$0xff]
  %v222 = vld [vmem:[%s1 + $0x5e0] sm:$0xff]
  %v223 = vld [vmem:[%s1 + $0x5e8] sm:$0xff]
  %v224 = vld [vmem:[%s1 + $0x5f0] sm:$0xff]
  %v225 = vld [vmem:[%s1 + $0x5f8] sm:$0xff]
  %v226 = vld [vmem:[%s1 + $0x600] sm:$0xff]
  %v227 = vld [vmem:[%s1 + $0x608] sm:$0xff]
  %v228 = vld [vmem:[%s1 + $0x610] sm:$0xff]
  %v229 = vld [vmem:[%s1 + $0x618] sm:$0xff]
  %v230 = vld [vmem:[%s1 + $0x620] sm:$0xff]
  %v231 = vld [vmem:[%s1 + $0x628] sm:$0xff]
  %v232 = vld [vmem:[%s1 + $0x630] sm:$0xff]
  %v233 = vld [vmem:[%s1 + $0x638] sm:$0xff]
  %v234 = vld [vmem:[%s1 + $0x640] sm:$0xff]
  %v235 = vld [vmem:[%s1 + $0x648] sm:$0xff]
  %v236 = vld [vmem:[%s1 + $0x650] sm:$0xff]
  %v237 = vld [vmem:[%s1 + $0x658] sm:$0xff]
  %v238 = vld [vmem:[%s1 + $0x660] sm:$0xff]
  %v239 = vld [vmem:[%s1 + $0x668] sm:$0xff]
  %v240 = vld [vmem:[%s1 + $0x670] sm:$0xff]
  %v241 = vld [vmem:[%s1 + $0x678] sm:$0xff]
  %v242 = vld [vmem:[%s1 + $0x680] sm:$0xff]
  %v243 = vld [vmem:[%s1 + $0x688] sm:$0xff]
  %v244 = vld [vmem:[%s1 + $0x690] sm:$0xff]
  %v245 = vld [vmem:[%s1 + $0x698] sm:$0xff]
  %v246 = vld [vmem:[%s1 + $0x6a0] sm:$0xff]
  %v247 = vld [vmem:[%s1 + $0x6a8] sm:$0xff]
  %v248 = vld [vmem:[%s1 + $0x6b0] sm:$0xff]
  %v249 = vld [vmem:[%s1 + $0x6b8] sm:$0xff]
  %v250 = vld [vmem:[%s1 + $0x6c0] sm:$0xff]
  %v251 = vld [vmem:[%s1 + $0x6c8] sm:$0xff]
  %v252 = vld [vmem:[%s1 + $0x6d0] sm:$0xff]
  %v253 = vld [vmem:[%s1 + $0x6d8] sm:$0xff]
  %v254 = vld [vmem:[%s1 + $0x6e0] sm:$0xff]
  %v255 = vld [vmem:[%s1 + $0x6e8] sm:$0xff]
  %v256 = vld [vmem:[%s1 + $0x6f0] sm:$0xff]
  %v257 = vld [vmem:[%s1 + $0x6f8] sm:$0xff]
  %v258 = vld [vmem:[%s1 + $0x700] sm:$0xff]
  %v259 = vld [vmem:[%s1 + $0x708] sm:$0xff]
  %v260 = vld [vmem:[%s1 + $0x710] sm:$0xff]
  %v261 = vld [vmem:[%s1 + $0x718] sm:$0xff]
  %v262 = vld [vmem:[%s1 + $0x720] sm:$0xff]
  %v263 = vld [vmem:[%s1 + $0x728] sm:$0xff]
  %v264 = vld [vmem:[%s1 + $0x730] sm:$0xff]
  %v265 = vld [vmem:[%s1 + $0x738] sm:$0xff]
  %v266 = vld [vmem:[%s1 + $0x740] sm:$0xff]
  %v267 = vld [vmem:[%s1 + $0x748] sm:$0xff]
  %v268 = vld [vmem:[%s1 + $0x750] sm:$0xff]
  %v269 = vld [vmem:[%s1 + $0x758] sm:$0xff]
  %v270 = vld [vmem:[%s1 + $0x760] sm:$0xff]
  %v271 = vld [vmem:[%s1 + $0x768] sm:$0xff]
  %v272 = vld [vmem:[%s1 + $0x770] sm:$0xff]
  %v273 = vld [vmem:[%s1 + $0x778] sm:$0xff]
  %v274 = vld [vmem:[%s1 + $0x780] sm:$0xff]
  %v275 = vld [vmem:[%s1 + $0x788] sm:$0xff]
  %v276 = vld [vmem:[%s1 + $0x790] sm:$0xff]
  %v277 = vld [vmem:[%s1 + $0x798] sm:$0xff]
  %v278 = vld [vmem:[%s1 + $0x7a0] sm:$0xff]
  %v279 = vld [vmem:[%s1 + $0x7a8] sm:$0xff]
  %v280 = vld [vmem:[%s1 + $0x7b0] sm:$0xff]
  %v281 = vld [vmem:[%s1 + $0x7b8] sm:$0xff]
  %v282 = vld [vmem:[%s1 + $0x7c0] sm:$0xff]
  %v283 = vld [vmem:[%s1 + $0x7c8] sm:$0xff]
  %v284 = vld [vmem:[%s1 + $0x7d0] sm:$0xff]
  %v285 = vld [vmem:[%s1 + $0x7d8] sm:$0xff]
  %v286 = vld [vmem:[%s1 + $0x7e0] sm:$0xff]
  %v287 = vld [vmem:[%s1 + $0x7e8] sm:$0xff]
  %v288 = vld [vmem:[%s1 + $0x7f0] sm:$0xff]
  %v289 = vld [vmem:[%s1 + $0x7f8] sm:$0xff]
  %v290 = vld [vmem:[%s1 + $0x800] sm:$0xff]
  %v291 = vld [vmem:[%s1 + $0x808] sm:$0xff]
  %v292 = vld [vmem:[%s1 + $0x810] sm:$0xff]
  %v293 = vld [vmem:[%s1 + $0x818] sm:$0xff]
  %v294 = vld [vmem:[%s1 + $0x820] sm:$0xff]
  %v295 = vld [vmem:[%s1 + $0x828] sm:$0xff]
  %v296 = vld [vmem:[%s1 + $0x830] sm:$0xff]
  %v297 = vld [vmem:[%s1 + $0x838] sm:$0xff]
  %v298 = vld [vmem:[%s1 + $0x840] sm:$0xff]
  %v299 = vld [vmem:[%s1 + $0x848] sm:$0xff]
  %v300 = vld [vmem:[%s1 + $0x850] sm:$0xff]
  %v301 = vld [vmem:[%s1 + $0x858] sm:$0xff]
  %v302 = vld [vmem:[%s1 + $0x860] sm:$0xff]
  %v303 = vld [vmem:[%s1 + $0x868] sm:$0xff]
  %v304 = vld [vmem:[%s1 + $0x870] sm:$0xff]
  %v305 = vld [vmem:[%s1 + $0x878] sm:$0xff]
  %v306 = vld [vmem:[%s1 + $0x880] sm:$0xff]
  %v307 = vld [vmem:[%s1 + $0x888] sm:$0xff]
  %v308 = vld [vmem:[%s1 + $0x890] sm:$0xff]
  %v309 = vld [vmem:[%s1 + $0x898] sm:$0xff]
  %v310 = vld [vmem:[%s1 + $0x8a0] sm:$0xff]
  %v311 = vld [vmem:[%s1 + $0x8a8] sm:$0xff]
  %v312 = vld [vmem:[%s1 + $0x8b0] sm:$0xff]
  %v313 = vld [vmem:[%s1 + $0x8b8] sm:$0xff]
  %v314 = vld [vmem:[%s1 + $0x8c0] sm:$0xff]
  %v315 = vld [vmem:[%s1 + $0x8c8] sm:$0xff]
  %v316 = vld [vmem:[%s1 + $0x8d0] sm:$0xff]
  %v317 = vld [vmem:[%s1 + $0x8d8] sm:$0xff]
  %v318 = vld [vmem:[%s1 + $0x8e0] sm:$0xff]
  %v319 = vld [vmem:[%s1 + $0x8e8] sm:$0xff]
  %v320 = vld [vmem:[%s1 + $0x8f0] sm:$0xff]
  %v321 = vld [vmem:[%s1 + $0x8f8] sm:$0xff]
  %vm322 = vcmask 523264
  %v324 = vsel %vm322, %v18, 0
  %v327 = vsel %vm322, %v23, 0
  %v330 = vsel %vm322, %v28, 0
  %v333 = vsel %vm322, %v33, 0
  %335 = vmatpush.msra.mxu0 %v94
  %336 = vmatpush.msra.mxu0 %v90
  %337 = vmatpush.msra.mxu0 %v86
  %338 = vmatpush.msra.mxu0 %v82
  %339 = vmatpush.msra.mxu0 %v78
  %340 = vmatpush.msra.mxu0 %v74
  %341 = vmatpush.msra.mxu0 %v70
  %342 = vmatpush.msra.mxu0 %v66
  %343 = vmatpush.msra.mxu0 %v62
  %344 = vmatpush.msra.mxu0 %v58
  %345 = vmatpush.msra.mxu0 %v54
  %346 = vmatpush.msra.mxu0 %v50
  %347 = vmatpush.msra.mxu0 %v46
  %348 = vmatpush.msra.mxu0 %v42
  %349 = vmatpush.msra.mxu0 %v38
  %350 = vmatpush.msra.mxu0 %v34
  %351 = vmatmul.f32.gmra.mxu0 %v14
  %v352 = vpop.f32.mrf.mxu0
  %v353 = vadd.f32 0.0, %v352
  %354 = vmatmul.f32.gmra.mxu0 %v19
  %v355 = vpop.f32.mrf.mxu0
  %v356 = vadd.f32 0.0, %v355
  %357 = vmatmul.f32.gmra.mxu0 %v24
  %v358 = vpop.f32.mrf.mxu0
  %v359 = vadd.f32 0.0, %v358
  %360 = vmatmul.f32.gmra.mxu0 %v29
  %v361 = vpop.f32.mrf.mxu0
  %v362 = vadd.f32 0.0, %v361
  %363 = vdwg.mxu0
  %364 = vmatpush.msra.mxu0 %v158
  %365 = vmatpush.msra.mxu0 %v154
  %366 = vmatpush.msra.mxu0 %v150
  %367 = vmatpush.msra.mxu0 %v146
  %368 = vmatpush.msra.mxu0 %v142
  %369 = vmatpush.msra.mxu0 %v138
  %370 = vmatpush.msra.mxu0 %v134
  %371 = vmatpush.msra.mxu0 %v130
  %372 = vmatpush.msra.mxu0 %v126
  %373 = vmatpush.msra.mxu0 %v122
  %374 = vmatpush.msra.mxu0 %v118
  %375 = vmatpush.msra.mxu0 %v114
  %376 = vmatpush.msra.mxu0 %v110
  %377 = vmatpush.msra.mxu0 %v106
  %378 = vmatpush.msra.mxu0 %v102
  %379 = vmatpush.msra.mxu0 %v98
  %380 = vmatmul.f32.gmra.mxu0 %v15
  %v381 = vpop.f32.mrf.mxu0
  %v382 = vadd.f32 %v353, %v381
  %383 = vmatmul.f32.gmra.mxu0 %v20
  %v384 = vpop.f32.mrf.mxu0
  %v385 = vadd.f32 %v356, %v384
  %386 = vmatmul.f32.gmra.mxu0 %v25
  %v387 = vpop.f32.mrf.mxu0
  %v388 = vadd.f32 %v359, %v387
  %389 = vmatmul.f32.gmra.mxu0 %v30
  %v390 = vpop.f32.mrf.mxu0
  %v391 = vadd.f32 %v362, %v390
  %392 = vdwg.mxu0
  %393 = vmatpush.msra.mxu0 %v222
  %394 = vmatpush.msra.mxu0 %v218
  %395 = vmatpush.msra.mxu0 %v214
  %396 = vmatpush.msra.mxu0 %v210
  %397 = vmatpush.msra.mxu0 %v206
  %398 = vmatpush.msra.mxu0 %v202
  %399 = vmatpush.msra.mxu0 %v198
  %400 = vmatpush.msra.mxu0 %v194
  %401 = vmatpush.msra.mxu0 %v190
  %402 = vmatpush.msra.mxu0 %v186
  %403 = vmatpush.msra.mxu0 %v182
  %404 = vmatpush.msra.mxu0 %v178
  %405 = vmatpush.msra.mxu0 %v174
  %406 = vmatpush.msra.mxu0 %v170
  %407 = vmatpush.msra.mxu0 %v166
  %408 = vmatpush.msra.mxu0 %v162
  %409 = vmatmul.f32.gmra.mxu0 %v16
  %v410 = vpop.f32.mrf.mxu0
  %v411 = vadd.f32 %v382, %v410
  %412 = vmatmul.f32.gmra.mxu0 %v21
  %v413 = vpop.f32.mrf.mxu0
  %v414 = vadd.f32 %v385, %v413
  %415 = vmatmul.f32.gmra.mxu0 %v26
  %v416 = vpop.f32.mrf.mxu0
  %v417 = vadd.f32 %v388, %v416
  %418 = vmatmul.f32.gmra.mxu0 %v31
  %v419 = vpop.f32.mrf.mxu0
  %v420 = vadd.f32 %v391, %v419
  %421 = vdwg.mxu0
  %422 = vmatpush.msra.mxu0 %v286
  %423 = vmatpush.msra.mxu0 %v282
  %424 = vmatpush.msra.mxu0 %v278
  %425 = vmatpush.msra.mxu0 %v274
  %426 = vmatpush.msra.mxu0 %v270
  %427 = vmatpush.msra.mxu0 %v266
  %428 = vmatpush.msra.mxu0 %v262
  %429 = vmatpush.msra.mxu0 %v258
  %430 = vmatpush.msra.mxu0 %v254
  %431 = vmatpush.msra.mxu0 %v250
  %432 = vmatpush.msra.mxu0 %v246
  %433 = vmatpush.msra.mxu0 %v242
  %434 = vmatpush.msra.mxu0 %v238
  %435 = vmatpush.msra.mxu0 %v234
  %436 = vmatpush.msra.mxu0 %v230
  %437 = vmatpush.msra.mxu0 %v226
  %438 = vmatmul.f32.gmra.mxu0 %v17
  %v439 = vpop.f32.mrf.mxu0
  %v440 = vadd.f32 %v411, %v439
  %441 = vmatmul.f32.gmra.mxu0 %v22
  %v442 = vpop.f32.mrf.mxu0
  %v443 = vadd.f32 %v414, %v442
  %444 = vmatmul.f32.gmra.mxu0 %v27
  %v445 = vpop.f32.mrf.mxu0
  %v446 = vadd.f32 %v417, %v445
  %447 = vmatmul.f32.gmra.mxu0 %v32
  %v448 = vpop.f32.mrf.mxu0
  %v449 = vadd.f32 %v420, %v448
  %450 = vdwg.mxu0
  %451 = vmatpush.msra.mxu0 0.0
  %452 = vmatpush.msra.mxu0 0.0
  %453 = vmatpush.msra.mxu0 0.0
  %454 = vmatpush.msra.mxu0 0.0
  %455 = vmatpush.msra.mxu0 0.0
  %456 = vmatpush.msra.mxu0 0.0
  %457 = vmatpush.msra.mxu0 0.0
  %458 = vmatpush.msra.mxu0 0.0
  %459 = vmatpush.msra.mxu0 %v318
  %460 = vmatpush.msra.mxu0 %v314
  %461 = vmatpush.msra.mxu0 %v310
  %462 = vmatpush.msra.mxu0 %v306
  %463 = vmatpush.msra.mxu0 %v302
  %464 = vmatpush.msra.mxu0 %v298
  %465 = vmatpush.msra.mxu0 %v294
  %466 = vmatpush.msra.mxu0 %v290
  %467 = vmatmul.f32.gmra.mxu0 %v324
  %v468 = vpop.f32.mrf.mxu0
  %v469 = vadd.f32 %v440, %v468
  %470 = vmatmul.f32.gmra.mxu0 %v327
  %v471 = vpop.f32.mrf.mxu0
  %v472 = vadd.f32 %v443, %v471
  %473 = vmatmul.f32.gmra.mxu0 %v330
  %v474 = vpop.f32.mrf.mxu0
  %v475 = vadd.f32 %v446, %v474
  %476 = vmatmul.f32.gmra.mxu0 %v333
  %v477 = vpop.f32.mrf.mxu0
  %v478 = vadd.f32 %v449, %v477
  %479 = vdwg.mxu0
  %480 = vmatpush.msra.mxu0 %v95
  %481 = vmatpush.msra.mxu0 %v91
  %482 = vmatpush.msra.mxu0 %v87
  %483 = vmatpush.msra.mxu0 %v83
  %484 = vmatpush.msra.mxu0 %v79
  %485 = vmatpush.msra.mxu0 %v75
  %486 = vmatpush.msra.mxu0 %v71
  %487 = vmatpush.msra.mxu0 %v67
  %488 = vmatpush.msra.mxu0 %v63
  %489 = vmatpush.msra.mxu0 %v59
  %490 = vmatpush.msra.mxu0 %v55
  %491 = vmatpush.msra.mxu0 %v51
  %492 = vmatpush.msra.mxu0 %v47
  %493 = vmatpush.msra.mxu0 %v43
  %494 = vmatpush.msra.mxu0 %v39
  %495 = vmatpush.msra.mxu0 %v35
  %496 = vmatmul.f32.gmra.mxu0 %v14
  %v497 = vpop.f32.mrf.mxu0
  %v498 = vadd.f32 0.0, %v497
  %499 = vmatmul.f32.gmra.mxu0 %v19
  %v500 = vpop.f32.mrf.mxu0
  %v501 = vadd.f32 0.0, %v500
  %502 = vmatmul.f32.gmra.mxu0 %v24
  %v503 = vpop.f32.mrf.mxu0
  %v504 = vadd.f32 0.0, %v503
  %505 = vmatmul.f32.gmra.mxu0 %v29
  %v506 = vpop.f32.mrf.mxu0
  %v507 = vadd.f32 0.0, %v506
  %508 = vdwg.mxu0
  %509 = vmatpush.msra.mxu0 %v159
  %510 = vmatpush.msra.mxu0 %v155
  %511 = vmatpush.msra.mxu0 %v151
  %512 = vmatpush.msra.mxu0 %v147
  %513 = vmatpush.msra.mxu0 %v143
  %514 = vmatpush.msra.mxu0 %v139
  %515 = vmatpush.msra.mxu0 %v135
  %516 = vmatpush.msra.mxu0 %v131
  %517 = vmatpush.msra.mxu0 %v127
  %518 = vmatpush.msra.mxu0 %v123
  %519 = vmatpush.msra.mxu0 %v119
  %520 = vmatpush.msra.mxu0 %v115
  %521 = vmatpush.msra.mxu0 %v111
  %522 = vmatpush.msra.mxu0 %v107
  %523 = vmatpush.msra.mxu0 %v103
  %524 = vmatpush.msra.mxu0 %v99
  %525 = vmatmul.f32.gmra.mxu0 %v15
  %v526 = vpop.f32.mrf.mxu0
  %v527 = vadd.f32 %v498, %v526
  %528 = vmatmul.f32.gmra.mxu0 %v20
  %v529 = vpop.f32.mrf.mxu0
  %v530 = vadd.f32 %v501, %v529
  %531 = vmatmul.f32.gmra.mxu0 %v25
  %v532 = vpop.f32.mrf.mxu0
  %v533 = vadd.f32 %v504, %v532
  %534 = vmatmul.f32.gmra.mxu0 %v30
  %v535 = vpop.f32.mrf.mxu0
  %v536 = vadd.f32 %v507, %v535
  %537 = vdwg.mxu0
  %538 = vmatpush.msra.mxu0 %v223
  %539 = vmatpush.msra.mxu0 %v219
  %540 = vmatpush.msra.mxu0 %v215
  %541 = vmatpush.msra.mxu0 %v211
  %542 = vmatpush.msra.mxu0 %v207
  %543 = vmatpush.msra.mxu0 %v203
  %544 = vmatpush.msra.mxu0 %v199
  %545 = vmatpush.msra.mxu0 %v195
  %546 = vmatpush.msra.mxu0 %v191
  %547 = vmatpush.msra.mxu0 %v187
  %548 = vmatpush.msra.mxu0 %v183
  %549 = vmatpush.msra.mxu0 %v179
  %550 = vmatpush.msra.mxu0 %v175
  %551 = vmatpush.msra.mxu0 %v171
  %552 = vmatpush.msra.mxu0 %v167
  %553 = vmatpush.msra.mxu0 %v163
  %554 = vmatmul.f32.gmra.mxu0 %v16
  %v555 = vpop.f32.mrf.mxu0
  %v556 = vadd.f32 %v527, %v555
  %557 = vmatmul.f32.gmra.mxu0 %v21
  %v558 = vpop.f32.mrf.mxu0
  %v559 = vadd.f32 %v530, %v558
  %560 = vmatmul.f32.gmra.mxu0 %v26
  %v561 = vpop.f32.mrf.mxu0
  %v562 = vadd.f32 %v533, %v561
  %563 = vmatmul.f32.gmra.mxu0 %v31
  %v564 = vpop.f32.mrf.mxu0
  %v565 = vadd.f32 %v536, %v564
  %566 = vdwg.mxu0
  %567 = vmatpush.msra.mxu0 %v287
  %568 = vmatpush.msra.mxu0 %v283
  %569 = vmatpush.msra.mxu0 %v279
  %570 = vmatpush.msra.mxu0 %v275
  %571 = vmatpush.msra.mxu0 %v271
  %572 = vmatpush.msra.mxu0 %v267
  %573 = vmatpush.msra.mxu0 %v263
  %574 = vmatpush.msra.mxu0 %v259
  %575 = vmatpush.msra.mxu0 %v255
  %576 = vmatpush.msra.mxu0 %v251
  %577 = vmatpush.msra.mxu0 %v247
  %578 = vmatpush.msra.mxu0 %v243
  %579 = vmatpush.msra.mxu0 %v239
  %580 = vmatpush.msra.mxu0 %v235
  %581 = vmatpush.msra.mxu0 %v231
  %582 = vmatpush.msra.mxu0 %v227
  %583 = vmatmul.f32.gmra.mxu0 %v17
  %v584 = vpop.f32.mrf.mxu0
  %v585 = vadd.f32 %v556, %v584
  %586 = vmatmul.f32.gmra.mxu0 %v22
  %v587 = vpop.f32.mrf.mxu0
  %v588 = vadd.f32 %v559, %v587
  %589 = vmatmul.f32.gmra.mxu0 %v27
  %v590 = vpop.f32.mrf.mxu0
  %v591 = vadd.f32 %v562, %v590
  %592 = vmatmul.f32.gmra.mxu0 %v32
  %v593 = vpop.f32.mrf.mxu0
  %v594 = vadd.f32 %v565, %v593
  %595 = vdwg.mxu0
  %596 = vmatpush.msra.mxu0 0.0
  %597 = vmatpush.msra.mxu0 0.0
  %598 = vmatpush.msra.mxu0 0.0
  %599 = vmatpush.msra.mxu0 0.0
  %600 = vmatpush.msra.mxu0 0.0
  %601 = vmatpush.msra.mxu0 0.0
  %602 = vmatpush.msra.mxu0 0.0
  %603 = vmatpush.msra.mxu0 0.0
  %604 = vmatpush.msra.mxu0 %v319
  %605 = vmatpush.msra.mxu0 %v315
  %606 = vmatpush.msra.mxu0 %v311
  %607 = vmatpush.msra.mxu0 %v307
  %608 = vmatpush.msra.mxu0 %v303
  %609 = vmatpush.msra.mxu0 %v299
  %610 = vmatpush.msra.mxu0 %v295
  %611 = vmatpush.msra.mxu0 %v291
  %612 = vmatmul.f32.gmra.mxu0 %v324
  %v613 = vpop.f32.mrf.mxu0
  %v614 = vadd.f32 %v585, %v613
  %615 = vmatmul.f32.gmra.mxu0 %v327
  %v616 = vpop.f32.mrf.mxu0
  %v617 = vadd.f32 %v588, %v616
  %618 = vmatmul.f32.gmra.mxu0 %v330
  %v619 = vpop.f32.mrf.mxu0
  %v620 = vadd.f32 %v591, %v619
  %621 = vmatmul.f32.gmra.mxu0 %v333
  %v622 = vpop.f32.mrf.mxu0
  %v623 = vadd.f32 %v594, %v622
  %624 = vdwg.mxu0
  %625 = vmatpush.msra.mxu0 %v96
  %626 = vmatpush.msra.mxu0 %v92
  %627 = vmatpush.msra.mxu0 %v88
  %628 = vmatpush.msra.mxu0 %v84
  %629 = vmatpush.msra.mxu0 %v80
  %630 = vmatpush.msra.mxu0 %v76
  %631 = vmatpush.msra.mxu0 %v72
  %632 = vmatpush.msra.mxu0 %v68
  %633 = vmatpush.msra.mxu0 %v64
  %634 = vmatpush.msra.mxu0 %v60
  %635 = vmatpush.msra.mxu0 %v56
  %636 = vmatpush.msra.mxu0 %v52
  %637 = vmatpush.msra.mxu0 %v48
  %638 = vmatpush.msra.mxu0 %v44
  %639 = vmatpush.msra.mxu0 %v40
  %640 = vmatpush.msra.mxu0 %v36
  %641 = vmatmul.f32.gmra.mxu0 %v14
  %v642 = vpop.f32.mrf.mxu0
  %v643 = vadd.f32 0.0, %v642
  %644 = vmatmul.f32.gmra.mxu0 %v19
  %v645 = vpop.f32.mrf.mxu0
  %v646 = vadd.f32 0.0, %v645
  %647 = vmatmul.f32.gmra.mxu0 %v24
  %v648 = vpop.f32.mrf.mxu0
  %v649 = vadd.f32 0.0, %v648
  %650 = vmatmul.f32.gmra.mxu0 %v29
  %v651 = vpop.f32.mrf.mxu0
  %v652 = vadd.f32 0.0, %v651
  %653 = vdwg.mxu0
  %654 = vmatpush.msra.mxu0 %v160
  %655 = vmatpush.msra.mxu0 %v156
  %656 = vmatpush.msra.mxu0 %v152
  %657 = vmatpush.msra.mxu0 %v148
  %658 = vmatpush.msra.mxu0 %v144
  %659 = vmatpush.msra.mxu0 %v140
  %660 = vmatpush.msra.mxu0 %v136
  %661 = vmatpush.msra.mxu0 %v132
  %662 = vmatpush.msra.mxu0 %v128
  %663 = vmatpush.msra.mxu0 %v124
  %664 = vmatpush.msra.mxu0 %v120
  %665 = vmatpush.msra.mxu0 %v116
  %666 = vmatpush.msra.mxu0 %v112
  %667 = vmatpush.msra.mxu0 %v108
  %668 = vmatpush.msra.mxu0 %v104
  %669 = vmatpush.msra.mxu0 %v100
  %670 = vmatmul.f32.gmra.mxu0 %v15
  %v671 = vpop.f32.mrf.mxu0
  %v672 = vadd.f32 %v643, %v671
  %673 = vmatmul.f32.gmra.mxu0 %v20
  %v674 = vpop.f32.mrf.mxu0
  %v675 = vadd.f32 %v646, %v674
  %676 = vmatmul.f32.gmra.mxu0 %v25
  %v677 = vpop.f32.mrf.mxu0
  %v678 = vadd.f32 %v649, %v677
  %679 = vmatmul.f32.gmra.mxu0 %v30
  %v680 = vpop.f32.mrf.mxu0
  %v681 = vadd.f32 %v652, %v680
  %682 = vdwg.mxu0
  %683 = vmatpush.msra.mxu0 %v224
  %684 = vmatpush.msra.mxu0 %v220
  %685 = vmatpush.msra.mxu0 %v216
  %686 = vmatpush.msra.mxu0 %v212
  %687 = vmatpush.msra.mxu0 %v208
  %688 = vmatpush.msra.mxu0 %v204
  %689 = vmatpush.msra.mxu0 %v200
  %690 = vmatpush.msra.mxu0 %v196
  %691 = vmatpush.msra.mxu0 %v192
  %692 = vmatpush.msra.mxu0 %v188
  %693 = vmatpush.msra.mxu0 %v184
  %694 = vmatpush.msra.mxu0 %v180
  %695 = vmatpush.msra.mxu0 %v176
  %696 = vmatpush.msra.mxu0 %v172
  %697 = vmatpush.msra.mxu0 %v168
  %698 = vmatpush.msra.mxu0 %v164
  %699 = vmatmul.f32.gmra.mxu0 %v16
  %v700 = vpop.f32.mrf.mxu0
  %v701 = vadd.f32 %v672, %v700
  %702 = vmatmul.f32.gmra.mxu0 %v21
  %v703 = vpop.f32.mrf.mxu0
  %v704 = vadd.f32 %v675, %v703
  %705 = vmatmul.f32.gmra.mxu0 %v26
  %v706 = vpop.f32.mrf.mxu0
  %v707 = vadd.f32 %v678, %v706
  %708 = vmatmul.f32.gmra.mxu0 %v31
  %v709 = vpop.f32.mrf.mxu0
  %v710 = vadd.f32 %v681, %v709
  %711 = vdwg.mxu0
  %712 = vmatpush.msra.mxu0 %v288
  %713 = vmatpush.msra.mxu0 %v284
  %714 = vmatpush.msra.mxu0 %v280
  %715 = vmatpush.msra.mxu0 %v276
  %716 = vmatpush.msra.mxu0 %v272
  %717 = vmatpush.msra.mxu0 %v268
  %718 = vmatpush.msra.mxu0 %v264
  %719 = vmatpush.msra.mxu0 %v260
  %720 = vmatpush.msra.mxu0 %v256
  %721 = vmatpush.msra.mxu0 %v252
  %722 = vmatpush.msra.mxu0 %v248
  %723 = vmatpush.msra.mxu0 %v244
  %724 = vmatpush.msra.mxu0 %v240
  %725 = vmatpush.msra.mxu0 %v236
  %726 = vmatpush.msra.mxu0 %v232
  %727 = vmatpush.msra.mxu0 %v228
  %728 = vmatmul.f32.gmra.mxu0 %v17
  %v729 = vpop.f32.mrf.mxu0
  %v730 = vadd.f32 %v701, %v729
  %731 = vmatmul.f32.gmra.mxu0 %v22
  %v732 = vpop.f32.mrf.mxu0
  %v733 = vadd.f32 %v704, %v732
  %734 = vmatmul.f32.gmra.mxu0 %v27
  %v735 = vpop.f32.mrf.mxu0
  %v736 = vadd.f32 %v707, %v735
  %737 = vmatmul.f32.gmra.mxu0 %v32
  %v738 = vpop.f32.mrf.mxu0
  %v739 = vadd.f32 %v710, %v738
  %740 = vdwg.mxu0
  %741 = vmatpush.msra.mxu0 0.0
  %742 = vmatpush.msra.mxu0 0.0
  %743 = vmatpush.msra.mxu0 0.0
  %744 = vmatpush.msra.mxu0 0.0
  %745 = vmatpush.msra.mxu0 0.0
  %746 = vmatpush.msra.mxu0 0.0
  %747 = vmatpush.msra.mxu0 0.0
  %748 = vmatpush.msra.mxu0 0.0
  %749 = vmatpush.msra.mxu0 %v320
  %750 = vmatpush.msra.mxu0 %v316
  %751 = vmatpush.msra.mxu0 %v312
  %752 = vmatpush.msra.mxu0 %v308
  %753 = vmatpush.msra.mxu0 %v304
  %754 = vmatpush.msra.mxu0 %v300
  %755 = vmatpush.msra.mxu0 %v296
  %756 = vmatpush.msra.mxu0 %v292
  %757 = vmatmul.f32.gmra.mxu0 %v324
  %v758 = vpop.f32.mrf.mxu0
  %v759 = vadd.f32 %v730, %v758
  %760 = vmatmul.f32.gmra.mxu0 %v327
  %v761 = vpop.f32.mrf.mxu0
  %v762 = vadd.f32 %v733, %v761
  %763 = vmatmul.f32.gmra.mxu0 %v330
  %v764 = vpop.f32.mrf.mxu0
  %v765 = vadd.f32 %v736, %v764
  %766 = vmatmul.f32.gmra.mxu0 %v333
  %v767 = vpop.f32.mrf.mxu0
  %v768 = vadd.f32 %v739, %v767
  %769 = vdwg.mxu0
  %770 = vmatpush.msra.mxu0 %v97
  %771 = vmatpush.msra.mxu0 %v93
  %772 = vmatpush.msra.mxu0 %v89
  %773 = vmatpush.msra.mxu0 %v85
  %774 = vmatpush.msra.mxu0 %v81
  %775 = vmatpush.msra.mxu0 %v77
  %776 = vmatpush.msra.mxu0 %v73
  %777 = vmatpush.msra.mxu0 %v69
  %778 = vmatpush.msra.mxu0 %v65
  %779 = vmatpush.msra.mxu0 %v61
  %780 = vmatpush.msra.mxu0 %v57
  %781 = vmatpush.msra.mxu0 %v53
  %782 = vmatpush.msra.mxu0 %v49
  %783 = vmatpush.msra.mxu0 %v45
  %784 = vmatpush.msra.mxu0 %v41
  %785 = vmatpush.msra.mxu0 %v37
  %786 = vmatmul.f32.gmra.mxu0 %v14
  %v787 = vpop.f32.mrf.mxu0
  %v788 = vadd.f32 0.0, %v787
  %789 = vmatmul.f32.gmra.mxu0 %v19
  %v790 = vpop.f32.mrf.mxu0
  %v791 = vadd.f32 0.0, %v790
  %792 = vmatmul.f32.gmra.mxu0 %v24
  %v793 = vpop.f32.mrf.mxu0
  %v794 = vadd.f32 0.0, %v793
  %795 = vmatmul.f32.gmra.mxu0 %v29
  %v796 = vpop.f32.mrf.mxu0
  %v797 = vadd.f32 0.0, %v796
  %798 = vdwg.mxu0
  %799 = vmatpush.msra.mxu0 %v161
  %800 = vmatpush.msra.mxu0 %v157
  %801 = vmatpush.msra.mxu0 %v153
  %802 = vmatpush.msra.mxu0 %v149
  %803 = vmatpush.msra.mxu0 %v145
  %804 = vmatpush.msra.mxu0 %v141
  %805 = vmatpush.msra.mxu0 %v137
  %806 = vmatpush.msra.mxu0 %v133
  %807 = vmatpush.msra.mxu0 %v129
  %808 = vmatpush.msra.mxu0 %v125
  %809 = vmatpush.msra.mxu0 %v121
  %810 = vmatpush.msra.mxu0 %v117
  %811 = vmatpush.msra.mxu0 %v113
  %812 = vmatpush.msra.mxu0 %v109
  %813 = vmatpush.msra.mxu0 %v105
  %814 = vmatpush.msra.mxu0 %v101
  %815 = vmatmul.f32.gmra.mxu0 %v15
  %v816 = vpop.f32.mrf.mxu0
  %v817 = vadd.f32 %v788, %v816
  %818 = vmatmul.f32.gmra.mxu0 %v20
  %v819 = vpop.f32.mrf.mxu0
  %v820 = vadd.f32 %v791, %v819
  %821 = vmatmul.f32.gmra.mxu0 %v25
  %v822 = vpop.f32.mrf.mxu0
  %v823 = vadd.f32 %v794, %v822
  %824 = vmatmul.f32.gmra.mxu0 %v30
  %v825 = vpop.f32.mrf.mxu0
  %v826 = vadd.f32 %v797, %v825
  %827 = vdwg.mxu0
  %828 = vmatpush.msra.mxu0 %v225
  %829 = vmatpush.msra.mxu0 %v221
  %830 = vmatpush.msra.mxu0 %v217
  %831 = vmatpush.msra.mxu0 %v213
  %832 = vmatpush.msra.mxu0 %v209
  %833 = vmatpush.msra.mxu0 %v205
  %834 = vmatpush.msra.mxu0 %v201
  %835 = vmatpush.msra.mxu0 %v197
  %836 = vmatpush.msra.mxu0 %v193
  %837 = vmatpush.msra.mxu0 %v189
  %838 = vmatpush.msra.mxu0 %v185
  %839 = vmatpush.msra.mxu0 %v181
  %840 = vmatpush.msra.mxu0 %v177
  %841 = vmatpush.msra.mxu0 %v173
  %842 = vmatpush.msra.mxu0 %v169
  %843 = vmatpush.msra.mxu0 %v165
  %844 = vmatmul.f32.gmra.mxu0 %v16
  %v845 = vpop.f32.mrf.mxu0
  %v846 = vadd.f32 %v817, %v845
  %847 = vmatmul.f32.gmra.mxu0 %v21
  %v848 = vpop.f32.mrf.mxu0
  %v849 = vadd.f32 %v820, %v848
  %850 = vmatmul.f32.gmra.mxu0 %v26
  %v851 = vpop.f32.mrf.mxu0
  %v852 = vadd.f32 %v823, %v851
  %853 = vmatmul.f32.gmra.mxu0 %v31
  %v854 = vpop.f32.mrf.mxu0
  %v855 = vadd.f32 %v826, %v854
  %856 = vdwg.mxu0
  %857 = vmatpush.msra.mxu0 %v289
  %858 = vmatpush.msra.mxu0 %v285
  %859 = vmatpush.msra.mxu0 %v281
  %860 = vmatpush.msra.mxu0 %v277
  %861 = vmatpush.msra.mxu0 %v273
  %862 = vmatpush.msra.mxu0 %v269
  %863 = vmatpush.msra.mxu0 %v265
  %864 = vmatpush.msra.mxu0 %v261
  %865 = vmatpush.msra.mxu0 %v257
  %866 = vmatpush.msra.mxu0 %v253
  %867 = vmatpush.msra.mxu0 %v249
  %868 = vmatpush.msra.mxu0 %v245
  %869 = vmatpush.msra.mxu0 %v241
  %870 = vmatpush.msra.mxu0 %v237
  %871 = vmatpush.msra.mxu0 %v233
  %872 = vmatpush.msra.mxu0 %v229
  %873 = vmatmul.f32.gmra.mxu0 %v17
  %v874 = vpop.f32.mrf.mxu0
  %v875 = vadd.f32 %v846, %v874
  %876 = vmatmul.f32.gmra.mxu0 %v22
  %v877 = vpop.f32.mrf.mxu0
  %v878 = vadd.f32 %v849, %v877
  %879 = vmatmul.f32.gmra.mxu0 %v27
  %v880 = vpop.f32.mrf.mxu0
  %v881 = vadd.f32 %v852, %v880
  %882 = vmatmul.f32.gmra.mxu0 %v32
  %v883 = vpop.f32.mrf.mxu0
  %v884 = vadd.f32 %v855, %v883
  %885 = vdwg.mxu0
  %886 = vmatpush.msra.mxu0 0.0
  %887 = vmatpush.msra.mxu0 0.0
  %888 = vmatpush.msra.mxu0 0.0
  %889 = vmatpush.msra.mxu0 0.0
  %890 = vmatpush.msra.mxu0 0.0
  %891 = vmatpush.msra.mxu0 0.0
  %892 = vmatpush.msra.mxu0 0.0
  %893 = vmatpush.msra.mxu0 0.0
  %894 = vmatpush.msra.mxu0 %v321
  %895 = vmatpush.msra.mxu0 %v317
  %896 = vmatpush.msra.mxu0 %v313
  %897 = vmatpush.msra.mxu0 %v309
  %898 = vmatpush.msra.mxu0 %v305
  %899 = vmatpush.msra.mxu0 %v301
  %900 = vmatpush.msra.mxu0 %v297
  %901 = vmatpush.msra.mxu0 %v293
  %902 = vmatmul.f32.gmra.mxu0 %v324
  %v903 = vpop.f32.mrf.mxu0
  %v904 = vadd.f32 %v875, %v903
  %905 = vmatmul.f32.gmra.mxu0 %v327
  %v906 = vpop.f32.mrf.mxu0
  %v907 = vadd.f32 %v878, %v906
  %908 = vmatmul.f32.gmra.mxu0 %v330
  %v909 = vpop.f32.mrf.mxu0
  %v910 = vadd.f32 %v881, %v909
  %911 = vmatmul.f32.gmra.mxu0 %v333
  %v912 = vpop.f32.mrf.mxu0
  %v913 = vadd.f32 %v884, %v912
  %914 = vdwg.mxu0
  %915 = vst [vmem:[%s2] sm:$0xff] %v469
  %916 = vst [vmem:[%s2 + $0x8] sm:$0xff] %v614
  %917 = vst [vmem:[%s2 + $0x10] sm:$0xff] %v759
  %918 = vst [vmem:[%s2 + $0x18] sm:$0xff] %v904
  %919 = vst [vmem:[%s2 + $0x20] sm:$0xff] %v472
  %920 = vst [vmem:[%s2 + $0x28] sm:$0xff] %v617
  %921 = vst [vmem:[%s2 + $0x30] sm:$0xff] %v762
  %922 = vst [vmem:[%s2 + $0x38] sm:$0xff] %v907
  %923 = vst [vmem:[%s2 + $0x40] sm:$0xff] %v475
  %924 = vst [vmem:[%s2 + $0x48] sm:$0xff] %v620
  %925 = vst [vmem:[%s2 + $0x50] sm:$0xff] %v765
  %926 = vst [vmem:[%s2 + $0x58] sm:$0xff] %v910
  %927 = vst [vmem:[%s2 + $0x60] sm:$0xff] %v478
  %928 = vst [vmem:[%s2 + $0x68] sm:$0xff] %v623
  %929 = vst [vmem:[%s2 + $0x70] sm:$0xff] %v768
  %930 = vst [vmem:[%s2 + $0x78] sm:$0xff] %v913
  %v931 = vadd.f32 %v469, %v614
  %v932 = vadd.f32 %v931, %v759
  %v933 = vadd.f32 %v932, %v904
  %934 = vadd.xlane.f32.xlu0 %v933
  %v935 = vpop.xlane.xlu0 %934
  %v936 = vadd.f32 %v472, %v617
  %v937 = vadd.f32 %v936, %v762
  %v938 = vadd.f32 %v937, %v907
  %939 = vadd.xlane.f32.xlu0 %v938
  %v940 = vpop.xlane.xlu0 %939
  %v941 = vadd.f32 %v475, %v620
  %v942 = vadd.f32 %v941, %v765
  %v943 = vadd.f32 %v942, %v910
  %944 = vadd.xlane.f32.xlu0 %v943
  %v945 = vpop.xlane.xlu0 %944
  %v946 = vadd.f32 %v478, %v623
  %v947 = vadd.f32 %v946, %v768
  %v948 = vadd.f32 %v947, %v913
  %949 = vadd.xlane.f32.xlu0 %v948
  %v950 = vpop.xlane.xlu0 %949
  %vm951 = vcmask 7168
  %952 = vst.msk [vmem:[%s3] sm:$0xff] %vm951, %v935
  %953 = vst.msk [vmem:[%s3 + $0x8] sm:$0xff] %vm951, %v940
  %954 = vst.msk [vmem:[%s3 + $0x10] sm:$0xff] %vm951, %v945
  %955 = vst.msk [vmem:[%s3 + $0x18] sm:$0xff] %vm951, %v950
  %v956 = vmul.f32 %v469, %v469
  %v957 = vmul.f32 %v614, %v614
  %v958 = vmul.f32 %v759, %v759
  %v959 = vmul.f32 %v904, %v904
  %v960 = vmul.f32 %v472, %v472
  %v961 = vmul.f32 %v617, %v617
  %v962 = vmul.f32 %v762, %v762
  %v963 = vmul.f32 %v907, %v907
  %v964 = vmul.f32 %v475, %v475
  %v965 = vmul.f32 %v620, %v620
  %v966 = vmul.f32 %v765, %v765
  %v967 = vmul.f32 %v910, %v910
  %v968 = vmul.f32 %v478, %v478
  %v969 = vmul.f32 %v623, %v623
  %v970 = vmul.f32 %v768, %v768
  %v971 = vmul.f32 %v913, %v913
  %v972 = vadd.f32 %v956, %v957
  %v973 = vadd.f32 %v972, %v958
  %v974 = vadd.f32 %v973, %v959
  %975 = vadd.xlane.f32.xlu0 %v974
  %v976 = vpop.xlane.xlu0 %975
  %v977 = vadd.f32 %v960, %v961
  %v978 = vadd.f32 %v977, %v962
  %v979 = vadd.f32 %v978, %v963
  %980 = vadd.xlane.f32.xlu0 %v979
  %v981 = vpop.xlane.xlu0 %980
  %v982 = vadd.f32 %v964, %v965
  %v983 = vadd.f32 %v982, %v966
  %v984 = vadd.f32 %v983, %v967
  %985 = vadd.xlane.f32.xlu0 %v984
  %v986 = vpop.xlane.xlu0 %985
  %v987 = vadd.f32 %v968, %v969
  %v988 = vadd.f32 %v987, %v970
  %v989 = vadd.f32 %v988, %v971
  %990 = vadd.xlane.f32.xlu0 %v989
  %v991 = vpop.xlane.xlu0 %990
  %992 = vst.msk [vmem:[%s4] sm:$0xff] %vm951, %v976
  %993 = vst.msk [vmem:[%s4 + $0x8] sm:$0xff] %vm951, %v981
  %994 = vst.msk [vmem:[%s4 + $0x10] sm:$0xff] %vm951, %v986
  %995 = vst.msk [vmem:[%s4 + $0x18] sm:$0xff] %vm951, %v991
  // Predicated region
  $region10: #{_lambda_.33} parent=0 // pred_check
    _
  $region11: #{_lambda_.33} parent=0 // pred_check_branch
    %997 = sbr.rel (0) target = $region13
  $region12: #{_lambda_.33} parent=0 // pred_region
    _
  $region13: #{_lambda_.33} parent=0 // pred_fallthru
    _
  // Predicated region
  $region14: #{_lambda_.33} parent=0 // pred_check
    _
  $region15: #{_lambda_.33} parent=0 // pred_check_branch
    %999 = sbr.rel (0) target = $region17
  $region16: #{_lambda_.33} parent=0 // pred_region
    _
  $region17: #{_lambda_.33} parent=0 // pred_fallthru
    _
  // Predicated region
  $region18: #{_lambda_.33} parent=0 // pred_check
    _
  $region19: #{_lambda_.33} parent=0 // pred_check_branch
    %1001 = sbr.rel (0) target = $region21
  $region20: #{_lambda_.33} parent=0 // pred_region
    _
  $region21: #{_lambda_.33} parent=0 // pred_fallthru
    _
  // Predicated region
  $region22: #{_lambda_.33} parent=0 // pred_check
    _
  $region23: #{_lambda_.33} parent=0 // pred_check_branch
    %1003 = sbr.rel (0) target = $region25
  $region24: #{_lambda_.33} parent=0 // pred_region
    _
  $region25: #{_lambda_.33} parent=0 // pred_fallthru
    _
  // Predicated region
  $region26: #{_lambda_.33} parent=0 // pred_check
    _
  $region27: #{_lambda_.33} parent=0 // pred_check_branch
    %1005 = sbr.rel (0) target = $region29
  $region28: #{_lambda_.33} parent=0 // pred_region
    _
  $region29: #{_lambda_.33} parent=0 // pred_fallthru
    _
  // Predicated region
  $region30: #{_lambda_.33} parent=0 // pred_check
    _
  $region31: #{_lambda_.33} parent=0 // pred_check_branch
    %1007 = sbr.rel (0) target = $region33
  $region32: #{_lambda_.33} parent=0 // pred_region
    _
  $region33: #{_lambda_.33} parent=0 // pred_fallthru
    _

// kernel: _lambda_.35
$region0: #{_lambda_.35}
  #allocation0 [shape = 'u32[]', space=smem, size = 0x4, offset = 0x4, fixed_abs, tag = 'smem constant byte address 0x4 - core index']
  #allocation1 [shape = 'u32[72,128]{1,0:T(1,128)}', space=vmem, size = 0x9000, scoped, tag = 'internal scratch']
  %s0 = inlined_call_operand.vmem [shape: f32[16,288], index: 0, kind: input, shape index: {}]
  %s1 = inlined_call_operand.vmem [shape: f32[288,2048], index: 1, kind: input, shape index: {}]
  %s2 = inlined_call_operand.vmem [shape: f32[16,2048], index: 2, kind: output, shape index: {0}]
  %s3 = inlined_call_operand.vmem [shape: f32[4,16,1], index: 3, kind: output, shape index: {1}]
  %s4 = inlined_call_operand.vmem [shape: f32[4,16,1], index: 4, kind: output, shape index: {2}]
  %5 = xla_tuple %s2, %s3, %s4
  %s6 = sld [smem:[#allocation0]]
  $region99: #{_lambda_.35} parent=0
    _
  %s8 = ssub.s32 1, %s6
  %s9 = scalar_select 0, %s8, %s6
  $region1: #{_lambda_.35} parent=0
    #allocation2 [shape = 'u8[1179648]{0}', space=vmem, size = 0x120000, scoped, tag = 'input window, operand 1']
    #allocation3 [shape = 'u8[65536]{0}', space=vmem, size = 0x10000, scoped, tag = 'output window, operand 0']
    loop: start=0, step=1, limit=6
    $region2: #{_lambda_.35} parent=1 // loop_pre_header
      _
    $region3: #{_lambda_.35} parent=1 // loop_header
      %s11 = sphi 0, %s15
      %p12 = scmp.ge.s32.totalorder %s11, 6
      %s19 = sphi 0, %s19
      %s21 = sphi 0, %s19
      %s22 = sphi 0, %s21
      %s36 = sphi 0, %s22
      %s42 = sphi 0, %s44
      %s45 = sphi 0, %s42
      %s46 = sphi 0, %s45
      %s62 = sphi 0, %s46
      %s68 = sphi 0, %s70
      %s71 = sphi 0, %s68
      %s72 = sphi 0, %s71
      %s88 = sphi 0, %s72
      %s94 = sphi 0, %s96
      %s97 = sphi 0, %s94
      %s98 = sphi 0, %s97
      %s114 = sphi 0, %s98
      %s120 = sphi 0, %s122
      %s123 = sphi 0, %s120
      %s124 = sphi 0, %s123
      %s140 = sphi 0, %s124
    $region4: #{_lambda_.35} parent=1 // loop_header_branch
      %14 = sbr.rel (%p12) target = $region8
    $region5: #{_lambda_.35} parent=1 // loop_body
      %s16 = ssub.s32 %s11, 1
      %s17 = ssub.s32 %s11, 2
      %s18 = sadd.s32 %s11, 1
      %s20 = sadd.s32 %s19, 1
      %p23 = scmp.eq.s32.totalorder %s11, 3
      %p24 = scmp.ne.s32.totalorder %s19, %s21
      %p25 = scmp.eq.s32.totalorder %s11, 0
      %p26 = por %p24, %p25
      %p27 = scmp.ne.s32.totalorder %s19, %s21
      %p28 = scmp.eq.s32.totalorder %s16, 3
      %p29 = por %p27, %p28
      %p30 = scmp.ne.s32.totalorder %s21, %s22
      %p31 = scmp.eq.s32.totalorder %s16, 0
      %p32 = por %p30, %p31
      %p33 = scmp.ne.s32.totalorder %s21, %s22
      %p34 = scmp.eq.s32.totalorder %s17, 3
      %p35 = por %p33, %p34
      %p37 = scmp.ne.s32.totalorder %s22, %s36
      %p38 = scmp.eq.s32.totalorder %s17, 0
      %p39 = por %p37, %p38
      %s40 = ssub.s32 %s11, %s18
      %p41 = scmp.eq.s32.totalorder %s40, 0
      %s43 = sadd.s32 %s42, 1
      %s44 = scalar_select %p41, %s42, %s43
      %p47 = pneg %p41
      %p48 = scmp.eq.s32.totalorder %s11, 3
      %p49 = por %p47, %p48
      %p50 = scmp.ne.s32.totalorder %s42, %s45
      %p51 = scmp.eq.s32.totalorder %s11, 0
      %p52 = por %p50, %p51
      %p53 = scmp.ne.s32.totalorder %s42, %s45
      %p54 = scmp.eq.s32.totalorder %s16, 3
      %p55 = por %p53, %p54
      %p56 = scmp.ne.s32.totalorder %s45, %s46
      %p57 = scmp.eq.s32.totalorder %s16, 0
      %p58 = por %p56, %p57
      %p59 = scmp.ne.s32.totalorder %s45, %s46
      %p60 = scmp.eq.s32.totalorder %s17, 3
      %p61 = por %p59, %p60
      %p63 = scmp.ne.s32.totalorder %s46, %s62
      %p64 = scmp.eq.s32.totalorder %s17, 0
      %p65 = por %p63, %p64
      %s66 = ssub.s32 %s11, %s18
      %p67 = scmp.eq.s32.totalorder %s66, 0
      %s69 = sadd.s32 %s68, 1
      %s70 = scalar_select %p67, %s68, %s69
      %p73 = pneg %p67
      %p74 = scmp.eq.s32.totalorder %s11, 3
      %p75 = por %p73, %p74
      %p76 = scmp.ne.s32.totalorder %s68, %s71
      %p77 = scmp.eq.s32.totalorder %s11, 0
      %p78 = por %p76, %p77
      %p79 = scmp.ne.s32.totalorder %s68, %s71
      %p80 = scmp.eq.s32.totalorder %s16, 3
      %p81 = por %p79, %p80
      %p82 = scmp.ne.s32.totalorder %s71, %s72
      %p83 = scmp.eq.s32.totalorder %s16, 0
      %p84 = por %p82, %p83
      %p85 = scmp.ne.s32.totalorder %s71, %s72
      %p86 = scmp.eq.s32.totalorder %s17, 3
      %p87 = por %p85, %p86
      %p89 = scmp.ne.s32.totalorder %s72, %s88
      %p90 = scmp.eq.s32.totalorder %s17, 0
      %p91 = por %p89, %p90
      %s92 = ssub.s32 %s11, %s18
      %p93 = scmp.eq.s32.totalorder %s92, 0
      %s95 = sadd.s32 %s94, 1
      %s96 = scalar_select %p93, %s94, %s95
      %p99 = pneg %p93
      %p100 = scmp.eq.s32.totalorder %s11, 3
      %p101 = por %p99, %p100
      %p102 = scmp.ne.s32.totalorder %s94, %s97
      %p103 = scmp.eq.s32.totalorder %s11, 0
      %p104 = por %p102, %p103
      %p105 = scmp.ne.s32.totalorder %s94, %s97
      %p106 = scmp.eq.s32.totalorder %s16, 3
      %p107 = por %p105, %p106
      %p108 = scmp.ne.s32.totalorder %s97, %s98
      %p109 = scmp.eq.s32.totalorder %s16, 0
      %p110 = por %p108, %p109
      %p111 = scmp.ne.s32.totalorder %s97, %s98
      %p112 = scmp.eq.s32.totalorder %s17, 3
      %p113 = por %p111, %p112
      %p115 = scmp.ne.s32.totalorder %s98, %s114
      %p116 = scmp.eq.s32.totalorder %s17, 0
      %p117 = por %p115, %p116
      %s118 = ssub.s32 %s11, %s18
      %p119 = scmp.eq.s32.totalorder %s118, 0
      %s121 = sadd.s32 %s120, 1
      %s122 = scalar_select %p119, %s120, %s121
      %p125 = pneg %p119
      %p126 = scmp.eq.s32.totalorder %s11, 3
      %p127 = por %p125, %p126
      %p128 = scmp.ne.s32.totalorder %s120, %s123
      %p129 = scmp.eq.s32.totalorder %s11, 0
      %p130 = por %p128, %p129
      %p131 = scmp.ne.s32.totalorder %s120, %s123
      %p132 = scmp.eq.s32.totalorder %s16, 3
      %p133 = por %p131, %p132
      %p134 = scmp.ne.s32.totalorder %s123, %s124
      %p135 = scmp.eq.s32.totalorder %s16, 0
      %p136 = por %p134, %p135
      %p137 = scmp.ne.s32.totalorder %s123, %s124
      %p138 = scmp.eq.s32.totalorder %s17, 3
      %p139 = por %p137, %p138
      %p141 = scmp.ne.s32.totalorder %s124, %s140
      %p142 = scmp.eq.s32.totalorder %s17, 0
      %p143 = por %p141, %p142
      %p144 = scmp.le.s32.totalorder 1, %s11
      %p145 = scmp.lt.s32.totalorder %s11, 5
      %p146 = pnand %p144, %p145
      %p147 = pneg %p146
      // Predicated region
      $region9: #{_lambda_.35} parent=5 // pred_check
        _
      $region10: #{_lambda_.35} parent=5 // pred_check_branch
        %149 = sbr.rel (%p146) target = $region12
      $region11: #{_lambda_.35} parent=5 // pred_region
        %s150 = ssub.s32 %s11, 1
        // Predicated region
        $region13: #{_lambda_.35} parent=11 // pred_check
          %p151 = pneg %p32
        $region14: #{_lambda_.35} parent=11 // pred_check_branch
          %153 = sbr.rel (%p151) target = $region16
        $region15: #{_lambda_.35} parent=11 // pred_region
          _
        $region16: #{_lambda_.35} parent=11 // pred_fallthru
          _
      $region12: #{_lambda_.35} parent=5 // pred_fallthru
        _
      %p154 = scmp.lt.s32.totalorder %s11, 4
      // Predicated region
      $region17: #{_lambda_.35} parent=5 // pred_check
        %p155 = pneg %p154
      $region18: #{_lambda_.35} parent=5 // pred_check_branch
        %157 = sbr.rel (%p155) target = $region20
      $region19: #{_lambda_.35} parent=5 // pred_region
        // Predicated region
        $region21: #{_lambda_.35} parent=19 // pred_check
          %p158 = pneg %p52
        $region22: #{_lambda_.35} parent=19 // pred_check_branch
          %160 = sbr.rel (%p158) target = $region24
        $region23: #{_lambda_.35} parent=19 // pred_region
          %s161 = sand.u32 %s42, 1
          %s162 = sand.u32 %s42, 1
          %s163 = smul.addr %s162, 1152
          %s164 = scalar_lea.vmem [#allocation2], %s163
          %s165 = smul.u32 4, %s11
          %s166 = smul.addr %s165, 8
          %s167 = scalar_lea.vmem %s1, %s166
          // Predicated region
          $region25: #{_lambda_.35} parent=23 // pred_check
            _
          $region26: #{_lambda_.35} parent=23 // pred_check_branch
            %169 = sbr.rel (0) target = $region28
          $region27: #{_lambda_.35} parent=23 // pred_region
            // Predicated region
            $region29: #{_lambda_.35} parent=27 // pred_check
              _
            $region30: #{_lambda_.35} parent=27 // pred_check_branch
              %171 = sbr.rel (0) target = $region32
            $region31: #{_lambda_.35} parent=27 // pred_region
              loop: start=0, step=1, limit=1
              $region33: #{_lambda_.35} parent=31 // loop_pre_header
                _
              $region34: #{_lambda_.35} parent=31 // loop_header
                %s173 = sphi 0, %s177
                %p174 = scmp.ge.s32.totalorder %s173, 1
                %s178 = sphi %s167, %s167
                %s179 = sphi %s164, %s164
              $region35: #{_lambda_.35} parent=31 // loop_header_branch
                %176 = sbr.rel (%p174) target = $region39
              $region36: #{_lambda_.35} parent=31 // loop_body
                %v180 = vld [vmem:[%s178] sm:$0xff]
                %181 = vst [vmem:[%s179] sm:$0xff] %v180
                %v182 = vld [vmem:[%s178 + $0x8] sm:$0xff]
                %183 = vst [vmem:[%s179 + $0x8] sm:$0xff] %v182
                %v184 = vld [vmem:[%s178 + $0x10] sm:$0xff]
                %185 = vst [vmem:[%s179 + $0x10] sm:$0xff] %v184
                %v186 = vld [vmem:[%s178 + $0x18] sm:$0xff]
                %187 = vst [vmem:[%s179 + $0x18] sm:$0xff] %v186
                %v188 = vld [vmem:[%s178 + $0x80] sm:$0xff]
                %189 = vst [vmem:[%s179 + $0x20] sm:$0xff] %v188
                %v190 = vld [vmem:[%s178 + $0x88] sm:$0xff]
                %191 = vst [vmem:[%s179 + $0x28] sm:$0xff] %v190
                %v192 = vld [vmem:[%s178 + $0x90] sm:$0xff]
                %193 = vst [vmem:[%s179 + $0x30] sm:$0xff] %v192
                %v194 = vld [vmem:[%s178 + $0x98] sm:$0xff]
                %195 = vst [vmem:[%s179 + $0x38] sm:$0xff] %v194
                %v196 = vld [vmem:[%s178 + $0x100] sm:$0xff]
                %197 = vst [vmem:[%s179 + $0x40] sm:$0xff] %v196
                %v198 = vld [vmem:[%s178 + $0x108] sm:$0xff]
                %199 = vst [vmem:[%s179 + $0x48] sm:$0xff] %v198
                %v200 = vld [vmem:[%s178 + $0x110] sm:$0xff]
                %201 = vst [vmem:[%s179 + $0x50] sm:$0xff] %v200
                %v202 = vld [vmem:[%s178 + $0x118] sm:$0xff]
                %203 = vst [vmem:[%s179 + $0x58] sm:$0xff] %v202
                %v204 = vld [vmem:[%s178 + $0x180] sm:$0xff]
                %205 = vst [vmem:[%s179 + $0x60] sm:$0xff] %v204
                %v206 = vld [vmem:[%s178 + $0x188] sm:$0xff]
                %207 = vst [vmem:[%s179 + $0x68] sm:$0xff] %v206
                %v208 = vld [vmem:[%s178 + $0x190] sm:$0xff]
                %209 = vst [vmem:[%s179 + $0x70] sm:$0xff] %v208
                %v210 = vld [vmem:[%s178 + $0x198] sm:$0xff]
                %211 = vst [vmem:[%s179 + $0x78] sm:$0xff] %v210
                %v212 = vld [vmem:[%s178 + $0x200] sm:$0xff]
                %213 = vst [vmem:[%s179 + $0x80] sm:$0xff] %v212
                %v214 = vld [vmem:[%s178 + $0x208] sm:$0xff]
                %215 = vst [vmem:[%s179 + $0x88] sm:$0xff] %v214
                %v216 = vld [vmem:[%s178 + $0x210] sm:$0xff]
                %217 = vst [vmem:[%s179 + $0x90] sm:$0xff] %v216
                %v218 = vld [vmem:[%s178 + $0x218] sm:$0xff]
                %219 = vst [vmem:[%s179 + $0x98] sm:$0xff] %v218
                %v220 = vld [vmem:[%s178 + $0x280] sm:$0xff]
                %221 = vst [vmem:[%s179 + $0xa0] sm:$0xff] %v220
                %v222 = vld [vmem:[%s178 + $0x288] sm:$0xff]
                %223 = vst [vmem:[%s179 + $0xa8] sm:$0xff] %v222
                %v224 = vld [vmem:[%s178 + $0x290] sm:$0xff]
                %225 = vst [vmem:[%s179 + $0xb0] sm:$0xff] %v224
                %v226 = vld [vmem:[%s178 + $0x298] sm:$0xff]
                %227 = vst [vmem:[%s179 + $0xb8] sm:$0xff] %v226
                %v228 = vld [vmem:[%s178 + $0x300] sm:$0xff]
                %229 = vst [vmem:[%s179 + $0xc0] sm:$0xff] %v228
                %v230 = vld [vmem:[%s178 + $0x308] sm:$0xff]
                %231 = vst [vmem:[%s179 + $0xc8] sm:$0xff] %v230
                %v232 = vld [vmem:[%s178 + $0x310] sm:$0xff]
                %233 = vst [vmem:[%s179 + $0xd0] sm:$0xff] %v232
                %v234 = vld [vmem:[%s178 + $0x318] sm:$0xff]
                %235 = vst [vmem:[%s179 + $0xd8] sm:$0xff] %v234
                %v236 = vld [vmem:[%s178 + $0x380] sm:$0xff]
                %237 = vst [vmem:[%s179 + $0xe0] sm:$0xff] %v236
                %v238 = vld [vmem:[%s178 + $0x388] sm:$0xff]
                %239 = vst [vmem:[%s179 + $0xe8] sm:$0xff] %v238
                %v240 = vld [vmem:[%s178 + $0x390] sm:$0xff]
                %241 = vst [vmem:[%s179 + $0xf0] sm:$0xff] %v240
                %v242 = vld [vmem:[%s178 + $0x398] sm:$0xff]
                %243 = vst [vmem:[%s179 + $0xf8] sm:$0xff] %v242
                %v244 = vld [vmem:[%s178 + $0x400] sm:$0xff]
                %245 = vst [vmem:[%s179 + $0x100] sm:$0xff] %v244
                %v246 = vld [vmem:[%s178 + $0x408] sm:$0xff]
                %247 = vst [vmem:[%s179 + $0x108] sm:$0xff] %v246
                %v248 = vld [vmem:[%s178 + $0x410] sm:$0xff]
                %249 = vst [vmem:[%s179 + $0x110] sm:$0xff] %v248
                %v250 = vld [vmem:[%s178 + $0x418] sm:$0xff]
                %251 = vst [vmem:[%s179 + $0x118] sm:$0xff] %v250
                %v252 = vld [vmem:[%s178 + $0x480] sm:$0xff]
                %253 = vst [vmem:[%s179 + $0x120] sm:$0xff] %v252
                %v254 = vld [vmem:[%s178 + $0x488] sm:$0xff]
                %255 = vst [vmem:[%s179 + $0x128] sm:$0xff] %v254
                %v256 = vld [vmem:[%s178 + $0x490] sm:$0xff]
                %257 = vst [vmem:[%s179 + $0x130] sm:$0xff] %v256
                %v258 = vld [vmem:[%s178 + $0x498] sm:$0xff]
                %259 = vst [vmem:[%s179 + $0x138] sm:$0xff] %v258
                %v260 = vld [vmem:[%s178 + $0x500] sm:$0xff]
                %261 = vst [vmem:[%s179 + $0x140] sm:$0xff] %v260
                %v262 = vld [vmem:[%s178 + $0x508] sm:$0xff]
                %263 = vst [vmem:[%s179 + $0x148] sm:$0xff] %v262
                %v264 = vld [vmem:[%s178 + $0x510] sm:$0xff]
                %265 = vst [vmem:[%s179 + $0x150] sm:$0xff] %v264
                %v266 = vld [vmem:[%s178 + $0x518] sm:$0xff]
                %267 = vst [vmem:[%s179 + $0x158] sm:$0xff] %v266
                %v268 = vld [vmem:[%s178 + $0x580] sm:$0xff]
                %269 = vst [vmem:[%s179 + $0x160] sm:$0xff] %v268
                %v270 = vld [vmem:[%s178 + $0x588] sm:$0xff]
                %271 = vst [vmem:[%s179 + $0x168] sm:$0xff] %v270
                %v272 = vld [vmem:[%s178 + $0x590] sm:$0xff]
                %273 = vst [vmem:[%s179 + $0x170] sm:$0xff] %v272
                %v274 = vld [vmem:[%s178 + $0x598] sm:$0xff]
                %275 = vst [vmem:[%s179 + $0x178] sm:$0xff] %v274
                %v276 = vld [vmem:[%s178 + $0x600] sm:$0xff]
                %277 = vst [vmem:[%s179 + $0x180] sm:$0xff] %v276
                %v278 = vld [vmem:[%s178 + $0x608] sm:$0xff]
                %279 = vst [vmem:[%s179 + $0x188] sm:$0xff] %v278
                %v280 = vld [vmem:[%s178 + $0x610] sm:$0xff]
                %281 = vst [vmem:[%s179 + $0x190] sm:$0xff] %v280
                %v282 = vld [vmem:[%s178 + $0x618] sm:$0xff]
                %283 = vst [vmem:[%s179 + $0x198] sm:$0xff] %v282
                %v284 = vld [vmem:[%s178 + $0x680] sm:$0xff]
                %285 = vst [vmem:[%s179 + $0x1a0] sm:$0xff] %v284
                %v286 = vld [vmem:[%s178 + $0x688] sm:$0xff]
                %287 = vst [vmem:[%s179 + $0x1a8] sm:$0xff] %v286
                %v288 = vld [vmem:[%s178 + $0x690] sm:$0xff]
                %289 = vst [vmem:[%s179 + $0x1b0] sm:$0xff] %v288
                %v290 = vld [vmem:[%s178 + $0x698] sm:$0xff]
                %291 = vst [vmem:[%s179 + $0x1b8] sm:$0xff] %v290
                %v292 = vld [vmem:[%s178 + $0x700] sm:$0xff]
                %293 = vst [vmem:[%s179 + $0x1c0] sm:$0xff] %v292
                %v294 = vld [vmem:[%s178 + $0x708] sm:$0xff]
                %295 = vst [vmem:[%s179 + $0x1c8] sm:$0xff] %v294
                %v296 = vld [vmem:[%s178 + $0x710] sm:$0xff]
                %297 = vst [vmem:[%s179 + $0x1d0] sm:$0xff] %v296
                %v298 = vld [vmem:[%s178 + $0x718] sm:$0xff]
                %299 = vst [vmem:[%s179 + $0x1d8] sm:$0xff] %v298
                %v300 = vld [vmem:[%s178 + $0x780] sm:$0xff]
                %301 = vst [vmem:[%s179 + $0x1e0] sm:$0xff] %v300
                %v302 = vld [vmem:[%s178 + $0x788] sm:$0xff]
                %303 = vst [vmem:[%s179 + $0x1e8] sm:$0xff] %v302
                %v304 = vld [vmem:[%s178 + $0x790] sm:$0xff]
                %305 = vst [vmem:[%s179 + $0x1f0] sm:$0xff] %v304
                %v306 = vld [vmem:[%s178 + $0x798] sm:$0xff]
                %307 = vst [vmem:[%s179 + $0x1f8] sm:$0xff] %v306
                %v308 = vld [vmem:[%s178 + $0x800] sm:$0xff]
                %309 = vst [vmem:[%s179 + $0x200] sm:$0xff] %v308
                %v310 = vld [vmem:[%s178 + $0x808] sm:$0xff]
                %311 = vst [vmem:[%s179 + $0x208] sm:$0xff] %v310
                %v312 = vld [vmem:[%s178 + $0x810] sm:$0xff]
                %313 = vst [vmem:[%s179 + $0x210] sm:$0xff] %v312
                %v314 = vld [vmem:[%s178 + $0x818] sm:$0xff]
                %315 = vst [vmem:[%s179 + $0x218] sm:$0xff] %v314
                %v316 = vld [vmem:[%s178 + $0x880] sm:$0xff]
                %317 = vst [vmem:[%s179 + $0x220] sm:$0xff] %v316
                %v318 = vld [vmem:[%s178 + $0x888] sm:$0xff]
                %319 = vst [vmem:[%s179 + $0x228] sm:$0xff] %v318
                %v320 = vld [vmem:[%s178 + $0x890] sm:$0xff]
                %321 = vst [vmem:[%s179 + $0x230] sm:$0xff] %v320
                %v322 = vld [vmem:[%s178 + $0x898] sm:$0xff]
                %323 = vst [vmem:[%s179 + $0x238] sm:$0xff] %v322
                %v324 = vld [vmem:[%s178 + $0x900] sm:$0xff]
                %325 = vst [vmem:[%s179 + $0x240] sm:$0xff] %v324
                %v326 = vld [vmem:[%s178 + $0x908] sm:$0xff]
                %327 = vst [vmem:[%s179 + $0x248] sm:$0xff] %v326
                %v328 = vld [vmem:[%s178 + $0x910] sm:$0xff]
                %329 = vst [vmem:[%s179 + $0x250] sm:$0xff] %v328
                %v330 = vld [vmem:[%s178 + $0x918] sm:$0xff]
                %331 = vst [vmem:[%s179 + $0x258] sm:$0xff] %v330
                %v332 = vld [vmem:[%s178 + $0x980] sm:$0xff]
                %333 = vst [vmem:[%s179 + $0x260] sm:$0xff] %v332
                %v334 = vld [vmem:[%s178 + $0x988] sm:$0xff]
                %335 = vst [vmem:[%s179 + $0x268] sm:$0xff] %v334
                %v336 = vld [vmem:[%s178 + $0x990] sm:$0xff]
                %337 = vst [vmem:[%s179 + $0x270] sm:$0xff] %v336
                %v338 = vld [vmem:[%s178 + $0x998] sm:$0xff]
                %339 = vst [vmem:[%s179 + $0x278] sm:$0xff] %v338
                %v340 = vld [vmem:[%s178 + $0xa00] sm:$0xff]
                %341 = vst [vmem:[%s179 + $0x280] sm:$0xff] %v340
                %v342 = vld [vmem:[%s178 + $0xa08] sm:$0xff]
                %343 = vst [vmem:[%s179 + $0x288] sm:$0xff] %v342
                %v344 = vld [vmem:[%s178 + $0xa10] sm:$0xff]
                %345 = vst [vmem:[%s179 + $0x290] sm:$0xff] %v344
                %v346 = vld [vmem:[%s178 + $0xa18] sm:$0xff]
                %347 = vst [vmem:[%s179 + $0x298] sm:$0xff] %v346
                %v348 = vld [vmem:[%s178 + $0xa80] sm:$0xff]
                %349 = vst [vmem:[%s179 + $0x2a0] sm:$0xff] %v348
                %v350 = vld [vmem:[%s178 + $0xa88] sm:$0xff]
                %351 = vst [vmem:[%s179 + $0x2a8] sm:$0xff] %v350
                %v352 = vld [vmem:[%s178 + $0xa90] sm:$0xff]
                %353 = vst [vmem:[%s179 + $0x2b0] sm:$0xff] %v352
                %v354 = vld [vmem:[%s178 + $0xa98] sm:$0xff]
                %355 = vst [vmem:[%s179 + $0x2b8] sm:$0xff] %v354
                %v356 = vld [vmem:[%s178 + $0xb00] sm:$0xff]
                %357 = vst [vmem:[%s179 + $0x2c0] sm:$0xff] %v356
                %v358 = vld [vmem:[%s178 + $0xb08] sm:$0xff]
                %359 = vst [vmem:[%s179 + $0x2c8] sm:$0xff] %v358
                %v360 = vld [vmem:[%s178 + $0xb10] sm:$0xff]
                %361 = vst [vmem:[%s179 + $0x2d0] sm:$0xff] %v360
                %v362 = vld [vmem:[%s178 + $0xb18] sm:$0xff]
                %363 = vst [vmem:[%s179 + $0x2d8] sm:$0xff] %v362
                %v364 = vld [vmem:[%s178 + $0xb80] sm:$0xff]
                %365 = vst [vmem:[%s179 + $0x2e0] sm:$0xff] %v364
                %v366 = vld [vmem:[%s178 + $0xb88] sm:$0xff]
                %367 = vst [vmem:[%s179 + $0x2e8] sm:$0xff] %v366
                %v368 = vld [vmem:[%s178 + $0xb90] sm:$0xff]
                %369 = vst [vmem:[%s179 + $0x2f0] sm:$0xff] %v368
                %v370 = vld [vmem:[%s178 + $0xb98] sm:$0xff]
                %371 = vst [vmem:[%s179 + $0x2f8] sm:$0xff] %v370
                %v372 = vld [vmem:[%s178 + $0xc00] sm:$0xff]
                %373 = vst [vmem:[%s179 + $0x300] sm:$0xff] %v372
                %v374 = vld [vmem:[%s178 + $0xc08] sm:$0xff]
                %375 = vst [vmem:[%s179 + $0x308] sm:$0xff] %v374
                %v376 = vld [vmem:[%s178 + $0xc10] sm:$0xff]
                %377 = vst [vmem:[%s179 + $0x310] sm:$0xff] %v376
                %v378 = vld [vmem:[%s178 + $0xc18] sm:$0xff]
                %379 = vst [vmem:[%s179 + $0x318] sm:$0xff] %v378
                %v380 = vld [vmem:[%s178 + $0xc80] sm:$0xff]
                %381 = vst [vmem:[%s179 + $0x320] sm:$0xff] %v380
                %v382 = vld [vmem:[%s178 + $0xc88] sm:$0xff]
                %383 = vst [vmem:[%s179 + $0x328] sm:$0xff] %v382
                %v384 = vld [vmem:[%s178 + $0xc90] sm:$0xff]
                %385 = vst [vmem:[%s179 + $0x330] sm:$0xff] %v384
                %v386 = vld [vmem:[%s178 + $0xc98] sm:$0xff]
                %387 = vst [vmem:[%s179 + $0x338] sm:$0xff] %v386
                %v388 = vld [vmem:[%s178 + $0xd00] sm:$0xff]
                %389 = vst [vmem:[%s179 + $0x340] sm:$0xff] %v388
                %v390 = vld [vmem:[%s178 + $0xd08] sm:$0xff]
                %391 = vst [vmem:[%s179 + $0x348] sm:$0xff] %v390
                %v392 = vld [vmem:[%s178 + $0xd10] sm:$0xff]
                %393 = vst [vmem:[%s179 + $0x350] sm:$0xff] %v392
                %v394 = vld [vmem:[%s178 + $0xd18] sm:$0xff]
                %395 = vst [vmem:[%s179 + $0x358] sm:$0xff] %v394
                %v396 = vld [vmem:[%s178 + $0xd80] sm:$0xff]
                %397 = vst [vmem:[%s179 + $0x360] sm:$0xff] %v396
                %v398 = vld [vmem:[%s178 + $0xd88] sm:$0xff]
                %399 = vst [vmem:[%s179 + $0x368] sm:$0xff] %v398
                %v400 = vld [vmem:[%s178 + $0xd90] sm:$0xff]
                %401 = vst [vmem:[%s179 + $0x370] sm:$0xff] %v400
                %v402 = vld [vmem:[%s178 + $0xd98] sm:$0xff]
                %403 = vst [vmem:[%s179 + $0x378] sm:$0xff] %v402
                %v404 = vld [vmem:[%s178 + $0xe00] sm:$0xff]
                %405 = vst [vmem:[%s179 + $0x380] sm:$0xff] %v404
                %v406 = vld [vmem:[%s178 + $0xe08] sm:$0xff]
                %407 = vst [vmem:[%s179 + $0x388] sm:$0xff] %v406
                %v408 = vld [vmem:[%s178 + $0xe10] sm:$0xff]
                %409 = vst [vmem:[%s179 + $0x390] sm:$0xff] %v408
                %v410 = vld [vmem:[%s178 + $0xe18] sm:$0xff]
                %411 = vst [vmem:[%s179 + $0x398] sm:$0xff] %v410
                %v412 = vld [vmem:[%s178 + $0xe80] sm:$0xff]
                %413 = vst [vmem:[%s179 + $0x3a0] sm:$0xff] %v412
                %v414 = vld [vmem:[%s178 + $0xe88] sm:$0xff]
                %415 = vst [vmem:[%s179 + $0x3a8] sm:$0xff] %v414
                %v416 = vld [vmem:[%s178 + $0xe90] sm:$0xff]
                %417 = vst [vmem:[%s179 + $0x3b0] sm:$0xff] %v416
                %v418 = vld [vmem:[%s178 + $0xe98] sm:$0xff]
                %419 = vst [vmem:[%s179 + $0x3b8] sm:$0xff] %v418
                %v420 = vld [vmem:[%s178 + $0xf00] sm:$0xff]
                %421 = vst [vmem:[%s179 + $0x3c0] sm:$0xff] %v420
                %v422 = vld [vmem:[%s178 + $0xf08] sm:$0xff]
                %423 = vst [vmem:[%s179 + $0x3c8] sm:$0xff] %v422
                %v424 = vld [vmem:[%s178 + $0xf10] sm:$0xff]
                %425 = vst [vmem:[%s179 + $0x3d0] sm:$0xff] %v424
                %v426 = vld [vmem:[%s178 + $0xf18] sm:$0xff]
                %427 = vst [vmem:[%s179 + $0x3d8] sm:$0xff] %v426
                %v428 = vld [vmem:[%s178 + $0xf80] sm:$0xff]
                %429 = vst [vmem:[%s179 + $0x3e0] sm:$0xff] %v428
                %v430 = vld [vmem:[%s178 + $0xf88] sm:$0xff]
                %431 = vst [vmem:[%s179 + $0x3e8] sm:$0xff] %v430
                %v432 = vld [vmem:[%s178 + $0xf90] sm:$0xff]
                %433 = vst [vmem:[%s179 + $0x3f0] sm:$0xff] %v432
                %v434 = vld [vmem:[%s178 + $0xf98] sm:$0xff]
                %435 = vst [vmem:[%s179 + $0x3f8] sm:$0xff] %v434
                %v436 = vld [vmem:[%s178 + $0x1000] sm:$0xff]
                %437 = vst [vmem:[%s179 + $0x400] sm:$0xff] %v436
                %v438 = vld [vmem:[%s178 + $0x1008] sm:$0xff]
                %439 = vst [vmem:[%s179 + $0x408] sm:$0xff] %v438
                %v440 = vld [vmem:[%s178 + $0x1010] sm:$0xff]
                %441 = vst [vmem:[%s179 + $0x410] sm:$0xff] %v440
                %v442 = vld [vmem:[%s178 + $0x1018] sm:$0xff]
                %443 = vst [vmem:[%s179 + $0x418] sm:$0xff] %v442
                %v444 = vld [vmem:[%s178 + $0x1080] sm:$0xff]
                %445 = vst [vmem:[%s179 + $0x420] sm:$0xff] %v444
                %v446 = vld [vmem:[%s178 + $0x1088] sm:$0xff]
                %447 = vst [vmem:[%s179 + $0x428] sm:$0xff] %v446
                %v448 = vld [vmem:[%s178 + $0x1090] sm:$0xff]
                %449 = vst [vmem:[%s179 + $0x430] sm:$0xff] %v448
                %v450 = vld [vmem:[%s178 + $0x1098] sm:$0xff]
                %451 = vst [vmem:[%s179 + $0x438] sm:$0xff] %v450
                %v452 = vld [vmem:[%s178 + $0x1100] sm:$0xff]
                %453 = vst [vmem:[%s179 + $0x440] sm:$0xff] %v452
                %v454 = vld [vmem:[%s178 + $0x1108] sm:$0xff]
                %455 = vst [vmem:[%s179 + $0x448] sm:$0xff] %v454
                %v456 = vld [vmem:[%s178 + $0x1110] sm:$0xff]
                %457 = vst [vmem:[%s179 + $0x450] sm:$0xff] %v456
                %v458 = vld [vmem:[%s178 + $0x1118] sm:$0xff]
                %459 = vst [vmem:[%s179 + $0x458] sm:$0xff] %v458
                %v460 = vld [vmem:[%s178 + $0x1180] sm:$0xff]
                %461 = vst [vmem:[%s179 + $0x460] sm:$0xff] %v460
                %v462 = vld [vmem:[%s178 + $0x1188] sm:$0xff]
                %463 = vst [vmem:[%s179 + $0x468] sm:$0xff] %v462
                %v464 = vld [vmem:[%s178 + $0x1190] sm:$0xff]
                %465 = vst [vmem:[%s179 + $0x470] sm:$0xff] %v464
                %v466 = vld [vmem:[%s178 + $0x1198] sm:$0xff]
                %467 = vst [vmem:[%s179 + $0x478] sm:$0xff] %v466
              $region37: #{_lambda_.35} parent=31 // loop_footer
                %s177 = sadd.s32 1, %s173
              $region38: #{_lambda_.35} parent=31 // loop_footer_branch
                %172 = sbr.rel target = $region34
              $region39: #{_lambda_.35} parent=31 // loop_exit
                _
            $region32: #{_lambda_.35} parent=27 // pred_fallthru
              _
            // Predicated region
            $region40: #{_lambda_.35} parent=27 // pred_check
              _
            $region41: #{_lambda_.35} parent=27 // pred_check_branch
              %469 = sbr.rel target = $region43
            $region42: #{_lambda_.35} parent=27 // pred_region
              _
            $region43: #{_lambda_.35} parent=27 // pred_fallthru
              _
          $region28: #{_lambda_.35} parent=23 // pred_fallthru
            _
          %470 = vnop
        $region24: #{_lambda_.35} parent=19 // pred_fallthru
          _
      $region20: #{_lambda_.35} parent=5 // pred_fallthru
        _
      %p471 = scmp.le.s32.totalorder 1, %s11
      %p472 = scmp.lt.s32.totalorder %s11, 5
      %p473 = pnand %p471, %p472
      %p474 = pneg %p473
      // Predicated region
      $region44: #{_lambda_.35} parent=5 // pred_check
        _
      $region45: #{_lambda_.35} parent=5 // pred_check_branch
        %476 = sbr.rel (%p473) target = $region47
      $region46: #{_lambda_.35} parent=5 // pred_region
        %s477 = ssub.s32 %s11, 1
        %s478 = sand.u32 %s45, 1
        %s479 = sand.u32 %s45, 1
        %s480 = smul.addr %s479, 1152
        %s481 = scalar_lea.vmem [#allocation2], %s480
        // Predicated region
        $region48: #{_lambda_.35} parent=46 // pred_check
          %p482 = pneg %p58
        $region49: #{_lambda_.35} parent=46 // pred_check_branch
          %484 = sbr.rel (%p482) target = $region51
        $region50: #{_lambda_.35} parent=46 // pred_region
          _
        $region51: #{_lambda_.35} parent=46 // pred_fallthru
          _
        %p485 = pneg %p32
        %p486 = pneg %p29
        %s487 = sand.u32 %s45, 1
        %s488 = sand.u32 %s45, 1
        %s489 = smul.addr %s488, 1152
        %s490 = scalar_lea.vmem [#allocation2], %s489
        %p491 = pneg %p58
        %p492 = pneg %p55
        %p493 = pneg %p84
        %p494 = pneg %p81
        %s495 = sand.u32 %s71, 1
        %s496 = sand.u32 %s71, 1
        %s497 = smul.addr %s496, 64
        %s498 = scalar_lea.vmem [#allocation3], %s497
        %p499 = pneg %p110
        %p500 = pneg %p107
        %p501 = scmp.lt.s32.totalorder %s16, 3
        %s502 = scalar_select %p501, %s16, 3
        %s503 = smul.addr %s502, 2
        %s504 = smul.addr %s503, 8
        %s505 = scalar_lea.vmem %s3, %s504
        %p506 = pneg %p136
        %p507 = pneg %p133
        %p508 = scmp.lt.s32.totalorder %s16, 3
        %s509 = scalar_select %p508, %s16, 3
        %s510 = smul.addr %s509, 2
        %s511 = smul.addr %s510, 8
        %s512 = scalar_lea.vmem %s4, %s511
        %s513 = smul.u32 4, %s16
        %s514 = smul.u32 4, %s16
        %p515 = scmp.lt.s32.totalorder %s16, 3
        %s516 = scalar_select %p515, %s16, 3
        %s517 = smul.addr %s516, 2
        %s518 = smul.addr %s517, 8
        %s519 = scalar_lea.vmem %s3, %s518
        %p520 = scmp.lt.s32.totalorder %s16, 3
        %s521 = scalar_select %p520, %s16, 3
        %s522 = smul.addr %s521, 2
        %s523 = smul.addr %s522, 8
        %s524 = scalar_lea.vmem %s4, %s523
        %v525 = vld [vmem:[%s0] sm:$0xff]
        %v526 = vld [vmem:[%s0 + $0x8] sm:$0xff]
        %v527 = vld [vmem:[%s0 + $0x10] sm:$0xff]
        %v528 = vld [vmem:[%s0 + $0x18] sm:$0xff]
        %v529 = vld [vmem:[%s0 + $0x20] sm:$0xff]
        %v530 = vld [vmem:[%s0 + $0x28] sm:$0xff]
        %v531 = vld [vmem:[%s481] sm:$0xff]
        %v532 = vld [vmem:[%s481 + $0x8] sm:$0xff]
        %v533 = vld [vmem:[%s481 + $0x10] sm:$0xff]
        %v534 = vld [vmem:[%s481 + $0x18] sm:$0xff]
        %v535 = vld [vmem:[%s481 + $0x20] sm:$0xff]
        %v536 = vld [vmem:[%s481 + $0x28] sm:$0xff]
        %v537 = vld [vmem:[%s481 + $0x30] sm:$0xff]
        %v538 = vld [vmem:[%s481 + $0x38] sm:$0xff]
        %v539 = vld [vmem:[%s481 + $0x40] sm:$0xff]
        %v540 = vld [vmem:[%s481 + $0x48] sm:$0xff]
        %v541 = vld [vmem:[%s481 + $0x50] sm:$0xff]
        %v542 = vld [vmem:[%s481 + $0x58] sm:$0xff]
        %v543 = vld [vmem:[%s481 + $0x60] sm:$0xff]
        %v544 = vld [vmem:[%s481 + $0x68] sm:$0xff]
        %v545 = vld [vmem:[%s481 + $0x70] sm:$0xff]
        %v546 = vld [vmem:[%s481 + $0x78] sm:$0xff]
        %v547 = vld [vmem:[%s481 + $0x80] sm:$0xff]
        %v548 = vld [vmem:[%s481 + $0x88] sm:$0xff]
        %v549 = vld [vmem:[%s481 + $0x90] sm:$0xff]
        %v550 = vld [vmem:[%s481 + $0x98] sm:$0xff]
        %v551 = vld [vmem:[%s481 + $0xa0] sm:$0xff]
        %v552 = vld [vmem:[%s481 + $0xa8] sm:$0xff]
        %v553 = vld [vmem:[%s481 + $0xb0] sm:$0xff]
        %v554 = vld [vmem:[%s481 + $0xb8] sm:$0xff]
        %v555 = vld [vmem:[%s481 + $0xc0] sm:$0xff]
        %v556 = vld [vmem:[%s481 + $0xc8] sm:$0xff]
        %v557 = vld [vmem:[%s481 + $0xd0] sm:$0xff]
        %v558 = vld [vmem:[%s481 + $0xd8] sm:$0xff]
        %v559 = vld [vmem:[%s481 + $0xe0] sm:$0xff]
        %v560 = vld [vmem:[%s481 + $0xe8] sm:$0xff]
        %v561 = vld [vmem:[%s481 + $0xf0] sm:$0xff]
        %v562 = vld [vmem:[%s481 + $0xf8] sm:$0xff]
        %v563 = vld [vmem:[%s481 + $0x100] sm:$0xff]
        %v564 = vld [vmem:[%s481 + $0x108] sm:$0xff]
        %v565 = vld [vmem:[%s481 + $0x110] sm:$0xff]
        %v566 = vld [vmem:[%s481 + $0x118] sm:$0xff]
        %v567 = vld [vmem:[%s481 + $0x120] sm:$0xff]
        %v568 = vld [vmem:[%s481 + $0x128] sm:$0xff]
        %v569 = vld [vmem:[%s481 + $0x130] sm:$0xff]
        %v570 = vld [vmem:[%s481 + $0x138] sm:$0xff]
        %v571 = vld [vmem:[%s481 + $0x140] sm:$0xff]
        %v572 = vld [vmem:[%s481 + $0x148] sm:$0xff]
        %v573 = vld [vmem:[%s481 + $0x150] sm:$0xff]
        %v574 = vld [vmem:[%s481 + $0x158] sm:$0xff]
        %v575 = vld [vmem:[%s481 + $0x160] sm:$0xff]
        %v576 = vld [vmem:[%s481 + $0x168] sm:$0xff]
        %v577 = vld [vmem:[%s481 + $0x170] sm:$0xff]
        %v578 = vld [vmem:[%s481 + $0x178] sm:$0xff]
        %v579 = vld [vmem:[%s481 + $0x180] sm:$0xff]
        %v580 = vld [vmem:[%s481 + $0x188] sm:$0xff]
        %v581 = vld [vmem:[%s481 + $0x190] sm:$0xff]
        %v582 = vld [vmem:[%s481 + $0x198] sm:$0xff]
        %v583 = vld [vmem:[%s481 + $0x1a0] sm:$0xff]
        %v584 = vld [vmem:[%s481 + $0x1a8] sm:$0xff]
        %v585 = vld [vmem:[%s481 + $0x1b0] sm:$0xff]
        %v586 = vld [vmem:[%s481 + $0x1b8] sm:$0xff]
        %v587 = vld [vmem:[%s481 + $0x1c0] sm:$0xff]
        %v588 = vld [vmem:[%s481 + $0x1c8] sm:$0xff]
        %v589 = vld [vmem:[%s481 + $0x1d0] sm:$0xff]
        %v590 = vld [vmem:[%s481 + $0x1d8] sm:$0xff]
        %v591 = vld [vmem:[%s481 + $0x1e0] sm:$0xff]
        %v592 = vld [vmem:[%s481 + $0x1e8] sm:$0xff]
        %v593 = vld [vmem:[%s481 + $0x1f0] sm:$0xff]
        %v594 = vld [vmem:[%s481 + $0x1f8] sm:$0xff]
        %v595 = vld [vmem:[%s481 + $0x200] sm:$0xff]
        %v596 = vld [vmem:[%s481 + $0x208] sm:$0xff]
        %v597 = vld [vmem:[%s481 + $0x210] sm:$0xff]
        %v598 = vld [vmem:[%s481 + $0x218] sm:$0xff]
        %v599 = vld [vmem:[%s481 + $0x220] sm:$0xff]
        %v600 = vld [vmem:[%s481 + $0x228] sm:$0xff]
        %v601 = vld [vmem:[%s481 + $0x230] sm:$0xff]
        %v602 = vld [vmem:[%s481 + $0x238] sm:$0xff]
        %v603 = vld [vmem:[%s481 + $0x240] sm:$0xff]
        %v604 = vld [vmem:[%s481 + $0x248] sm:$0xff]
        %v605 = vld [vmem:[%s481 + $0x250] sm:$0xff]
        %v606 = vld [vmem:[%s481 + $0x258] sm:$0xff]
        %v607 = vld [vmem:[%s481 + $0x260] sm:$0xff]
        %v608 = vld [vmem:[%s481 + $0x268] sm:$0xff]
        %v609 = vld [vmem:[%s481 + $0x270] sm:$0xff]
        %v610 = vld [vmem:[%s481 + $0x278] sm:$0xff]
        %v611 = vld [vmem:[%s481 + $0x280] sm:$0xff]
        %v612 = vld [vmem:[%s481 + $0x288] sm:$0xff]
        %v613 = vld [vmem:[%s481 + $0x290] sm:$0xff]
        %v614 = vld [vmem:[%s481 + $0x298] sm:$0xff]
        %v615 = vld [vmem:[%s481 + $0x2a0] sm:$0xff]
        %v616 = vld [vmem:[%s481 + $0x2a8] sm:$0xff]
        %v617 = vld [vmem:[%s481 + $0x2b0] sm:$0xff]
        %v618 = vld [vmem:[%s481 + $0x2b8] sm:$0xff]
        %v619 = vld [vmem:[%s481 + $0x2c0] sm:$0xff]
        %v620 = vld [vmem:[%s481 + $0x2c8] sm:$0xff]
        %v621 = vld [vmem:[%s481 + $0x2d0] sm:$0xff]
        %v622 = vld [vmem:[%s481 + $0x2d8] sm:$0xff]
        %v623 = vld [vmem:[%s481 + $0x2e0] sm:$0xff]
        %v624 = vld [vmem:[%s481 + $0x2e8] sm:$0xff]
        %v625 = vld [vmem:[%s481 + $0x2f0] sm:$0xff]
        %v626 = vld [vmem:[%s481 + $0x2f8] sm:$0xff]
        %v627 = vld [vmem:[%s481 + $0x300] sm:$0xff]
        %v628 = vld [vmem:[%s481 + $0x308] sm:$0xff]
        %v629 = vld [vmem:[%s481 + $0x310] sm:$0xff]
        %v630 = vld [vmem:[%s481 + $0x318] sm:$0xff]
        %v631 = vld [vmem:[%s481 + $0x320] sm:$0xff]
        %v632 = vld [vmem:[%s481 + $0x328] sm:$0xff]
        %v633 = vld [vmem:[%s481 + $0x330] sm:$0xff]
        %v634 = vld [vmem:[%s481 + $0x338] sm:$0xff]
        %v635 = vld [vmem:[%s481 + $0x340] sm:$0xff]
        %v636 = vld [vmem:[%s481 + $0x348] sm:$0xff]
        %v637 = vld [vmem:[%s481 + $0x350] sm:$0xff]
        %v638 = vld [vmem:[%s481 + $0x358] sm:$0xff]
        %v639 = vld [vmem:[%s481 + $0x360] sm:$0xff]
        %v640 = vld [vmem:[%s481 + $0x368] sm:$0xff]
        %v641 = vld [vmem:[%s481 + $0x370] sm:$0xff]
        %v642 = vld [vmem:[%s481 + $0x378] sm:$0xff]
        %v643 = vld [vmem:[%s481 + $0x380] sm:$0xff]
        %v644 = vld [vmem:[%s481 + $0x388] sm:$0xff]
        %v645 = vld [vmem:[%s481 + $0x390] sm:$0xff]
        %v646 = vld [vmem:[%s481 + $0x398] sm:$0xff]
        %v647 = vld [vmem:[%s481 + $0x3a0] sm:$0xff]
        %v648 = vld [vmem:[%s481 + $0x3a8] sm:$0xff]
        %v649 = vld [vmem:[%s481 + $0x3b0] sm:$0xff]
        %v650 = vld [vmem:[%s481 + $0x3b8] sm:$0xff]
        %v651 = vld [vmem:[%s481 + $0x3c0] sm:$0xff]
        %v652 = vld [vmem:[%s481 + $0x3c8] sm:$0xff]
        %v653 = vld [vmem:[%s481 + $0x3d0] sm:$0xff]
        %v654 = vld [vmem:[%s481 + $0x3d8] sm:$0xff]
        %v655 = vld [vmem:[%s481 + $0x3e0] sm:$0xff]
        %v656 = vld [vmem:[%s481 + $0x3e8] sm:$0xff]
        %v657 = vld [vmem:[%s481 + $0x3f0] sm:$0xff]
        %v658 = vld [vmem:[%s481 + $0x3f8] sm:$0xff]
        %v659 = vld [vmem:[%s481 + $0x400] sm:$0xff]
        %v660 = vld [vmem:[%s481 + $0x408] sm:$0xff]
        %v661 = vld [vmem:[%s481 + $0x410] sm:$0xff]
        %v662 = vld [vmem:[%s481 + $0x418] sm:$0xff]
        %v663 = vld [vmem:[%s481 + $0x420] sm:$0xff]
        %v664 = vld [vmem:[%s481 + $0x428] sm:$0xff]
        %v665 = vld [vmem:[%s481 + $0x430] sm:$0xff]
        %v666 = vld [vmem:[%s481 + $0x438] sm:$0xff]
        %v667 = vld [vmem:[%s481 + $0x440] sm:$0xff]
        %v668 = vld [vmem:[%s481 + $0x448] sm:$0xff]
        %v669 = vld [vmem:[%s481 + $0x450] sm:$0xff]
        %v670 = vld [vmem:[%s481 + $0x458] sm:$0xff]
        %v671 = vld [vmem:[%s481 + $0x460] sm:$0xff]
        %v672 = vld [vmem:[%s481 + $0x468] sm:$0xff]
        %v673 = vld [vmem:[%s481 + $0x470] sm:$0xff]
        %v674 = vld [vmem:[%s481 + $0x478] sm:$0xff]
        %vm675 = vcmask 261120
        %v677 = vsel %vm675, %v527, 0
        %v680 = vsel %vm675, %v530, 0
        %682 = vmatpush.msra.mxu0 %v591
        %683 = vmatpush.msra.mxu0 %v587
        %684 = vmatpush.msra.mxu0 %v583
        %685 = vmatpush.msra.mxu0 %v579
        %686 = vmatpush.msra.mxu0 %v575
        %687 = vmatpush.msra.mxu0 %v571
        %688 = vmatpush.msra.mxu0 %v567
        %689 = vmatpush.msra.mxu0 %v563
        %690 = vmatpush.msra.mxu0 %v559
        %691 = vmatpush.msra.mxu0 %v555
        %692 = vmatpush.msra.mxu0 %v551
        %693 = vmatpush.msra.mxu0 %v547
        %694 = vmatpush.msra.mxu0 %v543
        %695 = vmatpush.msra.mxu0 %v539
        %696 = vmatpush.msra.mxu0 %v535
        %697 = vmatpush.msra.mxu0 %v531
        %698 = vmatmul.f32.gmra.mxu0 %v525
        %v699 = vpop.f32.mrf.mxu0
        %v700 = vadd.f32 0.0, %v699
        %701 = vmatmul.f32.gmra.mxu0 %v528
        %v702 = vpop.f32.mrf.mxu0
        %v703 = vadd.f32 0.0, %v702
        %704 = vdwg.mxu0
        %705 = vmatpush.msra.mxu0 %v655
        %706 = vmatpush.msra.mxu0 %v651
        %707 = vmatpush.msra.mxu0 %v647
        %708 = vmatpush.msra.mxu0 %v643
        %709 = vmatpush.msra.mxu0 %v639
        %710 = vmatpush.msra.mxu0 %v635
        %711 = vmatpush.msra.mxu0 %v631
        %712 = vmatpush.msra.mxu0 %v627
        %713 = vmatpush.msra.mxu0 %v623
        %714 = vmatpush.msra.mxu0 %v619
        %715 = vmatpush.msra.mxu0 %v615
        %716 = vmatpush.msra.mxu0 %v611
        %717 = vmatpush.msra.mxu0 %v607
        %718 = vmatpush.msra.mxu0 %v603
        %719 = vmatpush.msra.mxu0 %v599
        %720 = vmatpush.msra.mxu0 %v595
        %721 = vmatmul.f32.gmra.mxu0 %v526
        %v722 = vpop.f32.mrf.mxu0
        %v723 = vadd.f32 %v700, %v722
        %724 = vmatmul.f32.gmra.mxu0 %v529
        %v725 = vpop.f32.mrf.mxu0
        %v726 = vadd.f32 %v703, %v725
        %727 = vdwg.mxu0
        %728 = vmatpush.msra.mxu0 0.0
        %729 = vmatpush.msra.mxu0 0.0
        %730 = vmatpush.msra.mxu0 0.0
        %731 = vmatpush.msra.mxu0 0.0
        %732 = vmatpush.msra.mxu0 0.0
        %733 = vmatpush.msra.mxu0 0.0
        %734 = vmatpush.msra.mxu0 0.0
        %735 = vmatpush.msra.mxu0 0.0
        %736 = vmatpush.msra.mxu0 0.0
        %737 = vmatpush.msra.mxu0 0.0
        %738 = vmatpush.msra.mxu0 0.0
        %739 = vmatpush.msra.mxu0 0.0
        %740 = vmatpush.msra.mxu0 %v671
        %741 = vmatpush.msra.mxu0 %v667
        %742 = vmatpush.msra.mxu0 %v663
        %743 = vmatpush.msra.mxu0 %v659
        %744 = vmatmul.f32.gmra.mxu0 %v677
        %v745 = vpop.f32.mrf.mxu0
        %v746 = vadd.f32 %v723, %v745
        %747 = vmatmul.f32.gmra.mxu0 %v680
        %v748 = vpop.f32.mrf.mxu0
        %v749 = vadd.f32 %v726, %v748
        %750 = vdwg.mxu0
        %751 = vmatpush.msra.mxu0 %v592
        %752 = vmatpush.msra.mxu0 %v588
        %753 = vmatpush.msra.mxu0 %v584
        %754 = vmatpush.msra.mxu0 %v580
        %755 = vmatpush.msra.mxu0 %v576
        %756 = vmatpush.msra.mxu0 %v572
        %757 = vmatpush.msra.mxu0 %v568
        %758 = vmatpush.msra.mxu0 %v564
        %759 = vmatpush.msra.mxu0 %v560
        %760 = vmatpush.msra.mxu0 %v556
        %761 = vmatpush.msra.mxu0 %v552
        %762 = vmatpush.msra.mxu0 %v548
        %763 = vmatpush.msra.mxu0 %v544
        %764 = vmatpush.msra.mxu0 %v540
        %765 = vmatpush.msra.mxu0 %v536
        %766 = vmatpush.msra.mxu0 %v532
        %767 = vmatmul.f32.gmra.mxu0 %v525
        %v768 = vpop.f32.mrf.mxu0
        %v769 = vadd.f32 0.0, %v768
        %770 = vmatmul.f32.gmra.mxu0 %v528
        %v771 = vpop.f32.mrf.mxu0
        %v772 = vadd.f32 0.0, %v771
        %773 = vdwg.mxu0
        %774 = vmatpush.msra.mxu0 %v656
        %775 = vmatpush.msra.mxu0 %v652
        %776 = vmatpush.msra.mxu0 %v648
        %777 = vmatpush.msra.mxu0 %v644
        %778 = vmatpush.msra.mxu0 %v640
        %779 = vmatpush.msra.mxu0 %v636
        %780 = vmatpush.msra.mxu0 %v632
        %781 = vmatpush.msra.mxu0 %v628
        %782 = vmatpush.msra.mxu0 %v624
        %783 = vmatpush.msra.mxu0 %v620
        %784 = vmatpush.msra.mxu0 %v616
        %785 = vmatpush.msra.mxu0 %v612
        %786 = vmatpush.msra.mxu0 %v608
        %787 = vmatpush.msra.mxu0 %v604
        %788 = vmatpush.msra.mxu0 %v600
        %789 = vmatpush.msra.mxu0 %v596
        %790 = vmatmul.f32.gmra.mxu0 %v526
        %v791 = vpop.f32.mrf.mxu0
        %v792 = vadd.f32 %v769, %v791
        %793 = vmatmul.f32.gmra.mxu0 %v529
        %v794 = vpop.f32.mrf.mxu0
        %v795 = vadd.f32 %v772, %v794
        %796 = vdwg.mxu0
        %797 = vmatpush.msra.mxu0 0.0
        %798 = vmatpush.msra.mxu0 0.0
        %799 = vmatpush.msra.mxu0 0.0
        %800 = vmatpush.msra.mxu0 0.0
        %801 = vmatpush.msra.mxu0 0.0
        %802 = vmatpush.msra.mxu0 0.0
        %803 = vmatpush.msra.mxu0 0.0
        %804 = vmatpush.msra.mxu0 0.0
        %805 = vmatpush.msra.mxu0 0.0
        %806 = vmatpush.msra.mxu0 0.0
        %807 = vmatpush.msra.mxu0 0.0
        %808 = vmatpush.msra.mxu0 0.0
        %809 = vmatpush.msra.mxu0 %v672
        %810 = vmatpush.msra.mxu0 %v668
        %811 = vmatpush.msra.mxu0 %v664
        %812 = vmatpush.msra.mxu0 %v660
        %813 = vmatmul.f32.gmra.mxu0 %v677
        %v814 = vpop.f32.mrf.mxu0
        %v815 = vadd.f32 %v792, %v814
        %816 = vmatmul.f32.gmra.mxu0 %v680
        %v817 = vpop.f32.mrf.mxu0
        %v818 = vadd.f32 %v795, %v817
        %819 = vdwg.mxu0
        %820 = vmatpush.msra.mxu0 %v593
        %821 = vmatpush.msra.mxu0 %v589
        %822 = vmatpush.msra.mxu0 %v585
        %823 = vmatpush.msra.mxu0 %v581
        %824 = vmatpush.msra.mxu0 %v577
        %825 = vmatpush.msra.mxu0 %v573
        %826 = vmatpush.msra.mxu0 %v569
        %827 = vmatpush.msra.mxu0 %v565
        %828 = vmatpush.msra.mxu0 %v561
        %829 = vmatpush.msra.mxu0 %v557
        %830 = vmatpush.msra.mxu0 %v553
        %831 = vmatpush.msra.mxu0 %v549
        %832 = vmatpush.msra.mxu0 %v545
        %833 = vmatpush.msra.mxu0 %v541
        %834 = vmatpush.msra.mxu0 %v537
        %835 = vmatpush.msra.mxu0 %v533
        %836 = vmatmul.f32.gmra.mxu0 %v525
        %v837 = vpop.f32.mrf.mxu0
        %v838 = vadd.f32 0.0, %v837
        %839 = vmatmul.f32.gmra.mxu0 %v528
        %v840 = vpop.f32.mrf.mxu0
        %v841 = vadd.f32 0.0, %v840
        %842 = vdwg.mxu0
        %843 = vmatpush.msra.mxu0 %v657
        %844 = vmatpush.msra.mxu0 %v653
        %845 = vmatpush.msra.mxu0 %v649
        %846 = vmatpush.msra.mxu0 %v645
        %847 = vmatpush.msra.mxu0 %v641
        %848 = vmatpush.msra.mxu0 %v637
        %849 = vmatpush.msra.mxu0 %v633
        %850 = vmatpush.msra.mxu0 %v629
        %851 = vmatpush.msra.mxu0 %v625
        %852 = vmatpush.msra.mxu0 %v621
        %853 = vmatpush.msra.mxu0 %v617
        %854 = vmatpush.msra.mxu0 %v613
        %855 = vmatpush.msra.mxu0 %v609
        %856 = vmatpush.msra.mxu0 %v605
        %857 = vmatpush.msra.mxu0 %v601
        %858 = vmatpush.msra.mxu0 %v597
        %859 = vmatmul.f32.gmra.mxu0 %v526
        %v860 = vpop.f32.mrf.mxu0
        %v861 = vadd.f32 %v838, %v860
        %862 = vmatmul.f32.gmra.mxu0 %v529
        %v863 = vpop.f32.mrf.mxu0
        %v864 = vadd.f32 %v841, %v863
        %865 = vdwg.mxu0
        %866 = vmatpush.msra.mxu0 0.0
        %867 = vmatpush.msra.mxu0 0.0
        %868 = vmatpush.msra.mxu0 0.0
        %869 = vmatpush.msra.mxu0 0.0
        %870 = vmatpush.msra.mxu0 0.0
        %871 = vmatpush.msra.mxu0 0.0
        %872 = vmatpush.msra.mxu0 0.0
        %873 = vmatpush.msra.mxu0 0.0
        %874 = vmatpush.msra.mxu0 0.0
        %875 = vmatpush.msra.mxu0 0.0
        %876 = vmatpush.msra.mxu0 0.0
        %877 = vmatpush.msra.mxu0 0.0
        %878 = vmatpush.msra.mxu0 %v673
        %879 = vmatpush.msra.mxu0 %v669
        %880 = vmatpush.msra.mxu0 %v665
        %881 = vmatpush.msra.mxu0 %v661
        %882 = vmatmul.f32.gmra.mxu0 %v677
        %v883 = vpop.f32.mrf.mxu0
        %v884 = vadd.f32 %v861, %v883
        %885 = vmatmul.f32.gmra.mxu0 %v680
        %v886 = vpop.f32.mrf.mxu0
        %v887 = vadd.f32 %v864, %v886
        %888 = vdwg.mxu0
        %889 = vmatpush.msra.mxu0 %v594
        %890 = vmatpush.msra.mxu0 %v590
        %891 = vmatpush.msra.mxu0 %v586
        %892 = vmatpush.msra.mxu0 %v582
        %893 = vmatpush.msra.mxu0 %v578
        %894 = vmatpush.msra.mxu0 %v574
        %895 = vmatpush.msra.mxu0 %v570
        %896 = vmatpush.msra.mxu0 %v566
        %897 = vmatpush.msra.mxu0 %v562
        %898 = vmatpush.msra.mxu0 %v558
        %899 = vmatpush.msra.mxu0 %v554
        %900 = vmatpush.msra.mxu0 %v550
        %901 = vmatpush.msra.mxu0 %v546
        %902 = vmatpush.msra.mxu0 %v542
        %903 = vmatpush.msra.mxu0 %v538
        %904 = vmatpush.msra.mxu0 %v534
        %905 = vmatmul.f32.gmra.mxu0 %v525
        %v906 = vpop.f32.mrf.mxu0
        %v907 = vadd.f32 0.0, %v906
        %908 = vmatmul.f32.gmra.mxu0 %v528
        %v909 = vpop.f32.mrf.mxu0
        %v910 = vadd.f32 0.0, %v909
        %911 = vdwg.mxu0
        %912 = vmatpush.msra.mxu0 %v658
        %913 = vmatpush.msra.mxu0 %v654
        %914 = vmatpush.msra.mxu0 %v650
        %915 = vmatpush.msra.mxu0 %v646
        %916 = vmatpush.msra.mxu0 %v642
        %917 = vmatpush.msra.mxu0 %v638
        %918 = vmatpush.msra.mxu0 %v634
        %919 = vmatpush.msra.mxu0 %v630
        %920 = vmatpush.msra.mxu0 %v626
        %921 = vmatpush.msra.mxu0 %v622
        %922 = vmatpush.msra.mxu0 %v618
        %923 = vmatpush.msra.mxu0 %v614
        %924 = vmatpush.msra.mxu0 %v610
        %925 = vmatpush.msra.mxu0 %v606
        %926 = vmatpush.msra.mxu0 %v602
        %927 = vmatpush.msra.mxu0 %v598
        %928 = vmatmul.f32.gmra.mxu0 %v526
        %v929 = vpop.f32.mrf.mxu0
        %v930 = vadd.f32 %v907, %v929
        %931 = vmatmul.f32.gmra.mxu0 %v529
        %v932 = vpop.f32.mrf.mxu0
        %v933 = vadd.f32 %v910, %v932
        %934 = vdwg.mxu0
        %935 = vmatpush.msra.mxu0 0.0
        %936 = vmatpush.msra.mxu0 0.0
        %937 = vmatpush.msra.mxu0 0.0
        %938 = vmatpush.msra.mxu0 0.0
        %939 = vmatpush.msra.mxu0 0.0
        %940 = vmatpush.msra.mxu0 0.0
        %941 = vmatpush.msra.mxu0 0.0
        %942 = vmatpush.msra.mxu0 0.0
        %943 = vmatpush.msra.mxu0 0.0
        %944 = vmatpush.msra.mxu0 0.0
        %945 = vmatpush.msra.mxu0 0.0
        %946 = vmatpush.msra.mxu0 0.0
        %947 = vmatpush.msra.mxu0 %v674
        %948 = vmatpush.msra.mxu0 %v670
        %949 = vmatpush.msra.mxu0 %v666
        %950 = vmatpush.msra.mxu0 %v662
        %951 = vmatmul.f32.gmra.mxu0 %v677
        %v952 = vpop.f32.mrf.mxu0
        %v953 = vadd.f32 %v930, %v952
        %954 = vmatmul.f32.gmra.mxu0 %v680
        %v955 = vpop.f32.mrf.mxu0
        %v956 = vadd.f32 %v933, %v955
        %957 = vdwg.mxu0
        %958 = vst [vmem:[%s498] sm:$0xff] %v746
        %959 = vst [vmem:[%s498 + $0x8] sm:$0xff] %v815
        %960 = vst [vmem:[%s498 + $0x10] sm:$0xff] %v884
        %961 = vst [vmem:[%s498 + $0x18] sm:$0xff] %v953
        %962 = vst [vmem:[%s498 + $0x20] sm:$0xff] %v749
        %963 = vst [vmem:[%s498 + $0x28] sm:$0xff] %v818
        %964 = vst [vmem:[%s498 + $0x30] sm:$0xff] %v887
        %965 = vst [vmem:[%s498 + $0x38] sm:$0xff] %v956
        %v966 = vadd.f32 %v746, %v815
        %v967 = vadd.f32 %v966, %v884
        %v968 = vadd.f32 %v967, %v953
        %969 = vadd.xlane.f32.xlu0 %v968
        %v970 = vpop.xlane.xlu0 %969
        %v971 = vadd.f32 %v749, %v818
        %v972 = vadd.f32 %v971, %v887
        %v973 = vadd.f32 %v972, %v956
        %974 = vadd.xlane.f32.xlu0 %v973
        %v975 = vpop.xlane.xlu0 %974
        %vm976 = vcmask 7168
        %977 = vst.msk [vmem:[%s519] sm:$0xff] %vm976, %v970
        %978 = vst.msk [vmem:[%s519 + $0x8] sm:$0xff] %vm976, %v975
        %v979 = vmul.f32 %v746, %v746
        %v980 = vmul.f32 %v815, %v815
        %v981 = vmul.f32 %v884, %v884
        %v982 = vmul.f32 %v953, %v953
        %v983 = vmul.f32 %v749, %v749
        %v984 = vmul.f32 %v818, %v818
        %v985 = vmul.f32 %v887, %v887
        %v986 = vmul.f32 %v956, %v956
        %v987 = vadd.f32 %v979, %v980
        %v988 = vadd.f32 %v987, %v981
        %v989 = vadd.f32 %v988, %v982
        %990 = vadd.xlane.f32.xlu0 %v989
        %v991 = vpop.xlane.xlu0 %990
        %v992 = vadd.f32 %v983, %v984
        %v993 = vadd.f32 %v992, %v985
        %v994 = vadd.f32 %v993, %v986
        %995 = vadd.xlane.f32.xlu0 %v994
        %v996 = vpop.xlane.xlu0 %995
        %997 = vst.msk [vmem:[%s524] sm:$0xff] %vm976, %v991
        %998 = vst.msk [vmem:[%s524 + $0x8] sm:$0xff] %vm976, %v996
        %s999 = sand.u32 %s71, 1
        %s1000 = sand.u32 %s71, 1
        %s1001 = smul.addr %s1000, 64
        %s1002 = scalar_lea.vmem [#allocation3], %s1001
        %p1003 = scmp.lt.s32.totalorder %s16, 3
        %s1004 = scalar_select %p1003, %s16, 3
        %s1005 = smul.addr %s1004, 2
        %s1006 = smul.addr %s1005, 8
        %s1007 = scalar_lea.vmem %s3, %s1006
        %p1008 = scmp.lt.s32.totalorder %s16, 3
        %s1009 = scalar_select %p1008, %s16, 3
        %s1010 = smul.addr %s1009, 2
        %s1011 = smul.addr %s1010, 8
        %s1012 = scalar_lea.vmem %s4, %s1011
        // Predicated region
        $region52: #{_lambda_.35} parent=46 // pred_check
          %p1013 = pneg %p81
        $region53: #{_lambda_.35} parent=46 // pred_check_branch
          %1015 = sbr.rel (%p1013) target = $region55
        $region54: #{_lambda_.35} parent=46 // pred_region
          %s1016 = smul.u32 4, %s16
          %s1017 = smul.addr %s1016, 8
          %s1018 = scalar_lea.vmem %s2, %s1017
          // Predicated region
          $region56: #{_lambda_.35} parent=54 // pred_check
            _
          $region57: #{_lambda_.35} parent=54 // pred_check_branch
            %1020 = sbr.rel (0) target = $region59
          $region58: #{_lambda_.35} parent=54 // pred_region
            // Predicated region
            $region60: #{_lambda_.35} parent=58 // pred_check
              _
            $region61: #{_lambda_.35} parent=58 // pred_check_branch
              %1022 = sbr.rel (0) target = $region63
            $region62: #{_lambda_.35} parent=58 // pred_region
              loop: start=0, step=1, limit=1
              $region64: #{_lambda_.35} parent=62 // loop_pre_header
                _
              $region65: #{_lambda_.35} parent=62 // loop_header
                %s1024 = sphi 0, %s1028
                %p1025 = scmp.ge.s32.totalorder %s1024, 1
                %s1029 = sphi %s1002, %s1002
                %s1030 = sphi %s1018, %s1018
              $region66: #{_lambda_.35} parent=62 // loop_header_branch
                %1027 = sbr.rel (%p1025) target = $region70
              $region67: #{_lambda_.35} parent=62 // loop_body
                %v1031 = vld [vmem:[%s1029] sm:$0xff]
                %1032 = vst [vmem:[%s1030] sm:$0xff] %v1031
                %v1033 = vld [vmem:[%s1029 + $0x8] sm:$0xff]
                %1034 = vst [vmem:[%s1030 + $0x8] sm:$0xff] %v1033
                %v1035 = vld [vmem:[%s1029 + $0x10] sm:$0xff]
                %1036 = vst [vmem:[%s1030 + $0x10] sm:$0xff] %v1035
                %v1037 = vld [vmem:[%s1029 + $0x18] sm:$0xff]
                %1038 = vst [vmem:[%s1030 + $0x18] sm:$0xff] %v1037
                %v1039 = vld [vmem:[%s1029 + $0x20] sm:$0xff]
                %1040 = vst [vmem:[%s1030 + $0x80] sm:$0xff] %v1039
                %v1041 = vld [vmem:[%s1029 + $0x28] sm:$0xff]
                %1042 = vst [vmem:[%s1030 + $0x88] sm:$0xff] %v1041
                %v1043 = vld [vmem:[%s1029 + $0x30] sm:$0xff]
                %1044 = vst [vmem:[%s1030 + $0x90] sm:$0xff] %v1043
                %v1045 = vld [vmem:[%s1029 + $0x38] sm:$0xff]
                %1046 = vst [vmem:[%s1030 + $0x98] sm:$0xff] %v1045
              $region68: #{_lambda_.35} parent=62 // loop_footer
                %s1028 = sadd.s32 1, %s1024
              $region69: #{_lambda_.35} parent=62 // loop_footer_branch
                %1023 = sbr.rel target = $region65
              $region70: #{_lambda_.35} parent=62 // loop_exit
                _
            $region63: #{_lambda_.35} parent=58 // pred_fallthru
              _
            // Predicated region
            $region71: #{_lambda_.35} parent=58 // pred_check
              _
            $region72: #{_lambda_.35} parent=58 // pred_check_branch
              %1048 = sbr.rel target = $region74
            $region73: #{_lambda_.35} parent=58 // pred_region
              _
            $region74: #{_lambda_.35} parent=58 // pred_fallthru
              _
          $region59: #{_lambda_.35} parent=54 // pred_fallthru
            _
          %1049 = vnop
        $region55: #{_lambda_.35} parent=46 // pred_fallthru
          _
        // Predicated region
        $region75: #{_lambda_.35} parent=46 // pred_check
          %p1050 = pneg %p107
        $region76: #{_lambda_.35} parent=46 // pred_check_branch
          %1052 = sbr.rel (%p1050) target = $region78
        $region77: #{_lambda_.35} parent=46 // pred_region
          _
        $region78: #{_lambda_.35} parent=46 // pred_fallthru
          _
        // Predicated region
        $region79: #{_lambda_.35} parent=46 // pred_check
          %p1053 = pneg %p133
        $region80: #{_lambda_.35} parent=46 // pred_check_branch
          %1055 = sbr.rel (%p1053) target = $region82
        $region81: #{_lambda_.35} parent=46 // pred_region
          _
        $region82: #{_lambda_.35} parent=46 // pred_fallthru
          _
      $region47: #{_lambda_.35} parent=5 // pred_fallthru
        _
      %p1056 = scmp.le.s32.totalorder 2, %s11
      // Predicated region
      $region83: #{_lambda_.35} parent=5 // pred_check
        %p1057 = pneg %p1056
      $region84: #{_lambda_.35} parent=5 // pred_check_branch
        %1059 = sbr.rel (%p1057) target = $region86
      $region85: #{_lambda_.35} parent=5 // pred_region
        %s1060 = ssub.s32 %s11, 2
        // Predicated region
        $region87: #{_lambda_.35} parent=85 // pred_check
          %p1061 = pneg %p87
        $region88: #{_lambda_.35} parent=85 // pred_check_branch
          %1063 = sbr.rel (%p1061) target = $region90
        $region89: #{_lambda_.35} parent=85 // pred_region
          %s1064 = sand.u32 %s72, 1
          %s1065 = sand.u32 %s72, 1
          %s1066 = smul.addr %s1065, 64
          %s1067 = scalar_lea.vmem [#allocation3], %s1066
        $region90: #{_lambda_.35} parent=85 // pred_fallthru
          _
        // Predicated region
        $region91: #{_lambda_.35} parent=85 // pred_check
          %p1068 = pneg %p113
        $region92: #{_lambda_.35} parent=85 // pred_check_branch
          %1070 = sbr.rel (%p1068) target = $region94
        $region93: #{_lambda_.35} parent=85 // pred_region
          %p1071 = scmp.lt.s32.totalorder %s17, 3
          %s1072 = scalar_select %p1071, %s17, 3
          %s1073 = smul.addr %s1072, 2
          %s1074 = smul.addr %s1073, 8
          %s1075 = scalar_lea.vmem %s3, %s1074
        $region94: #{_lambda_.35} parent=85 // pred_fallthru
          _
        // Predicated region
        $region95: #{_lambda_.35} parent=85 // pred_check
          %p1076 = pneg %p139
        $region96: #{_lambda_.35} parent=85 // pred_check_branch
          %1078 = sbr.rel (%p1076) target = $region98
        $region97: #{_lambda_.35} parent=85 // pred_region
          %p1079 = scmp.lt.s32.totalorder %s17, 3
          %s1080 = scalar_select %p1079, %s17, 3
          %s1081 = smul.addr %s1080, 2
          %s1082 = smul.addr %s1081, 8
          %s1083 = scalar_lea.vmem %s4, %s1082
        $region98: #{_lambda_.35} parent=85 // pred_fallthru
          _
      $region86: #{_lambda_.35} parent=5 // pred_fallthru
        _
    $region6: #{_lambda_.35} parent=1 // loop_footer
      %s15 = sadd.s32 1, %s11
    $region7: #{_lambda_.35} parent=1 // loop_footer_branch
      %10 = sbr.rel target = $region3
    $region8: #{_lambda_.35} parent=1 // loop_exit
      _

// kernel: _lambda_.37
$region0: #{_lambda_.37}
  #allocation0 [shape = 'u32[]', space=smem, size = 0x4, offset = 0x4, fixed_abs, tag = 'smem constant byte address 0x4 - core index']
  #allocation1 [shape = 'u32[72,128]{1,0:T(1,128)}', space=vmem, size = 0x9000, scoped, tag = 'internal scratch']
  %s0 = inlined_call_operand.vmem [shape: f32[3,784], index: 0, kind: input, shape index: {}]
  %s1 = inlined_call_operand.vmem [shape: f32[784,2048], index: 1, kind: input, shape index: {}]
  %s2 = inlined_call_operand.vmem [shape: f32[3,1], index: 2, kind: input, shape index: {}]
  %s3 = inlined_call_operand.vmem [shape: f32[3,2048], index: 3, kind: output, shape index: {}]
  %s4 = sld [smem:[#allocation0]]
  $region68: #{_lambda_.37} parent=0
    _
  %s6 = ssub.s32 1, %s4
  %s7 = scalar_select 0, %s6, %s4
  $region1: #{_lambda_.37} parent=0
    #allocation2 [shape = 'u8[3211264]{0}', space=vmem, size = 0x310000, scoped, tag = 'input window, operand 1']
    loop: start=0, step=1, limit=6
    $region2: #{_lambda_.37} parent=1 // loop_pre_header
      _
    $region3: #{_lambda_.37} parent=1 // loop_header
      %s9 = sphi 0, %s13
      %p10 = scmp.ge.s32.totalorder %s9, 6
      %s17 = sphi 0, %s17
      %s19 = sphi 0, %s17
      %s20 = sphi 0, %s19
      %s34 = sphi 0, %s20
      %s40 = sphi 0, %s42
      %s43 = sphi 0, %s40
      %s44 = sphi 0, %s43
      %s60 = sphi 0, %s44
      %s64 = sphi 0, %s64
      %s66 = sphi 0, %s64
      %s67 = sphi 0, %s66
      %s81 = sphi 0, %s67
      %s87 = sphi 0, %s89
      %s90 = sphi 0, %s87
      %s91 = sphi 0, %s90
      %s107 = sphi 0, %s91
    $region4: #{_lambda_.37} parent=1 // loop_header_branch
      %12 = sbr.rel (%p10) target = $region8
    $region5: #{_lambda_.37} parent=1 // loop_body
      %s14 = ssub.s32 %s9, 1
      %s15 = ssub.s32 %s9, 2
      %s16 = sadd.s32 %s9, 1
      %s18 = sadd.s32 %s17, 1
      %p21 = scmp.eq.s32.totalorder %s9, 3
      %p22 = scmp.ne.s32.totalorder %s17, %s19
      %p23 = scmp.eq.s32.totalorder %s9, 0
      %p24 = por %p22, %p23
      %p25 = scmp.ne.s32.totalorder %s17, %s19
      %p26 = scmp.eq.s32.totalorder %s14, 3
      %p27 = por %p25, %p26
      %p28 = scmp.ne.s32.totalorder %s19, %s20
      %p29 = scmp.eq.s32.totalorder %s14, 0
      %p30 = por %p28, %p29
      %p31 = scmp.ne.s32.totalorder %s19, %s20
      %p32 = scmp.eq.s32.totalorder %s15, 3
      %p33 = por %p31, %p32
      %p35 = scmp.ne.s32.totalorder %s20, %s34
      %p36 = scmp.eq.s32.totalorder %s15, 0
      %p37 = por %p35, %p36
      %s38 = ssub.s32 %s9, %s16
      %p39 = scmp.eq.s32.totalorder %s38, 0
      %s41 = sadd.s32 %s40, 1
      %s42 = scalar_select %p39, %s40, %s41
      %p45 = pneg %p39
      %p46 = scmp.eq.s32.totalorder %s9, 3
      %p47 = por %p45, %p46
      %p48 = scmp.ne.s32.totalorder %s40, %s43
      %p49 = scmp.eq.s32.totalorder %s9, 0
      %p50 = por %p48, %p49
      %p51 = scmp.ne.s32.totalorder %s40, %s43
      %p52 = scmp.eq.s32.totalorder %s14, 3
      %p53 = por %p51, %p52
      %p54 = scmp.ne.s32.totalorder %s43, %s44
      %p55 = scmp.eq.s32.totalorder %s14, 0
      %p56 = por %p54, %p55
      %p57 = scmp.ne.s32.totalorder %s43, %s44
      %p58 = scmp.eq.s32.totalorder %s15, 3
      %p59 = por %p57, %p58
      %p61 = scmp.ne.s32.totalorder %s44, %s60
      %p62 = scmp.eq.s32.totalorder %s15, 0
      %p63 = por %p61, %p62
      %s65 = sadd.s32 %s64, 1
      %p68 = scmp.eq.s32.totalorder %s9, 3
      %p69 = scmp.ne.s32.totalorder %s64, %s66
      %p70 = scmp.eq.s32.totalorder %s9, 0
      %p71 = por %p69, %p70
      %p72 = scmp.ne.s32.totalorder %s64, %s66
      %p73 = scmp.eq.s32.totalorder %s14, 3
      %p74 = por %p72, %p73
      %p75 = scmp.ne.s32.totalorder %s66, %s67
      %p76 = scmp.eq.s32.totalorder %s14, 0
      %p77 = por %p75, %p76
      %p78 = scmp.ne.s32.totalorder %s66, %s67
      %p79 = scmp.eq.s32.totalorder %s15, 3
      %p80 = por %p78, %p79
      %p82 = scmp.ne.s32.totalorder %s67, %s81
      %p83 = scmp.eq.s32.totalorder %s15, 0
      %p84 = por %p82, %p83
      %s85 = ssub.s32 %s9, %s16
      %p86 = scmp.eq.s32.totalorder %s85, 0
      %s88 = sadd.s32 %s87, 1
      %s89 = scalar_select %p86, %s87, %s88
      %p92 = pneg %p86
      %p93 = scmp.eq.s32.totalorder %s9, 3
      %p94 = por %p92, %p93
      %p95 = scmp.ne.s32.totalorder %s87, %s90
      %p96 = scmp.eq.s32.totalorder %s9, 0
      %p97 = por %p95, %p96
      %p98 = scmp.ne.s32.totalorder %s87, %s90
      %p99 = scmp.eq.s32.totalorder %s14, 3
      %p100 = por %p98, %p99
      %p101 = scmp.ne.s32.totalorder %s90, %s91
      %p102 = scmp.eq.s32.totalorder %s14, 0
      %p103 = por %p101, %p102
      %p104 = scmp.ne.s32.totalorder %s90, %s91
      %p105 = scmp.eq.s32.totalorder %s15, 3
      %p106 = por %p104, %p105
      %p108 = scmp.ne.s32.totalorder %s91, %s107
      %p109 = scmp.eq.s32.totalorder %s15, 0
      %p110 = por %p108, %p109
      %p111 = scmp.le.s32.totalorder 1, %s9
      %p112 = scmp.lt.s32.totalorder %s9, 5
      %p113 = pnand %p111, %p112
      %p114 = pneg %p113
      // Predicated region
      $region9: #{_lambda_.37} parent=5 // pred_check
        _
      $region10: #{_lambda_.37} parent=5 // pred_check_branch
        %116 = sbr.rel (%p113) target = $region12
      $region11: #{_lambda_.37} parent=5 // pred_region
        %s117 = ssub.s32 %s9, 1
        // Predicated region
        $region13: #{_lambda_.37} parent=11 // pred_check
          %p118 = pneg %p30
        $region14: #{_lambda_.37} parent=11 // pred_check_branch
          %120 = sbr.rel (%p118) target = $region16
        $region15: #{_lambda_.37} parent=11 // pred_region
          _
        $region16: #{_lambda_.37} parent=11 // pred_fallthru
          _
        // Predicated region
        $region17: #{_lambda_.37} parent=11 // pred_check
          %p121 = pneg %p77
        $region18: #{_lambda_.37} parent=11 // pred_check_branch
          %123 = sbr.rel (%p121) target = $region20
        $region19: #{_lambda_.37} parent=11 // pred_region
          _
        $region20: #{_lambda_.37} parent=11 // pred_fallthru
          _
      $region12: #{_lambda_.37} parent=5 // pred_fallthru
        _
      %p124 = scmp.lt.s32.totalorder %s9, 4
      // Predicated region
      $region21: #{_lambda_.37} parent=5 // pred_check
        %p125 = pneg %p124
      $region22: #{_lambda_.37} parent=5 // pred_check_branch
        %127 = sbr.rel (%p125) target = $region24
      $region23: #{_lambda_.37} parent=5 // pred_region
        // Predicated region
        $region25: #{_lambda_.37} parent=23 // pred_check
          %p128 = pneg %p50
        $region26: #{_lambda_.37} parent=23 // pred_check_branch
          %130 = sbr.rel (%p128) target = $region28
        $region27: #{_lambda_.37} parent=23 // pred_region
          %s131 = sand.u32 %s40, 1
          %s132 = sand.u32 %s40, 1
          %s133 = smul.addr %s132, 3136
          %s134 = scalar_lea.vmem [#allocation2], %s133
          %s135 = smul.u32 4, %s9
          %s136 = smul.addr %s135, 8
          %s137 = scalar_lea.vmem %s1, %s136
          // Predicated region
          $region29: #{_lambda_.37} parent=27 // pred_check
            _
          $region30: #{_lambda_.37} parent=27 // pred_check_branch
            %139 = sbr.rel (0) target = $region32
          $region31: #{_lambda_.37} parent=27 // pred_region
            // Predicated region
            $region33: #{_lambda_.37} parent=31 // pred_check
              _
            $region34: #{_lambda_.37} parent=31 // pred_check_branch
              %141 = sbr.rel (0) target = $region36
            $region35: #{_lambda_.37} parent=31 // pred_region
              loop: start=0, step=1, limit=1
              $region37: #{_lambda_.37} parent=35 // loop_pre_header
                _
              $region38: #{_lambda_.37} parent=35 // loop_header
                %s143 = sphi 0, %s147
                %p144 = scmp.ge.s32.totalorder %s143, 1
                %s148 = sphi %s137, %s137
                %s149 = sphi %s134, %s134
              $region39: #{_lambda_.37} parent=35 // loop_header_branch
                %146 = sbr.rel (%p144) target = $region43
              $region40: #{_lambda_.37} parent=35 // loop_body
                %v150 = vld [vmem:[%s148] sm:$0xff]
                %151 = vst [vmem:[%s149] sm:$0xff] %v150
                %v152 = vld [vmem:[%s148 + $0x8] sm:$0xff]
                %153 = vst [vmem:[%s149 + $0x8] sm:$0xff] %v152
                %v154 = vld [vmem:[%s148 + $0x10] sm:$0xff]
                %155 = vst [vmem:[%s149 + $0x10] sm:$0xff] %v154
                %v156 = vld [vmem:[%s148 + $0x18] sm:$0xff]
                %157 = vst [vmem:[%s149 + $0x18] sm:$0xff] %v156
                %v158 = vld [vmem:[%s148 + $0x80] sm:$0xff]
                %159 = vst [vmem:[%s149 + $0x20] sm:$0xff] %v158
                %v160 = vld [vmem:[%s148 + $0x88] sm:$0xff]
                %161 = vst [vmem:[%s149 + $0x28] sm:$0xff] %v160
                %v162 = vld [vmem:[%s148 + $0x90] sm:$0xff]
                %163 = vst [vmem:[%s149 + $0x30] sm:$0xff] %v162
                %v164 = vld [vmem:[%s148 + $0x98] sm:$0xff]
                %165 = vst [vmem:[%s149 + $0x38] sm:$0xff] %v164
                %v166 = vld [vmem:[%s148 + $0x100] sm:$0xff]
                %167 = vst [vmem:[%s149 + $0x40] sm:$0xff] %v166
                %v168 = vld [vmem:[%s148 + $0x108] sm:$0xff]
                %169 = vst [vmem:[%s149 + $0x48] sm:$0xff] %v168
                %v170 = vld [vmem:[%s148 + $0x110] sm:$0xff]
                %171 = vst [vmem:[%s149 + $0x50] sm:$0xff] %v170
                %v172 = vld [vmem:[%s148 + $0x118] sm:$0xff]
                %173 = vst [vmem:[%s149 + $0x58] sm:$0xff] %v172
                %v174 = vld [vmem:[%s148 + $0x180] sm:$0xff]
                %175 = vst [vmem:[%s149 + $0x60] sm:$0xff] %v174
                %v176 = vld [vmem:[%s148 + $0x188] sm:$0xff]
                %177 = vst [vmem:[%s149 + $0x68] sm:$0xff] %v176
                %v178 = vld [vmem:[%s148 + $0x190] sm:$0xff]
                %179 = vst [vmem:[%s149 + $0x70] sm:$0xff] %v178
                %v180 = vld [vmem:[%s148 + $0x198] sm:$0xff]
                %181 = vst [vmem:[%s149 + $0x78] sm:$0xff] %v180
                %v182 = vld [vmem:[%s148 + $0x200] sm:$0xff]
                %183 = vst [vmem:[%s149 + $0x80] sm:$0xff] %v182
                %v184 = vld [vmem:[%s148 + $0x208] sm:$0xff]
                %185 = vst [vmem:[%s149 + $0x88] sm:$0xff] %v184
                %v186 = vld [vmem:[%s148 + $0x210] sm:$0xff]
                %187 = vst [vmem:[%s149 + $0x90] sm:$0xff] %v186
                %v188 = vld [vmem:[%s148 + $0x218] sm:$0xff]
                %189 = vst [vmem:[%s149 + $0x98] sm:$0xff] %v188
                %v190 = vld [vmem:[%s148 + $0x280] sm:$0xff]
                %191 = vst [vmem:[%s149 + $0xa0] sm:$0xff] %v190
                %v192 = vld [vmem:[%s148 + $0x288] sm:$0xff]
                %193 = vst [vmem:[%s149 + $0xa8] sm:$0xff] %v192
                %v194 = vld [vmem:[%s148 + $0x290] sm:$0xff]
                %195 = vst [vmem:[%s149 + $0xb0] sm:$0xff] %v194
                %v196 = vld [vmem:[%s148 + $0x298] sm:$0xff]
                %197 = vst [vmem:[%s149 + $0xb8] sm:$0xff] %v196
                %v198 = vld [vmem:[%s148 + $0x300] sm:$0xff]
                %199 = vst [vmem:[%s149 + $0xc0] sm:$0xff] %v198
                %v200 = vld [vmem:[%s148 + $0x308] sm:$0xff]
                %201 = vst [vmem:[%s149 + $0xc8] sm:$0xff] %v200
                %v202 = vld [vmem:[%s148 + $0x310] sm:$0xff]
                %203 = vst [vmem:[%s149 + $0xd0] sm:$0xff] %v202
                %v204 = vld [vmem:[%s148 + $0x318] sm:$0xff]
                %205 = vst [vmem:[%s149 + $0xd8] sm:$0xff] %v204
                %v206 = vld [vmem:[%s148 + $0x380] sm:$0xff]
                %207 = vst [vmem:[%s149 + $0xe0] sm:$0xff] %v206
                %v208 = vld [vmem:[%s148 + $0x388] sm:$0xff]
                %209 = vst [vmem:[%s149 + $0xe8] sm:$0xff] %v208
                %v210 = vld [vmem:[%s148 + $0x390] sm:$0xff]
                %211 = vst [vmem:[%s149 + $0xf0] sm:$0xff] %v210
                %v212 = vld [vmem:[%s148 + $0x398] sm:$0xff]
                %213 = vst [vmem:[%s149 + $0xf8] sm:$0xff] %v212
                %v214 = vld [vmem:[%s148 + $0x400] sm:$0xff]
                %215 = vst [vmem:[%s149 + $0x100] sm:$0xff] %v214
                %v216 = vld [vmem:[%s148 + $0x408] sm:$0xff]
                %217 = vst [vmem:[%s149 + $0x108] sm:$0xff] %v216
                %v218 = vld [vmem:[%s148 + $0x410] sm:$0xff]
                %219 = vst [vmem:[%s149 + $0x110] sm:$0xff] %v218
                %v220 = vld [vmem:[%s148 + $0x418] sm:$0xff]
                %221 = vst [vmem:[%s149 + $0x118] sm:$0xff] %v220
                %v222 = vld [vmem:[%s148 + $0x480] sm:$0xff]
                %223 = vst [vmem:[%s149 + $0x120] sm:$0xff] %v222
                %v224 = vld [vmem:[%s148 + $0x488] sm:$0xff]
                %225 = vst [vmem:[%s149 + $0x128] sm:$0xff] %v224
                %v226 = vld [vmem:[%s148 + $0x490] sm:$0xff]
                %227 = vst [vmem:[%s149 + $0x130] sm:$0xff] %v226
                %v228 = vld [vmem:[%s148 + $0x498] sm:$0xff]
                %229 = vst [vmem:[%s149 + $0x138] sm:$0xff] %v228
                %v230 = vld [vmem:[%s148 + $0x500] sm:$0xff]
                %231 = vst [vmem:[%s149 + $0x140] sm:$0xff] %v230
                %v232 = vld [vmem:[%s148 + $0x508] sm:$0xff]
                %233 = vst [vmem:[%s149 + $0x148] sm:$0xff] %v232
                %v234 = vld [vmem:[%s148 + $0x510] sm:$0xff]
                %235 = vst [vmem:[%s149 + $0x150] sm:$0xff] %v234
                %v236 = vld [vmem:[%s148 + $0x518] sm:$0xff]
                %237 = vst [vmem:[%s149 + $0x158] sm:$0xff] %v236
                %v238 = vld [vmem:[%s148 + $0x580] sm:$0xff]
                %239 = vst [vmem:[%s149 + $0x160] sm:$0xff] %v238
                %v240 = vld [vmem:[%s148 + $0x588] sm:$0xff]
                %241 = vst [vmem:[%s149 + $0x168] sm:$0xff] %v240
                %v242 = vld [vmem:[%s148 + $0x590] sm:$0xff]
                %243 = vst [vmem:[%s149 + $0x170] sm:$0xff] %v242
                %v244 = vld [vmem:[%s148 + $0x598] sm:$0xff]
                %245 = vst [vmem:[%s149 + $0x178] sm:$0xff] %v244
                %v246 = vld [vmem:[%s148 + $0x600] sm:$0xff]
                %247 = vst [vmem:[%s149 + $0x180] sm:$0xff] %v246
                %v248 = vld [vmem:[%s148 + $0x608] sm:$0xff]
                %249 = vst [vmem:[%s149 + $0x188] sm:$0xff] %v248
                %v250 = vld [vmem:[%s148 + $0x610] sm:$0xff]
                %251 = vst [vmem:[%s149 + $0x190] sm:$0xff] %v250
                %v252 = vld [vmem:[%s148 + $0x618] sm:$0xff]
                %253 = vst [vmem:[%s149 + $0x198] sm:$0xff] %v252
                %v254 = vld [vmem:[%s148 + $0x680] sm:$0xff]
                %255 = vst [vmem:[%s149 + $0x1a0] sm:$0xff] %v254
                %v256 = vld [vmem:[%s148 + $0x688] sm:$0xff]
                %257 = vst [vmem:[%s149 + $0x1a8] sm:$0xff] %v256
                %v258 = vld [vmem:[%s148 + $0x690] sm:$0xff]
                %259 = vst [vmem:[%s149 + $0x1b0] sm:$0xff] %v258
                %v260 = vld [vmem:[%s148 + $0x698] sm:$0xff]
                %261 = vst [vmem:[%s149 + $0x1b8] sm:$0xff] %v260
                %v262 = vld [vmem:[%s148 + $0x700] sm:$0xff]
                %263 = vst [vmem:[%s149 + $0x1c0] sm:$0xff] %v262
                %v264 = vld [vmem:[%s148 + $0x708] sm:$0xff]
                %265 = vst [vmem:[%s149 + $0x1c8] sm:$0xff] %v264
                %v266 = vld [vmem:[%s148 + $0x710] sm:$0xff]
                %267 = vst [vmem:[%s149 + $0x1d0] sm:$0xff] %v266
                %v268 = vld [vmem:[%s148 + $0x718] sm:$0xff]
                %269 = vst [vmem:[%s149 + $0x1d8] sm:$0xff] %v268
                %v270 = vld [vmem:[%s148 + $0x780] sm:$0xff]
                %271 = vst [vmem:[%s149 + $0x1e0] sm:$0xff] %v270
                %v272 = vld [vmem:[%s148 + $0x788] sm:$0xff]
                %273 = vst [vmem:[%s149 + $0x1e8] sm:$0xff] %v272
                %v274 = vld [vmem:[%s148 + $0x790] sm:$0xff]
                %275 = vst [vmem:[%s149 + $0x1f0] sm:$0xff] %v274
                %v276 = vld [vmem:[%s148 + $0x798] sm:$0xff]
                %277 = vst [vmem:[%s149 + $0x1f8] sm:$0xff] %v276
                %v278 = vld [vmem:[%s148 + $0x800] sm:$0xff]
                %279 = vst [vmem:[%s149 + $0x200] sm:$0xff] %v278
                %v280 = vld [vmem:[%s148 + $0x808] sm:$0xff]
                %281 = vst [vmem:[%s149 + $0x208] sm:$0xff] %v280
                %v282 = vld [vmem:[%s148 + $0x810] sm:$0xff]
                %283 = vst [vmem:[%s149 + $0x210] sm:$0xff] %v282
                %v284 = vld [vmem:[%s148 + $0x818] sm:$0xff]
                %285 = vst [vmem:[%s149 + $0x218] sm:$0xff] %v284
                %v286 = vld [vmem:[%s148 + $0x880] sm:$0xff]
                %287 = vst [vmem:[%s149 + $0x220] sm:$0xff] %v286
                %v288 = vld [vmem:[%s148 + $0x888] sm:$0xff]
                %289 = vst [vmem:[%s149 + $0x228] sm:$0xff] %v288
                %v290 = vld [vmem:[%s148 + $0x890] sm:$0xff]
                %291 = vst [vmem:[%s149 + $0x230] sm:$0xff] %v290
                %v292 = vld [vmem:[%s148 + $0x898] sm:$0xff]
                %293 = vst [vmem:[%s149 + $0x238] sm:$0xff] %v292
                %v294 = vld [vmem:[%s148 + $0x900] sm:$0xff]
                %295 = vst [vmem:[%s149 + $0x240] sm:$0xff] %v294
                %v296 = vld [vmem:[%s148 + $0x908] sm:$0xff]
                %297 = vst [vmem:[%s149 + $0x248] sm:$0xff] %v296
                %v298 = vld [vmem:[%s148 + $0x910] sm:$0xff]
                %299 = vst [vmem:[%s149 + $0x250] sm:$0xff] %v298
                %v300 = vld [vmem:[%s148 + $0x918] sm:$0xff]
                %301 = vst [vmem:[%s149 + $0x258] sm:$0xff] %v300
                %v302 = vld [vmem:[%s148 + $0x980] sm:$0xff]
                %303 = vst [vmem:[%s149 + $0x260] sm:$0xff] %v302
                %v304 = vld [vmem:[%s148 + $0x988] sm:$0xff]
                %305 = vst [vmem:[%s149 + $0x268] sm:$0xff] %v304
                %v306 = vld [vmem:[%s148 + $0x990] sm:$0xff]
                %307 = vst [vmem:[%s149 + $0x270] sm:$0xff] %v306
                %v308 = vld [vmem:[%s148 + $0x998] sm:$0xff]
                %309 = vst [vmem:[%s149 + $0x278] sm:$0xff] %v308
                %v310 = vld [vmem:[%s148 + $0xa00] sm:$0xff]
                %311 = vst [vmem:[%s149 + $0x280] sm:$0xff] %v310
                %v312 = vld [vmem:[%s148 + $0xa08] sm:$0xff]
                %313 = vst [vmem:[%s149 + $0x288] sm:$0xff] %v312
                %v314 = vld [vmem:[%s148 + $0xa10] sm:$0xff]
                %315 = vst [vmem:[%s149 + $0x290] sm:$0xff] %v314
                %v316 = vld [vmem:[%s148 + $0xa18] sm:$0xff]
                %317 = vst [vmem:[%s149 + $0x298] sm:$0xff] %v316
                %v318 = vld [vmem:[%s148 + $0xa80] sm:$0xff]
                %319 = vst [vmem:[%s149 + $0x2a0] sm:$0xff] %v318
                %v320 = vld [vmem:[%s148 + $0xa88] sm:$0xff]
                %321 = vst [vmem:[%s149 + $0x2a8] sm:$0xff] %v320
                %v322 = vld [vmem:[%s148 + $0xa90] sm:$0xff]
                %323 = vst [vmem:[%s149 + $0x2b0] sm:$0xff] %v322
                %v324 = vld [vmem:[%s148 + $0xa98] sm:$0xff]
                %325 = vst [vmem:[%s149 + $0x2b8] sm:$0xff] %v324
                %v326 = vld [vmem:[%s148 + $0xb00] sm:$0xff]
                %327 = vst [vmem:[%s149 + $0x2c0] sm:$0xff] %v326
                %v328 = vld [vmem:[%s148 + $0xb08] sm:$0xff]
                %329 = vst [vmem:[%s149 + $0x2c8] sm:$0xff] %v328
                %v330 = vld [vmem:[%s148 + $0xb10] sm:$0xff]
                %331 = vst [vmem:[%s149 + $0x2d0] sm:$0xff] %v330
                %v332 = vld [vmem:[%s148 + $0xb18] sm:$0xff]
                %333 = vst [vmem:[%s149 + $0x2d8] sm:$0xff] %v332
                %v334 = vld [vmem:[%s148 + $0xb80] sm:$0xff]
                %335 = vst [vmem:[%s149 + $0x2e0] sm:$0xff] %v334
                %v336 = vld [vmem:[%s148 + $0xb88] sm:$0xff]
                %337 = vst [vmem:[%s149 + $0x2e8] sm:$0xff] %v336
                %v338 = vld [vmem:[%s148 + $0xb90] sm:$0xff]
                %339 = vst [vmem:[%s149 + $0x2f0] sm:$0xff] %v338
                %v340 = vld [vmem:[%s148 + $0xb98] sm:$0xff]
                %341 = vst [vmem:[%s149 + $0x2f8] sm:$0xff] %v340
                %v342 = vld [vmem:[%s148 + $0xc00] sm:$0xff]
                %343 = vst [vmem:[%s149 + $0x300] sm:$0xff] %v342
                %v344 = vld [vmem:[%s148 + $0xc08] sm:$0xff]
                %345 = vst [vmem:[%s149 + $0x308] sm:$0xff] %v344
                %v346 = vld [vmem:[%s148 + $0xc10] sm:$0xff]
                %347 = vst [vmem:[%s149 + $0x310] sm:$0xff] %v346
                %v348 = vld [vmem:[%s148 + $0xc18] sm:$0xff]
                %349 = vst [vmem:[%s149 + $0x318] sm:$0xff] %v348
                %v350 = vld [vmem:[%s148 + $0xc80] sm:$0xff]
                %351 = vst [vmem:[%s149 + $0x320] sm:$0xff] %v350
                %v352 = vld [vmem:[%s148 + $0xc88] sm:$0xff]
                %353 = vst [vmem:[%s149 + $0x328] sm:$0xff] %v352
                %v354 = vld [vmem:[%s148 + $0xc90] sm:$0xff]
                %355 = vst [vmem:[%s149 + $0x330] sm:$0xff] %v354
                %v356 = vld [vmem:[%s148 + $0xc98] sm:$0xff]
                %357 = vst [vmem:[%s149 + $0x338] sm:$0xff] %v356
                %v358 = vld [vmem:[%s148 + $0xd00] sm:$0xff]
                %359 = vst [vmem:[%s149 + $0x340] sm:$0xff] %v358
                %v360 = vld [vmem:[%s148 + $0xd08] sm:$0xff]
                %361 = vst [vmem:[%s149 + $0x348] sm:$0xff] %v360
                %v362 = vld [vmem:[%s148 + $0xd10] sm:$0xff]
                %363 = vst [vmem:[%s149 + $0x350] sm:$0xff] %v362
                %v364 = vld [vmem:[%s148 + $0xd18] sm:$0xff]
                %365 = vst [vmem:[%s149 + $0x358] sm:$0xff] %v364
                %v366 = vld [vmem:[%s148 + $0xd80] sm:$0xff]
                %367 = vst [vmem:[%s149 + $0x360] sm:$0xff] %v366
                %v368 = vld [vmem:[%s148 + $0xd88] sm:$0xff]
                %369 = vst [vmem:[%s149 + $0x368] sm:$0xff] %v368
                %v370 = vld [vmem:[%s148 + $0xd90] sm:$0xff]
                %371 = vst [vmem:[%s149 + $0x370] sm:$0xff] %v370
                %v372 = vld [vmem:[%s148 + $0xd98] sm:$0xff]
                %373 = vst [vmem:[%s149 + $0x378] sm:$0xff] %v372
                %v374 = vld [vmem:[%s148 + $0xe00] sm:$0xff]
                %375 = vst [vmem:[%s149 + $0x380] sm:$0xff] %v374
                %v376 = vld [vmem:[%s148 + $0xe08] sm:$0xff]
                %377 = vst [vmem:[%s149 + $0x388] sm:$0xff] %v376
                %v378 = vld [vmem:[%s148 + $0xe10] sm:$0xff]
                %379 = vst [vmem:[%s149 + $0x390] sm:$0xff] %v378
                %v380 = vld [vmem:[%s148 + $0xe18] sm:$0xff]
                %381 = vst [vmem:[%s149 + $0x398] sm:$0xff] %v380
                %v382 = vld [vmem:[%s148 + $0xe80] sm:$0xff]
                %383 = vst [vmem:[%s149 + $0x3a0] sm:$0xff] %v382
                %v384 = vld [vmem:[%s148 + $0xe88] sm:$0xff]
                %385 = vst [vmem:[%s149 + $0x3a8] sm:$0xff] %v384
                %v386 = vld [vmem:[%s148 + $0xe90] sm:$0xff]
                %387 = vst [vmem:[%s149 + $0x3b0] sm:$0xff] %v386
                %v388 = vld [vmem:[%s148 + $0xe98] sm:$0xff]
                %389 = vst [vmem:[%s149 + $0x3b8] sm:$0xff] %v388
                %v390 = vld [vmem:[%s148 + $0xf00] sm:$0xff]
                %391 = vst [vmem:[%s149 + $0x3c0] sm:$0xff] %v390
                %v392 = vld [vmem:[%s148 + $0xf08] sm:$0xff]
                %393 = vst [vmem:[%s149 + $0x3c8] sm:$0xff] %v392
                %v394 = vld [vmem:[%s148 + $0xf10] sm:$0xff]
                %395 = vst [vmem:[%s149 + $0x3d0] sm:$0xff] %v394
                %v396 = vld [vmem:[%s148 + $0xf18] sm:$0xff]
                %397 = vst [vmem:[%s149 + $0x3d8] sm:$0xff] %v396
                %v398 = vld [vmem:[%s148 + $0xf80] sm:$0xff]
                %399 = vst [vmem:[%s149 + $0x3e0] sm:$0xff] %v398
                %v400 = vld [vmem:[%s148 + $0xf88] sm:$0xff]
                %401 = vst [vmem:[%s149 + $0x3e8] sm:$0xff] %v400
                %v402 = vld [vmem:[%s148 + $0xf90] sm:$0xff]
                %403 = vst [vmem:[%s149 + $0x3f0] sm:$0xff] %v402
                %v404 = vld [vmem:[%s148 + $0xf98] sm:$0xff]
                %405 = vst [vmem:[%s149 + $0x3f8] sm:$0xff] %v404
                %v406 = vld [vmem:[%s148 + $0x1000] sm:$0xff]
                %407 = vst [vmem:[%s149 + $0x400] sm:$0xff] %v406
                %v408 = vld [vmem:[%s148 + $0x1008] sm:$0xff]
                %409 = vst [vmem:[%s149 + $0x408] sm:$0xff] %v408
                %v410 = vld [vmem:[%s148 + $0x1010] sm:$0xff]
                %411 = vst [vmem:[%s149 + $0x410] sm:$0xff] %v410
                %v412 = vld [vmem:[%s148 + $0x1018] sm:$0xff]
                %413 = vst [vmem:[%s149 + $0x418] sm:$0xff] %v412
                %v414 = vld [vmem:[%s148 + $0x1080] sm:$0xff]
                %415 = vst [vmem:[%s149 + $0x420] sm:$0xff] %v414
                %v416 = vld [vmem:[%s148 + $0x1088] sm:$0xff]
                %417 = vst [vmem:[%s149 + $0x428] sm:$0xff] %v416
                %v418 = vld [vmem:[%s148 + $0x1090] sm:$0xff]
                %419 = vst [vmem:[%s149 + $0x430] sm:$0xff] %v418
                %v420 = vld [vmem:[%s148 + $0x1098] sm:$0xff]
                %421 = vst [vmem:[%s149 + $0x438] sm:$0xff] %v420
                %v422 = vld [vmem:[%s148 + $0x1100] sm:$0xff]
                %423 = vst [vmem:[%s149 + $0x440] sm:$0xff] %v422
                %v424 = vld [vmem:[%s148 + $0x1108] sm:$0xff]
                %425 = vst [vmem:[%s149 + $0x448] sm:$0xff] %v424
                %v426 = vld [vmem:[%s148 + $0x1110] sm:$0xff]
                %427 = vst [vmem:[%s149 + $0x450] sm:$0xff] %v426
                %v428 = vld [vmem:[%s148 + $0x1118] sm:$0xff]
                %429 = vst [vmem:[%s149 + $0x458] sm:$0xff] %v428
                %v430 = vld [vmem:[%s148 + $0x1180] sm:$0xff]
                %431 = vst [vmem:[%s149 + $0x460] sm:$0xff] %v430
                %v432 = vld [vmem:[%s148 + $0x1188] sm:$0xff]
                %433 = vst [vmem:[%s149 + $0x468] sm:$0xff] %v432
                %v434 = vld [vmem:[%s148 + $0x1190] sm:$0xff]
                %435 = vst [vmem:[%s149 + $0x470] sm:$0xff] %v434
                %v436 = vld [vmem:[%s148 + $0x1198] sm:$0xff]
                %437 = vst [vmem:[%s149 + $0x478] sm:$0xff] %v436
                %v438 = vld [vmem:[%s148 + $0x1200] sm:$0xff]
                %439 = vst [vmem:[%s149 + $0x480] sm:$0xff] %v438
                %v440 = vld [vmem:[%s148 + $0x1208] sm:$0xff]
                %441 = vst [vmem:[%s149 + $0x488] sm:$0xff] %v440
                %v442 = vld [vmem:[%s148 + $0x1210] sm:$0xff]
                %443 = vst [vmem:[%s149 + $0x490] sm:$0xff] %v442
                %v444 = vld [vmem:[%s148 + $0x1218] sm:$0xff]
                %445 = vst [vmem:[%s149 + $0x498] sm:$0xff] %v444
                %v446 = vld [vmem:[%s148 + $0x1280] sm:$0xff]
                %447 = vst [vmem:[%s149 + $0x4a0] sm:$0xff] %v446
                %v448 = vld [vmem:[%s148 + $0x1288] sm:$0xff]
                %449 = vst [vmem:[%s149 + $0x4a8] sm:$0xff] %v448
                %v450 = vld [vmem:[%s148 + $0x1290] sm:$0xff]
                %451 = vst [vmem:[%s149 + $0x4b0] sm:$0xff] %v450
                %v452 = vld [vmem:[%s148 + $0x1298] sm:$0xff]
                %453 = vst [vmem:[%s149 + $0x4b8] sm:$0xff] %v452
                %v454 = vld [vmem:[%s148 + $0x1300] sm:$0xff]
                %455 = vst [vmem:[%s149 + $0x4c0] sm:$0xff] %v454
                %v456 = vld [vmem:[%s148 + $0x1308] sm:$0xff]
                %457 = vst [vmem:[%s149 + $0x4c8] sm:$0xff] %v456
                %v458 = vld [vmem:[%s148 + $0x1310] sm:$0xff]
                %459 = vst [vmem:[%s149 + $0x4d0] sm:$0xff] %v458
                %v460 = vld [vmem:[%s148 + $0x1318] sm:$0xff]
                %461 = vst [vmem:[%s149 + $0x4d8] sm:$0xff] %v460
                %v462 = vld [vmem:[%s148 + $0x1380] sm:$0xff]
                %463 = vst [vmem:[%s149 + $0x4e0] sm:$0xff] %v462
                %v464 = vld [vmem:[%s148 + $0x1388] sm:$0xff]
                %465 = vst [vmem:[%s149 + $0x4e8] sm:$0xff] %v464
                %v466 = vld [vmem:[%s148 + $0x1390] sm:$0xff]
                %467 = vst [vmem:[%s149 + $0x4f0] sm:$0xff] %v466
                %v468 = vld [vmem:[%s148 + $0x1398] sm:$0xff]
                %469 = vst [vmem:[%s149 + $0x4f8] sm:$0xff] %v468
                %v470 = vld [vmem:[%s148 + $0x1400] sm:$0xff]
                %471 = vst [vmem:[%s149 + $0x500] sm:$0xff] %v470
                %v472 = vld [vmem:[%s148 + $0x1408] sm:$0xff]
                %473 = vst [vmem:[%s149 + $0x508] sm:$0xff] %v472
                %v474 = vld [vmem:[%s148 + $0x1410] sm:$0xff]
                %475 = vst [vmem:[%s149 + $0x510] sm:$0xff] %v474
                %v476 = vld [vmem:[%s148 + $0x1418] sm:$0xff]
                %477 = vst [vmem:[%s149 + $0x518] sm:$0xff] %v476
                %v478 = vld [vmem:[%s148 + $0x1480] sm:$0xff]
                %479 = vst [vmem:[%s149 + $0x520] sm:$0xff] %v478
                %v480 = vld [vmem:[%s148 + $0x1488] sm:$0xff]
                %481 = vst [vmem:[%s149 + $0x528] sm:$0xff] %v480
                %v482 = vld [vmem:[%s148 + $0x1490] sm:$0xff]
                %483 = vst [vmem:[%s149 + $0x530] sm:$0xff] %v482
                %v484 = vld [vmem:[%s148 + $0x1498] sm:$0xff]
                %485 = vst [vmem:[%s149 + $0x538] sm:$0xff] %v484
                %v486 = vld [vmem:[%s148 + $0x1500] sm:$0xff]
                %487 = vst [vmem:[%s149 + $0x540] sm:$0xff] %v486
                %v488 = vld [vmem:[%s148 + $0x1508] sm:$0xff]
                %489 = vst [vmem:[%s149 + $0x548] sm:$0xff] %v488
                %v490 = vld [vmem:[%s148 + $0x1510] sm:$0xff]
                %491 = vst [vmem:[%s149 + $0x550] sm:$0xff] %v490
                %v492 = vld [vmem:[%s148 + $0x1518] sm:$0xff]
                %493 = vst [vmem:[%s149 + $0x558] sm:$0xff] %v492
                %v494 = vld [vmem:[%s148 + $0x1580] sm:$0xff]
                %495 = vst [vmem:[%s149 + $0x560] sm:$0xff] %v494
                %v496 = vld [vmem:[%s148 + $0x1588] sm:$0xff]
                %497 = vst [vmem:[%s149 + $0x568] sm:$0xff] %v496
                %v498 = vld [vmem:[%s148 + $0x1590] sm:$0xff]
                %499 = vst [vmem:[%s149 + $0x570] sm:$0xff] %v498
                %v500 = vld [vmem:[%s148 + $0x1598] sm:$0xff]
                %501 = vst [vmem:[%s149 + $0x578] sm:$0xff] %v500
                %v502 = vld [vmem:[%s148 + $0x1600] sm:$0xff]
                %503 = vst [vmem:[%s149 + $0x580] sm:$0xff] %v502
                %v504 = vld [vmem:[%s148 + $0x1608] sm:$0xff]
                %505 = vst [vmem:[%s149 + $0x588] sm:$0xff] %v504
                %v506 = vld [vmem:[%s148 + $0x1610] sm:$0xff]
                %507 = vst [vmem:[%s149 + $0x590] sm:$0xff] %v506
                %v508 = vld [vmem:[%s148 + $0x1618] sm:$0xff]
                %509 = vst [vmem:[%s149 + $0x598] sm:$0xff] %v508
                %v510 = vld [vmem:[%s148 + $0x1680] sm:$0xff]
                %511 = vst [vmem:[%s149 + $0x5a0] sm:$0xff] %v510
                %v512 = vld [vmem:[%s148 + $0x1688] sm:$0xff]
                %513 = vst [vmem:[%s149 + $0x5a8] sm:$0xff] %v512
                %v514 = vld [vmem:[%s148 + $0x1690] sm:$0xff]
                %515 = vst [vmem:[%s149 + $0x5b0] sm:$0xff] %v514
                %v516 = vld [vmem:[%s148 + $0x1698] sm:$0xff]
                %517 = vst [vmem:[%s149 + $0x5b8] sm:$0xff] %v516
                %v518 = vld [vmem:[%s148 + $0x1700] sm:$0xff]
                %519 = vst [vmem:[%s149 + $0x5c0] sm:$0xff] %v518
                %v520 = vld [vmem:[%s148 + $0x1708] sm:$0xff]
                %521 = vst [vmem:[%s149 + $0x5c8] sm:$0xff] %v520
                %v522 = vld [vmem:[%s148 + $0x1710] sm:$0xff]
                %523 = vst [vmem:[%s149 + $0x5d0] sm:$0xff] %v522
                %v524 = vld [vmem:[%s148 + $0x1718] sm:$0xff]
                %525 = vst [vmem:[%s149 + $0x5d8] sm:$0xff] %v524
                %v526 = vld [vmem:[%s148 + $0x1780] sm:$0xff]
                %527 = vst [vmem:[%s149 + $0x5e0] sm:$0xff] %v526
                %v528 = vld [vmem:[%s148 + $0x1788] sm:$0xff]
                %529 = vst [vmem:[%s149 + $0x5e8] sm:$0xff] %v528
                %v530 = vld [vmem:[%s148 + $0x1790] sm:$0xff]
                %531 = vst [vmem:[%s149 + $0x5f0] sm:$0xff] %v530
                %v532 = vld [vmem:[%s148 + $0x1798] sm:$0xff]
                %533 = vst [vmem:[%s149 + $0x5f8] sm:$0xff] %v532
                %v534 = vld [vmem:[%s148 + $0x1800] sm:$0xff]
                %535 = vst [vmem:[%s149 + $0x600] sm:$0xff] %v534
                %v536 = vld [vmem:[%s148 + $0x1808] sm:$0xff]
                %537 = vst [vmem:[%s149 + $0x608] sm:$0xff] %v536
                %v538 = vld [vmem:[%s148 + $0x1810] sm:$0xff]
                %539 = vst [vmem:[%s149 + $0x610] sm:$0xff] %v538
                %v540 = vld [vmem:[%s148 + $0x1818] sm:$0xff]
                %541 = vst [vmem:[%s149 + $0x618] sm:$0xff] %v540
                %v542 = vld [vmem:[%s148 + $0x1880] sm:$0xff]
                %543 = vst [vmem:[%s149 + $0x620] sm:$0xff] %v542
                %v544 = vld [vmem:[%s148 + $0x1888] sm:$0xff]
                %545 = vst [vmem:[%s149 + $0x628] sm:$0xff] %v544
                %v546 = vld [vmem:[%s148 + $0x1890] sm:$0xff]
                %547 = vst [vmem:[%s149 + $0x630] sm:$0xff] %v546
                %v548 = vld [vmem:[%s148 + $0x1898] sm:$0xff]
                %549 = vst [vmem:[%s149 + $0x638] sm:$0xff] %v548
                %v550 = vld [vmem:[%s148 + $0x1900] sm:$0xff]
                %551 = vst [vmem:[%s149 + $0x640] sm:$0xff] %v550
                %v552 = vld [vmem:[%s148 + $0x1908] sm:$0xff]
                %553 = vst [vmem:[%s149 + $0x648] sm:$0xff] %v552
                %v554 = vld [vmem:[%s148 + $0x1910] sm:$0xff]
                %555 = vst [vmem:[%s149 + $0x650] sm:$0xff] %v554
                %v556 = vld [vmem:[%s148 + $0x1918] sm:$0xff]
                %557 = vst [vmem:[%s149 + $0x658] sm:$0xff] %v556
                %v558 = vld [vmem:[%s148 + $0x1980] sm:$0xff]
                %559 = vst [vmem:[%s149 + $0x660] sm:$0xff] %v558
                %v560 = vld [vmem:[%s148 + $0x1988] sm:$0xff]
                %561 = vst [vmem:[%s149 + $0x668] sm:$0xff] %v560
                %v562 = vld [vmem:[%s148 + $0x1990] sm:$0xff]
                %563 = vst [vmem:[%s149 + $0x670] sm:$0xff] %v562
                %v564 = vld [vmem:[%s148 + $0x1998] sm:$0xff]
                %565 = vst [vmem:[%s149 + $0x678] sm:$0xff] %v564
                %v566 = vld [vmem:[%s148 + $0x1a00] sm:$0xff]
                %567 = vst [vmem:[%s149 + $0x680] sm:$0xff] %v566
                %v568 = vld [vmem:[%s148 + $0x1a08] sm:$0xff]
                %569 = vst [vmem:[%s149 + $0x688] sm:$0xff] %v568
                %v570 = vld [vmem:[%s148 + $0x1a10] sm:$0xff]
                %571 = vst [vmem:[%s149 + $0x690] sm:$0xff] %v570
                %v572 = vld [vmem:[%s148 + $0x1a18] sm:$0xff]
                %573 = vst [vmem:[%s149 + $0x698] sm:$0xff] %v572
                %v574 = vld [vmem:[%s148 + $0x1a80] sm:$0xff]
                %575 = vst [vmem:[%s149 + $0x6a0] sm:$0xff] %v574
                %v576 = vld [vmem:[%s148 + $0x1a88] sm:$0xff]
                %577 = vst [vmem:[%s149 + $0x6a8] sm:$0xff] %v576
                %v578 = vld [vmem:[%s148 + $0x1a90] sm:$0xff]
                %579 = vst [vmem:[%s149 + $0x6b0] sm:$0xff] %v578
                %v580 = vld [vmem:[%s148 + $0x1a98] sm:$0xff]
                %581 = vst [vmem:[%s149 + $0x6b8] sm:$0xff] %v580
                %v582 = vld [vmem:[%s148 + $0x1b00] sm:$0xff]
                %583 = vst [vmem:[%s149 + $0x6c0] sm:$0xff] %v582
                %v584 = vld [vmem:[%s148 + $0x1b08] sm:$0xff]
                %585 = vst [vmem:[%s149 + $0x6c8] sm:$0xff] %v584
                %v586 = vld [vmem:[%s148 + $0x1b10] sm:$0xff]
                %587 = vst [vmem:[%s149 + $0x6d0] sm:$0xff] %v586
                %v588 = vld [vmem:[%s148 + $0x1b18] sm:$0xff]
                %589 = vst [vmem:[%s149 + $0x6d8] sm:$0xff] %v588
                %v590 = vld [vmem:[%s148 + $0x1b80] sm:$0xff]
                %591 = vst [vmem:[%s149 + $0x6e0] sm:$0xff] %v590
                %v592 = vld [vmem:[%s148 + $0x1b88] sm:$0xff]
                %593 = vst [vmem:[%s149 + $0x6e8] sm:$0xff] %v592
                %v594 = vld [vmem:[%s148 + $0x1b90] sm:$0xff]
                %595 = vst [vmem:[%s149 + $0x6f0] sm:$0xff] %v594
                %v596 = vld [vmem:[%s148 + $0x1b98] sm:$0xff]
                %597 = vst [vmem:[%s149 + $0x6f8] sm:$0xff] %v596
                %v598 = vld [vmem:[%s148 + $0x1c00] sm:$0xff]
                %599 = vst [vmem:[%s149 + $0x700] sm:$0xff] %v598
                %v600 = vld [vmem:[%s148 + $0x1c08] sm:$0xff]
                %601 = vst [vmem:[%s149 + $0x708] sm:$0xff] %v600
                %v602 = vld [vmem:[%s148 + $0x1c10] sm:$0xff]
                %603 = vst [vmem:[%s149 + $0x710] sm:$0xff] %v602
                %v604 = vld [vmem:[%s148 + $0x1c18] sm:$0xff]
                %605 = vst [vmem:[%s149 + $0x718] sm:$0xff] %v604
                %v606 = vld [vmem:[%s148 + $0x1c80] sm:$0xff]
                %607 = vst [vmem:[%s149 + $0x720] sm:$0xff] %v606
                %v608 = vld [vmem:[%s148 + $0x1c88] sm:$0xff]
                %609 = vst [vmem:[%s149 + $0x728] sm:$0xff] %v608
                %v610 = vld [vmem:[%s148 + $0x1c90] sm:$0xff]
                %611 = vst [vmem:[%s149 + $0x730] sm:$0xff] %v610
                %v612 = vld [vmem:[%s148 + $0x1c98] sm:$0xff]
                %613 = vst [vmem:[%s149 + $0x738] sm:$0xff] %v612
                %v614 = vld [vmem:[%s148 + $0x1d00] sm:$0xff]
                %615 = vst [vmem:[%s149 + $0x740] sm:$0xff] %v614
                %v616 = vld [vmem:[%s148 + $0x1d08] sm:$0xff]
                %617 = vst [vmem:[%s149 + $0x748] sm:$0xff] %v616
                %v618 = vld [vmem:[%s148 + $0x1d10] sm:$0xff]
                %619 = vst [vmem:[%s149 + $0x750] sm:$0xff] %v618
                %v620 = vld [vmem:[%s148 + $0x1d18] sm:$0xff]
                %621 = vst [vmem:[%s149 + $0x758] sm:$0xff] %v620
                %v622 = vld [vmem:[%s148 + $0x1d80] sm:$0xff]
                %623 = vst [vmem:[%s149 + $0x760] sm:$0xff] %v622
                %v624 = vld [vmem:[%s148 + $0x1d88] sm:$0xff]
                %625 = vst [vmem:[%s149 + $0x768] sm:$0xff] %v624
                %v626 = vld [vmem:[%s148 + $0x1d90] sm:$0xff]
                %627 = vst [vmem:[%s149 + $0x770] sm:$0xff] %v626
                %v628 = vld [vmem:[%s148 + $0x1d98] sm:$0xff]
                %629 = vst [vmem:[%s149 + $0x778] sm:$0xff] %v628
                %v630 = vld [vmem:[%s148 + $0x1e00] sm:$0xff]
                %631 = vst [vmem:[%s149 + $0x780] sm:$0xff] %v630
                %v632 = vld [vmem:[%s148 + $0x1e08] sm:$0xff]
                %633 = vst [vmem:[%s149 + $0x788] sm:$0xff] %v632
                %v634 = vld [vmem:[%s148 + $0x1e10] sm:$0xff]
                %635 = vst [vmem:[%s149 + $0x790] sm:$0xff] %v634
                %v636 = vld [vmem:[%s148 + $0x1e18] sm:$0xff]
                %637 = vst [vmem:[%s149 + $0x798] sm:$0xff] %v636
                %v638 = vld [vmem:[%s148 + $0x1e80] sm:$0xff]
                %639 = vst [vmem:[%s149 + $0x7a0] sm:$0xff] %v638
                %v640 = vld [vmem:[%s148 + $0x1e88] sm:$0xff]
                %641 = vst [vmem:[%s149 + $0x7a8] sm:$0xff] %v640
                %v642 = vld [vmem:[%s148 + $0x1e90] sm:$0xff]
                %643 = vst [vmem:[%s149 + $0x7b0] sm:$0xff] %v642
                %v644 = vld [vmem:[%s148 + $0x1e98] sm:$0xff]
                %645 = vst [vmem:[%s149 + $0x7b8] sm:$0xff] %v644
                %v646 = vld [vmem:[%s148 + $0x1f00] sm:$0xff]
                %647 = vst [vmem:[%s149 + $0x7c0] sm:$0xff] %v646
                %v648 = vld [vmem:[%s148 + $0x1f08] sm:$0xff]
                %649 = vst [vmem:[%s149 + $0x7c8] sm:$0xff] %v648
                %v650 = vld [vmem:[%s148 + $0x1f10] sm:$0xff]
                %651 = vst [vmem:[%s149 + $0x7d0] sm:$0xff] %v650
                %v652 = vld [vmem:[%s148 + $0x1f18] sm:$0xff]
                %653 = vst [vmem:[%s149 + $0x7d8] sm:$0xff] %v652
                %v654 = vld [vmem:[%s148 + $0x1f80] sm:$0xff]
                %655 = vst [vmem:[%s149 + $0x7e0] sm:$0xff] %v654
                %v656 = vld [vmem:[%s148 + $0x1f88] sm:$0xff]
                %657 = vst [vmem:[%s149 + $0x7e8] sm:$0xff] %v656
                %v658 = vld [vmem:[%s148 + $0x1f90] sm:$0xff]
                %659 = vst [vmem:[%s149 + $0x7f0] sm:$0xff] %v658
                %v660 = vld [vmem:[%s148 + $0x1f98] sm:$0xff]
                %661 = vst [vmem:[%s149 + $0x7f8] sm:$0xff] %v660
                %v662 = vld [vmem:[%s148 + $0x2000] sm:$0xff]
                %663 = vst [vmem:[%s149 + $0x800] sm:$0xff] %v662
                %v664 = vld [vmem:[%s148 + $0x2008] sm:$0xff]
                %665 = vst [vmem:[%s149 + $0x808] sm:$0xff] %v664
                %v666 = vld [vmem:[%s148 + $0x2010] sm:$0xff]
                %667 = vst [vmem:[%s149 + $0x810] sm:$0xff] %v666
                %v668 = vld [vmem:[%s148 + $0x2018] sm:$0xff]
                %669 = vst [vmem:[%s149 + $0x818] sm:$0xff] %v668
                %v670 = vld [vmem:[%s148 + $0x2080] sm:$0xff]
                %671 = vst [vmem:[%s149 + $0x820] sm:$0xff] %v670
                %v672 = vld [vmem:[%s148 + $0x2088] sm:$0xff]
                %673 = vst [vmem:[%s149 + $0x828] sm:$0xff] %v672
                %v674 = vld [vmem:[%s148 + $0x2090] sm:$0xff]
                %675 = vst [vmem:[%s149 + $0x830] sm:$0xff] %v674
                %v676 = vld [vmem:[%s148 + $0x2098] sm:$0xff]
                %677 = vst [vmem:[%s149 + $0x838] sm:$0xff] %v676
                %v678 = vld [vmem:[%s148 + $0x2100] sm:$0xff]
                %679 = vst [vmem:[%s149 + $0x840] sm:$0xff] %v678
                %v680 = vld [vmem:[%s148 + $0x2108] sm:$0xff]
                %681 = vst [vmem:[%s149 + $0x848] sm:$0xff] %v680
                %v682 = vld [vmem:[%s148 + $0x2110] sm:$0xff]
                %683 = vst [vmem:[%s149 + $0x850] sm:$0xff] %v682
                %v684 = vld [vmem:[%s148 + $0x2118] sm:$0xff]
                %685 = vst [vmem:[%s149 + $0x858] sm:$0xff] %v684
                %v686 = vld [vmem:[%s148 + $0x2180] sm:$0xff]
                %687 = vst [vmem:[%s149 + $0x860] sm:$0xff] %v686
                %v688 = vld [vmem:[%s148 + $0x2188] sm:$0xff]
                %689 = vst [vmem:[%s149 + $0x868] sm:$0xff] %v688
                %v690 = vld [vmem:[%s148 + $0x2190] sm:$0xff]
                %691 = vst [vmem:[%s149 + $0x870] sm:$0xff] %v690
                %v692 = vld [vmem:[%s148 + $0x2198] sm:$0xff]
                %693 = vst [vmem:[%s149 + $0x878] sm:$0xff] %v692
                %v694 = vld [vmem:[%s148 + $0x2200] sm:$0xff]
                %695 = vst [vmem:[%s149 + $0x880] sm:$0xff] %v694
                %v696 = vld [vmem:[%s148 + $0x2208] sm:$0xff]
                %697 = vst [vmem:[%s149 + $0x888] sm:$0xff] %v696
                %v698 = vld [vmem:[%s148 + $0x2210] sm:$0xff]
                %699 = vst [vmem:[%s149 + $0x890] sm:$0xff] %v698
                %v700 = vld [vmem:[%s148 + $0x2218] sm:$0xff]
                %701 = vst [vmem:[%s149 + $0x898] sm:$0xff] %v700
                %v702 = vld [vmem:[%s148 + $0x2280] sm:$0xff]
                %703 = vst [vmem:[%s149 + $0x8a0] sm:$0xff] %v702
                %v704 = vld [vmem:[%s148 + $0x2288] sm:$0xff]
                %705 = vst [vmem:[%s149 + $0x8a8] sm:$0xff] %v704
                %v706 = vld [vmem:[%s148 + $0x2290] sm:$0xff]
                %707 = vst [vmem:[%s149 + $0x8b0] sm:$0xff] %v706
                %v708 = vld [vmem:[%s148 + $0x2298] sm:$0xff]
                %709 = vst [vmem:[%s149 + $0x8b8] sm:$0xff] %v708
                %v710 = vld [vmem:[%s148 + $0x2300] sm:$0xff]
                %711 = vst [vmem:[%s149 + $0x8c0] sm:$0xff] %v710
                %v712 = vld [vmem:[%s148 + $0x2308] sm:$0xff]
                %713 = vst [vmem:[%s149 + $0x8c8] sm:$0xff] %v712
                %v714 = vld [vmem:[%s148 + $0x2310] sm:$0xff]
                %715 = vst [vmem:[%s149 + $0x8d0] sm:$0xff] %v714
                %v716 = vld [vmem:[%s148 + $0x2318] sm:$0xff]
                %717 = vst [vmem:[%s149 + $0x8d8] sm:$0xff] %v716
                %v718 = vld [vmem:[%s148 + $0x2380] sm:$0xff]
                %719 = vst [vmem:[%s149 + $0x8e0] sm:$0xff] %v718
                %v720 = vld [vmem:[%s148 + $0x2388] sm:$0xff]
                %721 = vst [vmem:[%s149 + $0x8e8] sm:$0xff] %v720
                %v722 = vld [vmem:[%s148 + $0x2390] sm:$0xff]
                %723 = vst [vmem:[%s149 + $0x8f0] sm:$0xff] %v722
                %v724 = vld [vmem:[%s148 + $0x2398] sm:$0xff]
                %725 = vst [vmem:[%s149 + $0x8f8] sm:$0xff] %v724
                %v726 = vld [vmem:[%s148 + $0x2400] sm:$0xff]
                %727 = vst [vmem:[%s149 + $0x900] sm:$0xff] %v726
                %v728 = vld [vmem:[%s148 + $0x2408] sm:$0xff]
                %729 = vst [vmem:[%s149 + $0x908] sm:$0xff] %v728
                %v730 = vld [vmem:[%s148 + $0x2410] sm:$0xff]
                %731 = vst [vmem:[%s149 + $0x910] sm:$0xff] %v730
                %v732 = vld [vmem:[%s148 + $0x2418] sm:$0xff]
                %733 = vst [vmem:[%s149 + $0x918] sm:$0xff] %v732
                %v734 = vld [vmem:[%s148 + $0x2480] sm:$0xff]
                %735 = vst [vmem:[%s149 + $0x920] sm:$0xff] %v734
                %v736 = vld [vmem:[%s148 + $0x2488] sm:$0xff]
                %737 = vst [vmem:[%s149 + $0x928] sm:$0xff] %v736
                %v738 = vld [vmem:[%s148 + $0x2490] sm:$0xff]
                %739 = vst [vmem:[%s149 + $0x930] sm:$0xff] %v738
                %v740 = vld [vmem:[%s148 + $0x2498] sm:$0xff]
                %741 = vst [vmem:[%s149 + $0x938] sm:$0xff] %v740
                %v742 = vld [vmem:[%s148 + $0x2500] sm:$0xff]
                %743 = vst [vmem:[%s149 + $0x940] sm:$0xff] %v742
                %v744 = vld [vmem:[%s148 + $0x2508] sm:$0xff]
                %745 = vst [vmem:[%s149 + $0x948] sm:$0xff] %v744
                %v746 = vld [vmem:[%s148 + $0x2510] sm:$0xff]
                %747 = vst [vmem:[%s149 + $0x950] sm:$0xff] %v746
                %v748 = vld [vmem:[%s148 + $0x2518] sm:$0xff]
                %749 = vst [vmem:[%s149 + $0x958] sm:$0xff] %v748
                %v750 = vld [vmem:[%s148 + $0x2580] sm:$0xff]
                %751 = vst [vmem:[%s149 + $0x960] sm:$0xff] %v750
                %v752 = vld [vmem:[%s148 + $0x2588] sm:$0xff]
                %753 = vst [vmem:[%s149 + $0x968] sm:$0xff] %v752
                %v754 = vld [vmem:[%s148 + $0x2590] sm:$0xff]
                %755 = vst [vmem:[%s149 + $0x970] sm:$0xff] %v754
                %v756 = vld [vmem:[%s148 + $0x2598] sm:$0xff]
                %757 = vst [vmem:[%s149 + $0x978] sm:$0xff] %v756
                %v758 = vld [vmem:[%s148 + $0x2600] sm:$0xff]
                %759 = vst [vmem:[%s149 + $0x980] sm:$0xff] %v758
                %v760 = vld [vmem:[%s148 + $0x2608] sm:$0xff]
                %761 = vst [vmem:[%s149 + $0x988] sm:$0xff] %v760
                %v762 = vld [vmem:[%s148 + $0x2610] sm:$0xff]
                %763 = vst [vmem:[%s149 + $0x990] sm:$0xff] %v762
                %v764 = vld [vmem:[%s148 + $0x2618] sm:$0xff]
                %765 = vst [vmem:[%s149 + $0x998] sm:$0xff] %v764
                %v766 = vld [vmem:[%s148 + $0x2680] sm:$0xff]
                %767 = vst [vmem:[%s149 + $0x9a0] sm:$0xff] %v766
                %v768 = vld [vmem:[%s148 + $0x2688] sm:$0xff]
                %769 = vst [vmem:[%s149 + $0x9a8] sm:$0xff] %v768
                %v770 = vld [vmem:[%s148 + $0x2690] sm:$0xff]
                %771 = vst [vmem:[%s149 + $0x9b0] sm:$0xff] %v770
                %v772 = vld [vmem:[%s148 + $0x2698] sm:$0xff]
                %773 = vst [vmem:[%s149 + $0x9b8] sm:$0xff] %v772
                %v774 = vld [vmem:[%s148 + $0x2700] sm:$0xff]
                %775 = vst [vmem:[%s149 + $0x9c0] sm:$0xff] %v774
                %v776 = vld [vmem:[%s148 + $0x2708] sm:$0xff]
                %777 = vst [vmem:[%s149 + $0x9c8] sm:$0xff] %v776
                %v778 = vld [vmem:[%s148 + $0x2710] sm:$0xff]
                %779 = vst [vmem:[%s149 + $0x9d0] sm:$0xff] %v778
                %v780 = vld [vmem:[%s148 + $0x2718] sm:$0xff]
                %781 = vst [vmem:[%s149 + $0x9d8] sm:$0xff] %v780
                %v782 = vld [vmem:[%s148 + $0x2780] sm:$0xff]
                %783 = vst [vmem:[%s149 + $0x9e0] sm:$0xff] %v782
                %v784 = vld [vmem:[%s148 + $0x2788] sm:$0xff]
                %785 = vst [vmem:[%s149 + $0x9e8] sm:$0xff] %v784
                %v786 = vld [vmem:[%s148 + $0x2790] sm:$0xff]
                %787 = vst [vmem:[%s149 + $0x9f0] sm:$0xff] %v786
                %v788 = vld [vmem:[%s148 + $0x2798] sm:$0xff]
                %789 = vst [vmem:[%s149 + $0x9f8] sm:$0xff] %v788
                %v790 = vld [vmem:[%s148 + $0x2800] sm:$0xff]
                %791 = vst [vmem:[%s149 + $0xa00] sm:$0xff] %v790
                %v792 = vld [vmem:[%s148 + $0x2808] sm:$0xff]
                %793 = vst [vmem:[%s149 + $0xa08] sm:$0xff] %v792
                %v794 = vld [vmem:[%s148 + $0x2810] sm:$0xff]
                %795 = vst [vmem:[%s149 + $0xa10] sm:$0xff] %v794
                %v796 = vld [vmem:[%s148 + $0x2818] sm:$0xff]
                %797 = vst [vmem:[%s149 + $0xa18] sm:$0xff] %v796
                %v798 = vld [vmem:[%s148 + $0x2880] sm:$0xff]
                %799 = vst [vmem:[%s149 + $0xa20] sm:$0xff] %v798
                %v800 = vld [vmem:[%s148 + $0x2888] sm:$0xff]
                %801 = vst [vmem:[%s149 + $0xa28] sm:$0xff] %v800
                %v802 = vld [vmem:[%s148 + $0x2890] sm:$0xff]
                %803 = vst [vmem:[%s149 + $0xa30] sm:$0xff] %v802
                %v804 = vld [vmem:[%s148 + $0x2898] sm:$0xff]
                %805 = vst [vmem:[%s149 + $0xa38] sm:$0xff] %v804
                %v806 = vld [vmem:[%s148 + $0x2900] sm:$0xff]
                %807 = vst [vmem:[%s149 + $0xa40] sm:$0xff] %v806
                %v808 = vld [vmem:[%s148 + $0x2908] sm:$0xff]
                %809 = vst [vmem:[%s149 + $0xa48] sm:$0xff] %v808
                %v810 = vld [vmem:[%s148 + $0x2910] sm:$0xff]
                %811 = vst [vmem:[%s149 + $0xa50] sm:$0xff] %v810
                %v812 = vld [vmem:[%s148 + $0x2918] sm:$0xff]
                %813 = vst [vmem:[%s149 + $0xa58] sm:$0xff] %v812
                %v814 = vld [vmem:[%s148 + $0x2980] sm:$0xff]
                %815 = vst [vmem:[%s149 + $0xa60] sm:$0xff] %v814
                %v816 = vld [vmem:[%s148 + $0x2988] sm:$0xff]
                %817 = vst [vmem:[%s149 + $0xa68] sm:$0xff] %v816
                %v818 = vld [vmem:[%s148 + $0x2990] sm:$0xff]
                %819 = vst [vmem:[%s149 + $0xa70] sm:$0xff] %v818
                %v820 = vld [vmem:[%s148 + $0x2998] sm:$0xff]
                %821 = vst [vmem:[%s149 + $0xa78] sm:$0xff] %v820
                %v822 = vld [vmem:[%s148 + $0x2a00] sm:$0xff]
                %823 = vst [vmem:[%s149 + $0xa80] sm:$0xff] %v822
                %v824 = vld [vmem:[%s148 + $0x2a08] sm:$0xff]
                %825 = vst [vmem:[%s149 + $0xa88] sm:$0xff] %v824
                %v826 = vld [vmem:[%s148 + $0x2a10] sm:$0xff]
                %827 = vst [vmem:[%s149 + $0xa90] sm:$0xff] %v826
                %v828 = vld [vmem:[%s148 + $0x2a18] sm:$0xff]
                %829 = vst [vmem:[%s149 + $0xa98] sm:$0xff] %v828
                %v830 = vld [vmem:[%s148 + $0x2a80] sm:$0xff]
                %831 = vst [vmem:[%s149 + $0xaa0] sm:$0xff] %v830
                %v832 = vld [vmem:[%s148 + $0x2a88] sm:$0xff]
                %833 = vst [vmem:[%s149 + $0xaa8] sm:$0xff] %v832
                %v834 = vld [vmem:[%s148 + $0x2a90] sm:$0xff]
                %835 = vst [vmem:[%s149 + $0xab0] sm:$0xff] %v834
                %v836 = vld [vmem:[%s148 + $0x2a98] sm:$0xff]
                %837 = vst [vmem:[%s149 + $0xab8] sm:$0xff] %v836
                %v838 = vld [vmem:[%s148 + $0x2b00] sm:$0xff]
                %839 = vst [vmem:[%s149 + $0xac0] sm:$0xff] %v838
                %v840 = vld [vmem:[%s148 + $0x2b08] sm:$0xff]
                %841 = vst [vmem:[%s149 + $0xac8] sm:$0xff] %v840
                %v842 = vld [vmem:[%s148 + $0x2b10] sm:$0xff]
                %843 = vst [vmem:[%s149 + $0xad0] sm:$0xff] %v842
                %v844 = vld [vmem:[%s148 + $0x2b18] sm:$0xff]
                %845 = vst [vmem:[%s149 + $0xad8] sm:$0xff] %v844
                %v846 = vld [vmem:[%s148 + $0x2b80] sm:$0xff]
                %847 = vst [vmem:[%s149 + $0xae0] sm:$0xff] %v846
                %v848 = vld [vmem:[%s148 + $0x2b88] sm:$0xff]
                %849 = vst [vmem:[%s149 + $0xae8] sm:$0xff] %v848
                %v850 = vld [vmem:[%s148 + $0x2b90] sm:$0xff]
                %851 = vst [vmem:[%s149 + $0xaf0] sm:$0xff] %v850
                %v852 = vld [vmem:[%s148 + $0x2b98] sm:$0xff]
                %853 = vst [vmem:[%s149 + $0xaf8] sm:$0xff] %v852
                %v854 = vld [vmem:[%s148 + $0x2c00] sm:$0xff]
                %855 = vst [vmem:[%s149 + $0xb00] sm:$0xff] %v854
                %v856 = vld [vmem:[%s148 + $0x2c08] sm:$0xff]
                %857 = vst [vmem:[%s149 + $0xb08] sm:$0xff] %v856
                %v858 = vld [vmem:[%s148 + $0x2c10] sm:$0xff]
                %859 = vst [vmem:[%s149 + $0xb10] sm:$0xff] %v858
                %v860 = vld [vmem:[%s148 + $0x2c18] sm:$0xff]
                %861 = vst [vmem:[%s149 + $0xb18] sm:$0xff] %v860
                %v862 = vld [vmem:[%s148 + $0x2c80] sm:$0xff]
                %863 = vst [vmem:[%s149 + $0xb20] sm:$0xff] %v862
                %v864 = vld [vmem:[%s148 + $0x2c88] sm:$0xff]
                %865 = vst [vmem:[%s149 + $0xb28] sm:$0xff] %v864
                %v866 = vld [vmem:[%s148 + $0x2c90] sm:$0xff]
                %867 = vst [vmem:[%s149 + $0xb30] sm:$0xff] %v866
                %v868 = vld [vmem:[%s148 + $0x2c98] sm:$0xff]
                %869 = vst [vmem:[%s149 + $0xb38] sm:$0xff] %v868
                %v870 = vld [vmem:[%s148 + $0x2d00] sm:$0xff]
                %871 = vst [vmem:[%s149 + $0xb40] sm:$0xff] %v870
                %v872 = vld [vmem:[%s148 + $0x2d08] sm:$0xff]
                %873 = vst [vmem:[%s149 + $0xb48] sm:$0xff] %v872
                %v874 = vld [vmem:[%s148 + $0x2d10] sm:$0xff]
                %875 = vst [vmem:[%s149 + $0xb50] sm:$0xff] %v874
                %v876 = vld [vmem:[%s148 + $0x2d18] sm:$0xff]
                %877 = vst [vmem:[%s149 + $0xb58] sm:$0xff] %v876
                %v878 = vld [vmem:[%s148 + $0x2d80] sm:$0xff]
                %879 = vst [vmem:[%s149 + $0xb60] sm:$0xff] %v878
                %v880 = vld [vmem:[%s148 + $0x2d88] sm:$0xff]
                %881 = vst [vmem:[%s149 + $0xb68] sm:$0xff] %v880
                %v882 = vld [vmem:[%s148 + $0x2d90] sm:$0xff]
                %883 = vst [vmem:[%s149 + $0xb70] sm:$0xff] %v882
                %v884 = vld [vmem:[%s148 + $0x2d98] sm:$0xff]
                %885 = vst [vmem:[%s149 + $0xb78] sm:$0xff] %v884
                %v886 = vld [vmem:[%s148 + $0x2e00] sm:$0xff]
                %887 = vst [vmem:[%s149 + $0xb80] sm:$0xff] %v886
                %v888 = vld [vmem:[%s148 + $0x2e08] sm:$0xff]
                %889 = vst [vmem:[%s149 + $0xb88] sm:$0xff] %v888
                %v890 = vld [vmem:[%s148 + $0x2e10] sm:$0xff]
                %891 = vst [vmem:[%s149 + $0xb90] sm:$0xff] %v890
                %v892 = vld [vmem:[%s148 + $0x2e18] sm:$0xff]
                %893 = vst [vmem:[%s149 + $0xb98] sm:$0xff] %v892
                %v894 = vld [vmem:[%s148 + $0x2e80] sm:$0xff]
                %895 = vst [vmem:[%s149 + $0xba0] sm:$0xff] %v894
                %v896 = vld [vmem:[%s148 + $0x2e88] sm:$0xff]
                %897 = vst [vmem:[%s149 + $0xba8] sm:$0xff] %v896
                %v898 = vld [vmem:[%s148 + $0x2e90] sm:$0xff]
                %899 = vst [vmem:[%s149 + $0xbb0] sm:$0xff] %v898
                %v900 = vld [vmem:[%s148 + $0x2e98] sm:$0xff]
                %901 = vst [vmem:[%s149 + $0xbb8] sm:$0xff] %v900
                %v902 = vld [vmem:[%s148 + $0x2f00] sm:$0xff]
                %903 = vst [vmem:[%s149 + $0xbc0] sm:$0xff] %v902
                %v904 = vld [vmem:[%s148 + $0x2f08] sm:$0xff]
                %905 = vst [vmem:[%s149 + $0xbc8] sm:$0xff] %v904
                %v906 = vld [vmem:[%s148 + $0x2f10] sm:$0xff]
                %907 = vst [vmem:[%s149 + $0xbd0] sm:$0xff] %v906
                %v908 = vld [vmem:[%s148 + $0x2f18] sm:$0xff]
                %909 = vst [vmem:[%s149 + $0xbd8] sm:$0xff] %v908
                %v910 = vld [vmem:[%s148 + $0x2f80] sm:$0xff]
                %911 = vst [vmem:[%s149 + $0xbe0] sm:$0xff] %v910
                %v912 = vld [vmem:[%s148 + $0x2f88] sm:$0xff]
                %913 = vst [vmem:[%s149 + $0xbe8] sm:$0xff] %v912
                %v914 = vld [vmem:[%s148 + $0x2f90] sm:$0xff]
                %915 = vst [vmem:[%s149 + $0xbf0] sm:$0xff] %v914
                %v916 = vld [vmem:[%s148 + $0x2f98] sm:$0xff]
                %917 = vst [vmem:[%s149 + $0xbf8] sm:$0xff] %v916
                %v918 = vld [vmem:[%s148 + $0x3000] sm:$0xff]
                %919 = vst [vmem:[%s149 + $0xc00] sm:$0xff] %v918
                %v920 = vld [vmem:[%s148 + $0x3008] sm:$0xff]
                %921 = vst [vmem:[%s149 + $0xc08] sm:$0xff] %v920
                %v922 = vld [vmem:[%s148 + $0x3010] sm:$0xff]
                %923 = vst [vmem:[%s149 + $0xc10] sm:$0xff] %v922
                %v924 = vld [vmem:[%s148 + $0x3018] sm:$0xff]
                %925 = vst [vmem:[%s149 + $0xc18] sm:$0xff] %v924
                %v926 = vld [vmem:[%s148 + $0x3080] sm:$0xff]
                %927 = vst [vmem:[%s149 + $0xc20] sm:$0xff] %v926
                %v928 = vld [vmem:[%s148 + $0x3088] sm:$0xff]
                %929 = vst [vmem:[%s149 + $0xc28] sm:$0xff] %v928
                %v930 = vld [vmem:[%s148 + $0x3090] sm:$0xff]
                %931 = vst [vmem:[%s149 + $0xc30] sm:$0xff] %v930
                %v932 = vld [vmem:[%s148 + $0x3098] sm:$0xff]
                %933 = vst [vmem:[%s149 + $0xc38] sm:$0xff] %v932
              $region41: #{_lambda_.37} parent=35 // loop_footer
                %s147 = sadd.s32 1, %s143
              $region42: #{_lambda_.37} parent=35 // loop_footer_branch
                %142 = sbr.rel target = $region38
              $region43: #{_lambda_.37} parent=35 // loop_exit
                _
            $region36: #{_lambda_.37} parent=31 // pred_fallthru
              _
            // Predicated region
            $region44: #{_lambda_.37} parent=31 // pred_check
              _
            $region45: #{_lambda_.37} parent=31 // pred_check_branch
              %935 = sbr.rel target = $region47
            $region46: #{_lambda_.37} parent=31 // pred_region
              _
            $region47: #{_lambda_.37} parent=31 // pred_fallthru
              _
          $region32: #{_lambda_.37} parent=27 // pred_fallthru
            _
          %936 = vnop
        $region28: #{_lambda_.37} parent=23 // pred_fallthru
          _
      $region24: #{_lambda_.37} parent=5 // pred_fallthru
        _
      %p937 = scmp.le.s32.totalorder 1, %s9
      %p938 = scmp.lt.s32.totalorder %s9, 5
      %p939 = pnand %p937, %p938
      %p940 = pneg %p939
      // Predicated region
      $region48: #{_lambda_.37} parent=5 // pred_check
        _
      $region49: #{_lambda_.37} parent=5 // pred_check_branch
        %942 = sbr.rel (%p939) target = $region51
      $region50: #{_lambda_.37} parent=5 // pred_region
        %s943 = ssub.s32 %s9, 1
        %s944 = sand.u32 %s43, 1
        %s945 = sand.u32 %s43, 1
        %s946 = smul.addr %s945, 3136
        %s947 = scalar_lea.vmem [#allocation2], %s946
        // Predicated region
        $region52: #{_lambda_.37} parent=50 // pred_check
          %p948 = pneg %p56
        $region53: #{_lambda_.37} parent=50 // pred_check_branch
          %950 = sbr.rel (%p948) target = $region55
        $region54: #{_lambda_.37} parent=50 // pred_region
          _
        $region55: #{_lambda_.37} parent=50 // pred_fallthru
          _
        %p951 = pneg %p30
        %p952 = pneg %p27
        %s953 = sand.u32 %s43, 1
        %s954 = sand.u32 %s43, 1
        %s955 = smul.addr %s954, 3136
        %s956 = scalar_lea.vmem [#allocation2], %s955
        %p957 = pneg %p56
        %p958 = pneg %p53
        %p959 = pneg %p77
        %p960 = pneg %p74
        %p961 = pneg %p103
        %p962 = pneg %p100
        %s963 = smul.u32 4, %s14
        %p964 = scmp.lt.s32.totalorder %s963, 15
        %s965 = scalar_select %p964, %s963, 15
        %s966 = smul.addr %s965, 4
        %s967 = scalar_lea.vmem %s3, %s966
        %s968 = smul.u32 4, %s14
        %s969 = smul.u32 4, %s14
        %p970 = scmp.lt.s32.totalorder %s969, 15
        %s971 = scalar_select %p970, %s969, 15
        %s972 = smul.addr %s971, 4
        %s973 = scalar_lea.vmem %s3, %s972
        %s974 = smul.u32 4, %s14
        %v975 = vld [vmem:[%s0] sm:$0x77]
        %v976 = vld [vmem:[%s0 + $0x8] sm:$0x77]
        %v977 = vld [vmem:[%s0 + $0x10] sm:$0x77]
        %v978 = vld [vmem:[%s0 + $0x18] sm:$0x7]
        %v979 = vld [vmem:[%s947] sm:$0xff]
        %v980 = vld [vmem:[%s947 + $0x8] sm:$0xff]
        %v981 = vld [vmem:[%s947 + $0x10] sm:$0xff]
        %v982 = vld [vmem:[%s947 + $0x18] sm:$0xff]
        %v983 = vld [vmem:[%s947 + $0x20] sm:$0xff]
        %v984 = vld [vmem:[%s947 + $0x28] sm:$0xff]
        %v985 = vld [vmem:[%s947 + $0x30] sm:$0xff]
        %v986 = vld [vmem:[%s947 + $0x38] sm:$0xff]
        %v987 = vld [vmem:[%s947 + $0x40] sm:$0xff]
        %v988 = vld [vmem:[%s947 + $0x48] sm:$0xff]
        %v989 = vld [vmem:[%s947 + $0x50] sm:$0xff]
        %v990 = vld [vmem:[%s947 + $0x58] sm:$0xff]
        %v991 = vld [vmem:[%s947 + $0x60] sm:$0xff]
        %v992 = vld [vmem:[%s947 + $0x68] sm:$0xff]
        %v993 = vld [vmem:[%s947 + $0x70] sm:$0xff]
        %v994 = vld [vmem:[%s947 + $0x78] sm:$0xff]
        %v995 = vld [vmem:[%s947 + $0x80] sm:$0xff]
        %v996 = vld [vmem:[%s947 + $0x88] sm:$0xff]
        %v997 = vld [vmem:[%s947 + $0x90] sm:$0xff]
        %v998 = vld [vmem:[%s947 + $0x98] sm:$0xff]
        %v999 = vld [vmem:[%s947 + $0xa0] sm:$0xff]
        %v1000 = vld [vmem:[%s947 + $0xa8] sm:$0xff]
        %v1001 = vld [vmem:[%s947 + $0xb0] sm:$0xff]
        %v1002 = vld [vmem:[%s947 + $0xb8] sm:$0xff]
        %v1003 = vld [vmem:[%s947 + $0xc0] sm:$0xff]
        %v1004 = vld [vmem:[%s947 + $0xc8] sm:$0xff]
        %v1005 = vld [vmem:[%s947 + $0xd0] sm:$0xff]
        %v1006 = vld [vmem:[%s947 + $0xd8] sm:$0xff]
        %v1007 = vld [vmem:[%s947 + $0xe0] sm:$0xff]
        %v1008 = vld [vmem:[%s947 + $0xe8] sm:$0xff]
        %v1009 = vld [vmem:[%s947 + $0xf0] sm:$0xff]
        %v1010 = vld [vmem:[%s947 + $0xf8] sm:$0xff]
        %v1011 = vld [vmem:[%s947 + $0x100] sm:$0xff]
        %v1012 = vld [vmem:[%s947 + $0x108] sm:$0xff]
        %v1013 = vld [vmem:[%s947 + $0x110] sm:$0xff]
        %v1014 = vld [vmem:[%s947 + $0x118] sm:$0xff]
        %v1015 = vld [vmem:[%s947 + $0x120] sm:$0xff]
        %v1016 = vld [vmem:[%s947 + $0x128] sm:$0xff]
        %v1017 = vld [vmem:[%s947 + $0x130] sm:$0xff]
        %v1018 = vld [vmem:[%s947 + $0x138] sm:$0xff]
        %v1019 = vld [vmem:[%s947 + $0x140] sm:$0xff]
        %v1020 = vld [vmem:[%s947 + $0x148] sm:$0xff]
        %v1021 = vld [vmem:[%s947 + $0x150] sm:$0xff]
        %v1022 = vld [vmem:[%s947 + $0x158] sm:$0xff]
        %v1023 = vld [vmem:[%s947 + $0x160] sm:$0xff]
        %v1024 = vld [vmem:[%s947 + $0x168] sm:$0xff]
        %v1025 = vld [vmem:[%s947 + $0x170] sm:$0xff]
        %v1026 = vld [vmem:[%s947 + $0x178] sm:$0xff]
        %v1027 = vld [vmem:[%s947 + $0x180] sm:$0xff]
        %v1028 = vld [vmem:[%s947 + $0x188] sm:$0xff]
        %v1029 = vld [vmem:[%s947 + $0x190] sm:$0xff]
        %v1030 = vld [vmem:[%s947 + $0x198] sm:$0xff]
        %v1031 = vld [vmem:[%s947 + $0x1a0] sm:$0xff]
        %v1032 = vld [vmem:[%s947 + $0x1a8] sm:$0xff]
        %v1033 = vld [vmem:[%s947 + $0x1b0] sm:$0xff]
        %v1034 = vld [vmem:[%s947 + $0x1b8] sm:$0xff]
        %v1035 = vld [vmem:[%s947 + $0x1c0] sm:$0xff]
        %v1036 = vld [vmem:[%s947 + $0x1c8] sm:$0xff]
        %v1037 = vld [vmem:[%s947 + $0x1d0] sm:$0xff]
        %v1038 = vld [vmem:[%s947 + $0x1d8] sm:$0xff]
        %v1039 = vld [vmem:[%s947 + $0x1e0] sm:$0xff]
        %v1040 = vld [vmem:[%s947 + $0x1e8] sm:$0xff]
        %v1041 = vld [vmem:[%s947 + $0x1f0] sm:$0xff]
        %v1042 = vld [vmem:[%s947 + $0x1f8] sm:$0xff]
        %v1043 = vld [vmem:[%s947 + $0x200] sm:$0xff]
        %v1044 = vld [vmem:[%s947 + $0x208] sm:$0xff]
        %v1045 = vld [vmem:[%s947 + $0x210] sm:$0xff]
        %v1046 = vld [vmem:[%s947 + $0x218] sm:$0xff]
        %v1047 = vld [vmem:[%s947 + $0x220] sm:$0xff]
        %v1048 = vld [vmem:[%s947 + $0x228] sm:$0xff]
        %v1049 = vld [vmem:[%s947 + $0x230] sm:$0xff]
        %v1050 = vld [vmem:[%s947 + $0x238] sm:$0xff]
        %v1051 = vld [vmem:[%s947 + $0x240] sm:$0xff]
        %v1052 = vld [vmem:[%s947 + $0x248] sm:$0xff]
        %v1053 = vld [vmem:[%s947 + $0x250] sm:$0xff]
        %v1054 = vld [vmem:[%s947 + $0x258] sm:$0xff]
        %v1055 = vld [vmem:[%s947 + $0x260] sm:$0xff]
        %v1056 = vld [vmem:[%s947 + $0x268] sm:$0xff]
        %v1057 = vld [vmem:[%s947 + $0x270] sm:$0xff]
        %v1058 = vld [vmem:[%s947 + $0x278] sm:$0xff]
        %v1059 = vld [vmem:[%s947 + $0x280] sm:$0xff]
        %v1060 = vld [vmem:[%s947 + $0x288] sm:$0xff]
        %v1061 = vld [vmem:[%s947 + $0x290] sm:$0xff]
        %v1062 = vld [vmem:[%s947 + $0x298] sm:$0xff]
        %v1063 = vld [vmem:[%s947 + $0x2a0] sm:$0xff]
        %v1064 = vld [vmem:[%s947 + $0x2a8] sm:$0xff]
        %v1065 = vld [vmem:[%s947 + $0x2b0] sm:$0xff]
        %v1066 = vld [vmem:[%s947 + $0x2b8] sm:$0xff]
        %v1067 = vld [vmem:[%s947 + $0x2c0] sm:$0xff]
        %v1068 = vld [vmem:[%s947 + $0x2c8] sm:$0xff]
        %v1069 = vld [vmem:[%s947 + $0x2d0] sm:$0xff]
        %v1070 = vld [vmem:[%s947 + $0x2d8] sm:$0xff]
        %v1071 = vld [vmem:[%s947 + $0x2e0] sm:$0xff]
        %v1072 = vld [vmem:[%s947 + $0x2e8] sm:$0xff]
        %v1073 = vld [vmem:[%s947 + $0x2f0] sm:$0xff]
        %v1074 = vld [vmem:[%s947 + $0x2f8] sm:$0xff]
        %v1075 = vld [vmem:[%s947 + $0x300] sm:$0xff]
        %v1076 = vld [vmem:[%s947 + $0x308] sm:$0xff]
        %v1077 = vld [vmem:[%s947 + $0x310] sm:$0xff]
        %v1078 = vld [vmem:[%s947 + $0x318] sm:$0xff]
        %v1079 = vld [vmem:[%s947 + $0x320] sm:$0xff]
        %v1080 = vld [vmem:[%s947 + $0x328] sm:$0xff]
        %v1081 = vld [vmem:[%s947 + $0x330] sm:$0xff]
        %v1082 = vld [vmem:[%s947 + $0x338] sm:$0xff]
        %v1083 = vld [vmem:[%s947 + $0x340] sm:$0xff]
        %v1084 = vld [vmem:[%s947 + $0x348] sm:$0xff]
        %v1085 = vld [vmem:[%s947 + $0x350] sm:$0xff]
        %v1086 = vld [vmem:[%s947 + $0x358] sm:$0xff]
        %v1087 = vld [vmem:[%s947 + $0x360] sm:$0xff]
        %v1088 = vld [vmem:[%s947 + $0x368] sm:$0xff]
        %v1089 = vld [vmem:[%s947 + $0x370] sm:$0xff]
        %v1090 = vld [vmem:[%s947 + $0x378] sm:$0xff]
        %v1091 = vld [vmem:[%s947 + $0x380] sm:$0xff]
        %v1092 = vld [vmem:[%s947 + $0x388] sm:$0xff]
        %v1093 = vld [vmem:[%s947 + $0x390] sm:$0xff]
        %v1094 = vld [vmem:[%s947 + $0x398] sm:$0xff]
        %v1095 = vld [vmem:[%s947 + $0x3a0] sm:$0xff]
        %v1096 = vld [vmem:[%s947 + $0x3a8] sm:$0xff]
        %v1097 = vld [vmem:[%s947 + $0x3b0] sm:$0xff]
        %v1098 = vld [vmem:[%s947 + $0x3b8] sm:$0xff]
        %v1099 = vld [vmem:[%s947 + $0x3c0] sm:$0xff]
        %v1100 = vld [vmem:[%s947 + $0x3c8] sm:$0xff]
        %v1101 = vld [vmem:[%s947 + $0x3d0] sm:$0xff]
        %v1102 = vld [vmem:[%s947 + $0x3d8] sm:$0xff]
        %v1103 = vld [vmem:[%s947 + $0x3e0] sm:$0xff]
        %v1104 = vld [vmem:[%s947 + $0x3e8] sm:$0xff]
        %v1105 = vld [vmem:[%s947 + $0x3f0] sm:$0xff]
        %v1106 = vld [vmem:[%s947 + $0x3f8] sm:$0xff]
        %v1107 = vld [vmem:[%s947 + $0x400] sm:$0xff]
        %v1108 = vld [vmem:[%s947 + $0x408] sm:$0xff]
        %v1109 = vld [vmem:[%s947 + $0x410] sm:$0xff]
        %v1110 = vld [vmem:[%s947 + $0x418] sm:$0xff]
        %v1111 = vld [vmem:[%s947 + $0x420] sm:$0xff]
        %v1112 = vld [vmem:[%s947 + $0x428] sm:$0xff]
        %v1113 = vld [vmem:[%s947 + $0x430] sm:$0xff]
        %v1114 = vld [vmem:[%s947 + $0x438] sm:$0xff]
        %v1115 = vld [vmem:[%s947 + $0x440] sm:$0xff]
        %v1116 = vld [vmem:[%s947 + $0x448] sm:$0xff]
        %v1117 = vld [vmem:[%s947 + $0x450] sm:$0xff]
        %v1118 = vld [vmem:[%s947 + $0x458] sm:$0xff]
        %v1119 = vld [vmem:[%s947 + $0x460] sm:$0xff]
        %v1120 = vld [vmem:[%s947 + $0x468] sm:$0xff]
        %v1121 = vld [vmem:[%s947 + $0x470] sm:$0xff]
        %v1122 = vld [vmem:[%s947 + $0x478] sm:$0xff]
        %v1123 = vld [vmem:[%s947 + $0x480] sm:$0xff]
        %v1124 = vld [vmem:[%s947 + $0x488] sm:$0xff]
        %v1125 = vld [vmem:[%s947 + $0x490] sm:$0xff]
        %v1126 = vld [vmem:[%s947 + $0x498] sm:$0xff]
        %v1127 = vld [vmem:[%s947 + $0x4a0] sm:$0xff]
        %v1128 = vld [vmem:[%s947 + $0x4a8] sm:$0xff]
        %v1129 = vld [vmem:[%s947 + $0x4b0] sm:$0xff]
        %v1130 = vld [vmem:[%s947 + $0x4b8] sm:$0xff]
        %v1131 = vld [vmem:[%s947 + $0x4c0] sm:$0xff]
        %v1132 = vld [vmem:[%s947 + $0x4c8] sm:$0xff]
        %v1133 = vld [vmem:[%s947 + $0x4d0] sm:$0xff]
        %v1134 = vld [vmem:[%s947 + $0x4d8] sm:$0xff]
        %v1135 = vld [vmem:[%s947 + $0x4e0] sm:$0xff]
        %v1136 = vld [vmem:[%s947 + $0x4e8] sm:$0xff]
        %v1137 = vld [vmem:[%s947 + $0x4f0] sm:$0xff]
        %v1138 = vld [vmem:[%s947 + $0x4f8] sm:$0xff]
        %v1139 = vld [vmem:[%s947 + $0x500] sm:$0xff]
        %v1140 = vld [vmem:[%s947 + $0x508] sm:$0xff]
        %v1141 = vld [vmem:[%s947 + $0x510] sm:$0xff]
        %v1142 = vld [vmem:[%s947 + $0x518] sm:$0xff]
        %v1143 = vld [vmem:[%s947 + $0x520] sm:$0xff]
        %v1144 = vld [vmem:[%s947 + $0x528] sm:$0xff]
        %v1145 = vld [vmem:[%s947 + $0x530] sm:$0xff]
        %v1146 = vld [vmem:[%s947 + $0x538] sm:$0xff]
        %v1147 = vld [vmem:[%s947 + $0x540] sm:$0xff]
        %v1148 = vld [vmem:[%s947 + $0x548] sm:$0xff]
        %v1149 = vld [vmem:[%s947 + $0x550] sm:$0xff]
        %v1150 = vld [vmem:[%s947 + $0x558] sm:$0xff]
        %v1151 = vld [vmem:[%s947 + $0x560] sm:$0xff]
        %v1152 = vld [vmem:[%s947 + $0x568] sm:$0xff]
        %v1153 = vld [vmem:[%s947 + $0x570] sm:$0xff]
        %v1154 = vld [vmem:[%s947 + $0x578] sm:$0xff]
        %v1155 = vld [vmem:[%s947 + $0x580] sm:$0xff]
        %v1156 = vld [vmem:[%s947 + $0x588] sm:$0xff]
        %v1157 = vld [vmem:[%s947 + $0x590] sm:$0xff]
        %v1158 = vld [vmem:[%s947 + $0x598] sm:$0xff]
        %v1159 = vld [vmem:[%s947 + $0x5a0] sm:$0xff]
        %v1160 = vld [vmem:[%s947 + $0x5a8] sm:$0xff]
        %v1161 = vld [vmem:[%s947 + $0x5b0] sm:$0xff]
        %v1162 = vld [vmem:[%s947 + $0x5b8] sm:$0xff]
        %v1163 = vld [vmem:[%s947 + $0x5c0] sm:$0xff]
        %v1164 = vld [vmem:[%s947 + $0x5c8] sm:$0xff]
        %v1165 = vld [vmem:[%s947 + $0x5d0] sm:$0xff]
        %v1166 = vld [vmem:[%s947 + $0x5d8] sm:$0xff]
        %v1167 = vld [vmem:[%s947 + $0x5e0] sm:$0xff]
        %v1168 = vld [vmem:[%s947 + $0x5e8] sm:$0xff]
        %v1169 = vld [vmem:[%s947 + $0x5f0] sm:$0xff]
        %v1170 = vld [vmem:[%s947 + $0x5f8] sm:$0xff]
        %v1171 = vld [vmem:[%s947 + $0x600] sm:$0xff]
        %v1172 = vld [vmem:[%s947 + $0x608] sm:$0xff]
        %v1173 = vld [vmem:[%s947 + $0x610] sm:$0xff]
        %v1174 = vld [vmem:[%s947 + $0x618] sm:$0xff]
        %v1175 = vld [vmem:[%s947 + $0x620] sm:$0xff]
        %v1176 = vld [vmem:[%s947 + $0x628] sm:$0xff]
        %v1177 = vld [vmem:[%s947 + $0x630] sm:$0xff]
        %v1178 = vld [vmem:[%s947 + $0x638] sm:$0xff]
        %v1179 = vld [vmem:[%s947 + $0x640] sm:$0xff]
        %v1180 = vld [vmem:[%s947 + $0x648] sm:$0xff]
        %v1181 = vld [vmem:[%s947 + $0x650] sm:$0xff]
        %v1182 = vld [vmem:[%s947 + $0x658] sm:$0xff]
        %v1183 = vld [vmem:[%s947 + $0x660] sm:$0xff]
        %v1184 = vld [vmem:[%s947 + $0x668] sm:$0xff]
        %v1185 = vld [vmem:[%s947 + $0x670] sm:$0xff]
        %v1186 = vld [vmem:[%s947 + $0x678] sm:$0xff]
        %v1187 = vld [vmem:[%s947 + $0x680] sm:$0xff]
        %v1188 = vld [vmem:[%s947 + $0x688] sm:$0xff]
        %v1189 = vld [vmem:[%s947 + $0x690] sm:$0xff]
        %v1190 = vld [vmem:[%s947 + $0x698] sm:$0xff]
        %v1191 = vld [vmem:[%s947 + $0x6a0] sm:$0xff]
        %v1192 = vld [vmem:[%s947 + $0x6a8] sm:$0xff]
        %v1193 = vld [vmem:[%s947 + $0x6b0] sm:$0xff]
        %v1194 = vld [vmem:[%s947 + $0x6b8] sm:$0xff]
        %v1195 = vld [vmem:[%s947 + $0x6c0] sm:$0xff]
        %v1196 = vld [vmem:[%s947 + $0x6c8] sm:$0xff]
        %v1197 = vld [vmem:[%s947 + $0x6d0] sm:$0xff]
        %v1198 = vld [vmem:[%s947 + $0x6d8] sm:$0xff]
        %v1199 = vld [vmem:[%s947 + $0x6e0] sm:$0xff]
        %v1200 = vld [vmem:[%s947 + $0x6e8] sm:$0xff]
        %v1201 = vld [vmem:[%s947 + $0x6f0] sm:$0xff]
        %v1202 = vld [vmem:[%s947 + $0x6f8] sm:$0xff]
        %v1203 = vld [vmem:[%s947 + $0x700] sm:$0xff]
        %v1204 = vld [vmem:[%s947 + $0x708] sm:$0xff]
        %v1205 = vld [vmem:[%s947 + $0x710] sm:$0xff]
        %v1206 = vld [vmem:[%s947 + $0x718] sm:$0xff]
        %v1207 = vld [vmem:[%s947 + $0x720] sm:$0xff]
        %v1208 = vld [vmem:[%s947 + $0x728] sm:$0xff]
        %v1209 = vld [vmem:[%s947 + $0x730] sm:$0xff]
        %v1210 = vld [vmem:[%s947 + $0x738] sm:$0xff]
        %v1211 = vld [vmem:[%s947 + $0x740] sm:$0xff]
        %v1212 = vld [vmem:[%s947 + $0x748] sm:$0xff]
        %v1213 = vld [vmem:[%s947 + $0x750] sm:$0xff]
        %v1214 = vld [vmem:[%s947 + $0x758] sm:$0xff]
        %v1215 = vld [vmem:[%s947 + $0x760] sm:$0xff]
        %v1216 = vld [vmem:[%s947 + $0x768] sm:$0xff]
        %v1217 = vld [vmem:[%s947 + $0x770] sm:$0xff]
        %v1218 = vld [vmem:[%s947 + $0x778] sm:$0xff]
        %v1219 = vld [vmem:[%s947 + $0x780] sm:$0xff]
        %v1220 = vld [vmem:[%s947 + $0x788] sm:$0xff]
        %v1221 = vld [vmem:[%s947 + $0x790] sm:$0xff]
        %v1222 = vld [vmem:[%s947 + $0x798] sm:$0xff]
        %v1223 = vld [vmem:[%s947 + $0x7a0] sm:$0xff]
        %v1224 = vld [vmem:[%s947 + $0x7a8] sm:$0xff]
        %v1225 = vld [vmem:[%s947 + $0x7b0] sm:$0xff]
        %v1226 = vld [vmem:[%s947 + $0x7b8] sm:$0xff]
        %v1227 = vld [vmem:[%s947 + $0x7c0] sm:$0xff]
        %v1228 = vld [vmem:[%s947 + $0x7c8] sm:$0xff]
        %v1229 = vld [vmem:[%s947 + $0x7d0] sm:$0xff]
        %v1230 = vld [vmem:[%s947 + $0x7d8] sm:$0xff]
        %v1231 = vld [vmem:[%s947 + $0x7e0] sm:$0xff]
        %v1232 = vld [vmem:[%s947 + $0x7e8] sm:$0xff]
        %v1233 = vld [vmem:[%s947 + $0x7f0] sm:$0xff]
        %v1234 = vld [vmem:[%s947 + $0x7f8] sm:$0xff]
        %v1235 = vld [vmem:[%s947 + $0x800] sm:$0xff]
        %v1236 = vld [vmem:[%s947 + $0x808] sm:$0xff]
        %v1237 = vld [vmem:[%s947 + $0x810] sm:$0xff]
        %v1238 = vld [vmem:[%s947 + $0x818] sm:$0xff]
        %v1239 = vld [vmem:[%s947 + $0x820] sm:$0xff]
        %v1240 = vld [vmem:[%s947 + $0x828] sm:$0xff]
        %v1241 = vld [vmem:[%s947 + $0x830] sm:$0xff]
        %v1242 = vld [vmem:[%s947 + $0x838] sm:$0xff]
        %v1243 = vld [vmem:[%s947 + $0x840] sm:$0xff]
        %v1244 = vld [vmem:[%s947 + $0x848] sm:$0xff]
        %v1245 = vld [vmem:[%s947 + $0x850] sm:$0xff]
        %v1246 = vld [vmem:[%s947 + $0x858] sm:$0xff]
        %v1247 = vld [vmem:[%s947 + $0x860] sm:$0xff]
        %v1248 = vld [vmem:[%s947 + $0x868] sm:$0xff]
        %v1249 = vld [vmem:[%s947 + $0x870] sm:$0xff]
        %v1250 = vld [vmem:[%s947 + $0x878] sm:$0xff]
        %v1251 = vld [vmem:[%s947 + $0x880] sm:$0xff]
        %v1252 = vld [vmem:[%s947 + $0x888] sm:$0xff]
        %v1253 = vld [vmem:[%s947 + $0x890] sm:$0xff]
        %v1254 = vld [vmem:[%s947 + $0x898] sm:$0xff]
        %v1255 = vld [vmem:[%s947 + $0x8a0] sm:$0xff]
        %v1256 = vld [vmem:[%s947 + $0x8a8] sm:$0xff]
        %v1257 = vld [vmem:[%s947 + $0x8b0] sm:$0xff]
        %v1258 = vld [vmem:[%s947 + $0x8b8] sm:$0xff]
        %v1259 = vld [vmem:[%s947 + $0x8c0] sm:$0xff]
        %v1260 = vld [vmem:[%s947 + $0x8c8] sm:$0xff]
        %v1261 = vld [vmem:[%s947 + $0x8d0] sm:$0xff]
        %v1262 = vld [vmem:[%s947 + $0x8d8] sm:$0xff]
        %v1263 = vld [vmem:[%s947 + $0x8e0] sm:$0xff]
        %v1264 = vld [vmem:[%s947 + $0x8e8] sm:$0xff]
        %v1265 = vld [vmem:[%s947 + $0x8f0] sm:$0xff]
        %v1266 = vld [vmem:[%s947 + $0x8f8] sm:$0xff]
        %v1267 = vld [vmem:[%s947 + $0x900] sm:$0xff]
        %v1268 = vld [vmem:[%s947 + $0x908] sm:$0xff]
        %v1269 = vld [vmem:[%s947 + $0x910] sm:$0xff]
        %v1270 = vld [vmem:[%s947 + $0x918] sm:$0xff]
        %v1271 = vld [vmem:[%s947 + $0x920] sm:$0xff]
        %v1272 = vld [vmem:[%s947 + $0x928] sm:$0xff]
        %v1273 = vld [vmem:[%s947 + $0x930] sm:$0xff]
        %v1274 = vld [vmem:[%s947 + $0x938] sm:$0xff]
        %v1275 = vld [vmem:[%s947 + $0x940] sm:$0xff]
        %v1276 = vld [vmem:[%s947 + $0x948] sm:$0xff]
        %v1277 = vld [vmem:[%s947 + $0x950] sm:$0xff]
        %v1278 = vld [vmem:[%s947 + $0x958] sm:$0xff]
        %v1279 = vld [vmem:[%s947 + $0x960] sm:$0xff]
        %v1280 = vld [vmem:[%s947 + $0x968] sm:$0xff]
        %v1281 = vld [vmem:[%s947 + $0x970] sm:$0xff]
        %v1282 = vld [vmem:[%s947 + $0x978] sm:$0xff]
        %v1283 = vld [vmem:[%s947 + $0x980] sm:$0xff]
        %v1284 = vld [vmem:[%s947 + $0x988] sm:$0xff]
        %v1285 = vld [vmem:[%s947 + $0x990] sm:$0xff]
        %v1286 = vld [vmem:[%s947 + $0x998] sm:$0xff]
        %v1287 = vld [vmem:[%s947 + $0x9a0] sm:$0xff]
        %v1288 = vld [vmem:[%s947 + $0x9a8] sm:$0xff]
        %v1289 = vld [vmem:[%s947 + $0x9b0] sm:$0xff]
        %v1290 = vld [vmem:[%s947 + $0x9b8] sm:$0xff]
        %v1291 = vld [vmem:[%s947 + $0x9c0] sm:$0xff]
        %v1292 = vld [vmem:[%s947 + $0x9c8] sm:$0xff]
        %v1293 = vld [vmem:[%s947 + $0x9d0] sm:$0xff]
        %v1294 = vld [vmem:[%s947 + $0x9d8] sm:$0xff]
        %v1295 = vld [vmem:[%s947 + $0x9e0] sm:$0xff]
        %v1296 = vld [vmem:[%s947 + $0x9e8] sm:$0xff]
        %v1297 = vld [vmem:[%s947 + $0x9f0] sm:$0xff]
        %v1298 = vld [vmem:[%s947 + $0x9f8] sm:$0xff]
        %v1299 = vld [vmem:[%s947 + $0xa00] sm:$0xff]
        %v1300 = vld [vmem:[%s947 + $0xa08] sm:$0xff]
        %v1301 = vld [vmem:[%s947 + $0xa10] sm:$0xff]
        %v1302 = vld [vmem:[%s947 + $0xa18] sm:$0xff]
        %v1303 = vld [vmem:[%s947 + $0xa20] sm:$0xff]
        %v1304 = vld [vmem:[%s947 + $0xa28] sm:$0xff]
        %v1305 = vld [vmem:[%s947 + $0xa30] sm:$0xff]
        %v1306 = vld [vmem:[%s947 + $0xa38] sm:$0xff]
        %v1307 = vld [vmem:[%s947 + $0xa40] sm:$0xff]
        %v1308 = vld [vmem:[%s947 + $0xa48] sm:$0xff]
        %v1309 = vld [vmem:[%s947 + $0xa50] sm:$0xff]
        %v1310 = vld [vmem:[%s947 + $0xa58] sm:$0xff]
        %v1311 = vld [vmem:[%s947 + $0xa60] sm:$0xff]
        %v1312 = vld [vmem:[%s947 + $0xa68] sm:$0xff]
        %v1313 = vld [vmem:[%s947 + $0xa70] sm:$0xff]
        %v1314 = vld [vmem:[%s947 + $0xa78] sm:$0xff]
        %v1315 = vld [vmem:[%s947 + $0xa80] sm:$0xff]
        %v1316 = vld [vmem:[%s947 + $0xa88] sm:$0xff]
        %v1317 = vld [vmem:[%s947 + $0xa90] sm:$0xff]
        %v1318 = vld [vmem:[%s947 + $0xa98] sm:$0xff]
        %v1319 = vld [vmem:[%s947 + $0xaa0] sm:$0xff]
        %v1320 = vld [vmem:[%s947 + $0xaa8] sm:$0xff]
        %v1321 = vld [vmem:[%s947 + $0xab0] sm:$0xff]
        %v1322 = vld [vmem:[%s947 + $0xab8] sm:$0xff]
        %v1323 = vld [vmem:[%s947 + $0xac0] sm:$0xff]
        %v1324 = vld [vmem:[%s947 + $0xac8] sm:$0xff]
        %v1325 = vld [vmem:[%s947 + $0xad0] sm:$0xff]
        %v1326 = vld [vmem:[%s947 + $0xad8] sm:$0xff]
        %v1327 = vld [vmem:[%s947 + $0xae0] sm:$0xff]
        %v1328 = vld [vmem:[%s947 + $0xae8] sm:$0xff]
        %v1329 = vld [vmem:[%s947 + $0xaf0] sm:$0xff]
        %v1330 = vld [vmem:[%s947 + $0xaf8] sm:$0xff]
        %v1331 = vld [vmem:[%s947 + $0xb00] sm:$0xff]
        %v1332 = vld [vmem:[%s947 + $0xb08] sm:$0xff]
        %v1333 = vld [vmem:[%s947 + $0xb10] sm:$0xff]
        %v1334 = vld [vmem:[%s947 + $0xb18] sm:$0xff]
        %v1335 = vld [vmem:[%s947 + $0xb20] sm:$0xff]
        %v1336 = vld [vmem:[%s947 + $0xb28] sm:$0xff]
        %v1337 = vld [vmem:[%s947 + $0xb30] sm:$0xff]
        %v1338 = vld [vmem:[%s947 + $0xb38] sm:$0xff]
        %v1339 = vld [vmem:[%s947 + $0xb40] sm:$0xff]
        %v1340 = vld [vmem:[%s947 + $0xb48] sm:$0xff]
        %v1341 = vld [vmem:[%s947 + $0xb50] sm:$0xff]
        %v1342 = vld [vmem:[%s947 + $0xb58] sm:$0xff]
        %v1343 = vld [vmem:[%s947 + $0xb60] sm:$0xff]
        %v1344 = vld [vmem:[%s947 + $0xb68] sm:$0xff]
        %v1345 = vld [vmem:[%s947 + $0xb70] sm:$0xff]
        %v1346 = vld [vmem:[%s947 + $0xb78] sm:$0xff]
        %v1347 = vld [vmem:[%s947 + $0xb80] sm:$0xff]
        %v1348 = vld [vmem:[%s947 + $0xb88] sm:$0xff]
        %v1349 = vld [vmem:[%s947 + $0xb90] sm:$0xff]
        %v1350 = vld [vmem:[%s947 + $0xb98] sm:$0xff]
        %v1351 = vld [vmem:[%s947 + $0xba0] sm:$0xff]
        %v1352 = vld [vmem:[%s947 + $0xba8] sm:$0xff]
        %v1353 = vld [vmem:[%s947 + $0xbb0] sm:$0xff]
        %v1354 = vld [vmem:[%s947 + $0xbb8] sm:$0xff]
        %v1355 = vld [vmem:[%s947 + $0xbc0] sm:$0xff]
        %v1356 = vld [vmem:[%s947 + $0xbc8] sm:$0xff]
        %v1357 = vld [vmem:[%s947 + $0xbd0] sm:$0xff]
        %v1358 = vld [vmem:[%s947 + $0xbd8] sm:$0xff]
        %v1359 = vld [vmem:[%s947 + $0xbe0] sm:$0xff]
        %v1360 = vld [vmem:[%s947 + $0xbe8] sm:$0xff]
        %v1361 = vld [vmem:[%s947 + $0xbf0] sm:$0xff]
        %v1362 = vld [vmem:[%s947 + $0xbf8] sm:$0xff]
        %v1363 = vld [vmem:[%s947 + $0xc00] sm:$0xff]
        %v1364 = vld [vmem:[%s947 + $0xc08] sm:$0xff]
        %v1365 = vld [vmem:[%s947 + $0xc10] sm:$0xff]
        %v1366 = vld [vmem:[%s947 + $0xc18] sm:$0xff]
        %v1367 = vld [vmem:[%s947 + $0xc20] sm:$0xff]
        %v1368 = vld [vmem:[%s947 + $0xc28] sm:$0xff]
        %v1369 = vld [vmem:[%s947 + $0xc30] sm:$0xff]
        %v1370 = vld [vmem:[%s947 + $0xc38] sm:$0xff]
        %v1371 = vld [vmem:[%s2] sm:$0x7]
        %1373 = vset.pattern.permute.xlu0 0
        %1374 = vperm.xlu0 %1373, %v1371
        %v1375 = vpop.permute.xlu0 %1374
        %1381 = vst [vmem:[#allocation1] ss:$2 sm:$0xff] %v975
        %s1382 = scalar_lea.vmem [#allocation1], 16
        %1383 = vst [vmem:[%s1382] ss:$2 sm:$0xff] %v976
        %s1384 = scalar_lea.vmem [#allocation1], 32
        %1385 = vst [vmem:[%s1384] ss:$2 sm:$0xff] %v977
        %s1386 = scalar_lea.vmem [#allocation1], 48
        %1387 = vst [vmem:[%s1386] ss:$2 sm:$0xff] %v978
        %v1388 = vld.sshfl [vmem:[#allocation1] sm:$0xff pattern:$0x75316420]
        %v1389 = vld.sshfl [vmem:[#allocation1 + $0x8] sm:$0xff pattern:$0x75316420]
        %v1390 = vld.sshfl [vmem:[#allocation1 + $0x10] sm:$0xff pattern:$0x75316420]
        %v1391 = vld.sshfl [vmem:[#allocation1 + $0x18] sm:$0xff pattern:$0x75316420]
        %v1392 = vld.sshfl [vmem:[#allocation1 + $0x20] sm:$0xff pattern:$0x75316420]
        %v1393 = vld.sshfl [vmem:[#allocation1 + $0x28] sm:$0xff pattern:$0x75316420]
        %v1394 = vld.sshfl [vmem:[#allocation1 + $0x30] sm:$0xff pattern:$0x75316420]
        %vm1401 = vcmask 130048
        %v1402 = vsel %vm1401, %v1394, 0
        %1404 = vmatpush.msra.mxu0 %v1039
        %1405 = vmatpush.msra.mxu0 %v1035
        %1406 = vmatpush.msra.mxu0 %v1031
        %1407 = vmatpush.msra.mxu0 %v1027
        %1408 = vmatpush.msra.mxu0 %v1023
        %1409 = vmatpush.msra.mxu0 %v1019
        %1410 = vmatpush.msra.mxu0 %v1015
        %1411 = vmatpush.msra.mxu0 %v1011
        %1412 = vmatpush.msra.mxu0 %v1007
        %1413 = vmatpush.msra.mxu0 %v1003
        %1414 = vmatpush.msra.mxu0 %v999
        %1415 = vmatpush.msra.mxu0 %v995
        %1416 = vmatpush.msra.mxu0 %v991
        %1417 = vmatpush.msra.mxu0 %v987
        %1418 = vmatpush.msra.mxu0 %v983
        %1419 = vmatpush.msra.mxu0 %v979
        %1420 = vmatmul.f32.gmra.mxu0 %v1388
        %v1421 = vpop.f32.mrf.mxu0
        %v1422 = vadd.f32 %v1375, %v1421
        %1423 = vdwg.mxu0
        %1424 = vmatpush.msra.mxu0 %v1103
        %1425 = vmatpush.msra.mxu0 %v1099
        %1426 = vmatpush.msra.mxu0 %v1095
        %1427 = vmatpush.msra.mxu0 %v1091
        %1428 = vmatpush.msra.mxu0 %v1087
        %1429 = vmatpush.msra.mxu0 %v1083
        %1430 = vmatpush.msra.mxu0 %v1079
        %1431 = vmatpush.msra.mxu0 %v1075
        %1432 = vmatpush.msra.mxu0 %v1071
        %1433 = vmatpush.msra.mxu0 %v1067
        %1434 = vmatpush.msra.mxu0 %v1063
        %1435 = vmatpush.msra.mxu0 %v1059
        %1436 = vmatpush.msra.mxu0 %v1055
        %1437 = vmatpush.msra.mxu0 %v1051
        %1438 = vmatpush.msra.mxu0 %v1047
        %1439 = vmatpush.msra.mxu0 %v1043
        %1440 = vmatmul.f32.gmra.mxu0 %v1389
        %v1441 = vpop.f32.mrf.mxu0
        %v1442 = vadd.f32 %v1422, %v1441
        %1443 = vdwg.mxu0
        %1444 = vmatpush.msra.mxu0 %v1167
        %1445 = vmatpush.msra.mxu0 %v1163
        %1446 = vmatpush.msra.mxu0 %v1159
        %1447 = vmatpush.msra.mxu0 %v1155
        %1448 = vmatpush.msra.mxu0 %v1151
        %1449 = vmatpush.msra.mxu0 %v1147
        %1450 = vmatpush.msra.mxu0 %v1143
        %1451 = vmatpush.msra.mxu0 %v1139
        %1452 = vmatpush.msra.mxu0 %v1135
        %1453 = vmatpush.msra.mxu0 %v1131
        %1454 = vmatpush.msra.mxu0 %v1127
        %1455 = vmatpush.msra.mxu0 %v1123
        %1456 = vmatpush.msra.mxu0 %v1119
        %1457 = vmatpush.msra.mxu0 %v1115
        %1458 = vmatpush.msra.mxu0 %v1111
        %1459 = vmatpush.msra.mxu0 %v1107
        %1460 = vmatmul.f32.gmra.mxu0 %v1390
        %v1461 = vpop.f32.mrf.mxu0
        %v1462 = vadd.f32 %v1442, %v1461
        %1463 = vdwg.mxu0
        %1464 = vmatpush.msra.mxu0 %v1231
        %1465 = vmatpush.msra.mxu0 %v1227
        %1466 = vmatpush.msra.mxu0 %v1223
        %1467 = vmatpush.msra.mxu0 %v1219
        %1468 = vmatpush.msra.mxu0 %v1215
        %1469 = vmatpush.msra.mxu0 %v1211
        %1470 = vmatpush.msra.mxu0 %v1207
        %1471 = vmatpush.msra.mxu0 %v1203
        %1472 = vmatpush.msra.mxu0 %v1199
        %1473 = vmatpush.msra.mxu0 %v1195
        %1474 = vmatpush.msra.mxu0 %v1191
        %1475 = vmatpush.msra.mxu0 %v1187
        %1476 = vmatpush.msra.mxu0 %v1183
        %1477 = vmatpush.msra.mxu0 %v1179
        %1478 = vmatpush.msra.mxu0 %v1175
        %1479 = vmatpush.msra.mxu0 %v1171
        %1480 = vmatmul.f32.gmra.mxu0 %v1391
        %v1481 = vpop.f32.mrf.mxu0
        %v1482 = vadd.f32 %v1462, %v1481
        %1483 = vdwg.mxu0
        %1484 = vmatpush.msra.mxu0 %v1295
        %1485 = vmatpush.msra.mxu0 %v1291
        %1486 = vmatpush.msra.mxu0 %v1287
        %1487 = vmatpush.msra.mxu0 %v1283
        %1488 = vmatpush.msra.mxu0 %v1279
        %1489 = vmatpush.msra.mxu0 %v1275
        %1490 = vmatpush.msra.mxu0 %v1271
        %1491 = vmatpush.msra.mxu0 %v1267
        %1492 = vmatpush.msra.mxu0 %v1263
        %1493 = vmatpush.msra.mxu0 %v1259
        %1494 = vmatpush.msra.mxu0 %v1255
        %1495 = vmatpush.msra.mxu0 %v1251
        %1496 = vmatpush.msra.mxu0 %v1247
        %1497 = vmatpush.msra.mxu0 %v1243
        %1498 = vmatpush.msra.mxu0 %v1239
        %1499 = vmatpush.msra.mxu0 %v1235
        %1500 = vmatmul.f32.gmra.mxu0 %v1392
        %v1501 = vpop.f32.mrf.mxu0
        %v1502 = vadd.f32 %v1482, %v1501
        %1503 = vdwg.mxu0
        %1504 = vmatpush.msra.mxu0 %v1359
        %1505 = vmatpush.msra.mxu0 %v1355
        %1506 = vmatpush.msra.mxu0 %v1351
        %1507 = vmatpush.msra.mxu0 %v1347
        %1508 = vmatpush.msra.mxu0 %v1343
        %1509 = vmatpush.msra.mxu0 %v1339
        %1510 = vmatpush.msra.mxu0 %v1335
        %1511 = vmatpush.msra.mxu0 %v1331
        %1512 = vmatpush.msra.mxu0 %v1327
        %1513 = vmatpush.msra.mxu0 %v1323
        %1514 = vmatpush.msra.mxu0 %v1319
        %1515 = vmatpush.msra.mxu0 %v1315
        %1516 = vmatpush.msra.mxu0 %v1311
        %1517 = vmatpush.msra.mxu0 %v1307
        %1518 = vmatpush.msra.mxu0 %v1303
        %1519 = vmatpush.msra.mxu0 %v1299
        %1520 = vmatmul.f32.gmra.mxu0 %v1393
        %v1521 = vpop.f32.mrf.mxu0
        %v1522 = vadd.f32 %v1502, %v1521
        %1523 = vdwg.mxu0
        %1524 = vmatpush.msra.mxu0 0.0
        %1525 = vmatpush.msra.mxu0 0.0
        %1526 = vmatpush.msra.mxu0 0.0
        %1527 = vmatpush.msra.mxu0 0.0
        %1528 = vmatpush.msra.mxu0 0.0
        %1529 = vmatpush.msra.mxu0 0.0
        %1530 = vmatpush.msra.mxu0 0.0
        %1531 = vmatpush.msra.mxu0 0.0
        %1532 = vmatpush.msra.mxu0 0.0
        %1533 = vmatpush.msra.mxu0 0.0
        %1534 = vmatpush.msra.mxu0 0.0
        %1535 = vmatpush.msra.mxu0 0.0
        %1536 = vmatpush.msra.mxu0 0.0
        %1537 = vmatpush.msra.mxu0 0.0
        %1538 = vmatpush.msra.mxu0 %v1367
        %1539 = vmatpush.msra.mxu0 %v1363
        %1540 = vmatmul.f32.gmra.mxu0 %v1402
        %v1541 = vpop.f32.mrf.mxu0
        %v1542 = vadd.f32 %v1522, %v1541
        %1543 = vdwg.mxu0
        %1544 = vmatpush.msra.mxu0 %v1040
        %1545 = vmatpush.msra.mxu0 %v1036
        %1546 = vmatpush.msra.mxu0 %v1032
        %1547 = vmatpush.msra.mxu0 %v1028
        %1548 = vmatpush.msra.mxu0 %v1024
        %1549 = vmatpush.msra.mxu0 %v1020
        %1550 = vmatpush.msra.mxu0 %v1016
        %1551 = vmatpush.msra.mxu0 %v1012
        %1552 = vmatpush.msra.mxu0 %v1008
        %1553 = vmatpush.msra.mxu0 %v1004
        %1554 = vmatpush.msra.mxu0 %v1000
        %1555 = vmatpush.msra.mxu0 %v996
        %1556 = vmatpush.msra.mxu0 %v992
        %1557 = vmatpush.msra.mxu0 %v988
        %1558 = vmatpush.msra.mxu0 %v984
        %1559 = vmatpush.msra.mxu0 %v980
        %1560 = vmatmul.f32.gmra.mxu0 %v1388
        %v1561 = vpop.f32.mrf.mxu0
        %v1562 = vadd.f32 %v1375, %v1561
        %1563 = vdwg.mxu0
        %1564 = vmatpush.msra.mxu0 %v1104
        %1565 = vmatpush.msra.mxu0 %v1100
        %1566 = vmatpush.msra.mxu0 %v1096
        %1567 = vmatpush.msra.mxu0 %v1092
        %1568 = vmatpush.msra.mxu0 %v1088
        %1569 = vmatpush.msra.mxu0 %v1084
        %1570 = vmatpush.msra.mxu0 %v1080
        %1571 = vmatpush.msra.mxu0 %v1076
        %1572 = vmatpush.msra.mxu0 %v1072
        %1573 = vmatpush.msra.mxu0 %v1068
        %1574 = vmatpush.msra.mxu0 %v1064
        %1575 = vmatpush.msra.mxu0 %v1060
        %1576 = vmatpush.msra.mxu0 %v1056
        %1577 = vmatpush.msra.mxu0 %v1052
        %1578 = vmatpush.msra.mxu0 %v1048
        %1579 = vmatpush.msra.mxu0 %v1044
        %1580 = vmatmul.f32.gmra.mxu0 %v1389
        %v1581 = vpop.f32.mrf.mxu0
        %v1582 = vadd.f32 %v1562, %v1581
        %1583 = vdwg.mxu0
        %1584 = vmatpush.msra.mxu0 %v1168
        %1585 = vmatpush.msra.mxu0 %v1164
        %1586 = vmatpush.msra.mxu0 %v1160
        %1587 = vmatpush.msra.mxu0 %v1156
        %1588 = vmatpush.msra.mxu0 %v1152
        %1589 = vmatpush.msra.mxu0 %v1148
        %1590 = vmatpush.msra.mxu0 %v1144
        %1591 = vmatpush.msra.mxu0 %v1140
        %1592 = vmatpush.msra.mxu0 %v1136
        %1593 = vmatpush.msra.mxu0 %v1132
        %1594 = vmatpush.msra.mxu0 %v1128
        %1595 = vmatpush.msra.mxu0 %v1124
        %1596 = vmatpush.msra.mxu0 %v1120
        %1597 = vmatpush.msra.mxu0 %v1116
        %1598 = vmatpush.msra.mxu0 %v1112
        %1599 = vmatpush.msra.mxu0 %v1108
        %1600 = vmatmul.f32.gmra.mxu0 %v1390
        %v1601 = vpop.f32.mrf.mxu0
        %v1602 = vadd.f32 %v1582, %v1601
        %1603 = vdwg.mxu0
        %1604 = vmatpush.msra.mxu0 %v1232
        %1605 = vmatpush.msra.mxu0 %v1228
        %1606 = vmatpush.msra.mxu0 %v1224
        %1607 = vmatpush.msra.mxu0 %v1220
        %1608 = vmatpush.msra.mxu0 %v1216
        %1609 = vmatpush.msra.mxu0 %v1212
        %1610 = vmatpush.msra.mxu0 %v1208
        %1611 = vmatpush.msra.mxu0 %v1204
        %1612 = vmatpush.msra.mxu0 %v1200
        %1613 = vmatpush.msra.mxu0 %v1196
        %1614 = vmatpush.msra.mxu0 %v1192
        %1615 = vmatpush.msra.mxu0 %v1188
        %1616 = vmatpush.msra.mxu0 %v1184
        %1617 = vmatpush.msra.mxu0 %v1180
        %1618 = vmatpush.msra.mxu0 %v1176
        %1619 = vmatpush.msra.mxu0 %v1172
        %1620 = vmatmul.f32.gmra.mxu0 %v1391
        %v1621 = vpop.f32.mrf.mxu0
        %v1622 = vadd.f32 %v1602, %v1621
        %1623 = vdwg.mxu0
        %1624 = vmatpush.msra.mxu0 %v1296
        %1625 = vmatpush.msra.mxu0 %v1292
        %1626 = vmatpush.msra.mxu0 %v1288
        %1627 = vmatpush.msra.mxu0 %v1284
        %1628 = vmatpush.msra.mxu0 %v1280
        %1629 = vmatpush.msra.mxu0 %v1276
        %1630 = vmatpush.msra.mxu0 %v1272
        %1631 = vmatpush.msra.mxu0 %v1268
        %1632 = vmatpush.msra.mxu0 %v1264
        %1633 = vmatpush.msra.mxu0 %v1260
        %1634 = vmatpush.msra.mxu0 %v1256
        %1635 = vmatpush.msra.mxu0 %v1252
        %1636 = vmatpush.msra.mxu0 %v1248
        %1637 = vmatpush.msra.mxu0 %v1244
        %1638 = vmatpush.msra.mxu0 %v1240
        %1639 = vmatpush.msra.mxu0 %v1236
        %1640 = vmatmul.f32.gmra.mxu0 %v1392
        %v1641 = vpop.f32.mrf.mxu0
        %v1642 = vadd.f32 %v1622, %v1641
        %1643 = vdwg.mxu0
        %1644 = vmatpush.msra.mxu0 %v1360
        %1645 = vmatpush.msra.mxu0 %v1356
        %1646 = vmatpush.msra.mxu0 %v1352
        %1647 = vmatpush.msra.mxu0 %v1348
        %1648 = vmatpush.msra.mxu0 %v1344
        %1649 = vmatpush.msra.mxu0 %v1340
        %1650 = vmatpush.msra.mxu0 %v1336
        %1651 = vmatpush.msra.mxu0 %v1332
        %1652 = vmatpush.msra.mxu0 %v1328
        %1653 = vmatpush.msra.mxu0 %v1324
        %1654 = vmatpush.msra.mxu0 %v1320
        %1655 = vmatpush.msra.mxu0 %v1316
        %1656 = vmatpush.msra.mxu0 %v1312
        %1657 = vmatpush.msra.mxu0 %v1308
        %1658 = vmatpush.msra.mxu0 %v1304
        %1659 = vmatpush.msra.mxu0 %v1300
        %1660 = vmatmul.f32.gmra.mxu0 %v1393
        %v1661 = vpop.f32.mrf.mxu0
        %v1662 = vadd.f32 %v1642, %v1661
        %1663 = vdwg.mxu0
        %1664 = vmatpush.msra.mxu0 0.0
        %1665 = vmatpush.msra.mxu0 0.0
        %1666 = vmatpush.msra.mxu0 0.0
        %1667 = vmatpush.msra.mxu0 0.0
        %1668 = vmatpush.msra.mxu0 0.0
        %1669 = vmatpush.msra.mxu0 0.0
        %1670 = vmatpush.msra.mxu0 0.0
        %1671 = vmatpush.msra.mxu0 0.0
        %1672 = vmatpush.msra.mxu0 0.0
        %1673 = vmatpush.msra.mxu0 0.0
        %1674 = vmatpush.msra.mxu0 0.0
        %1675 = vmatpush.msra.mxu0 0.0
        %1676 = vmatpush.msra.mxu0 0.0
        %1677 = vmatpush.msra.mxu0 0.0
        %1678 = vmatpush.msra.mxu0 %v1368
        %1679 = vmatpush.msra.mxu0 %v1364
        %1680 = vmatmul.f32.gmra.mxu0 %v1402
        %v1681 = vpop.f32.mrf.mxu0
        %v1682 = vadd.f32 %v1662, %v1681
        %1683 = vdwg.mxu0
        %1684 = vmatpush.msra.mxu0 %v1041
        %1685 = vmatpush.msra.mxu0 %v1037
        %1686 = vmatpush.msra.mxu0 %v1033
        %1687 = vmatpush.msra.mxu0 %v1029
        %1688 = vmatpush.msra.mxu0 %v1025
        %1689 = vmatpush.msra.mxu0 %v1021
        %1690 = vmatpush.msra.mxu0 %v1017
        %1691 = vmatpush.msra.mxu0 %v1013
        %1692 = vmatpush.msra.mxu0 %v1009
        %1693 = vmatpush.msra.mxu0 %v1005
        %1694 = vmatpush.msra.mxu0 %v1001
        %1695 = vmatpush.msra.mxu0 %v997
        %1696 = vmatpush.msra.mxu0 %v993
        %1697 = vmatpush.msra.mxu0 %v989
        %1698 = vmatpush.msra.mxu0 %v985
        %1699 = vmatpush.msra.mxu0 %v981
        %1700 = vmatmul.f32.gmra.mxu0 %v1388
        %v1701 = vpop.f32.mrf.mxu0
        %v1702 = vadd.f32 %v1375, %v1701
        %1703 = vdwg.mxu0
        %1704 = vmatpush.msra.mxu0 %v1105
        %1705 = vmatpush.msra.mxu0 %v1101
        %1706 = vmatpush.msra.mxu0 %v1097
        %1707 = vmatpush.msra.mxu0 %v1093
        %1708 = vmatpush.msra.mxu0 %v1089
        %1709 = vmatpush.msra.mxu0 %v1085
        %1710 = vmatpush.msra.mxu0 %v1081
        %1711 = vmatpush.msra.mxu0 %v1077
        %1712 = vmatpush.msra.mxu0 %v1073
        %1713 = vmatpush.msra.mxu0 %v1069
        %1714 = vmatpush.msra.mxu0 %v1065
        %1715 = vmatpush.msra.mxu0 %v1061
        %1716 = vmatpush.msra.mxu0 %v1057
        %1717 = vmatpush.msra.mxu0 %v1053
        %1718 = vmatpush.msra.mxu0 %v1049
        %1719 = vmatpush.msra.mxu0 %v1045
        %1720 = vmatmul.f32.gmra.mxu0 %v1389
        %v1721 = vpop.f32.mrf.mxu0
        %v1722 = vadd.f32 %v1702, %v1721
        %1723 = vdwg.mxu0
        %1724 = vmatpush.msra.mxu0 %v1169
        %1725 = vmatpush.msra.mxu0 %v1165
        %1726 = vmatpush.msra.mxu0 %v1161
        %1727 = vmatpush.msra.mxu0 %v1157
        %1728 = vmatpush.msra.mxu0 %v1153
        %1729 = vmatpush.msra.mxu0 %v1149
        %1730 = vmatpush.msra.mxu0 %v1145
        %1731 = vmatpush.msra.mxu0 %v1141
        %1732 = vmatpush.msra.mxu0 %v1137
        %1733 = vmatpush.msra.mxu0 %v1133
        %1734 = vmatpush.msra.mxu0 %v1129
        %1735 = vmatpush.msra.mxu0 %v1125
        %1736 = vmatpush.msra.mxu0 %v1121
        %1737 = vmatpush.msra.mxu0 %v1117
        %1738 = vmatpush.msra.mxu0 %v1113
        %1739 = vmatpush.msra.mxu0 %v1109
        %1740 = vmatmul.f32.gmra.mxu0 %v1390
        %v1741 = vpop.f32.mrf.mxu0
        %v1742 = vadd.f32 %v1722, %v1741
        %1743 = vdwg.mxu0
        %1744 = vmatpush.msra.mxu0 %v1233
        %1745 = vmatpush.msra.mxu0 %v1229
        %1746 = vmatpush.msra.mxu0 %v1225
        %1747 = vmatpush.msra.mxu0 %v1221
        %1748 = vmatpush.msra.mxu0 %v1217
        %1749 = vmatpush.msra.mxu0 %v1213
        %1750 = vmatpush.msra.mxu0 %v1209
        %1751 = vmatpush.msra.mxu0 %v1205
        %1752 = vmatpush.msra.mxu0 %v1201
        %1753 = vmatpush.msra.mxu0 %v1197
        %1754 = vmatpush.msra.mxu0 %v1193
        %1755 = vmatpush.msra.mxu0 %v1189
        %1756 = vmatpush.msra.mxu0 %v1185
        %1757 = vmatpush.msra.mxu0 %v1181
        %1758 = vmatpush.msra.mxu0 %v1177
        %1759 = vmatpush.msra.mxu0 %v1173
        %1760 = vmatmul.f32.gmra.mxu0 %v1391
        %v1761 = vpop.f32.mrf.mxu0
        %v1762 = vadd.f32 %v1742, %v1761
        %1763 = vdwg.mxu0
        %1764 = vmatpush.msra.mxu0 %v1297
        %1765 = vmatpush.msra.mxu0 %v1293
        %1766 = vmatpush.msra.mxu0 %v1289
        %1767 = vmatpush.msra.mxu0 %v1285
        %1768 = vmatpush.msra.mxu0 %v1281
        %1769 = vmatpush.msra.mxu0 %v1277
        %1770 = vmatpush.msra.mxu0 %v1273
        %1771 = vmatpush.msra.mxu0 %v1269
        %1772 = vmatpush.msra.mxu0 %v1265
        %1773 = vmatpush.msra.mxu0 %v1261
        %1774 = vmatpush.msra.mxu0 %v1257
        %1775 = vmatpush.msra.mxu0 %v1253
        %1776 = vmatpush.msra.mxu0 %v1249
        %1777 = vmatpush.msra.mxu0 %v1245
        %1778 = vmatpush.msra.mxu0 %v1241
        %1779 = vmatpush.msra.mxu0 %v1237
        %1780 = vmatmul.f32.gmra.mxu0 %v1392
        %v1781 = vpop.f32.mrf.mxu0
        %v1782 = vadd.f32 %v1762, %v1781
        %1783 = vdwg.mxu0
        %1784 = vmatpush.msra.mxu0 %v1361
        %1785 = vmatpush.msra.mxu0 %v1357
        %1786 = vmatpush.msra.mxu0 %v1353
        %1787 = vmatpush.msra.mxu0 %v1349
        %1788 = vmatpush.msra.mxu0 %v1345
        %1789 = vmatpush.msra.mxu0 %v1341
        %1790 = vmatpush.msra.mxu0 %v1337
        %1791 = vmatpush.msra.mxu0 %v1333
        %1792 = vmatpush.msra.mxu0 %v1329
        %1793 = vmatpush.msra.mxu0 %v1325
        %1794 = vmatpush.msra.mxu0 %v1321
        %1795 = vmatpush.msra.mxu0 %v1317
        %1796 = vmatpush.msra.mxu0 %v1313
        %1797 = vmatpush.msra.mxu0 %v1309
        %1798 = vmatpush.msra.mxu0 %v1305
        %1799 = vmatpush.msra.mxu0 %v1301
        %1800 = vmatmul.f32.gmra.mxu0 %v1393
        %v1801 = vpop.f32.mrf.mxu0
        %v1802 = vadd.f32 %v1782, %v1801
        %1803 = vdwg.mxu0
        %1804 = vmatpush.msra.mxu0 0.0
        %1805 = vmatpush.msra.mxu0 0.0
        %1806 = vmatpush.msra.mxu0 0.0
        %1807 = vmatpush.msra.mxu0 0.0
        %1808 = vmatpush.msra.mxu0 0.0
        %1809 = vmatpush.msra.mxu0 0.0
        %1810 = vmatpush.msra.mxu0 0.0
        %1811 = vmatpush.msra.mxu0 0.0
        %1812 = vmatpush.msra.mxu0 0.0
        %1813 = vmatpush.msra.mxu0 0.0
        %1814 = vmatpush.msra.mxu0 0.0
        %1815 = vmatpush.msra.mxu0 0.0
        %1816 = vmatpush.msra.mxu0 0.0
        %1817 = vmatpush.msra.mxu0 0.0
        %1818 = vmatpush.msra.mxu0 %v1369
        %1819 = vmatpush.msra.mxu0 %v1365
        %1820 = vmatmul.f32.gmra.mxu0 %v1402
        %v1821 = vpop.f32.mrf.mxu0
        %v1822 = vadd.f32 %v1802, %v1821
        %1823 = vdwg.mxu0
        %1824 = vmatpush.msra.mxu0 %v1042
        %1825 = vmatpush.msra.mxu0 %v1038
        %1826 = vmatpush.msra.mxu0 %v1034
        %1827 = vmatpush.msra.mxu0 %v1030
        %1828 = vmatpush.msra.mxu0 %v1026
        %1829 = vmatpush.msra.mxu0 %v1022
        %1830 = vmatpush.msra.mxu0 %v1018
        %1831 = vmatpush.msra.mxu0 %v1014
        %1832 = vmatpush.msra.mxu0 %v1010
        %1833 = vmatpush.msra.mxu0 %v1006
        %1834 = vmatpush.msra.mxu0 %v1002
        %1835 = vmatpush.msra.mxu0 %v998
        %1836 = vmatpush.msra.mxu0 %v994
        %1837 = vmatpush.msra.mxu0 %v990
        %1838 = vmatpush.msra.mxu0 %v986
        %1839 = vmatpush.msra.mxu0 %v982
        %1840 = vmatmul.f32.gmra.mxu0 %v1388
        %v1841 = vpop.f32.mrf.mxu0
        %v1842 = vadd.f32 %v1375, %v1841
        %1843 = vdwg.mxu0
        %1844 = vmatpush.msra.mxu0 %v1106
        %1845 = vmatpush.msra.mxu0 %v1102
        %1846 = vmatpush.msra.mxu0 %v1098
        %1847 = vmatpush.msra.mxu0 %v1094
        %1848 = vmatpush.msra.mxu0 %v1090
        %1849 = vmatpush.msra.mxu0 %v1086
        %1850 = vmatpush.msra.mxu0 %v1082
        %1851 = vmatpush.msra.mxu0 %v1078
        %1852 = vmatpush.msra.mxu0 %v1074
        %1853 = vmatpush.msra.mxu0 %v1070
        %1854 = vmatpush.msra.mxu0 %v1066
        %1855 = vmatpush.msra.mxu0 %v1062
        %1856 = vmatpush.msra.mxu0 %v1058
        %1857 = vmatpush.msra.mxu0 %v1054
        %1858 = vmatpush.msra.mxu0 %v1050
        %1859 = vmatpush.msra.mxu0 %v1046
        %1860 = vmatmul.f32.gmra.mxu0 %v1389
        %v1861 = vpop.f32.mrf.mxu0
        %v1862 = vadd.f32 %v1842, %v1861
        %1863 = vdwg.mxu0
        %1864 = vmatpush.msra.mxu0 %v1170
        %1865 = vmatpush.msra.mxu0 %v1166
        %1866 = vmatpush.msra.mxu0 %v1162
        %1867 = vmatpush.msra.mxu0 %v1158
        %1868 = vmatpush.msra.mxu0 %v1154
        %1869 = vmatpush.msra.mxu0 %v1150
        %1870 = vmatpush.msra.mxu0 %v1146
        %1871 = vmatpush.msra.mxu0 %v1142
        %1872 = vmatpush.msra.mxu0 %v1138
        %1873 = vmatpush.msra.mxu0 %v1134
        %1874 = vmatpush.msra.mxu0 %v1130
        %1875 = vmatpush.msra.mxu0 %v1126
        %1876 = vmatpush.msra.mxu0 %v1122
        %1877 = vmatpush.msra.mxu0 %v1118
        %1878 = vmatpush.msra.mxu0 %v1114
        %1879 = vmatpush.msra.mxu0 %v1110
        %1880 = vmatmul.f32.gmra.mxu0 %v1390
        %v1881 = vpop.f32.mrf.mxu0
        %v1882 = vadd.f32 %v1862, %v1881
        %1883 = vdwg.mxu0
        %1884 = vmatpush.msra.mxu0 %v1234
        %1885 = vmatpush.msra.mxu0 %v1230
        %1886 = vmatpush.msra.mxu0 %v1226
        %1887 = vmatpush.msra.mxu0 %v1222
        %1888 = vmatpush.msra.mxu0 %v1218
        %1889 = vmatpush.msra.mxu0 %v1214
        %1890 = vmatpush.msra.mxu0 %v1210
        %1891 = vmatpush.msra.mxu0 %v1206
        %1892 = vmatpush.msra.mxu0 %v1202
        %1893 = vmatpush.msra.mxu0 %v1198
        %1894 = vmatpush.msra.mxu0 %v1194
        %1895 = vmatpush.msra.mxu0 %v1190
        %1896 = vmatpush.msra.mxu0 %v1186
        %1897 = vmatpush.msra.mxu0 %v1182
        %1898 = vmatpush.msra.mxu0 %v1178
        %1899 = vmatpush.msra.mxu0 %v1174
        %1900 = vmatmul.f32.gmra.mxu0 %v1391
        %v1901 = vpop.f32.mrf.mxu0
        %v1902 = vadd.f32 %v1882, %v1901
        %1903 = vdwg.mxu0
        %1904 = vmatpush.msra.mxu0 %v1298
        %1905 = vmatpush.msra.mxu0 %v1294
        %1906 = vmatpush.msra.mxu0 %v1290
        %1907 = vmatpush.msra.mxu0 %v1286
        %1908 = vmatpush.msra.mxu0 %v1282
        %1909 = vmatpush.msra.mxu0 %v1278
        %1910 = vmatpush.msra.mxu0 %v1274
        %1911 = vmatpush.msra.mxu0 %v1270
        %1912 = vmatpush.msra.mxu0 %v1266
        %1913 = vmatpush.msra.mxu0 %v1262
        %1914 = vmatpush.msra.mxu0 %v1258
        %1915 = vmatpush.msra.mxu0 %v1254
        %1916 = vmatpush.msra.mxu0 %v1250
        %1917 = vmatpush.msra.mxu0 %v1246
        %1918 = vmatpush.msra.mxu0 %v1242
        %1919 = vmatpush.msra.mxu0 %v1238
        %1920 = vmatmul.f32.gmra.mxu0 %v1392
        %v1921 = vpop.f32.mrf.mxu0
        %v1922 = vadd.f32 %v1902, %v1921
        %1923 = vdwg.mxu0
        %1924 = vmatpush.msra.mxu0 %v1362
        %1925 = vmatpush.msra.mxu0 %v1358
        %1926 = vmatpush.msra.mxu0 %v1354
        %1927 = vmatpush.msra.mxu0 %v1350
        %1928 = vmatpush.msra.mxu0 %v1346
        %1929 = vmatpush.msra.mxu0 %v1342
        %1930 = vmatpush.msra.mxu0 %v1338
        %1931 = vmatpush.msra.mxu0 %v1334
        %1932 = vmatpush.msra.mxu0 %v1330
        %1933 = vmatpush.msra.mxu0 %v1326
        %1934 = vmatpush.msra.mxu0 %v1322
        %1935 = vmatpush.msra.mxu0 %v1318
        %1936 = vmatpush.msra.mxu0 %v1314
        %1937 = vmatpush.msra.mxu0 %v1310
        %1938 = vmatpush.msra.mxu0 %v1306
        %1939 = vmatpush.msra.mxu0 %v1302
        %1940 = vmatmul.f32.gmra.mxu0 %v1393
        %v1941 = vpop.f32.mrf.mxu0
        %v1942 = vadd.f32 %v1922, %v1941
        %1943 = vdwg.mxu0
        %1944 = vmatpush.msra.mxu0 0.0
        %1945 = vmatpush.msra.mxu0 0.0
        %1946 = vmatpush.msra.mxu0 0.0
        %1947 = vmatpush.msra.mxu0 0.0
        %1948 = vmatpush.msra.mxu0 0.0
        %1949 = vmatpush.msra.mxu0 0.0
        %1950 = vmatpush.msra.mxu0 0.0
        %1951 = vmatpush.msra.mxu0 0.0
        %1952 = vmatpush.msra.mxu0 0.0
        %1953 = vmatpush.msra.mxu0 0.0
        %1954 = vmatpush.msra.mxu0 0.0
        %1955 = vmatpush.msra.mxu0 0.0
        %1956 = vmatpush.msra.mxu0 0.0
        %1957 = vmatpush.msra.mxu0 0.0
        %1958 = vmatpush.msra.mxu0 %v1370
        %1959 = vmatpush.msra.mxu0 %v1366
        %1960 = vmatmul.f32.gmra.mxu0 %v1402
        %v1961 = vpop.f32.mrf.mxu0
        %v1962 = vadd.f32 %v1942, %v1961
        %1963 = vdwg.mxu0
        %v1964 = vtanh.pop %v1542
        %v1965 = vtanh.pop %v1682
        %v1966 = vtanh.pop %v1822
        %v1967 = vtanh.pop %v1962
        %v1972 = vrot.slane %v1965, 4
        %v1973 = vrot.slane %v1967, 4
        %vm1974 = vcmask 1043456
        %v1975 = vsel %vm1974, %v1964, %v1972
        %v1976 = vsel %vm1974, %v1966, %v1973
        %1979 = vst [vmem:[%s973] sm:$0x77] %v1975
        %1980 = vst [vmem:[%s973 + $0x8] sm:$0x77] %v1976
        %s1981 = smul.u32 4, %s14
        %p1982 = scmp.lt.s32.totalorder %s1981, 15
        %s1983 = scalar_select %p1982, %s1981, 15
        %s1984 = smul.addr %s1983, 4
        %s1985 = scalar_lea.vmem %s3, %s1984
        // Predicated region
        $region56: #{_lambda_.37} parent=50 // pred_check
          %p1986 = pneg %p100
        $region57: #{_lambda_.37} parent=50 // pred_check_branch
          %1988 = sbr.rel (%p1986) target = $region59
        $region58: #{_lambda_.37} parent=50 // pred_region
          %s1989 = smul.u32 4, %s14
        $region59: #{_lambda_.37} parent=50 // pred_fallthru
          _
      $region51: #{_lambda_.37} parent=5 // pred_fallthru
        _
      %p1990 = scmp.le.s32.totalorder 2, %s9
      // Predicated region
      $region60: #{_lambda_.37} parent=5 // pred_check
        %p1991 = pneg %p1990
      $region61: #{_lambda_.37} parent=5 // pred_check_branch
        %1993 = sbr.rel (%p1991) target = $region63
      $region62: #{_lambda_.37} parent=5 // pred_region
        %s1994 = ssub.s32 %s9, 2
        // Predicated region
        $region64: #{_lambda_.37} parent=62 // pred_check
          %p1995 = pneg %p106
        $region65: #{_lambda_.37} parent=62 // pred_check_branch
          %1997 = sbr.rel (%p1995) target = $region67
        $region66: #{_lambda_.37} parent=62 // pred_region
          %s1998 = smul.u32 4, %s15
          %p1999 = scmp.lt.s32.totalorder %s1998, 15
          %s2000 = scalar_select %p1999, %s1998, 15
          %s2001 = smul.addr %s2000, 4
          %s2002 = scalar_lea.vmem %s3, %s2001
        $region67: #{_lambda_.37} parent=62 // pred_fallthru
          _
      $region63: #{_lambda_.37} parent=5 // pred_fallthru
        _
    $region6: #{_lambda_.37} parent=1 // loop_footer
      %s13 = sadd.s32 1, %s9
    $region7: #{_lambda_.37} parent=1 // loop_footer_branch
      %8 = sbr.rel target = $region3
    $region8: #{_lambda_.37} parent=1 // loop_exit
      _

</llo_original>
